<compile_context>
chip_gen: v6e
topology: v6e:2x2x1
jax: 0.10.0
libtpu: 0.0.40
codegen_flags: <defaults>
</compile_context>

<pallas_src>
import functools

import jax
import jax.numpy as jnp
from jax import lax
from jax.experimental import pallas as pl
from jax.experimental.pallas import tpu as pltpu


# ----------------------------------------------------------------------------
# Fused kernel.
#
# Ref order (positional):
#   inputs : x2 (T*B, E),
#            [wih_f, whh_f, b_f, wih_b, whh_b, b_b]  for each layer,
#            w_lin (1, 2H), b_lin (1, 1)
#   outputs: out (1, T*B), h_n (2L, B, H), c_n (2L, B, H)
#   scratch: xg_f (T*B, 4H), xg_b (T*B, 4H), y_f (T*B, H), y_b (T*B, H),
#            h (B, H), c (B, H)
#
# NOTE: B here is the batch *padded* to a multiple of 8 sublanes so every
# dynamic row slice (pl.ds(t*B, B)) is tile-aligned. All BlockSpecs are
# "block == full array", which satisfies the (8,128) rule for these shapes.
# TODO(synk): on v7x the independent fwd/bwd recurrences could be split across
#             the two TensorCores via pl.core_map; single-core here.
# ----------------------------------------------------------------------------
def _fused_bilstm_kernel(*refs, T, B, H, L):
    n_in = 1 + 6 * L + 2
    in_refs = refs[:n_in]
    out_ref, hn_ref, cn_ref = refs[n_in:n_in + 3]
    xgf_scr, xgb_scr, yf_scr, yb_scr, h_scr, c_scr = refs[n_in + 3:]

    x_ref = in_refs[0]
    wlin_ref = in_refs[1 + 6 * L]
    blin_ref = in_refs[2 + 6 * L]

    def run_direction(xg_ref, whh_ref, y_ref, reverse):
        # (h, c) carried in VMEM scratch; zero initial state (PyTorch default).
        h_scr[...] = jnp.zeros_like(h_scr)
        c_scr[...] = jnp.zeros_like(c_scr)
        whh = whh_ref[...]                                    # (H, 4H), loaded once

        def step(s, carry):
            t = (T - 1 - s) if reverse else s
            row = pl.multiple_of(t * B, 8)                    # B padded to 8
            # Input projection was hoisted; only h @ W_hh sits on the serial
            # dependency chain of the recurrence.
            gates = xg_ref[pl.ds(row, B), :] + jnp.dot(
                h_scr[...], whh, preferred_element_type=jnp.float32)   # (B, 4H)
            # Full-width transcendentals on the EUP, then static lane slices
            # (gate order i, f, g, o as in PyTorch).
            sig = jax.nn.sigmoid(gates)
            tg = jnp.tanh(gates)
            c_new = sig[:, H:2 * H] * c_scr[...] + sig[:, :H] * tg[:, 2 * H:3 * H]
            h_new = sig[:, 3 * H:] * jnp.tanh(c_new)
            h_scr[...] = h_new
            c_scr[...] = c_new
            y_ref[pl.ds(row, B), :] = h_new
            return carry

        lax.fori_loop(0, T, step, 0, unroll=True)

    for l in range(L):
        base = 1 + 6 * l
        wih_f, whh_f, b_f, wih_b, whh_b, b_b = in_refs[base:base + 6]

        # Hoist the input projection for BOTH directions of this layer before
        # the recurrences overwrite y_f/y_b.
        if l == 0:
            x_in = x_ref[...]                                 # (T*B, E)
            xgf_scr[...] = jnp.dot(x_in, wih_f[...],
                                   preferred_element_type=jnp.float32) + b_f[...]
            xgb_scr[...] = jnp.dot(x_in, wih_b[...],
                                   preferred_element_type=jnp.float32) + b_b[...]
        else:
            # Layer input is concat([y_f, y_b], -1); split the weight matrix
            # instead of materializing the concat.
            yf = yf_scr[...]
            yb = yb_scr[...]
            wf = wih_f[...]                                   # (2H, 4H)
            wb = wih_b[...]
            xgf_scr[...] = (jnp.dot(yf, wf[:H, :], preferred_element_type=jnp.float32)
                            + jnp.dot(yb, wf[H:, :], preferred_element_type=jnp.float32)
                            + b_f[...])
            xgb_scr[...] = (jnp.dot(yf, wb[:H, :], preferred_element_type=jnp.float32)
                            + jnp.dot(yb, wb[H:, :], preferred_element_type=jnp.float32)
                            + b_b[...])

        # Forward direction, then backward (reversal via loop index, no flips).
        run_direction(xgf_scr, whh_f, yf_scr, reverse=False)
        hn_ref[2 * l] = h_scr[...]
        cn_ref[2 * l] = c_scr[...]

        run_direction(xgb_scr, whh_b, yb_scr, reverse=True)
        hn_ref[2 * l + 1] = h_scr[...]
        cn_ref[2 * l + 1] = c_scr[...]

    # Final (2H -> 1) projection as a VPU multiply + lane reduce, emitted
    # lane-dense as (1, T*B). Wrapper reshapes to (B, T, 1).
    wlin = wlin_ref[...]                                      # (1, 2H)
    proj = (jnp.sum(yf_scr[...] * wlin[:, :H], axis=-1)
            + jnp.sum(yb_scr[...] * wlin[:, H:], axis=-1)
            + blin_ref[0, 0])                                 # (T*B,)
    out_ref[...] = proj.reshape(1, T * B)


# ----------------------------------------------------------------------------
# Full model forward (matches the PyTorch Model.forward semantics).
# ----------------------------------------------------------------------------
def model_forward(idxs, params):
    B, T = idxs.shape
    emb = params["embedding"]
    E = emb.shape[1]
    H = params["lstm"][0]["fwd"]["whh_t"].shape[0]
    L = len(params["lstm"])
    BP = ((B + 7) // 8) * 8            # pad batch to a full sublane tile

    # Embedding gather is data-dependent glue; done in plain JAX.
    x = jnp.take(emb, idxs, axis=0)                     # (B, T, E)
    x_tm = jnp.transpose(x, (1, 0, 2))                  # (T, B, E) time-major
    x_tm = jnp.pad(x_tm, ((0, 0), (0, BP - B), (0, 0)))
    x2 = x_tm.reshape(T * BP, E)                        # (T*BP, E)

    inputs = [x2]
    for lp in params["lstm"]:
        inputs += [lp["fwd"]["wih_t"], lp["fwd"]["whh_t"], lp["fwd"]["b"],
                   lp["bwd"]["wih_t"], lp["bwd"]["whh_t"], lp["bwd"]["b"]]
    inputs += [params["linear"]["w"].reshape(1, 2 * H),
               params["linear"]["b"].reshape(1, 1)]

    kernel = functools.partial(_fused_bilstm_kernel, T=T, B=BP, H=H, L=L)
    out_flat, h_n, c_n = pl.pallas_call(
        kernel,
        out_shape=(jax.ShapeDtypeStruct((1, T * BP), jnp.float32),
                   jax.ShapeDtypeStruct((2 * L, BP, H), jnp.float32),
                   jax.ShapeDtypeStruct((2 * L, BP, H), jnp.float32)),
        scratch_shapes=[pltpu.VMEM((T * BP, 4 * H), jnp.float32),   # xg fwd
                        pltpu.VMEM((T * BP, 4 * H), jnp.float32),   # xg bwd
                        pltpu.VMEM((T * BP, H), jnp.float32),       # y fwd
                        pltpu.VMEM((T * BP, H), jnp.float32),       # y bwd
                        pltpu.VMEM((BP, H), jnp.float32),           # h carry
                        pltpu.VMEM((BP, H), jnp.float32)],          # c carry
    )(*inputs)

    out_tb = out_flat.reshape(T, BP)[:, :B]             # (T, B)
    output = jnp.transpose(out_tb)[..., None]           # (B, T, 1)
    return output, (h_n[:, :B, :], c_n[:, :B, :])


# ----------------------------------------------------------------------------
# Deterministic parameter construction (replaces the pickle'd embedding and
# nn.LSTM / nn.Linear initializations). PyTorch gate order (i,f,g,o) and
# b_ih + b_hh bias fusion are preserved.
# ----------------------------------------------------------------------------
def make_params(key, vocab, embed_size, hidden, num_layers):
    keys = jax.random.split(key, 3 + num_layers * 8)
    k = iter(keys)
    params = {"embedding": jax.random.normal(next(k), (vocab, embed_size),
                                             jnp.float32) * 0.1}
    layers = []
    in_size = embed_size
    for _ in range(num_layers):
        layer = {}
        for d in ("fwd", "bwd"):
            wih = jax.random.normal(next(k), (4 * hidden, in_size),
                                    jnp.float32) * 0.1
            whh = jax.random.normal(next(k), (4 * hidden, hidden),
                                    jnp.float32) * 0.1
            b_ih = jax.random.normal(next(k), (4 * hidden,), jnp.float32) * 0.1
            b_hh = jax.random.normal(next(k), (4 * hidden,), jnp.float32) * 0.1
            layer[d] = {
                "wih_t": wih.T,                       # (in_size, 4H)
                "whh_t": whh.T,                       # (H, 4H)
                "b": (b_ih + b_hh).reshape(1, 4 * hidden),
            }
        layers.append(layer)
        in_size = 2 * hidden
    params["lstm"] = layers
    params["linear"] = {
        "w": jax.random.normal(next(k), (2 * hidden, 1), jnp.float32) * 0.1,
        "b": jax.random.normal(next(k), (1, 1), jnp.float32) * 0.1,
    }
    return params


if __name__ == "__main__":
    B, T = 2, 8
    VOCAB, EMBED, HIDDEN, LAYERS = 50, 16, 32, 2

    key = jax.random.PRNGKey(0)
    k_idx, k_par = jax.random.split(key)
    idxs = jax.random.randint(k_idx, (B, T), 0, VOCAB, dtype=jnp.int32)
    params = make_params(k_par, VOCAB, EMBED, HIDDEN, LAYERS)

    fwd = jax.jit(model_forward)
    output, (h_n, c_n) = fwd(idxs, params)
    jax.block_until_ready((output, h_n, c_n))

    assert output.shape == (B, T, 1)
    assert h_n.shape == (LAYERS * 2, B, HIDDEN)
    assert c_n.shape == (LAYERS * 2, B, HIDDEN)
    print("KERNEL_OK")
</pallas_src>

<mosaic_0001>
module attributes {stable_mosaic.version = 11 : i64} {
  func.func @_fused_bilstm_kernel(%arg0: memref<64x16xf32, #tpu.memory_space<vmem>>, %arg1: memref<16x128xf32, #tpu.memory_space<vmem>>, %arg2: memref<32x128xf32, #tpu.memory_space<vmem>>, %arg3: memref<1x128xf32, #tpu.memory_space<vmem>>, %arg4: memref<16x128xf32, #tpu.memory_space<vmem>>, %arg5: memref<32x128xf32, #tpu.memory_space<vmem>>, %arg6: memref<1x128xf32, #tpu.memory_space<vmem>>, %arg7: memref<64x128xf32, #tpu.memory_space<vmem>>, %arg8: memref<32x128xf32, #tpu.memory_space<vmem>>, %arg9: memref<1x128xf32, #tpu.memory_space<vmem>>, %arg10: memref<64x128xf32, #tpu.memory_space<vmem>>, %arg11: memref<32x128xf32, #tpu.memory_space<vmem>>, %arg12: memref<1x128xf32, #tpu.memory_space<vmem>>, %arg13: memref<1x64xf32, #tpu.memory_space<vmem>>, %arg14: memref<1x1xf32, #tpu.memory_space<vmem>>, %arg15: memref<1x64xf32, #tpu.memory_space<vmem>>, %arg16: memref<4x8x32xf32, #tpu.memory_space<vmem>>, %arg17: memref<4x8x32xf32, #tpu.memory_space<vmem>>, %arg18: memref<64x128xf32, #tpu.memory_space<vmem>>, %arg19: memref<64x128xf32, #tpu.memory_space<vmem>>, %arg20: memref<64x32xf32, #tpu.memory_space<vmem>>, %arg21: memref<64x32xf32, #tpu.memory_space<vmem>>, %arg22: memref<8x32xf32, #tpu.memory_space<vmem>>, %arg23: memref<8x32xf32, #tpu.memory_space<vmem>>) attributes {dimension_semantics = [], scalar_prefetch = 0 : i64, scratch_operands = 6 : i64, tpu.core_type = #tpu.core_type<tc>} {
    %c0 = arith.constant 0 : index
    %c0_0 = arith.constant 0 : index
    %0 = vector.load %arg0[%c0, %c0_0] : memref<64x16xf32, #tpu.memory_space<vmem>>, vector<64x16xf32>
    %c0_1 = arith.constant 0 : index
    %c0_2 = arith.constant 0 : index
    %1 = vector.load %arg1[%c0_1, %c0_2] : memref<16x128xf32, #tpu.memory_space<vmem>>, vector<16x128xf32>
    %cst = arith.constant dense<0.000000e+00> : vector<64x128xf32>
    %2 = tpu.matmul %0, %1, %cst {dimension_numbers = #tpu.dot_dimension_numbers<[1], [0], [0], [1], [0, 0, 1, 1], [], []>} : vector<64x16xf32>, vector<16x128xf32>, vector<64x128xf32> -> vector<64x128xf32>
    %c0_3 = arith.constant 0 : index
    %c0_4 = arith.constant 0 : index
    %3 = vector.load %arg3[%c0_3, %c0_4] : memref<1x128xf32, #tpu.memory_space<vmem>>, vector<1x128xf32>
    %4 = vector.broadcast %3 : vector<1x128xf32> to vector<64x128xf32>
    %5 = arith.addf %2, %4 : vector<64x128xf32>
    %c0_5 = arith.constant 0 : index
    %c0_6 = arith.constant 0 : index
    %6 = vector.load %arg18[%c0_5, %c0_6] : memref<64x128xf32, #tpu.memory_space<vmem>>, vector<64x128xf32>
    tpu.vector_store %arg18[%c0_5, %c0_6], %5 {strides = array<i32>} : memref<64x128xf32, #tpu.memory_space<vmem>>, vector<64x128xf32>,
    %c0_7 = arith.constant 0 : index
    %c0_8 = arith.constant 0 : index
    %7 = vector.load %arg4[%c0_7, %c0_8] : memref<16x128xf32, #tpu.memory_space<vmem>>, vector<16x128xf32>
    %cst_9 = arith.constant dense<0.000000e+00> : vector<64x128xf32>
    %8 = tpu.matmul %0, %7, %cst_9 {dimension_numbers = #tpu.dot_dimension_numbers<[1], [0], [0], [1], [0, 0, 1, 1], [], []>} : vector<64x16xf32>, vector<16x128xf32>, vector<64x128xf32> -> vector<64x128xf32>
    %c0_10 = arith.constant 0 : index
    %c0_11 = arith.constant 0 : index
    %9 = vector.load %arg6[%c0_10, %c0_11] : memref<1x128xf32, #tpu.memory_space<vmem>>, vector<1x128xf32>
    %10 = vector.broadcast %9 : vector<1x128xf32> to vector<64x128xf32>
    %11 = arith.addf %8, %10 : vector<64x128xf32>
    %c0_12 = arith.constant 0 : index
    %c0_13 = arith.constant 0 : index
    %12 = vector.load %arg19[%c0_12, %c0_13] : memref<64x128xf32, #tpu.memory_space<vmem>>, vector<64x128xf32>
    tpu.vector_store %arg19[%c0_12, %c0_13], %11 {strides = array<i32>} : memref<64x128xf32, #tpu.memory_space<vmem>>, vector<64x128xf32>,
    %cst_14 = arith.constant 0.000000e+00 : f32
    %13 = vector.broadcast %cst_14 : f32 to vector<8x32xf32>
    %c0_15 = arith.constant 0 : index
    %c0_16 = arith.constant 0 : index
    %14 = vector.load %arg22[%c0_15, %c0_16] : memref<8x32xf32, #tpu.memory_space<vmem>>, vector<8x32xf32>
    tpu.vector_store %arg22[%c0_15, %c0_16], %13 {strides = array<i32>} : memref<8x32xf32, #tpu.memory_space<vmem>>, vector<8x32xf32>,
    %cst_17 = arith.constant 0.000000e+00 : f32
    %15 = vector.broadcast %cst_17 : f32 to vector<8x32xf32>
    %c0_18 = arith.constant 0 : index
    %c0_19 = arith.constant 0 : index
    %16 = vector.load %arg23[%c0_18, %c0_19] : memref<8x32xf32, #tpu.memory_space<vmem>>, vector<8x32xf32>
    tpu.vector_store %arg23[%c0_18, %c0_19], %15 {strides = array<i32>} : memref<8x32xf32, #tpu.memory_space<vmem>>, vector<8x32xf32>,
    %c0_20 = arith.constant 0 : index
    %c0_21 = arith.constant 0 : index
    %17 = vector.load %arg2[%c0_20, %c0_21] : memref<32x128xf32, #tpu.memory_space<vmem>>, vector<32x128xf32>
    %c0_i32 = arith.constant 0 : i32
    %c8_i32 = arith.constant 8 : i32
    %18 = arith.muli %c0_i32, %c8_i32 : i32
    %19 = tpu.assume_multiple %18, 8 : i32
    %20 = arith.index_cast %19 : i32 to index
    %c0_22 = arith.constant 0 : index
    %21 = vector.load %arg18[%20, %c0_22] : memref<64x128xf32, #tpu.memory_space<vmem>>, vector<8x128xf32>
    %c0_23 = arith.constant 0 : index
    %c0_24 = arith.constant 0 : index
    %22 = vector.load %arg22[%c0_23, %c0_24] : memref<8x32xf32, #tpu.memory_space<vmem>>, vector<8x32xf32>
    %cst_25 = arith.constant dense<0.000000e+00> : vector<8x128xf32>
    %23 = tpu.matmul %22, %17, %cst_25 {dimension_numbers = #tpu.dot_dimension_numbers<[1], [0], [0], [1], [0, 0, 1, 1], [], []>} : vector<8x32xf32>, vector<32x128xf32>, vector<8x128xf32> -> vector<8x128xf32>
    %24 = arith.addf %21, %23 : vector<8x128xf32>
    %25 = arith.negf %24 : vector<8x128xf32>
    %26 = math.exp %25 : vector<8x128xf32>
    %cst_26 = arith.constant 1.000000e+00 : f32
    %27 = vector.broadcast %cst_26 : f32 to vector<8x128xf32>
    %28 = arith.addf %27, %26 : vector<8x128xf32>
    %29 = arith.divf %27, %28 : vector<8x128xf32>
    %30 = math.tanh %24 : vector<8x128xf32>
    %31 = vector.extract_strided_slice %29 {offsets = [0, 32], sizes = [8, 32], strides = [1, 1]} : vector<8x128xf32> to vector<8x32xf32>
    %c0_27 = arith.constant 0 : index
    %c0_28 = arith.constant 0 : index
    %32 = vector.load %arg23[%c0_27, %c0_28] : memref<8x32xf32, #tpu.memory_space<vmem>>, vector<8x32xf32>
    %33 = arith.mulf %31, %32 : vector<8x32xf32>
    %34 = vector.extract_strided_slice %29 {offsets = [0, 0], sizes = [8, 32], strides = [1, 1]} : vector<8x128xf32> to vector<8x32xf32>
    %35 = vector.extract_strided_slice %30 {offsets = [0, 64], sizes = [8, 32], strides = [1, 1]} : vector<8x128xf32> to vector<8x32xf32>
    %36 = arith.mulf %34, %35 : vector<8x32xf32>
    %37 = arith.addf %33, %36 : vector<8x32xf32>
    %38 = vector.extract_strided_slice %29 {offsets = [0, 96], sizes = [8, 32], strides = [1, 1]} : vector<8x128xf32> to vector<8x32xf32>
    %39 = math.tanh %37 : vector<8x32xf32>
    %40 = arith.mulf %38, %39 : vector<8x32xf32>
    %c0_29 = arith.constant 0 : index
    %c0_30 = arith.constant 0 : index
    %41 = vector.load %arg22[%c0_29, %c0_30] : memref<8x32xf32, #tpu.memory_space<vmem>>, vector<8x32xf32>
    tpu.vector_store %arg22[%c0_29, %c0_30], %40 {strides = array<i32>} : memref<8x32xf32, #tpu.memory_space<vmem>>, vector<8x32xf32>,
    %c0_31 = arith.constant 0 : index
    %c0_32 = arith.constant 0 : index
    %42 = vector.load %arg23[%c0_31, %c0_32] : memref<8x32xf32, #tpu.memory_space<vmem>>, vector<8x32xf32>
    tpu.vector_store %arg23[%c0_31, %c0_32], %37 {strides = array<i32>} : memref<8x32xf32, #tpu.memory_space<vmem>>, vector<8x32xf32>,
    %43 = arith.index_cast %19 : i32 to index
    %c0_33 = arith.constant 0 : index
    %44 = vector.load %arg20[%43, %c0_33] : memref<64x32xf32, #tpu.memory_space<vmem>>, vector<8x32xf32>
    tpu.vector_store %arg20[%43, %c0_33], %40 {strides = array<i32>} : memref<64x32xf32, #tpu.memory_space<vmem>>, vector<8x32xf32>,
    %c1_i32 = arith.constant 1 : i32
    %c8_i32_34 = arith.constant 8 : i32
    %45 = arith.muli %c1_i32, %c8_i32_34 : i32
    %46 = tpu.assume_multiple %45, 8 : i32
    %47 = arith.index_cast %46 : i32 to index
    %c0_35 = arith.constant 0 : index
    %48 = vector.load %arg18[%47, %c0_35] : memref<64x128xf32, #tpu.memory_space<vmem>>, vector<8x128xf32>
    %c0_36 = arith.constant 0 : index
    %c0_37 = arith.constant 0 : index
    %49 = vector.load %arg22[%c0_36, %c0_37] : memref<8x32xf32, #tpu.memory_space<vmem>>, vector<8x32xf32>
    %cst_38 = arith.constant dense<0.000000e+00> : vector<8x128xf32>
    %50 = tpu.matmul %49, %17, %cst_38 {dimension_numbers = #tpu.dot_dimension_numbers<[1], [0], [0], [1], [0, 0, 1, 1], [], []>} : vector<8x32xf32>, vector<32x128xf32>, vector<8x128xf32> -> vector<8x128xf32>
    %51 = arith.addf %48, %50 : vector<8x128xf32>
    %52 = arith.negf %51 : vector<8x128xf32>
    %53 = math.exp %52 : vector<8x128xf32>
    %cst_39 = arith.constant 1.000000e+00 : f32
    %54 = vector.broadcast %cst_39 : f32 to vector<8x128xf32>
    %55 = arith.addf %54, %53 : vector<8x128xf32>
    %56 = arith.divf %54, %55 : vector<8x128xf32>
    %57 = math.tanh %51 : vector<8x128xf32>
    %58 = vector.extract_strided_slice %56 {offsets = [0, 32], sizes = [8, 32], strides = [1, 1]} : vector<8x128xf32> to vector<8x32xf32>
    %c0_40 = arith.constant 0 : index
    %c0_41 = arith.constant 0 : index
    %59 = vector.load %arg23[%c0_40, %c0_41] : memref<8x32xf32, #tpu.memory_space<vmem>>, vector<8x32xf32>
    %60 = arith.mulf %58, %59 : vector<8x32xf32>
    %61 = vector.extract_strided_slice %56 {offsets = [0, 0], sizes = [8, 32], strides = [1, 1]} : vector<8x128xf32> to vector<8x32xf32>
    %62 = vector.extract_strided_slice %57 {offsets = [0, 64], sizes = [8, 32], strides = [1, 1]} : vector<8x128xf32> to vector<8x32xf32>
    %63 = arith.mulf %61, %62 : vector<8x32xf32>
    %64 = arith.addf %60, %63 : vector<8x32xf32>
    %65 = vector.extract_strided_slice %56 {offsets = [0, 96], sizes = [8, 32], strides = [1, 1]} : vector<8x128xf32> to vector<8x32xf32>
    %66 = math.tanh %64 : vector<8x32xf32>
    %67 = arith.mulf %65, %66 : vector<8x32xf32>
    %c0_42 = arith.constant 0 : index
    %c0_43 = arith.constant 0 : index
    %68 = vector.load %arg22[%c0_42, %c0_43] : memref<8x32xf32, #tpu.memory_space<vmem>>, vector<8x32xf32>
    tpu.vector_store %arg22[%c0_42, %c0_43], %67 {strides = array<i32>} : memref<8x32xf32, #tpu.memory_space<vmem>>, vector<8x32xf32>,
    %c0_44 = arith.constant 0 : index
    %c0_45 = arith.constant 0 : index
    %69 = vector.load %arg23[%c0_44, %c0_45] : memref<8x32xf32, #tpu.memory_space<vmem>>, vector<8x32xf32>
    tpu.vector_store %arg23[%c0_44, %c0_45], %64 {strides = array<i32>} : memref<8x32xf32, #tpu.memory_space<vmem>>, vector<8x32xf32>,
    %70 = arith.index_cast %46 : i32 to index
    %c0_46 = arith.constant 0 : index
    %71 = vector.load %arg20[%70, %c0_46] : memref<64x32xf32, #tpu.memory_space<vmem>>, vector<8x32xf32>
    tpu.vector_store %arg20[%70, %c0_46], %67 {strides = array<i32>} : memref<64x32xf32, #tpu.memory_space<vmem>>, vector<8x32xf32>,
    %c2_i32 = arith.constant 2 : i32
    %c8_i32_47 = arith.constant 8 : i32
    %72 = arith.muli %c2_i32, %c8_i32_47 : i32
    %73 = tpu.assume_multiple %72, 8 : i32
    %74 = arith.index_cast %73 : i32 to index
    %c0_48 = arith.constant 0 : index
    %75 = vector.load %arg18[%74, %c0_48] : memref<64x128xf32, #tpu.memory_space<vmem>>, vector<8x128xf32>
    %c0_49 = arith.constant 0 : index
    %c0_50 = arith.constant 0 : index
    %76 = vector.load %arg22[%c0_49, %c0_50] : memref<8x32xf32, #tpu.memory_space<vmem>>, vector<8x32xf32>
    %cst_51 = arith.constant dense<0.000000e+00> : vector<8x128xf32>
    %77 = tpu.matmul %76, %17, %cst_51 {dimension_numbers = #tpu.dot_dimension_numbers<[1], [0], [0], [1], [0, 0, 1, 1], [], []>} : vector<8x32xf32>, vector<32x128xf32>, vector<8x128xf32> -> vector<8x128xf32>
    %78 = arith.addf %75, %77 : vector<8x128xf32>
    %79 = arith.negf %78 : vector<8x128xf32>
    %80 = math.exp %79 : vector<8x128xf32>
    %cst_52 = arith.constant 1.000000e+00 : f32
    %81 = vector.broadcast %cst_52 : f32 to vector<8x128xf32>
    %82 = arith.addf %81, %80 : vector<8x128xf32>
    %83 = arith.divf %81, %82 : vector<8x128xf32>
    %84 = math.tanh %78 : vector<8x128xf32>
    %85 = vector.extract_strided_slice %83 {offsets = [0, 32], sizes = [8, 32], strides = [1, 1]} : vector<8x128xf32> to vector<8x32xf32>
    %c0_53 = arith.constant 0 : index
    %c0_54 = arith.constant 0 : index
    %86 = vector.load %arg23[%c0_53, %c0_54] : memref<8x32xf32, #tpu.memory_space<vmem>>, vector<8x32xf32>
    %87 = arith.mulf %85, %86 : vector<8x32xf32>
    %88 = vector.extract_strided_slice %83 {offsets = [0, 0], sizes = [8, 32], strides = [1, 1]} : vector<8x128xf32> to vector<8x32xf32>
    %89 = vector.extract_strided_slice %84 {offsets = [0, 64], sizes = [8, 32], strides = [1, 1]} : vector<8x128xf32> to vector<8x32xf32>
    %90 = arith.mulf %88, %89 : vector<8x32xf32>
    %91 = arith.addf %87, %90 : vector<8x32xf32>
    %92 = vector.extract_strided_slice %83 {offsets = [0, 96], sizes = [8, 32], strides = [1, 1]} : vector<8x128xf32> to vector<8x32xf32>
    %93 = math.tanh %91 : vector<8x32xf32>
    %94 = arith.mulf %92, %93 : vector<8x32xf32>
    %c0_55 = arith.constant 0 : index
    %c0_56 = arith.constant 0 : index
    %95 = vector.load %arg22[%c0_55, %c0_56] : memref<8x32xf32, #tpu.memory_space<vmem>>, vector<8x32xf32>
    tpu.vector_store %arg22[%c0_55, %c0_56], %94 {strides = array<i32>} : memref<8x32xf32, #tpu.memory_space<vmem>>, vector<8x32xf32>,
    %c0_57 = arith.constant 0 : index
    %c0_58 = arith.constant 0 : index
    %96 = vector.load %arg23[%c0_57, %c0_58] : memref<8x32xf32, #tpu.memory_space<vmem>>, vector<8x32xf32>
    tpu.vector_store %arg23[%c0_57, %c0_58], %91 {strides = array<i32>} : memref<8x32xf32, #tpu.memory_space<vmem>>, vector<8x32xf32>,
    %97 = arith.index_cast %73 : i32 to index
    %c0_59 = arith.constant 0 : index
    %98 = vector.load %arg20[%97, %c0_59] : memref<64x32xf32, #tpu.memory_space<vmem>>, vector<8x32xf32>
    tpu.vector_store %arg20[%97, %c0_59], %94 {strides = array<i32>} : memref<64x32xf32, #tpu.memory_space<vmem>>, vector<8x32xf32>,
    %c3_i32 = arith.constant 3 : i32
    %c8_i32_60 = arith.constant 8 : i32
    %99 = arith.muli %c3_i32, %c8_i32_60 : i32
    %100 = tpu.assume_multiple %99, 8 : i32
    %101 = arith.index_cast %100 : i32 to index
    %c0_61 = arith.constant 0 : index
    %102 = vector.load %arg18[%101, %c0_61] : memref<64x128xf32, #tpu.memory_space<vmem>>, vector<8x128xf32>
    %c0_62 = arith.constant 0 : index
    %c0_63 = arith.constant 0 : index
    %103 = vector.load %arg22[%c0_62, %c0_63] : memref<8x32xf32, #tpu.memory_space<vmem>>, vector<8x32xf32>
    %cst_64 = arith.constant dense<0.000000e+00> : vector<8x128xf32>
    %104 = tpu.matmul %103, %17, %cst_64 {dimension_numbers = #tpu.dot_dimension_numbers<[1], [0], [0], [1], [0, 0, 1, 1], [], []>} : vector<8x32xf32>, vector<32x128xf32>, vector<8x128xf32> -> vector<8x128xf32>
    %105 = arith.addf %102, %104 : vector<8x128xf32>
    %106 = arith.negf %105 : vector<8x128xf32>
    %107 = math.exp %106 : vector<8x128xf32>
    %cst_65 = arith.constant 1.000000e+00 : f32
    %108 = vector.broadcast %cst_65 : f32 to vector<8x128xf32>
    %109 = arith.addf %108, %107 : vector<8x128xf32>
    %110 = arith.divf %108, %109 : vector<8x128xf32>
    %111 = math.tanh %105 : vector<8x128xf32>
    %112 = vector.extract_strided_slice %110 {offsets = [0, 32], sizes = [8, 32], strides = [1, 1]} : vector<8x128xf32> to vector<8x32xf32>
    %c0_66 = arith.constant 0 : index
    %c0_67 = arith.constant 0 : index
    %113 = vector.load %arg23[%c0_66, %c0_67] : memref<8x32xf32, #tpu.memory_space<vmem>>, vector<8x32xf32>
    %114 = arith.mulf %112, %113 : vector<8x32xf32>
    %115 = vector.extract_strided_slice %110 {offsets = [0, 0], sizes = [8, 32], strides = [1, 1]} : vector<8x128xf32> to vector<8x32xf32>
    %116 = vector.extract_strided_slice %111 {offsets = [0, 64], sizes = [8, 32], strides = [1, 1]} : vector<8x128xf32> to vector<8x32xf32>
    %117 = arith.mulf %115, %116 : vector<8x32xf32>
    %118 = arith.addf %114, %117 : vector<8x32xf32>
    %119 = vector.extract_strided_slice %110 {offsets = [0, 96], sizes = [8, 32], strides = [1, 1]} : vector<8x128xf32> to vector<8x32xf32>
    %120 = math.tanh %118 : vector<8x32xf32>
    %121 = arith.mulf %119, %120 : vector<8x32xf32>
    %c0_68 = arith.constant 0 : index
    %c0_69 = arith.constant 0 : index
    %122 = vector.load %arg22[%c0_68, %c0_69] : memref<8x32xf32, #tpu.memory_space<vmem>>, vector<8x32xf32>
    tpu.vector_store %arg22[%c0_68, %c0_69], %121 {strides = array<i32>} : memref<8x32xf32, #tpu.memory_space<vmem>>, vector<8x32xf32>,
    %c0_70 = arith.constant 0 : index
    %c0_71 = arith.constant 0 : index
    %123 = vector.load %arg23[%c0_70, %c0_71] : memref<8x32xf32, #tpu.memory_space<vmem>>, vector<8x32xf32>
    tpu.vector_store %arg23[%c0_70, %c0_71], %118 {strides = array<i32>} : memref<8x32xf32, #tpu.memory_space<vmem>>, vector<8x32xf32>,
    %124 = arith.index_cast %100 : i32 to index
    %c0_72 = arith.constant 0 : index
    %125 = vector.load %arg20[%124, %c0_72] : memref<64x32xf32, #tpu.memory_space<vmem>>, vector<8x32xf32>
    tpu.vector_store %arg20[%124, %c0_72], %121 {strides = array<i32>} : memref<64x32xf32, #tpu.memory_space<vmem>>, vector<8x32xf32>,
    %c4_i32 = arith.constant 4 : i32
    %c8_i32_73 = arith.constant 8 : i32
    %126 = arith.muli %c4_i32, %c8_i32_73 : i32
    %127 = tpu.assume_multiple %126, 8 : i32
    %128 = arith.index_cast %127 : i32 to index
    %c0_74 = arith.constant 0 : index
    %129 = vector.load %arg18[%128, %c0_74] : memref<64x128xf32, #tpu.memory_space<vmem>>, vector<8x128xf32>
    %c0_75 = arith.constant 0 : index
    %c0_76 = arith.constant 0 : index
    %130 = vector.load %arg22[%c0_75, %c0_76] : memref<8x32xf32, #tpu.memory_space<vmem>>, vector<8x32xf32>
    %cst_77 = arith.constant dense<0.000000e+00> : vector<8x128xf32>
    %131 = tpu.matmul %130, %17, %cst_77 {dimension_numbers = #tpu.dot_dimension_numbers<[1], [0], [0], [1], [0, 0, 1, 1], [], []>} : vector<8x32xf32>, vector<32x128xf32>, vector<8x128xf32> -> vector<8x128xf32>
    %132 = arith.addf %129, %131 : vector<8x128xf32>
    %133 = arith.negf %132 : vector<8x128xf32>
    %134 = math.exp %133 : vector<8x128xf32>
    %cst_78 = arith.constant 1.000000e+00 : f32
    %135 = vector.broadcast %cst_78 : f32 to vector<8x128xf32>
    %136 = arith.addf %135, %134 : vector<8x128xf32>
    %137 = arith.divf %135, %136 : vector<8x128xf32>
    %138 = math.tanh %132 : vector<8x128xf32>
    %139 = vector.extract_strided_slice %137 {offsets = [0, 32], sizes = [8, 32], strides = [1, 1]} : vector<8x128xf32> to vector<8x32xf32>
    %c0_79 = arith.constant 0 : index
    %c0_80 = arith.constant 0 : index
    %140 = vector.load %arg23[%c0_79, %c0_80] : memref<8x32xf32, #tpu.memory_space<vmem>>, vector<8x32xf32>
    %141 = arith.mulf %139, %140 : vector<8x32xf32>
    %142 = vector.extract_strided_slice %137 {offsets = [0, 0], sizes = [8, 32], strides = [1, 1]} : vector<8x128xf32> to vector<8x32xf32>
    %143 = vector.extract_strided_slice %138 {offsets = [0, 64], sizes = [8, 32], strides = [1, 1]} : vector<8x128xf32> to vector<8x32xf32>
    %144 = arith.mulf %142, %143 : vector<8x32xf32>
    %145 = arith.addf %141, %144 : vector<8x32xf32>
    %146 = vector.extract_strided_slice %137 {offsets = [0, 96], sizes = [8, 32], strides = [1, 1]} : vector<8x128xf32> to vector<8x32xf32>
    %147 = math.tanh %145 : vector<8x32xf32>
    %148 = arith.mulf %146, %147 : vector<8x32xf32>
    %c0_81 = arith.constant 0 : index
    %c0_82 = arith.constant 0 : index
    %149 = vector.load %arg22[%c0_81, %c0_82] : memref<8x32xf32, #tpu.memory_space<vmem>>, vector<8x32xf32>
    tpu.vector_store %arg22[%c0_81, %c0_82], %148 {strides = array<i32>} : memref<8x32xf32, #tpu.memory_space<vmem>>, vector<8x32xf32>,
    %c0_83 = arith.constant 0 : index
    %c0_84 = arith.constant 0 : index
    %150 = vector.load %arg23[%c0_83, %c0_84] : memref<8x32xf32, #tpu.memory_space<vmem>>, vector<8x32xf32>
    tpu.vector_store %arg23[%c0_83, %c0_84], %145 {strides = array<i32>} : memref<8x32xf32, #tpu.memory_space<vmem>>, vector<8x32xf32>,
    %151 = arith.index_cast %127 : i32 to index
    %c0_85 = arith.constant 0 : index
    %152 = vector.load %arg20[%151, %c0_85] : memref<64x32xf32, #tpu.memory_space<vmem>>, vector<8x32xf32>
    tpu.vector_store %arg20[%151, %c0_85], %148 {strides = array<i32>} : memref<64x32xf32, #tpu.memory_space<vmem>>, vector<8x32xf32>,
    %c5_i32 = arith.constant 5 : i32
    %c8_i32_86 = arith.constant 8 : i32
    %153 = arith.muli %c5_i32, %c8_i32_86 : i32
    %154 = tpu.assume_multiple %153, 8 : i32
    %155 = arith.index_cast %154 : i32 to index
    %c0_87 = arith.constant 0 : index
    %156 = vector.load %arg18[%155, %c0_87] : memref<64x128xf32, #tpu.memory_space<vmem>>, vector<8x128xf32>
    %c0_88 = arith.constant 0 : index
    %c0_89 = arith.constant 0 : index
    %157 = vector.load %arg22[%c0_88, %c0_89] : memref<8x32xf32, #tpu.memory_space<vmem>>, vector<8x32xf32>
    %cst_90 = arith.constant dense<0.000000e+00> : vector<8x128xf32>
    %158 = tpu.matmul %157, %17, %cst_90 {dimension_numbers = #tpu.dot_dimension_numbers<[1], [0], [0], [1], [0, 0, 1, 1], [], []>} : vector<8x32xf32>, vector<32x128xf32>, vector<8x128xf32> -> vector<8x128xf32>
    %159 = arith.addf %156, %158 : vector<8x128xf32>
    %160 = arith.negf %159 : vector<8x128xf32>
    %161 = math.exp %160 : vector<8x128xf32>
    %cst_91 = arith.constant 1.000000e+00 : f32
    %162 = vector.broadcast %cst_91 : f32 to vector<8x128xf32>
    %163 = arith.addf %162, %161 : vector<8x128xf32>
    %164 = arith.divf %162, %163 : vector<8x128xf32>
    %165 = math.tanh %159 : vector<8x128xf32>
    %166 = vector.extract_strided_slice %164 {offsets = [0, 32], sizes = [8, 32], strides = [1, 1]} : vector<8x128xf32> to vector<8x32xf32>
    %c0_92 = arith.constant 0 : index
    %c0_93 = arith.constant 0 : index
    %167 = vector.load %arg23[%c0_92, %c0_93] : memref<8x32xf32, #tpu.memory_space<vmem>>, vector<8x32xf32>
    %168 = arith.mulf %166, %167 : vector<8x32xf32>
    %169 = vector.extract_strided_slice %164 {offsets = [0, 0], sizes = [8, 32], strides = [1, 1]} : vector<8x128xf32> to vector<8x32xf32>
    %170 = vector.extract_strided_slice %165 {offsets = [0, 64], sizes = [8, 32], strides = [1, 1]} : vector<8x128xf32> to vector<8x32xf32>
    %171 = arith.mulf %169, %170 : vector<8x32xf32>
    %172 = arith.addf %168, %171 : vector<8x32xf32>
    %173 = vector.extract_strided_slice %164 {offsets = [0, 96], sizes = [8, 32], strides = [1, 1]} : vector<8x128xf32> to vector<8x32xf32>
    %174 = math.tanh %172 : vector<8x32xf32>
    %175 = arith.mulf %173, %174 : vector<8x32xf32>
    %c0_94 = arith.constant 0 : index
    %c0_95 = arith.constant 0 : index
    %176 = vector.load %arg22[%c0_94, %c0_95] : memref<8x32xf32, #tpu.memory_space<vmem>>, vector<8x32xf32>
    tpu.vector_store %arg22[%c0_94, %c0_95], %175 {strides = array<i32>} : memref<8x32xf32, #tpu.memory_space<vmem>>, vector<8x32xf32>,
    %c0_96 = arith.constant 0 : index
    %c0_97 = arith.constant 0 : index
    %177 = vector.load %arg23[%c0_96, %c0_97] : memref<8x32xf32, #tpu.memory_space<vmem>>, vector<8x32xf32>
    tpu.vector_store %arg23[%c0_96, %c0_97], %172 {strides = array<i32>} : memref<8x32xf32, #tpu.memory_space<vmem>>, vector<8x32xf32>,
    %178 = arith.index_cast %154 : i32 to index
    %c0_98 = arith.constant 0 : index
    %179 = vector.load %arg20[%178, %c0_98] : memref<64x32xf32, #tpu.memory_space<vmem>>, vector<8x32xf32>
    tpu.vector_store %arg20[%178, %c0_98], %175 {strides = array<i32>} : memref<64x32xf32, #tpu.memory_space<vmem>>, vector<8x32xf32>,
    %c6_i32 = arith.constant 6 : i32
    %c8_i32_99 = arith.constant 8 : i32
    %180 = arith.muli %c6_i32, %c8_i32_99 : i32
    %181 = tpu.assume_multiple %180, 8 : i32
    %182 = arith.index_cast %181 : i32 to index
    %c0_100 = arith.constant 0 : index
    %183 = vector.load %arg18[%182, %c0_100] : memref<64x128xf32, #tpu.memory_space<vmem>>, vector<8x128xf32>
    %c0_101 = arith.constant 0 : index
    %c0_102 = arith.constant 0 : index
    %184 = vector.load %arg22[%c0_101, %c0_102] : memref<8x32xf32, #tpu.memory_space<vmem>>, vector<8x32xf32>
    %cst_103 = arith.constant dense<0.000000e+00> : vector<8x128xf32>
    %185 = tpu.matmul %184, %17, %cst_103 {dimension_numbers = #tpu.dot_dimension_numbers<[1], [0], [0], [1], [0, 0, 1, 1], [], []>} : vector<8x32xf32>, vector<32x128xf32>, vector<8x128xf32> -> vector<8x128xf32>
    %186 = arith.addf %183, %185 : vector<8x128xf32>
    %187 = arith.negf %186 : vector<8x128xf32>
    %188 = math.exp %187 : vector<8x128xf32>
    %cst_104 = arith.constant 1.000000e+00 : f32
    %189 = vector.broadcast %cst_104 : f32 to vector<8x128xf32>
    %190 = arith.addf %189, %188 : vector<8x128xf32>
    %191 = arith.divf %189, %190 : vector<8x128xf32>
    %192 = math.tanh %186 : vector<8x128xf32>
    %193 = vector.extract_strided_slice %191 {offsets = [0, 32], sizes = [8, 32], strides = [1, 1]} : vector<8x128xf32> to vector<8x32xf32>
    %c0_105 = arith.constant 0 : index
    %c0_106 = arith.constant 0 : index
    %194 = vector.load %arg23[%c0_105, %c0_106] : memref<8x32xf32, #tpu.memory_space<vmem>>, vector<8x32xf32>
    %195 = arith.mulf %193, %194 : vector<8x32xf32>
    %196 = vector.extract_strided_slice %191 {offsets = [0, 0], sizes = [8, 32], strides = [1, 1]} : vector<8x128xf32> to vector<8x32xf32>
    %197 = vector.extract_strided_slice %192 {offsets = [0, 64], sizes = [8, 32], strides = [1, 1]} : vector<8x128xf32> to vector<8x32xf32>
    %198 = arith.mulf %196, %197 : vector<8x32xf32>
    %199 = arith.addf %195, %198 : vector<8x32xf32>
    %200 = vector.extract_strided_slice %191 {offsets = [0, 96], sizes = [8, 32], strides = [1, 1]} : vector<8x128xf32> to vector<8x32xf32>
    %201 = math.tanh %199 : vector<8x32xf32>
    %202 = arith.mulf %200, %201 : vector<8x32xf32>
    %c0_107 = arith.constant 0 : index
    %c0_108 = arith.constant 0 : index
    %203 = vector.load %arg22[%c0_107, %c0_108] : memref<8x32xf32, #tpu.memory_space<vmem>>, vector<8x32xf32>
    tpu.vector_store %arg22[%c0_107, %c0_108], %202 {strides = array<i32>} : memref<8x32xf32, #tpu.memory_space<vmem>>, vector<8x32xf32>,
    %c0_109 = arith.constant 0 : index
    %c0_110 = arith.constant 0 : index
    %204 = vector.load %arg23[%c0_109, %c0_110] : memref<8x32xf32, #tpu.memory_space<vmem>>, vector<8x32xf32>
    tpu.vector_store %arg23[%c0_109, %c0_110], %199 {strides = array<i32>} : memref<8x32xf32, #tpu.memory_space<vmem>>, vector<8x32xf32>,
    %205 = arith.index_cast %181 : i32 to index
    %c0_111 = arith.constant 0 : index
    %206 = vector.load %arg20[%205, %c0_111] : memref<64x32xf32, #tpu.memory_space<vmem>>, vector<8x32xf32>
    tpu.vector_store %arg20[%205, %c0_111], %202 {strides = array<i32>} : memref<64x32xf32, #tpu.memory_space<vmem>>, vector<8x32xf32>,
    %c7_i32 = arith.constant 7 : i32
    %c8_i32_112 = arith.constant 8 : i32
    %207 = arith.muli %c7_i32, %c8_i32_112 : i32
    %208 = tpu.assume_multiple %207, 8 : i32
    %209 = arith.index_cast %208 : i32 to index
    %c0_113 = arith.constant 0 : index
    %210 = vector.load %arg18[%209, %c0_113] : memref<64x128xf32, #tpu.memory_space<vmem>>, vector<8x128xf32>
    %c0_114 = arith.constant 0 : index
    %c0_115 = arith.constant 0 : index
    %211 = vector.load %arg22[%c0_114, %c0_115] : memref<8x32xf32, #tpu.memory_space<vmem>>, vector<8x32xf32>
    %cst_116 = arith.constant dense<0.000000e+00> : vector<8x128xf32>
    %212 = tpu.matmul %211, %17, %cst_116 {dimension_numbers = #tpu.dot_dimension_numbers<[1], [0], [0], [1], [0, 0, 1, 1], [], []>} : vector<8x32xf32>, vector<32x128xf32>, vector<8x128xf32> -> vector<8x128xf32>
    %213 = arith.addf %210, %212 : vector<8x128xf32>
    %214 = arith.negf %213 : vector<8x128xf32>
    %215 = math.exp %214 : vector<8x128xf32>
    %cst_117 = arith.constant 1.000000e+00 : f32
    %216 = vector.broadcast %cst_117 : f32 to vector<8x128xf32>
    %217 = arith.addf %216, %215 : vector<8x128xf32>
    %218 = arith.divf %216, %217 : vector<8x128xf32>
    %219 = math.tanh %213 : vector<8x128xf32>
    %220 = vector.extract_strided_slice %218 {offsets = [0, 32], sizes = [8, 32], strides = [1, 1]} : vector<8x128xf32> to vector<8x32xf32>
    %c0_118 = arith.constant 0 : index
    %c0_119 = arith.constant 0 : index
    %221 = vector.load %arg23[%c0_118, %c0_119] : memref<8x32xf32, #tpu.memory_space<vmem>>, vector<8x32xf32>
    %222 = arith.mulf %220, %221 : vector<8x32xf32>
    %223 = vector.extract_strided_slice %218 {offsets = [0, 0], sizes = [8, 32], strides = [1, 1]} : vector<8x128xf32> to vector<8x32xf32>
    %224 = vector.extract_strided_slice %219 {offsets = [0, 64], sizes = [8, 32], strides = [1, 1]} : vector<8x128xf32> to vector<8x32xf32>
    %225 = arith.mulf %223, %224 : vector<8x32xf32>
    %226 = arith.addf %222, %225 : vector<8x32xf32>
    %227 = vector.extract_strided_slice %218 {offsets = [0, 96], sizes = [8, 32], strides = [1, 1]} : vector<8x128xf32> to vector<8x32xf32>
    %228 = math.tanh %226 : vector<8x32xf32>
    %229 = arith.mulf %227, %228 : vector<8x32xf32>
    %c0_120 = arith.constant 0 : index
    %c0_121 = arith.constant 0 : index
    %230 = vector.load %arg22[%c0_120, %c0_121] : memref<8x32xf32, #tpu.memory_space<vmem>>, vector<8x32xf32>
    tpu.vector_store %arg22[%c0_120, %c0_121], %229 {strides = array<i32>} : memref<8x32xf32, #tpu.memory_space<vmem>>, vector<8x32xf32>,
    %c0_122 = arith.constant 0 : index
    %c0_123 = arith.constant 0 : index
    %231 = vector.load %arg23[%c0_122, %c0_123] : memref<8x32xf32, #tpu.memory_space<vmem>>, vector<8x32xf32>
    tpu.vector_store %arg23[%c0_122, %c0_123], %226 {strides = array<i32>} : memref<8x32xf32, #tpu.memory_space<vmem>>, vector<8x32xf32>,
    %232 = arith.index_cast %208 : i32 to index
    %c0_124 = arith.constant 0 : index
    %233 = vector.load %arg20[%232, %c0_124] : memref<64x32xf32, #tpu.memory_space<vmem>>, vector<8x32xf32>
    tpu.vector_store %arg20[%232, %c0_124], %229 {strides = array<i32>} : memref<64x32xf32, #tpu.memory_space<vmem>>, vector<8x32xf32>,
    %c8_i32_125 = arith.constant 8 : i32
    %c0_126 = arith.constant 0 : index
    %c0_127 = arith.constant 0 : index
    %234 = vector.load %arg22[%c0_126, %c0_127] : memref<8x32xf32, #tpu.memory_space<vmem>>, vector<8x32xf32>
    %c0_128 = arith.constant 0 : index
    %c0_129 = arith.constant 0 : index
    %c0_130 = arith.constant 0 : index
    %235 = vector.load %arg16[%c0_128, %c0_129, %c0_130] : memref<4x8x32xf32, #tpu.memory_space<vmem>>, vector<1x8x32xf32>
    %236 = vector.shape_cast %235 : vector<1x8x32xf32> to vector<8x32xf32>
    %237 = vector.shape_cast %234 : vector<8x32xf32> to vector<1x8x32xf32>
    tpu.vector_store %arg16[%c0_128, %c0_129, %c0_130], %237 {strides = array<i32>} : memref<4x8x32xf32, #tpu.memory_space<vmem>>, vector<1x8x32xf32>,
    %c0_131 = arith.constant 0 : index
    %c0_132 = arith.constant 0 : index
    %238 = vector.load %arg23[%c0_131, %c0_132] : memref<8x32xf32, #tpu.memory_space<vmem>>, vector<8x32xf32>
    %c0_133 = arith.constant 0 : index
    %c0_134 = arith.constant 0 : index
    %c0_135 = arith.constant 0 : index
    %239 = vector.load %arg17[%c0_133, %c0_134, %c0_135] : memref<4x8x32xf32, #tpu.memory_space<vmem>>, vector<1x8x32xf32>
    %240 = vector.shape_cast %239 : vector<1x8x32xf32> to vector<8x32xf32>
    %241 = vector.shape_cast %238 : vector<8x32xf32> to vector<1x8x32xf32>
    tpu.vector_store %arg17[%c0_133, %c0_134, %c0_135], %241 {strides = array<i32>} : memref<4x8x32xf32, #tpu.memory_space<vmem>>, vector<1x8x32xf32>,
    %cst_136 = arith.constant 0.000000e+00 : f32
    %242 = vector.broadcast %cst_136 : f32 to vector<8x32xf32>
    %c0_137 = arith.constant 0 : index
    %c0_138 = arith.constant 0 : index
    %243 = vector.load %arg22[%c0_137, %c0_138] : memref<8x32xf32, #tpu.memory_space<vmem>>, vector<8x32xf32>
    tpu.vector_store %arg22[%c0_137, %c0_138], %242 {strides = array<i32>} : memref<8x32xf32, #tpu.memory_space<vmem>>, vector<8x32xf32>,
    %cst_139 = arith.constant 0.000000e+00 : f32
    %244 = vector.broadcast %cst_139 : f32 to vector<8x32xf32>
    %c0_140 = arith.constant 0 : index
    %c0_141 = arith.constant 0 : index
    %245 = vector.load %arg23[%c0_140, %c0_141] : memref<8x32xf32, #tpu.memory_space<vmem>>, vector<8x32xf32>
    tpu.vector_store %arg23[%c0_140, %c0_141], %244 {strides = array<i32>} : memref<8x32xf32, #tpu.memory_space<vmem>>, vector<8x32xf32>,
    %c0_142 = arith.constant 0 : index
    %c0_143 = arith.constant 0 : index
    %246 = vector.load %arg5[%c0_142, %c0_143] : memref<32x128xf32, #tpu.memory_space<vmem>>, vector<32x128xf32>
    %c0_i32_144 = arith.constant 0 : i32
    %c7_i32_145 = arith.constant 7 : i32
    %247 = arith.subi %c7_i32_145, %c0_i32_144 : i32
    %c8_i32_146 = arith.constant 8 : i32
    %248 = arith.muli %247, %c8_i32_146 : i32
    %249 = tpu.assume_multiple %248, 8 : i32
    %250 = arith.index_cast %249 : i32 to index
    %c0_147 = arith.constant 0 : index
    %251 = vector.load %arg19[%250, %c0_147] : memref<64x128xf32, #tpu.memory_space<vmem>>, vector<8x128xf32>
    %c0_148 = arith.constant 0 : index
    %c0_149 = arith.constant 0 : index
    %252 = vector.load %arg22[%c0_148, %c0_149] : memref<8x32xf32, #tpu.memory_space<vmem>>, vector<8x32xf32>
    %cst_150 = arith.constant dense<0.000000e+00> : vector<8x128xf32>
    %253 = tpu.matmul %252, %246, %cst_150 {dimension_numbers = #tpu.dot_dimension_numbers<[1], [0], [0], [1], [0, 0, 1, 1], [], []>} : vector<8x32xf32>, vector<32x128xf32>, vector<8x128xf32> -> vector<8x128xf32>
    %254 = arith.addf %251, %253 : vector<8x128xf32>
    %255 = arith.negf %254 : vector<8x128xf32>
    %256 = math.exp %255 : vector<8x128xf32>
    %cst_151 = arith.constant 1.000000e+00 : f32
    %257 = vector.broadcast %cst_151 : f32 to vector<8x128xf32>
    %258 = arith.addf %257, %256 : vector<8x128xf32>
    %259 = arith.divf %257, %258 : vector<8x128xf32>
    %260 = math.tanh %254 : vector<8x128xf32>
    %261 = vector.extract_strided_slice %259 {offsets = [0, 32], sizes = [8, 32], strides = [1, 1]} : vector<8x128xf32> to vector<8x32xf32>
    %c0_152 = arith.constant 0 : index
    %c0_153 = arith.constant 0 : index
    %262 = vector.load %arg23[%c0_152, %c0_153] : memref<8x32xf32, #tpu.memory_space<vmem>>, vector<8x32xf32>
    %263 = arith.mulf %261, %262 : vector<8x32xf32>
    %264 = vector.extract_strided_slice %259 {offsets = [0, 0], sizes = [8, 32], strides = [1, 1]} : vector<8x128xf32> to vector<8x32xf32>
    %265 = vector.extract_strided_slice %260 {offsets = [0, 64], sizes = [8, 32], strides = [1, 1]} : vector<8x128xf32> to vector<8x32xf32>
    %266 = arith.mulf %264, %265 : vector<8x32xf32>
    %267 = arith.addf %263, %266 : vector<8x32xf32>
    %268 = vector.extract_strided_slice %259 {offsets = [0, 96], sizes = [8, 32], strides = [1, 1]} : vector<8x128xf32> to vector<8x32xf32>
    %269 = math.tanh %267 : vector<8x32xf32>
    %270 = arith.mulf %268, %269 : vector<8x32xf32>
    %c0_154 = arith.constant 0 : index
    %c0_155 = arith.constant 0 : index
    %271 = vector.load %arg22[%c0_154, %c0_155] : memref<8x32xf32, #tpu.memory_space<vmem>>, vector<8x32xf32>
    tpu.vector_store %arg22[%c0_154, %c0_155], %270 {strides = array<i32>} : memref<8x32xf32, #tpu.memory_space<vmem>>, vector<8x32xf32>,
    %c0_156 = arith.constant 0 : index
    %c0_157 = arith.constant 0 : index
    %272 = vector.load %arg23[%c0_156, %c0_157] : memref<8x32xf32, #tpu.memory_space<vmem>>, vector<8x32xf32>
    tpu.vector_store %arg23[%c0_156, %c0_157], %267 {strides = array<i32>} : memref<8x32xf32, #tpu.memory_space<vmem>>, vector<8x32xf32>,
    %273 = arith.index_cast %249 : i32 to index
    %c0_158 = arith.constant 0 : index
    %274 = vector.load %arg21[%273, %c0_158] : memref<64x32xf32, #tpu.memory_space<vmem>>, vector<8x32xf32>
    tpu.vector_store %arg21[%273, %c0_158], %270 {strides = array<i32>} : memref<64x32xf32, #tpu.memory_space<vmem>>, vector<8x32xf32>,
    %c1_i32_159 = arith.constant 1 : i32
    %c7_i32_160 = arith.constant 7 : i32
    %275 = arith.subi %c7_i32_160, %c1_i32_159 : i32
    %c8_i32_161 = arith.constant 8 : i32
    %276 = arith.muli %275, %c8_i32_161 : i32
    %277 = tpu.assume_multiple %276, 8 : i32
    %278 = arith.index_cast %277 : i32 to index
    %c0_162 = arith.constant 0 : index
    %279 = vector.load %arg19[%278, %c0_162] : memref<64x128xf32, #tpu.memory_space<vmem>>, vector<8x128xf32>
    %c0_163 = arith.constant 0 : index
    %c0_164 = arith.constant 0 : index
    %280 = vector.load %arg22[%c0_163, %c0_164] : memref<8x32xf32, #tpu.memory_space<vmem>>, vector<8x32xf32>
    %cst_165 = arith.constant dense<0.000000e+00> : vector<8x128xf32>
    %281 = tpu.matmul %280, %246, %cst_165 {dimension_numbers = #tpu.dot_dimension_numbers<[1], [0], [0], [1], [0, 0, 1, 1], [], []>} : vector<8x32xf32>, vector<32x128xf32>, vector<8x128xf32> -> vector<8x128xf32>
    %282 = arith.addf %279, %281 : vector<8x128xf32>
    %283 = arith.negf %282 : vector<8x128xf32>
    %284 = math.exp %283 : vector<8x128xf32>
    %cst_166 = arith.constant 1.000000e+00 : f32
    %285 = vector.broadcast %cst_166 : f32 to vector<8x128xf32>
    %286 = arith.addf %285, %284 : vector<8x128xf32>
    %287 = arith.divf %285, %286 : vector<8x128xf32>
    %288 = math.tanh %282 : vector<8x128xf32>
    %289 = vector.extract_strided_slice %287 {offsets = [0, 32], sizes = [8, 32], strides = [1, 1]} : vector<8x128xf32> to vector<8x32xf32>
    %c0_167 = arith.constant 0 : index
    %c0_168 = arith.constant 0 : index
    %290 = vector.load %arg23[%c0_167, %c0_168] : memref<8x32xf32, #tpu.memory_space<vmem>>, vector<8x32xf32>
    %291 = arith.mulf %289, %290 : vector<8x32xf32>
    %292 = vector.extract_strided_slice %287 {offsets = [0, 0], sizes = [8, 32], strides = [1, 1]} : vector<8x128xf32> to vector<8x32xf32>
    %293 = vector.extract_strided_slice %288 {offsets = [0, 64], sizes = [8, 32], strides = [1, 1]} : vector<8x128xf32> to vector<8x32xf32>
    %294 = arith.mulf %292, %293 : vector<8x32xf32>
    %295 = arith.addf %291, %294 : vector<8x32xf32>
    %296 = vector.extract_strided_slice %287 {offsets = [0, 96], sizes = [8, 32], strides = [1, 1]} : vector<8x128xf32> to vector<8x32xf32>
    %297 = math.tanh %295 : vector<8x32xf32>
    %298 = arith.mulf %296, %297 : vector<8x32xf32>
    %c0_169 = arith.constant 0 : index
    %c0_170 = arith.constant 0 : index
    %299 = vector.load %arg22[%c0_169, %c0_170] : memref<8x32xf32, #tpu.memory_space<vmem>>, vector<8x32xf32>
    tpu.vector_store %arg22[%c0_169, %c0_170], %298 {strides = array<i32>} : memref<8x32xf32, #tpu.memory_space<vmem>>, vector<8x32xf32>,
    %c0_171 = arith.constant 0 : index
    %c0_172 = arith.constant 0 : index
    %300 = vector.load %arg23[%c0_171, %c0_172] : memref<8x32xf32, #tpu.memory_space<vmem>>, vector<8x32xf32>
    tpu.vector_store %arg23[%c0_171, %c0_172], %295 {strides = array<i32>} : memref<8x32xf32, #tpu.memory_space<vmem>>, vector<8x32xf32>,
    %301 = arith.index_cast %277 : i32 to index
    %c0_173 = arith.constant 0 : index
    %302 = vector.load %arg21[%301, %c0_173] : memref<64x32xf32, #tpu.memory_space<vmem>>, vector<8x32xf32>
    tpu.vector_store %arg21[%301, %c0_173], %298 {strides = array<i32>} : memref<64x32xf32, #tpu.memory_space<vmem>>, vector<8x32xf32>,
    %c2_i32_174 = arith.constant 2 : i32
    %c7_i32_175 = arith.constant 7 : i32
    %303 = arith.subi %c7_i32_175, %c2_i32_174 : i32
    %c8_i32_176 = arith.constant 8 : i32
    %304 = arith.muli %303, %c8_i32_176 : i32
    %305 = tpu.assume_multiple %304, 8 : i32
    %306 = arith.index_cast %305 : i32 to index
    %c0_177 = arith.constant 0 : index
    %307 = vector.load %arg19[%306, %c0_177] : memref<64x128xf32, #tpu.memory_space<vmem>>, vector<8x128xf32>
    %c0_178 = arith.constant 0 : index
    %c0_179 = arith.constant 0 : index
    %308 = vector.load %arg22[%c0_178, %c0_179] : memref<8x32xf32, #tpu.memory_space<vmem>>, vector<8x32xf32>
    %cst_180 = arith.constant dense<0.000000e+00> : vector<8x128xf32>
    %309 = tpu.matmul %308, %246, %cst_180 {dimension_numbers = #tpu.dot_dimension_numbers<[1], [0], [0], [1], [0, 0, 1, 1], [], []>} : vector<8x32xf32>, vector<32x128xf32>, vector<8x128xf32> -> vector<8x128xf32>
    %310 = arith.addf %307, %309 : vector<8x128xf32>
    %311 = arith.negf %310 : vector<8x128xf32>
    %312 = math.exp %311 : vector<8x128xf32>
    %cst_181 = arith.constant 1.000000e+00 : f32
    %313 = vector.broadcast %cst_181 : f32 to vector<8x128xf32>
    %314 = arith.addf %313, %312 : vector<8x128xf32>
    %315 = arith.divf %313, %314 : vector<8x128xf32>
    %316 = math.tanh %310 : vector<8x128xf32>
    %317 = vector.extract_strided_slice %315 {offsets = [0, 32], sizes = [8, 32], strides = [1, 1]} : vector<8x128xf32> to vector<8x32xf32>
    %c0_182 = arith.constant 0 : index
    %c0_183 = arith.constant 0 : index
    %318 = vector.load %arg23[%c0_182, %c0_183] : memref<8x32xf32, #tpu.memory_space<vmem>>, vector<8x32xf32>
    %319 = arith.mulf %317, %318 : vector<8x32xf32>
    %320 = vector.extract_strided_slice %315 {offsets = [0, 0], sizes = [8, 32], strides = [1, 1]} : vector<8x128xf32> to vector<8x32xf32>
    %321 = vector.extract_strided_slice %316 {offsets = [0, 64], sizes = [8, 32], strides = [1, 1]} : vector<8x128xf32> to vector<8x32xf32>
    %322 = arith.mulf %320, %321 : vector<8x32xf32>
    %323 = arith.addf %319, %322 : vector<8x32xf32>
    %324 = vector.extract_strided_slice %315 {offsets = [0, 96], sizes = [8, 32], strides = [1, 1]} : vector<8x128xf32> to vector<8x32xf32>
    %325 = math.tanh %323 : vector<8x32xf32>
    %326 = arith.mulf %324, %325 : vector<8x32xf32>
    %c0_184 = arith.constant 0 : index
    %c0_185 = arith.constant 0 : index
    %327 = vector.load %arg22[%c0_184, %c0_185] : memref<8x32xf32, #tpu.memory_space<vmem>>, vector<8x32xf32>
    tpu.vector_store %arg22[%c0_184, %c0_185], %326 {strides = array<i32>} : memref<8x32xf32, #tpu.memory_space<vmem>>, vector<8x32xf32>,
    %c0_186 = arith.constant 0 : index
    %c0_187 = arith.constant 0 : index
    %328 = vector.load %arg23[%c0_186, %c0_187] : memref<8x32xf32, #tpu.memory_space<vmem>>, vector<8x32xf32>
    tpu.vector_store %arg23[%c0_186, %c0_187], %323 {strides = array<i32>} : memref<8x32xf32, #tpu.memory_space<vmem>>, vector<8x32xf32>,
    %329 = arith.index_cast %305 : i32 to index
    %c0_188 = arith.constant 0 : index
    %330 = vector.load %arg21[%329, %c0_188] : memref<64x32xf32, #tpu.memory_space<vmem>>, vector<8x32xf32>
    tpu.vector_store %arg21[%329, %c0_188], %326 {strides = array<i32>} : memref<64x32xf32, #tpu.memory_space<vmem>>, vector<8x32xf32>,
    %c3_i32_189 = arith.constant 3 : i32
    %c7_i32_190 = arith.constant 7 : i32
    %331 = arith.subi %c7_i32_190, %c3_i32_189 : i32
    %c8_i32_191 = arith.constant 8 : i32
    %332 = arith.muli %331, %c8_i32_191 : i32
    %333 = tpu.assume_multiple %332, 8 : i32
    %334 = arith.index_cast %333 : i32 to index
    %c0_192 = arith.constant 0 : index
    %335 = vector.load %arg19[%334, %c0_192] : memref<64x128xf32, #tpu.memory_space<vmem>>, vector<8x128xf32>
    %c0_193 = arith.constant 0 : index
    %c0_194 = arith.constant 0 : index
    %336 = vector.load %arg22[%c0_193, %c0_194] : memref<8x32xf32, #tpu.memory_space<vmem>>, vector<8x32xf32>
    %cst_195 = arith.constant dense<0.000000e+00> : vector<8x128xf32>
    %337 = tpu.matmul %336, %246, %cst_195 {dimension_numbers = #tpu.dot_dimension_numbers<[1], [0], [0], [1], [0, 0, 1, 1], [], []>} : vector<8x32xf32>, vector<32x128xf32>, vector<8x128xf32> -> vector<8x128xf32>
    %338 = arith.addf %335, %337 : vector<8x128xf32>
    %339 = arith.negf %338 : vector<8x128xf32>
    %340 = math.exp %339 : vector<8x128xf32>
    %cst_196 = arith.constant 1.000000e+00 : f32
    %341 = vector.broadcast %cst_196 : f32 to vector<8x128xf32>
    %342 = arith.addf %341, %340 : vector<8x128xf32>
    %343 = arith.divf %341, %342 : vector<8x128xf32>
    %344 = math.tanh %338 : vector<8x128xf32>
    %345 = vector.extract_strided_slice %343 {offsets = [0, 32], sizes = [8, 32], strides = [1, 1]} : vector<8x128xf32> to vector<8x32xf32>
    %c0_197 = arith.constant 0 : index
    %c0_198 = arith.constant 0 : index
    %346 = vector.load %arg23[%c0_197, %c0_198] : memref<8x32xf32, #tpu.memory_space<vmem>>, vector<8x32xf32>
    %347 = arith.mulf %345, %346 : vector<8x32xf32>
    %348 = vector.extract_strided_slice %343 {offsets = [0, 0], sizes = [8, 32], strides = [1, 1]} : vector<8x128xf32> to vector<8x32xf32>
    %349 = vector.extract_strided_slice %344 {offsets = [0, 64], sizes = [8, 32], strides = [1, 1]} : vector<8x128xf32> to vector<8x32xf32>
    %350 = arith.mulf %348, %349 : vector<8x32xf32>
    %351 = arith.addf %347, %350 : vector<8x32xf32>
    %352 = vector.extract_strided_slice %343 {offsets = [0, 96], sizes = [8, 32], strides = [1, 1]} : vector<8x128xf32> to vector<8x32xf32>
    %353 = math.tanh %351 : vector<8x32xf32>
    %354 = arith.mulf %352, %353 : vector<8x32xf32>
    %c0_199 = arith.constant 0 : index
    %c0_200 = arith.constant 0 : index
    %355 = vector.load %arg22[%c0_199, %c0_200] : memref<8x32xf32, #tpu.memory_space<vmem>>, vector<8x32xf32>
    tpu.vector_store %arg22[%c0_199, %c0_200], %354 {strides = array<i32>} : memref<8x32xf32, #tpu.memory_space<vmem>>, vector<8x32xf32>,
    %c0_201 = arith.constant 0 : index
    %c0_202 = arith.constant 0 : index
    %356 = vector.load %arg23[%c0_201, %c0_202] : memref<8x32xf32, #tpu.memory_space<vmem>>, vector<8x32xf32>
    tpu.vector_store %arg23[%c0_201, %c0_202], %351 {strides = array<i32>} : memref<8x32xf32, #tpu.memory_space<vmem>>, vector<8x32xf32>,
    %357 = arith.index_cast %333 : i32 to index
    %c0_203 = arith.constant 0 : index
    %358 = vector.load %arg21[%357, %c0_203] : memref<64x32xf32, #tpu.memory_space<vmem>>, vector<8x32xf32>
    tpu.vector_store %arg21[%357, %c0_203], %354 {strides = array<i32>} : memref<64x32xf32, #tpu.memory_space<vmem>>, vector<8x32xf32>,
    %c4_i32_204 = arith.constant 4 : i32
    %c7_i32_205 = arith.constant 7 : i32
    %359 = arith.subi %c7_i32_205, %c4_i32_204 : i32
    %c8_i32_206 = arith.constant 8 : i32
    %360 = arith.muli %359, %c8_i32_206 : i32
    %361 = tpu.assume_multiple %360, 8 : i32
    %362 = arith.index_cast %361 : i32 to index
    %c0_207 = arith.constant 0 : index
    %363 = vector.load %arg19[%362, %c0_207] : memref<64x128xf32, #tpu.memory_space<vmem>>, vector<8x128xf32>
    %c0_208 = arith.constant 0 : index
    %c0_209 = arith.constant 0 : index
    %364 = vector.load %arg22[%c0_208, %c0_209] : memref<8x32xf32, #tpu.memory_space<vmem>>, vector<8x32xf32>
    %cst_210 = arith.constant dense<0.000000e+00> : vector<8x128xf32>
    %365 = tpu.matmul %364, %246, %cst_210 {dimension_numbers = #tpu.dot_dimension_numbers<[1], [0], [0], [1], [0, 0, 1, 1], [], []>} : vector<8x32xf32>, vector<32x128xf32>, vector<8x128xf32> -> vector<8x128xf32>
    %366 = arith.addf %363, %365 : vector<8x128xf32>
    %367 = arith.negf %366 : vector<8x128xf32>
    %368 = math.exp %367 : vector<8x128xf32>
    %cst_211 = arith.constant 1.000000e+00 : f32
    %369 = vector.broadcast %cst_211 : f32 to vector<8x128xf32>
    %370 = arith.addf %369, %368 : vector<8x128xf32>
    %371 = arith.divf %369, %370 : vector<8x128xf32>
    %372 = math.tanh %366 : vector<8x128xf32>
    %373 = vector.extract_strided_slice %371 {offsets = [0, 32], sizes = [8, 32], strides = [1, 1]} : vector<8x128xf32> to vector<8x32xf32>
    %c0_212 = arith.constant 0 : index
    %c0_213 = arith.constant 0 : index
    %374 = vector.load %arg23[%c0_212, %c0_213] : memref<8x32xf32, #tpu.memory_space<vmem>>, vector<8x32xf32>
    %375 = arith.mulf %373, %374 : vector<8x32xf32>
    %376 = vector.extract_strided_slice %371 {offsets = [0, 0], sizes = [8, 32], strides = [1, 1]} : vector<8x128xf32> to vector<8x32xf32>
    %377 = vector.extract_strided_slice %372 {offsets = [0, 64], sizes = [8, 32], strides = [1, 1]} : vector<8x128xf32> to vector<8x32xf32>
    %378 = arith.mulf %376, %377 : vector<8x32xf32>
    %379 = arith.addf %375, %378 : vector<8x32xf32>
    %380 = vector.extract_strided_slice %371 {offsets = [0, 96], sizes = [8, 32], strides = [1, 1]} : vector<8x128xf32> to vector<8x32xf32>
    %381 = math.tanh %379 : vector<8x32xf32>
    %382 = arith.mulf %380, %381 : vector<8x32xf32>
    %c0_214 = arith.constant 0 : index
    %c0_215 = arith.constant 0 : index
    %383 = vector.load %arg22[%c0_214, %c0_215] : memref<8x32xf32, #tpu.memory_space<vmem>>, vector<8x32xf32>
    tpu.vector_store %arg22[%c0_214, %c0_215], %382 {strides = array<i32>} : memref<8x32xf32, #tpu.memory_space<vmem>>, vector<8x32xf32>,
    %c0_216 = arith.constant 0 : index
    %c0_217 = arith.constant 0 : index
    %384 = vector.load %arg23[%c0_216, %c0_217] : memref<8x32xf32, #tpu.memory_space<vmem>>, vector<8x32xf32>
    tpu.vector_store %arg23[%c0_216, %c0_217], %379 {strides = array<i32>} : memref<8x32xf32, #tpu.memory_space<vmem>>, vector<8x32xf32>,
    %385 = arith.index_cast %361 : i32 to index
    %c0_218 = arith.constant 0 : index
    %386 = vector.load %arg21[%385, %c0_218] : memref<64x32xf32, #tpu.memory_space<vmem>>, vector<8x32xf32>
    tpu.vector_store %arg21[%385, %c0_218], %382 {strides = array<i32>} : memref<64x32xf32, #tpu.memory_space<vmem>>, vector<8x32xf32>,
    %c5_i32_219 = arith.constant 5 : i32
    %c7_i32_220 = arith.constant 7 : i32
    %387 = arith.subi %c7_i32_220, %c5_i32_219 : i32
    %c8_i32_221 = arith.constant 8 : i32
    %388 = arith.muli %387, %c8_i32_221 : i32
    %389 = tpu.assume_multiple %388, 8 : i32
    %390 = arith.index_cast %389 : i32 to index
    %c0_222 = arith.constant 0 : index
    %391 = vector.load %arg19[%390, %c0_222] : memref<64x128xf32, #tpu.memory_space<vmem>>, vector<8x128xf32>
    %c0_223 = arith.constant 0 : index
    %c0_224 = arith.constant 0 : index
    %392 = vector.load %arg22[%c0_223, %c0_224] : memref<8x32xf32, #tpu.memory_space<vmem>>, vector<8x32xf32>
    %cst_225 = arith.constant dense<0.000000e+00> : vector<8x128xf32>
    %393 = tpu.matmul %392, %246, %cst_225 {dimension_numbers = #tpu.dot_dimension_numbers<[1], [0], [0], [1], [0, 0, 1, 1], [], []>} : vector<8x32xf32>, vector<32x128xf32>, vector<8x128xf32> -> vector<8x128xf32>
    %394 = arith.addf %391, %393 : vector<8x128xf32>
    %395 = arith.negf %394 : vector<8x128xf32>
    %396 = math.exp %395 : vector<8x128xf32>
    %cst_226 = arith.constant 1.000000e+00 : f32
    %397 = vector.broadcast %cst_226 : f32 to vector<8x128xf32>
    %398 = arith.addf %397, %396 : vector<8x128xf32>
    %399 = arith.divf %397, %398 : vector<8x128xf32>
    %400 = math.tanh %394 : vector<8x128xf32>
    %401 = vector.extract_strided_slice %399 {offsets = [0, 32], sizes = [8, 32], strides = [1, 1]} : vector<8x128xf32> to vector<8x32xf32>
    %c0_227 = arith.constant 0 : index
    %c0_228 = arith.constant 0 : index
    %402 = vector.load %arg23[%c0_227, %c0_228] : memref<8x32xf32, #tpu.memory_space<vmem>>, vector<8x32xf32>
    %403 = arith.mulf %401, %402 : vector<8x32xf32>
    %404 = vector.extract_strided_slice %399 {offsets = [0, 0], sizes = [8, 32], strides = [1, 1]} : vector<8x128xf32> to vector<8x32xf32>
    %405 = vector.extract_strided_slice %400 {offsets = [0, 64], sizes = [8, 32], strides = [1, 1]} : vector<8x128xf32> to vector<8x32xf32>
    %406 = arith.mulf %404, %405 : vector<8x32xf32>
    %407 = arith.addf %403, %406 : vector<8x32xf32>
    %408 = vector.extract_strided_slice %399 {offsets = [0, 96], sizes = [8, 32], strides = [1, 1]} : vector<8x128xf32> to vector<8x32xf32>
    %409 = math.tanh %407 : vector<8x32xf32>
    %410 = arith.mulf %408, %409 : vector<8x32xf32>
    %c0_229 = arith.constant 0 : index
    %c0_230 = arith.constant 0 : index
    %411 = vector.load %arg22[%c0_229, %c0_230] : memref<8x32xf32, #tpu.memory_space<vmem>>, vector<8x32xf32>
    tpu.vector_store %arg22[%c0_229, %c0_230], %410 {strides = array<i32>} : memref<8x32xf32, #tpu.memory_space<vmem>>, vector<8x32xf32>,
    %c0_231 = arith.constant 0 : index
    %c0_232 = arith.constant 0 : index
    %412 = vector.load %arg23[%c0_231, %c0_232] : memref<8x32xf32, #tpu.memory_space<vmem>>, vector<8x32xf32>
    tpu.vector_store %arg23[%c0_231, %c0_232], %407 {strides = array<i32>} : memref<8x32xf32, #tpu.memory_space<vmem>>, vector<8x32xf32>,
    %413 = arith.index_cast %389 : i32 to index
    %c0_233 = arith.constant 0 : index
    %414 = vector.load %arg21[%413, %c0_233] : memref<64x32xf32, #tpu.memory_space<vmem>>, vector<8x32xf32>
    tpu.vector_store %arg21[%413, %c0_233], %410 {strides = array<i32>} : memref<64x32xf32, #tpu.memory_space<vmem>>, vector<8x32xf32>,
    %c6_i32_234 = arith.constant 6 : i32
    %c7_i32_235 = arith.constant 7 : i32
    %415 = arith.subi %c7_i32_235, %c6_i32_234 : i32
    %c8_i32_236 = arith.constant 8 : i32
    %416 = arith.muli %415, %c8_i32_236 : i32
    %417 = tpu.assume_multiple %416, 8 : i32
    %418 = arith.index_cast %417 : i32 to index
    %c0_237 = arith.constant 0 : index
    %419 = vector.load %arg19[%418, %c0_237] : memref<64x128xf32, #tpu.memory_space<vmem>>, vector<8x128xf32>
    %c0_238 = arith.constant 0 : index
    %c0_239 = arith.constant 0 : index
    %420 = vector.load %arg22[%c0_238, %c0_239] : memref<8x32xf32, #tpu.memory_space<vmem>>, vector<8x32xf32>
    %cst_240 = arith.constant dense<0.000000e+00> : vector<8x128xf32>
    %421 = tpu.matmul %420, %246, %cst_240 {dimension_numbers = #tpu.dot_dimension_numbers<[1], [0], [0], [1], [0, 0, 1, 1], [], []>} : vector<8x32xf32>, vector<32x128xf32>, vector<8x128xf32> -> vector<8x128xf32>
    %422 = arith.addf %419, %421 : vector<8x128xf32>
    %423 = arith.negf %422 : vector<8x128xf32>
    %424 = math.exp %423 : vector<8x128xf32>
    %cst_241 = arith.constant 1.000000e+00 : f32
    %425 = vector.broadcast %cst_241 : f32 to vector<8x128xf32>
    %426 = arith.addf %425, %424 : vector<8x128xf32>
    %427 = arith.divf %425, %426 : vector<8x128xf32>
    %428 = math.tanh %422 : vector<8x128xf32>
    %429 = vector.extract_strided_slice %427 {offsets = [0, 32], sizes = [8, 32], strides = [1, 1]} : vector<8x128xf32> to vector<8x32xf32>
    %c0_242 = arith.constant 0 : index
    %c0_243 = arith.constant 0 : index
    %430 = vector.load %arg23[%c0_242, %c0_243] : memref<8x32xf32, #tpu.memory_space<vmem>>, vector<8x32xf32>
    %431 = arith.mulf %429, %430 : vector<8x32xf32>
    %432 = vector.extract_strided_slice %427 {offsets = [0, 0], sizes = [8, 32], strides = [1, 1]} : vector<8x128xf32> to vector<8x32xf32>
    %433 = vector.extract_strided_slice %428 {offsets = [0, 64], sizes = [8, 32], strides = [1, 1]} : vector<8x128xf32> to vector<8x32xf32>
    %434 = arith.mulf %432, %433 : vector<8x32xf32>
    %435 = arith.addf %431, %434 : vector<8x32xf32>
    %436 = vector.extract_strided_slice %427 {offsets = [0, 96], sizes = [8, 32], strides = [1, 1]} : vector<8x128xf32> to vector<8x32xf32>
    %437 = math.tanh %435 : vector<8x32xf32>
    %438 = arith.mulf %436, %437 : vector<8x32xf32>
    %c0_244 = arith.constant 0 : index
    %c0_245 = arith.constant 0 : index
    %439 = vector.load %arg22[%c0_244, %c0_245] : memref<8x32xf32, #tpu.memory_space<vmem>>, vector<8x32xf32>
    tpu.vector_store %arg22[%c0_244, %c0_245], %438 {strides = array<i32>} : memref<8x32xf32, #tpu.memory_space<vmem>>, vector<8x32xf32>,
    %c0_246 = arith.constant 0 : index
    %c0_247 = arith.constant 0 : index
    %440 = vector.load %arg23[%c0_246, %c0_247] : memref<8x32xf32, #tpu.memory_space<vmem>>, vector<8x32xf32>
    tpu.vector_store %arg23[%c0_246, %c0_247], %435 {strides = array<i32>} : memref<8x32xf32, #tpu.memory_space<vmem>>, vector<8x32xf32>,
    %441 = arith.index_cast %417 : i32 to index
    %c0_248 = arith.constant 0 : index
    %442 = vector.load %arg21[%441, %c0_248] : memref<64x32xf32, #tpu.memory_space<vmem>>, vector<8x32xf32>
    tpu.vector_store %arg21[%441, %c0_248], %438 {strides = array<i32>} : memref<64x32xf32, #tpu.memory_space<vmem>>, vector<8x32xf32>,
    %c7_i32_249 = arith.constant 7 : i32
    %c7_i32_250 = arith.constant 7 : i32
    %443 = arith.subi %c7_i32_250, %c7_i32_249 : i32
    %c8_i32_251 = arith.constant 8 : i32
    %444 = arith.muli %443, %c8_i32_251 : i32
    %445 = tpu.assume_multiple %444, 8 : i32
    %446 = arith.index_cast %445 : i32 to index
    %c0_252 = arith.constant 0 : index
    %447 = vector.load %arg19[%446, %c0_252] : memref<64x128xf32, #tpu.memory_space<vmem>>, vector<8x128xf32>
    %c0_253 = arith.constant 0 : index
    %c0_254 = arith.constant 0 : index
    %448 = vector.load %arg22[%c0_253, %c0_254] : memref<8x32xf32, #tpu.memory_space<vmem>>, vector<8x32xf32>
    %cst_255 = arith.constant dense<0.000000e+00> : vector<8x128xf32>
    %449 = tpu.matmul %448, %246, %cst_255 {dimension_numbers = #tpu.dot_dimension_numbers<[1], [0], [0], [1], [0, 0, 1, 1], [], []>} : vector<8x32xf32>, vector<32x128xf32>, vector<8x128xf32> -> vector<8x128xf32>
    %450 = arith.addf %447, %449 : vector<8x128xf32>
    %451 = arith.negf %450 : vector<8x128xf32>
    %452 = math.exp %451 : vector<8x128xf32>
    %cst_256 = arith.constant 1.000000e+00 : f32
    %453 = vector.broadcast %cst_256 : f32 to vector<8x128xf32>
    %454 = arith.addf %453, %452 : vector<8x128xf32>
    %455 = arith.divf %453, %454 : vector<8x128xf32>
    %456 = math.tanh %450 : vector<8x128xf32>
    %457 = vector.extract_strided_slice %455 {offsets = [0, 32], sizes = [8, 32], strides = [1, 1]} : vector<8x128xf32> to vector<8x32xf32>
    %c0_257 = arith.constant 0 : index
    %c0_258 = arith.constant 0 : index
    %458 = vector.load %arg23[%c0_257, %c0_258] : memref<8x32xf32, #tpu.memory_space<vmem>>, vector<8x32xf32>
    %459 = arith.mulf %457, %458 : vector<8x32xf32>
    %460 = vector.extract_strided_slice %455 {offsets = [0, 0], sizes = [8, 32], strides = [1, 1]} : vector<8x128xf32> to vector<8x32xf32>
    %461 = vector.extract_strided_slice %456 {offsets = [0, 64], sizes = [8, 32], strides = [1, 1]} : vector<8x128xf32> to vector<8x32xf32>
    %462 = arith.mulf %460, %461 : vector<8x32xf32>
    %463 = arith.addf %459, %462 : vector<8x32xf32>
    %464 = vector.extract_strided_slice %455 {offsets = [0, 96], sizes = [8, 32], strides = [1, 1]} : vector<8x128xf32> to vector<8x32xf32>
    %465 = math.tanh %463 : vector<8x32xf32>
    %466 = arith.mulf %464, %465 : vector<8x32xf32>
    %c0_259 = arith.constant 0 : index
    %c0_260 = arith.constant 0 : index
    %467 = vector.load %arg22[%c0_259, %c0_260] : memref<8x32xf32, #tpu.memory_space<vmem>>, vector<8x32xf32>
    tpu.vector_store %arg22[%c0_259, %c0_260], %466 {strides = array<i32>} : memref<8x32xf32, #tpu.memory_space<vmem>>, vector<8x32xf32>,
    %c0_261 = arith.constant 0 : index
    %c0_262 = arith.constant 0 : index
    %468 = vector.load %arg23[%c0_261, %c0_262] : memref<8x32xf32, #tpu.memory_space<vmem>>, vector<8x32xf32>
    tpu.vector_store %arg23[%c0_261, %c0_262], %463 {strides = array<i32>} : memref<8x32xf32, #tpu.memory_space<vmem>>, vector<8x32xf32>,
    %469 = arith.index_cast %445 : i32 to index
    %c0_263 = arith.constant 0 : index
    %470 = vector.load %arg21[%469, %c0_263] : memref<64x32xf32, #tpu.memory_space<vmem>>, vector<8x32xf32>
    tpu.vector_store %arg21[%469, %c0_263], %466 {strides = array<i32>} : memref<64x32xf32, #tpu.memory_space<vmem>>, vector<8x32xf32>,
    %c8_i32_264 = arith.constant 8 : i32
    %c0_265 = arith.constant 0 : index
    %c0_266 = arith.constant 0 : index
    %471 = vector.load %arg22[%c0_265, %c0_266] : memref<8x32xf32, #tpu.memory_space<vmem>>, vector<8x32xf32>
    %c1 = arith.constant 1 : index
    %c0_267 = arith.constant 0 : index
    %c0_268 = arith.constant 0 : index
    %472 = vector.load %arg16[%c1, %c0_267, %c0_268] : memref<4x8x32xf32, #tpu.memory_space<vmem>>, vector<1x8x32xf32>
    %473 = vector.shape_cast %472 : vector<1x8x32xf32> to vector<8x32xf32>
    %474 = vector.shape_cast %471 : vector<8x32xf32> to vector<1x8x32xf32>
    tpu.vector_store %arg16[%c1, %c0_267, %c0_268], %474 {strides = array<i32>} : memref<4x8x32xf32, #tpu.memory_space<vmem>>, vector<1x8x32xf32>,
    %c0_269 = arith.constant 0 : index
    %c0_270 = arith.constant 0 : index
    %475 = vector.load %arg23[%c0_269, %c0_270] : memref<8x32xf32, #tpu.memory_space<vmem>>, vector<8x32xf32>
    %c1_271 = arith.constant 1 : index
    %c0_272 = arith.constant 0 : index
    %c0_273 = arith.constant 0 : index
    %476 = vector.load %arg17[%c1_271, %c0_272, %c0_273] : memref<4x8x32xf32, #tpu.memory_space<vmem>>, vector<1x8x32xf32>
    %477 = vector.shape_cast %476 : vector<1x8x32xf32> to vector<8x32xf32>
    %478 = vector.shape_cast %475 : vector<8x32xf32> to vector<1x8x32xf32>
    tpu.vector_store %arg17[%c1_271, %c0_272, %c0_273], %478 {strides = array<i32>} : memref<4x8x32xf32, #tpu.memory_space<vmem>>, vector<1x8x32xf32>,
    %c0_274 = arith.constant 0 : index
    %c0_275 = arith.constant 0 : index
    %479 = vector.load %arg20[%c0_274, %c0_275] : memref<64x32xf32, #tpu.memory_space<vmem>>, vector<64x32xf32>
    %c0_276 = arith.constant 0 : index
    %c0_277 = arith.constant 0 : index
    %480 = vector.load %arg21[%c0_276, %c0_277] : memref<64x32xf32, #tpu.memory_space<vmem>>, vector<64x32xf32>
    %c0_278 = arith.constant 0 : index
    %c0_279 = arith.constant 0 : index
    %481 = vector.load %arg7[%c0_278, %c0_279] : memref<64x128xf32, #tpu.memory_space<vmem>>, vector<64x128xf32>
    %c0_280 = arith.constant 0 : index
    %c0_281 = arith.constant 0 : index
    %482 = vector.load %arg10[%c0_280, %c0_281] : memref<64x128xf32, #tpu.memory_space<vmem>>, vector<64x128xf32>
    %483 = vector.extract_strided_slice %481 {offsets = [0, 0], sizes = [32, 128], strides = [1, 1]} : vector<64x128xf32> to vector<32x128xf32>
    %cst_282 = arith.constant dense<0.000000e+00> : vector<64x128xf32>
    %484 = tpu.matmul %479, %483, %cst_282 {dimension_numbers = #tpu.dot_dimension_numbers<[1], [0], [0], [1], [0, 0, 1, 1], [], []>} : vector<64x32xf32>, vector<32x128xf32>, vector<64x128xf32> -> vector<64x128xf32>
    %485 = vector.extract_strided_slice %481 {offsets = [32, 0], sizes = [32, 128], strides = [1, 1]} : vector<64x128xf32> to vector<32x128xf32>
    %cst_283 = arith.constant dense<0.000000e+00> : vector<64x128xf32>
    %486 = tpu.matmul %480, %485, %cst_283 {dimension_numbers = #tpu.dot_dimension_numbers<[1], [0], [0], [1], [0, 0, 1, 1], [], []>} : vector<64x32xf32>, vector<32x128xf32>, vector<64x128xf32> -> vector<64x128xf32>
    %487 = arith.addf %484, %486 : vector<64x128xf32>
    %c0_284 = arith.constant 0 : index
    %c0_285 = arith.constant 0 : index
    %488 = vector.load %arg9[%c0_284, %c0_285] : memref<1x128xf32, #tpu.memory_space<vmem>>, vector<1x128xf32>
    %489 = vector.broadcast %488 : vector<1x128xf32> to vector<64x128xf32>
    %490 = arith.addf %487, %489 : vector<64x128xf32>
    %c0_286 = arith.constant 0 : index
    %c0_287 = arith.constant 0 : index
    %491 = vector.load %arg18[%c0_286, %c0_287] : memref<64x128xf32, #tpu.memory_space<vmem>>, vector<64x128xf32>
    tpu.vector_store %arg18[%c0_286, %c0_287], %490 {strides = array<i32>} : memref<64x128xf32, #tpu.memory_space<vmem>>, vector<64x128xf32>,
    %492 = vector.extract_strided_slice %482 {offsets = [0, 0], sizes = [32, 128], strides = [1, 1]} : vector<64x128xf32> to vector<32x128xf32>
    %cst_288 = arith.constant dense<0.000000e+00> : vector<64x128xf32>
    %493 = tpu.matmul %479, %492, %cst_288 {dimension_numbers = #tpu.dot_dimension_numbers<[1], [0], [0], [1], [0, 0, 1, 1], [], []>} : vector<64x32xf32>, vector<32x128xf32>, vector<64x128xf32> -> vector<64x128xf32>
    %494 = vector.extract_strided_slice %482 {offsets = [32, 0], sizes = [32, 128], strides = [1, 1]} : vector<64x128xf32> to vector<32x128xf32>
    %cst_289 = arith.constant dense<0.000000e+00> : vector<64x128xf32>
    %495 = tpu.matmul %480, %494, %cst_289 {dimension_numbers = #tpu.dot_dimension_numbers<[1], [0], [0], [1], [0, 0, 1, 1], [], []>} : vector<64x32xf32>, vector<32x128xf32>, vector<64x128xf32> -> vector<64x128xf32>
    %496 = arith.addf %493, %495 : vector<64x128xf32>
    %c0_290 = arith.constant 0 : index
    %c0_291 = arith.constant 0 : index
    %497 = vector.load %arg12[%c0_290, %c0_291] : memref<1x128xf32, #tpu.memory_space<vmem>>, vector<1x128xf32>
    %498 = vector.broadcast %497 : vector<1x128xf32> to vector<64x128xf32>
    %499 = arith.addf %496, %498 : vector<64x128xf32>
    %c0_292 = arith.constant 0 : index
    %c0_293 = arith.constant 0 : index
    %500 = vector.load %arg19[%c0_292, %c0_293] : memref<64x128xf32, #tpu.memory_space<vmem>>, vector<64x128xf32>
    tpu.vector_store %arg19[%c0_292, %c0_293], %499 {strides = array<i32>} : memref<64x128xf32, #tpu.memory_space<vmem>>, vector<64x128xf32>,
    %cst_294 = arith.constant 0.000000e+00 : f32
    %501 = vector.broadcast %cst_294 : f32 to vector<8x32xf32>
    %c0_295 = arith.constant 0 : index
    %c0_296 = arith.constant 0 : index
    %502 = vector.load %arg22[%c0_295, %c0_296] : memref<8x32xf32, #tpu.memory_space<vmem>>, vector<8x32xf32>
    tpu.vector_store %arg22[%c0_295, %c0_296], %501 {strides = array<i32>} : memref<8x32xf32, #tpu.memory_space<vmem>>, vector<8x32xf32>,
    %cst_297 = arith.constant 0.000000e+00 : f32
    %503 = vector.broadcast %cst_297 : f32 to vector<8x32xf32>
    %c0_298 = arith.constant 0 : index
    %c0_299 = arith.constant 0 : index
    %504 = vector.load %arg23[%c0_298, %c0_299] : memref<8x32xf32, #tpu.memory_space<vmem>>, vector<8x32xf32>
    tpu.vector_store %arg23[%c0_298, %c0_299], %503 {strides = array<i32>} : memref<8x32xf32, #tpu.memory_space<vmem>>, vector<8x32xf32>,
    %c0_300 = arith.constant 0 : index
    %c0_301 = arith.constant 0 : index
    %505 = vector.load %arg8[%c0_300, %c0_301] : memref<32x128xf32, #tpu.memory_space<vmem>>, vector<32x128xf32>
    %c0_i32_302 = arith.constant 0 : i32
    %c8_i32_303 = arith.constant 8 : i32
    %506 = arith.muli %c0_i32_302, %c8_i32_303 : i32
    %507 = tpu.assume_multiple %506, 8 : i32
    %508 = arith.index_cast %507 : i32 to index
    %c0_304 = arith.constant 0 : index
    %509 = vector.load %arg18[%508, %c0_304] : memref<64x128xf32, #tpu.memory_space<vmem>>, vector<8x128xf32>
    %c0_305 = arith.constant 0 : index
    %c0_306 = arith.constant 0 : index
    %510 = vector.load %arg22[%c0_305, %c0_306] : memref<8x32xf32, #tpu.memory_space<vmem>>, vector<8x32xf32>
    %cst_307 = arith.constant dense<0.000000e+00> : vector<8x128xf32>
    %511 = tpu.matmul %510, %505, %cst_307 {dimension_numbers = #tpu.dot_dimension_numbers<[1], [0], [0], [1], [0, 0, 1, 1], [], []>} : vector<8x32xf32>, vector<32x128xf32>, vector<8x128xf32> -> vector<8x128xf32>
    %512 = arith.addf %509, %511 : vector<8x128xf32>
    %513 = arith.negf %512 : vector<8x128xf32>
    %514 = math.exp %513 : vector<8x128xf32>
    %cst_308 = arith.constant 1.000000e+00 : f32
    %515 = vector.broadcast %cst_308 : f32 to vector<8x128xf32>
    %516 = arith.addf %515, %514 : vector<8x128xf32>
    %517 = arith.divf %515, %516 : vector<8x128xf32>
    %518 = math.tanh %512 : vector<8x128xf32>
    %519 = vector.extract_strided_slice %517 {offsets = [0, 32], sizes = [8, 32], strides = [1, 1]} : vector<8x128xf32> to vector<8x32xf32>
    %c0_309 = arith.constant 0 : index
    %c0_310 = arith.constant 0 : index
    %520 = vector.load %arg23[%c0_309, %c0_310] : memref<8x32xf32, #tpu.memory_space<vmem>>, vector<8x32xf32>
    %521 = arith.mulf %519, %520 : vector<8x32xf32>
    %522 = vector.extract_strided_slice %517 {offsets = [0, 0], sizes = [8, 32], strides = [1, 1]} : vector<8x128xf32> to vector<8x32xf32>
    %523 = vector.extract_strided_slice %518 {offsets = [0, 64], sizes = [8, 32], strides = [1, 1]} : vector<8x128xf32> to vector<8x32xf32>
    %524 = arith.mulf %522, %523 : vector<8x32xf32>
    %525 = arith.addf %521, %524 : vector<8x32xf32>
    %526 = vector.extract_strided_slice %517 {offsets = [0, 96], sizes = [8, 32], strides = [1, 1]} : vector<8x128xf32> to vector<8x32xf32>
    %527 = math.tanh %525 : vector<8x32xf32>
    %528 = arith.mulf %526, %527 : vector<8x32xf32>
    %c0_311 = arith.constant 0 : index
    %c0_312 = arith.constant 0 : index
    %529 = vector.load %arg22[%c0_311, %c0_312] : memref<8x32xf32, #tpu.memory_space<vmem>>, vector<8x32xf32>
    tpu.vector_store %arg22[%c0_311, %c0_312], %528 {strides = array<i32>} : memref<8x32xf32, #tpu.memory_space<vmem>>, vector<8x32xf32>,
    %c0_313 = arith.constant 0 : index
    %c0_314 = arith.constant 0 : index
    %530 = vector.load %arg23[%c0_313, %c0_314] : memref<8x32xf32, #tpu.memory_space<vmem>>, vector<8x32xf32>
    tpu.vector_store %arg23[%c0_313, %c0_314], %525 {strides = array<i32>} : memref<8x32xf32, #tpu.memory_space<vmem>>, vector<8x32xf32>,
    %531 = arith.index_cast %507 : i32 to index
    %c0_315 = arith.constant 0 : index
    %532 = vector.load %arg20[%531, %c0_315] : memref<64x32xf32, #tpu.memory_space<vmem>>, vector<8x32xf32>
    tpu.vector_store %arg20[%531, %c0_315], %528 {strides = array<i32>} : memref<64x32xf32, #tpu.memory_space<vmem>>, vector<8x32xf32>,
    %c1_i32_316 = arith.constant 1 : i32
    %c8_i32_317 = arith.constant 8 : i32
    %533 = arith.muli %c1_i32_316, %c8_i32_317 : i32
    %534 = tpu.assume_multiple %533, 8 : i32
    %535 = arith.index_cast %534 : i32 to index
    %c0_318 = arith.constant 0 : index
    %536 = vector.load %arg18[%535, %c0_318] : memref<64x128xf32, #tpu.memory_space<vmem>>, vector<8x128xf32>
    %c0_319 = arith.constant 0 : index
    %c0_320 = arith.constant 0 : index
    %537 = vector.load %arg22[%c0_319, %c0_320] : memref<8x32xf32, #tpu.memory_space<vmem>>, vector<8x32xf32>
    %cst_321 = arith.constant dense<0.000000e+00> : vector<8x128xf32>
    %538 = tpu.matmul %537, %505, %cst_321 {dimension_numbers = #tpu.dot_dimension_numbers<[1], [0], [0], [1], [0, 0, 1, 1], [], []>} : vector<8x32xf32>, vector<32x128xf32>, vector<8x128xf32> -> vector<8x128xf32>
    %539 = arith.addf %536, %538 : vector<8x128xf32>
    %540 = arith.negf %539 : vector<8x128xf32>
    %541 = math.exp %540 : vector<8x128xf32>
    %cst_322 = arith.constant 1.000000e+00 : f32
    %542 = vector.broadcast %cst_322 : f32 to vector<8x128xf32>
    %543 = arith.addf %542, %541 : vector<8x128xf32>
    %544 = arith.divf %542, %543 : vector<8x128xf32>
    %545 = math.tanh %539 : vector<8x128xf32>
    %546 = vector.extract_strided_slice %544 {offsets = [0, 32], sizes = [8, 32], strides = [1, 1]} : vector<8x128xf32> to vector<8x32xf32>
    %c0_323 = arith.constant 0 : index
    %c0_324 = arith.constant 0 : index
    %547 = vector.load %arg23[%c0_323, %c0_324] : memref<8x32xf32, #tpu.memory_space<vmem>>, vector<8x32xf32>
    %548 = arith.mulf %546, %547 : vector<8x32xf32>
    %549 = vector.extract_strided_slice %544 {offsets = [0, 0], sizes = [8, 32], strides = [1, 1]} : vector<8x128xf32> to vector<8x32xf32>
    %550 = vector.extract_strided_slice %545 {offsets = [0, 64], sizes = [8, 32], strides = [1, 1]} : vector<8x128xf32> to vector<8x32xf32>
    %551 = arith.mulf %549, %550 : vector<8x32xf32>
    %552 = arith.addf %548, %551 : vector<8x32xf32>
    %553 = vector.extract_strided_slice %544 {offsets = [0, 96], sizes = [8, 32], strides = [1, 1]} : vector<8x128xf32> to vector<8x32xf32>
    %554 = math.tanh %552 : vector<8x32xf32>
    %555 = arith.mulf %553, %554 : vector<8x32xf32>
    %c0_325 = arith.constant 0 : index
    %c0_326 = arith.constant 0 : index
    %556 = vector.load %arg22[%c0_325, %c0_326] : memref<8x32xf32, #tpu.memory_space<vmem>>, vector<8x32xf32>
    tpu.vector_store %arg22[%c0_325, %c0_326], %555 {strides = array<i32>} : memref<8x32xf32, #tpu.memory_space<vmem>>, vector<8x32xf32>,
    %c0_327 = arith.constant 0 : index
    %c0_328 = arith.constant 0 : index
    %557 = vector.load %arg23[%c0_327, %c0_328] : memref<8x32xf32, #tpu.memory_space<vmem>>, vector<8x32xf32>
    tpu.vector_store %arg23[%c0_327, %c0_328], %552 {strides = array<i32>} : memref<8x32xf32, #tpu.memory_space<vmem>>, vector<8x32xf32>,
    %558 = arith.index_cast %534 : i32 to index
    %c0_329 = arith.constant 0 : index
    %559 = vector.load %arg20[%558, %c0_329] : memref<64x32xf32, #tpu.memory_space<vmem>>, vector<8x32xf32>
    tpu.vector_store %arg20[%558, %c0_329], %555 {strides = array<i32>} : memref<64x32xf32, #tpu.memory_space<vmem>>, vector<8x32xf32>,
    %c2_i32_330 = arith.constant 2 : i32
    %c8_i32_331 = arith.constant 8 : i32
    %560 = arith.muli %c2_i32_330, %c8_i32_331 : i32
    %561 = tpu.assume_multiple %560, 8 : i32
    %562 = arith.index_cast %561 : i32 to index
    %c0_332 = arith.constant 0 : index
    %563 = vector.load %arg18[%562, %c0_332] : memref<64x128xf32, #tpu.memory_space<vmem>>, vector<8x128xf32>
    %c0_333 = arith.constant 0 : index
    %c0_334 = arith.constant 0 : index
    %564 = vector.load %arg22[%c0_333, %c0_334] : memref<8x32xf32, #tpu.memory_space<vmem>>, vector<8x32xf32>
    %cst_335 = arith.constant dense<0.000000e+00> : vector<8x128xf32>
    %565 = tpu.matmul %564, %505, %cst_335 {dimension_numbers = #tpu.dot_dimension_numbers<[1], [0], [0], [1], [0, 0, 1, 1], [], []>} : vector<8x32xf32>, vector<32x128xf32>, vector<8x128xf32> -> vector<8x128xf32>
    %566 = arith.addf %563, %565 : vector<8x128xf32>
    %567 = arith.negf %566 : vector<8x128xf32>
    %568 = math.exp %567 : vector<8x128xf32>
    %cst_336 = arith.constant 1.000000e+00 : f32
    %569 = vector.broadcast %cst_336 : f32 to vector<8x128xf32>
    %570 = arith.addf %569, %568 : vector<8x128xf32>
    %571 = arith.divf %569, %570 : vector<8x128xf32>
    %572 = math.tanh %566 : vector<8x128xf32>
    %573 = vector.extract_strided_slice %571 {offsets = [0, 32], sizes = [8, 32], strides = [1, 1]} : vector<8x128xf32> to vector<8x32xf32>
    %c0_337 = arith.constant 0 : index
    %c0_338 = arith.constant 0 : index
    %574 = vector.load %arg23[%c0_337, %c0_338] : memref<8x32xf32, #tpu.memory_space<vmem>>, vector<8x32xf32>
    %575 = arith.mulf %573, %574 : vector<8x32xf32>
    %576 = vector.extract_strided_slice %571 {offsets = [0, 0], sizes = [8, 32], strides = [1, 1]} : vector<8x128xf32> to vector<8x32xf32>
    %577 = vector.extract_strided_slice %572 {offsets = [0, 64], sizes = [8, 32], strides = [1, 1]} : vector<8x128xf32> to vector<8x32xf32>
    %578 = arith.mulf %576, %577 : vector<8x32xf32>
    %579 = arith.addf %575, %578 : vector<8x32xf32>
    %580 = vector.extract_strided_slice %571 {offsets = [0, 96], sizes = [8, 32], strides = [1, 1]} : vector<8x128xf32> to vector<8x32xf32>
    %581 = math.tanh %579 : vector<8x32xf32>
    %582 = arith.mulf %580, %581 : vector<8x32xf32>
    %c0_339 = arith.constant 0 : index
    %c0_340 = arith.constant 0 : index
    %583 = vector.load %arg22[%c0_339, %c0_340] : memref<8x32xf32, #tpu.memory_space<vmem>>, vector<8x32xf32>
    tpu.vector_store %arg22[%c0_339, %c0_340], %582 {strides = array<i32>} : memref<8x32xf32, #tpu.memory_space<vmem>>, vector<8x32xf32>,
    %c0_341 = arith.constant 0 : index
    %c0_342 = arith.constant 0 : index
    %584 = vector.load %arg23[%c0_341, %c0_342] : memref<8x32xf32, #tpu.memory_space<vmem>>, vector<8x32xf32>
    tpu.vector_store %arg23[%c0_341, %c0_342], %579 {strides = array<i32>} : memref<8x32xf32, #tpu.memory_space<vmem>>, vector<8x32xf32>,
    %585 = arith.index_cast %561 : i32 to index
    %c0_343 = arith.constant 0 : index
    %586 = vector.load %arg20[%585, %c0_343] : memref<64x32xf32, #tpu.memory_space<vmem>>, vector<8x32xf32>
    tpu.vector_store %arg20[%585, %c0_343], %582 {strides = array<i32>} : memref<64x32xf32, #tpu.memory_space<vmem>>, vector<8x32xf32>,
    %c3_i32_344 = arith.constant 3 : i32
    %c8_i32_345 = arith.constant 8 : i32
    %587 = arith.muli %c3_i32_344, %c8_i32_345 : i32
    %588 = tpu.assume_multiple %587, 8 : i32
    %589 = arith.index_cast %588 : i32 to index
    %c0_346 = arith.constant 0 : index
    %590 = vector.load %arg18[%589, %c0_346] : memref<64x128xf32, #tpu.memory_space<vmem>>, vector<8x128xf32>
    %c0_347 = arith.constant 0 : index
    %c0_348 = arith.constant 0 : index
    %591 = vector.load %arg22[%c0_347, %c0_348] : memref<8x32xf32, #tpu.memory_space<vmem>>, vector<8x32xf32>
    %cst_349 = arith.constant dense<0.000000e+00> : vector<8x128xf32>
    %592 = tpu.matmul %591, %505, %cst_349 {dimension_numbers = #tpu.dot_dimension_numbers<[1], [0], [0], [1], [0, 0, 1, 1], [], []>} : vector<8x32xf32>, vector<32x128xf32>, vector<8x128xf32> -> vector<8x128xf32>
    %593 = arith.addf %590, %592 : vector<8x128xf32>
    %594 = arith.negf %593 : vector<8x128xf32>
    %595 = math.exp %594 : vector<8x128xf32>
    %cst_350 = arith.constant 1.000000e+00 : f32
    %596 = vector.broadcast %cst_350 : f32 to vector<8x128xf32>
    %597 = arith.addf %596, %595 : vector<8x128xf32>
    %598 = arith.divf %596, %597 : vector<8x128xf32>
    %599 = math.tanh %593 : vector<8x128xf32>
    %600 = vector.extract_strided_slice %598 {offsets = [0, 32], sizes = [8, 32], strides = [1, 1]} : vector<8x128xf32> to vector<8x32xf32>
    %c0_351 = arith.constant 0 : index
    %c0_352 = arith.constant 0 : index
    %601 = vector.load %arg23[%c0_351, %c0_352] : memref<8x32xf32, #tpu.memory_space<vmem>>, vector<8x32xf32>
    %602 = arith.mulf %600, %601 : vector<8x32xf32>
    %603 = vector.extract_strided_slice %598 {offsets = [0, 0], sizes = [8, 32], strides = [1, 1]} : vector<8x128xf32> to vector<8x32xf32>
    %604 = vector.extract_strided_slice %599 {offsets = [0, 64], sizes = [8, 32], strides = [1, 1]} : vector<8x128xf32> to vector<8x32xf32>
    %605 = arith.mulf %603, %604 : vector<8x32xf32>
    %606 = arith.addf %602, %605 : vector<8x32xf32>
    %607 = vector.extract_strided_slice %598 {offsets = [0, 96], sizes = [8, 32], strides = [1, 1]} : vector<8x128xf32> to vector<8x32xf32>
    %608 = math.tanh %606 : vector<8x32xf32>
    %609 = arith.mulf %607, %608 : vector<8x32xf32>
    %c0_353 = arith.constant 0 : index
    %c0_354 = arith.constant 0 : index
    %610 = vector.load %arg22[%c0_353, %c0_354] : memref<8x32xf32, #tpu.memory_space<vmem>>, vector<8x32xf32>
    tpu.vector_store %arg22[%c0_353, %c0_354], %609 {strides = array<i32>} : memref<8x32xf32, #tpu.memory_space<vmem>>, vector<8x32xf32>,
    %c0_355 = arith.constant 0 : index
    %c0_356 = arith.constant 0 : index
    %611 = vector.load %arg23[%c0_355, %c0_356] : memref<8x32xf32, #tpu.memory_space<vmem>>, vector<8x32xf32>
    tpu.vector_store %arg23[%c0_355, %c0_356], %606 {strides = array<i32>} : memref<8x32xf32, #tpu.memory_space<vmem>>, vector<8x32xf32>,
    %612 = arith.index_cast %588 : i32 to index
    %c0_357 = arith.constant 0 : index
    %613 = vector.load %arg20[%612, %c0_357] : memref<64x32xf32, #tpu.memory_space<vmem>>, vector<8x32xf32>
    tpu.vector_store %arg20[%612, %c0_357], %609 {strides = array<i32>} : memref<64x32xf32, #tpu.memory_space<vmem>>, vector<8x32xf32>,
    %c4_i32_358 = arith.constant 4 : i32
    %c8_i32_359 = arith.constant 8 : i32
    %614 = arith.muli %c4_i32_358, %c8_i32_359 : i32
    %615 = tpu.assume_multiple %614, 8 : i32
    %616 = arith.index_cast %615 : i32 to index
    %c0_360 = arith.constant 0 : index
    %617 = vector.load %arg18[%616, %c0_360] : memref<64x128xf32, #tpu.memory_space<vmem>>, vector<8x128xf32>
    %c0_361 = arith.constant 0 : index
    %c0_362 = arith.constant 0 : index
    %618 = vector.load %arg22[%c0_361, %c0_362] : memref<8x32xf32, #tpu.memory_space<vmem>>, vector<8x32xf32>
    %cst_363 = arith.constant dense<0.000000e+00> : vector<8x128xf32>
    %619 = tpu.matmul %618, %505, %cst_363 {dimension_numbers = #tpu.dot_dimension_numbers<[1], [0], [0], [1], [0, 0, 1, 1], [], []>} : vector<8x32xf32>, vector<32x128xf32>, vector<8x128xf32> -> vector<8x128xf32>
    %620 = arith.addf %617, %619 : vector<8x128xf32>
    %621 = arith.negf %620 : vector<8x128xf32>
    %622 = math.exp %621 : vector<8x128xf32>
    %cst_364 = arith.constant 1.000000e+00 : f32
    %623 = vector.broadcast %cst_364 : f32 to vector<8x128xf32>
    %624 = arith.addf %623, %622 : vector<8x128xf32>
    %625 = arith.divf %623, %624 : vector<8x128xf32>
    %626 = math.tanh %620 : vector<8x128xf32>
    %627 = vector.extract_strided_slice %625 {offsets = [0, 32], sizes = [8, 32], strides = [1, 1]} : vector<8x128xf32> to vector<8x32xf32>
    %c0_365 = arith.constant 0 : index
    %c0_366 = arith.constant 0 : index
    %628 = vector.load %arg23[%c0_365, %c0_366] : memref<8x32xf32, #tpu.memory_space<vmem>>, vector<8x32xf32>
    %629 = arith.mulf %627, %628 : vector<8x32xf32>
    %630 = vector.extract_strided_slice %625 {offsets = [0, 0], sizes = [8, 32], strides = [1, 1]} : vector<8x128xf32> to vector<8x32xf32>
    %631 = vector.extract_strided_slice %626 {offsets = [0, 64], sizes = [8, 32], strides = [1, 1]} : vector<8x128xf32> to vector<8x32xf32>
    %632 = arith.mulf %630, %631 : vector<8x32xf32>
    %633 = arith.addf %629, %632 : vector<8x32xf32>
    %634 = vector.extract_strided_slice %625 {offsets = [0, 96], sizes = [8, 32], strides = [1, 1]} : vector<8x128xf32> to vector<8x32xf32>
    %635 = math.tanh %633 : vector<8x32xf32>
    %636 = arith.mulf %634, %635 : vector<8x32xf32>
    %c0_367 = arith.constant 0 : index
    %c0_368 = arith.constant 0 : index
    %637 = vector.load %arg22[%c0_367, %c0_368] : memref<8x32xf32, #tpu.memory_space<vmem>>, vector<8x32xf32>
    tpu.vector_store %arg22[%c0_367, %c0_368], %636 {strides = array<i32>} : memref<8x32xf32, #tpu.memory_space<vmem>>, vector<8x32xf32>,
    %c0_369 = arith.constant 0 : index
    %c0_370 = arith.constant 0 : index
    %638 = vector.load %arg23[%c0_369, %c0_370] : memref<8x32xf32, #tpu.memory_space<vmem>>, vector<8x32xf32>
    tpu.vector_store %arg23[%c0_369, %c0_370], %633 {strides = array<i32>} : memref<8x32xf32, #tpu.memory_space<vmem>>, vector<8x32xf32>,
    %639 = arith.index_cast %615 : i32 to index
    %c0_371 = arith.constant 0 : index
    %640 = vector.load %arg20[%639, %c0_371] : memref<64x32xf32, #tpu.memory_space<vmem>>, vector<8x32xf32>
    tpu.vector_store %arg20[%639, %c0_371], %636 {strides = array<i32>} : memref<64x32xf32, #tpu.memory_space<vmem>>, vector<8x32xf32>,
    %c5_i32_372 = arith.constant 5 : i32
    %c8_i32_373 = arith.constant 8 : i32
    %641 = arith.muli %c5_i32_372, %c8_i32_373 : i32
    %642 = tpu.assume_multiple %641, 8 : i32
    %643 = arith.index_cast %642 : i32 to index
    %c0_374 = arith.constant 0 : index
    %644 = vector.load %arg18[%643, %c0_374] : memref<64x128xf32, #tpu.memory_space<vmem>>, vector<8x128xf32>
    %c0_375 = arith.constant 0 : index
    %c0_376 = arith.constant 0 : index
    %645 = vector.load %arg22[%c0_375, %c0_376] : memref<8x32xf32, #tpu.memory_space<vmem>>, vector<8x32xf32>
    %cst_377 = arith.constant dense<0.000000e+00> : vector<8x128xf32>
    %646 = tpu.matmul %645, %505, %cst_377 {dimension_numbers = #tpu.dot_dimension_numbers<[1], [0], [0], [1], [0, 0, 1, 1], [], []>} : vector<8x32xf32>, vector<32x128xf32>, vector<8x128xf32> -> vector<8x128xf32>
    %647 = arith.addf %644, %646 : vector<8x128xf32>
    %648 = arith.negf %647 : vector<8x128xf32>
    %649 = math.exp %648 : vector<8x128xf32>
    %cst_378 = arith.constant 1.000000e+00 : f32
    %650 = vector.broadcast %cst_378 : f32 to vector<8x128xf32>
    %651 = arith.addf %650, %649 : vector<8x128xf32>
    %652 = arith.divf %650, %651 : vector<8x128xf32>
    %653 = math.tanh %647 : vector<8x128xf32>
    %654 = vector.extract_strided_slice %652 {offsets = [0, 32], sizes = [8, 32], strides = [1, 1]} : vector<8x128xf32> to vector<8x32xf32>
    %c0_379 = arith.constant 0 : index
    %c0_380 = arith.constant 0 : index
    %655 = vector.load %arg23[%c0_379, %c0_380] : memref<8x32xf32, #tpu.memory_space<vmem>>, vector<8x32xf32>
    %656 = arith.mulf %654, %655 : vector<8x32xf32>
    %657 = vector.extract_strided_slice %652 {offsets = [0, 0], sizes = [8, 32], strides = [1, 1]} : vector<8x128xf32> to vector<8x32xf32>
    %658 = vector.extract_strided_slice %653 {offsets = [0, 64], sizes = [8, 32], strides = [1, 1]} : vector<8x128xf32> to vector<8x32xf32>
    %659 = arith.mulf %657, %658 : vector<8x32xf32>
    %660 = arith.addf %656, %659 : vector<8x32xf32>
    %661 = vector.extract_strided_slice %652 {offsets = [0, 96], sizes = [8, 32], strides = [1, 1]} : vector<8x128xf32> to vector<8x32xf32>
    %662 = math.tanh %660 : vector<8x32xf32>
    %663 = arith.mulf %661, %662 : vector<8x32xf32>
    %c0_381 = arith.constant 0 : index
    %c0_382 = arith.constant 0 : index
    %664 = vector.load %arg22[%c0_381, %c0_382] : memref<8x32xf32, #tpu.memory_space<vmem>>, vector<8x32xf32>
    tpu.vector_store %arg22[%c0_381, %c0_382], %663 {strides = array<i32>} : memref<8x32xf32, #tpu.memory_space<vmem>>, vector<8x32xf32>,
    %c0_383 = arith.constant 0 : index
    %c0_384 = arith.constant 0 : index
    %665 = vector.load %arg23[%c0_383, %c0_384] : memref<8x32xf32, #tpu.memory_space<vmem>>, vector<8x32xf32>
    tpu.vector_store %arg23[%c0_383, %c0_384], %660 {strides = array<i32>} : memref<8x32xf32, #tpu.memory_space<vmem>>, vector<8x32xf32>,
    %666 = arith.index_cast %642 : i32 to index
    %c0_385 = arith.constant 0 : index
    %667 = vector.load %arg20[%666, %c0_385] : memref<64x32xf32, #tpu.memory_space<vmem>>, vector<8x32xf32>
    tpu.vector_store %arg20[%666, %c0_385], %663 {strides = array<i32>} : memref<64x32xf32, #tpu.memory_space<vmem>>, vector<8x32xf32>,
    %c6_i32_386 = arith.constant 6 : i32
    %c8_i32_387 = arith.constant 8 : i32
    %668 = arith.muli %c6_i32_386, %c8_i32_387 : i32
    %669 = tpu.assume_multiple %668, 8 : i32
    %670 = arith.index_cast %669 : i32 to index
    %c0_388 = arith.constant 0 : index
    %671 = vector.load %arg18[%670, %c0_388] : memref<64x128xf32, #tpu.memory_space<vmem>>, vector<8x128xf32>
    %c0_389 = arith.constant 0 : index
    %c0_390 = arith.constant 0 : index
    %672 = vector.load %arg22[%c0_389, %c0_390] : memref<8x32xf32, #tpu.memory_space<vmem>>, vector<8x32xf32>
    %cst_391 = arith.constant dense<0.000000e+00> : vector<8x128xf32>
    %673 = tpu.matmul %672, %505, %cst_391 {dimension_numbers = #tpu.dot_dimension_numbers<[1], [0], [0], [1], [0, 0, 1, 1], [], []>} : vector<8x32xf32>, vector<32x128xf32>, vector<8x128xf32> -> vector<8x128xf32>
    %674 = arith.addf %671, %673 : vector<8x128xf32>
    %675 = arith.negf %674 : vector<8x128xf32>
    %676 = math.exp %675 : vector<8x128xf32>
    %cst_392 = arith.constant 1.000000e+00 : f32
    %677 = vector.broadcast %cst_392 : f32 to vector<8x128xf32>
    %678 = arith.addf %677, %676 : vector<8x128xf32>
    %679 = arith.divf %677, %678 : vector<8x128xf32>
    %680 = math.tanh %674 : vector<8x128xf32>
    %681 = vector.extract_strided_slice %679 {offsets = [0, 32], sizes = [8, 32], strides = [1, 1]} : vector<8x128xf32> to vector<8x32xf32>
    %c0_393 = arith.constant 0 : index
    %c0_394 = arith.constant 0 : index
    %682 = vector.load %arg23[%c0_393, %c0_394] : memref<8x32xf32, #tpu.memory_space<vmem>>, vector<8x32xf32>
    %683 = arith.mulf %681, %682 : vector<8x32xf32>
    %684 = vector.extract_strided_slice %679 {offsets = [0, 0], sizes = [8, 32], strides = [1, 1]} : vector<8x128xf32> to vector<8x32xf32>
    %685 = vector.extract_strided_slice %680 {offsets = [0, 64], sizes = [8, 32], strides = [1, 1]} : vector<8x128xf32> to vector<8x32xf32>
    %686 = arith.mulf %684, %685 : vector<8x32xf32>
    %687 = arith.addf %683, %686 : vector<8x32xf32>
    %688 = vector.extract_strided_slice %679 {offsets = [0, 96], sizes = [8, 32], strides = [1, 1]} : vector<8x128xf32> to vector<8x32xf32>
    %689 = math.tanh %687 : vector<8x32xf32>
    %690 = arith.mulf %688, %689 : vector<8x32xf32>
    %c0_395 = arith.constant 0 : index
    %c0_396 = arith.constant 0 : index
    %691 = vector.load %arg22[%c0_395, %c0_396] : memref<8x32xf32, #tpu.memory_space<vmem>>, vector<8x32xf32>
    tpu.vector_store %arg22[%c0_395, %c0_396], %690 {strides = array<i32>} : memref<8x32xf32, #tpu.memory_space<vmem>>, vector<8x32xf32>,
    %c0_397 = arith.constant 0 : index
    %c0_398 = arith.constant 0 : index
    %692 = vector.load %arg23[%c0_397, %c0_398] : memref<8x32xf32, #tpu.memory_space<vmem>>, vector<8x32xf32>
    tpu.vector_store %arg23[%c0_397, %c0_398], %687 {strides = array<i32>} : memref<8x32xf32, #tpu.memory_space<vmem>>, vector<8x32xf32>,
    %693 = arith.index_cast %669 : i32 to index
    %c0_399 = arith.constant 0 : index
    %694 = vector.load %arg20[%693, %c0_399] : memref<64x32xf32, #tpu.memory_space<vmem>>, vector<8x32xf32>
    tpu.vector_store %arg20[%693, %c0_399], %690 {strides = array<i32>} : memref<64x32xf32, #tpu.memory_space<vmem>>, vector<8x32xf32>,
    %c7_i32_400 = arith.constant 7 : i32
    %c8_i32_401 = arith.constant 8 : i32
    %695 = arith.muli %c7_i32_400, %c8_i32_401 : i32
    %696 = tpu.assume_multiple %695, 8 : i32
    %697 = arith.index_cast %696 : i32 to index
    %c0_402 = arith.constant 0 : index
    %698 = vector.load %arg18[%697, %c0_402] : memref<64x128xf32, #tpu.memory_space<vmem>>, vector<8x128xf32>
    %c0_403 = arith.constant 0 : index
    %c0_404 = arith.constant 0 : index
    %699 = vector.load %arg22[%c0_403, %c0_404] : memref<8x32xf32, #tpu.memory_space<vmem>>, vector<8x32xf32>
    %cst_405 = arith.constant dense<0.000000e+00> : vector<8x128xf32>
    %700 = tpu.matmul %699, %505, %cst_405 {dimension_numbers = #tpu.dot_dimension_numbers<[1], [0], [0], [1], [0, 0, 1, 1], [], []>} : vector<8x32xf32>, vector<32x128xf32>, vector<8x128xf32> -> vector<8x128xf32>
    %701 = arith.addf %698, %700 : vector<8x128xf32>
    %702 = arith.negf %701 : vector<8x128xf32>
    %703 = math.exp %702 : vector<8x128xf32>
    %cst_406 = arith.constant 1.000000e+00 : f32
    %704 = vector.broadcast %cst_406 : f32 to vector<8x128xf32>
    %705 = arith.addf %704, %703 : vector<8x128xf32>
    %706 = arith.divf %704, %705 : vector<8x128xf32>
    %707 = math.tanh %701 : vector<8x128xf32>
    %708 = vector.extract_strided_slice %706 {offsets = [0, 32], sizes = [8, 32], strides = [1, 1]} : vector<8x128xf32> to vector<8x32xf32>
    %c0_407 = arith.constant 0 : index
    %c0_408 = arith.constant 0 : index
    %709 = vector.load %arg23[%c0_407, %c0_408] : memref<8x32xf32, #tpu.memory_space<vmem>>, vector<8x32xf32>
    %710 = arith.mulf %708, %709 : vector<8x32xf32>
    %711 = vector.extract_strided_slice %706 {offsets = [0, 0], sizes = [8, 32], strides = [1, 1]} : vector<8x128xf32> to vector<8x32xf32>
    %712 = vector.extract_strided_slice %707 {offsets = [0, 64], sizes = [8, 32], strides = [1, 1]} : vector<8x128xf32> to vector<8x32xf32>
    %713 = arith.mulf %711, %712 : vector<8x32xf32>
    %714 = arith.addf %710, %713 : vector<8x32xf32>
    %715 = vector.extract_strided_slice %706 {offsets = [0, 96], sizes = [8, 32], strides = [1, 1]} : vector<8x128xf32> to vector<8x32xf32>
    %716 = math.tanh %714 : vector<8x32xf32>
    %717 = arith.mulf %715, %716 : vector<8x32xf32>
    %c0_409 = arith.constant 0 : index
    %c0_410 = arith.constant 0 : index
    %718 = vector.load %arg22[%c0_409, %c0_410] : memref<8x32xf32, #tpu.memory_space<vmem>>, vector<8x32xf32>
    tpu.vector_store %arg22[%c0_409, %c0_410], %717 {strides = array<i32>} : memref<8x32xf32, #tpu.memory_space<vmem>>, vector<8x32xf32>,
    %c0_411 = arith.constant 0 : index
    %c0_412 = arith.constant 0 : index
    %719 = vector.load %arg23[%c0_411, %c0_412] : memref<8x32xf32, #tpu.memory_space<vmem>>, vector<8x32xf32>
    tpu.vector_store %arg23[%c0_411, %c0_412], %714 {strides = array<i32>} : memref<8x32xf32, #tpu.memory_space<vmem>>, vector<8x32xf32>,
    %720 = arith.index_cast %696 : i32 to index
    %c0_413 = arith.constant 0 : index
    %721 = vector.load %arg20[%720, %c0_413] : memref<64x32xf32, #tpu.memory_space<vmem>>, vector<8x32xf32>
    tpu.vector_store %arg20[%720, %c0_413], %717 {strides = array<i32>} : memref<64x32xf32, #tpu.memory_space<vmem>>, vector<8x32xf32>,
    %c8_i32_414 = arith.constant 8 : i32
    %c0_415 = arith.constant 0 : index
    %c0_416 = arith.constant 0 : index
    %722 = vector.load %arg22[%c0_415, %c0_416] : memref<8x32xf32, #tpu.memory_space<vmem>>, vector<8x32xf32>
    %c2 = arith.constant 2 : index
    %c0_417 = arith.constant 0 : index
    %c0_418 = arith.constant 0 : index
    %723 = vector.load %arg16[%c2, %c0_417, %c0_418] : memref<4x8x32xf32, #tpu.memory_space<vmem>>, vector<1x8x32xf32>
    %724 = vector.shape_cast %723 : vector<1x8x32xf32> to vector<8x32xf32>
    %725 = vector.shape_cast %722 : vector<8x32xf32> to vector<1x8x32xf32>
    tpu.vector_store %arg16[%c2, %c0_417, %c0_418], %725 {strides = array<i32>} : memref<4x8x32xf32, #tpu.memory_space<vmem>>, vector<1x8x32xf32>,
    %c0_419 = arith.constant 0 : index
    %c0_420 = arith.constant 0 : index
    %726 = vector.load %arg23[%c0_419, %c0_420] : memref<8x32xf32, #tpu.memory_space<vmem>>, vector<8x32xf32>
    %c2_421 = arith.constant 2 : index
    %c0_422 = arith.constant 0 : index
    %c0_423 = arith.constant 0 : index
    %727 = vector.load %arg17[%c2_421, %c0_422, %c0_423] : memref<4x8x32xf32, #tpu.memory_space<vmem>>, vector<1x8x32xf32>
    %728 = vector.shape_cast %727 : vector<1x8x32xf32> to vector<8x32xf32>
    %729 = vector.shape_cast %726 : vector<8x32xf32> to vector<1x8x32xf32>
    tpu.vector_store %arg17[%c2_421, %c0_422, %c0_423], %729 {strides = array<i32>} : memref<4x8x32xf32, #tpu.memory_space<vmem>>, vector<1x8x32xf32>,
    %cst_424 = arith.constant 0.000000e+00 : f32
    %730 = vector.broadcast %cst_424 : f32 to vector<8x32xf32>
    %c0_425 = arith.constant 0 : index
    %c0_426 = arith.constant 0 : index
    %731 = vector.load %arg22[%c0_425, %c0_426] : memref<8x32xf32, #tpu.memory_space<vmem>>, vector<8x32xf32>
    tpu.vector_store %arg22[%c0_425, %c0_426], %730 {strides = array<i32>} : memref<8x32xf32, #tpu.memory_space<vmem>>, vector<8x32xf32>,
    %cst_427 = arith.constant 0.000000e+00 : f32
    %732 = vector.broadcast %cst_427 : f32 to vector<8x32xf32>
    %c0_428 = arith.constant 0 : index
    %c0_429 = arith.constant 0 : index
    %733 = vector.load %arg23[%c0_428, %c0_429] : memref<8x32xf32, #tpu.memory_space<vmem>>, vector<8x32xf32>
    tpu.vector_store %arg23[%c0_428, %c0_429], %732 {strides = array<i32>} : memref<8x32xf32, #tpu.memory_space<vmem>>, vector<8x32xf32>,
    %c0_430 = arith.constant 0 : index
    %c0_431 = arith.constant 0 : index
    %734 = vector.load %arg11[%c0_430, %c0_431] : memref<32x128xf32, #tpu.memory_space<vmem>>, vector<32x128xf32>
    %c0_i32_432 = arith.constant 0 : i32
    %c7_i32_433 = arith.constant 7 : i32
    %735 = arith.subi %c7_i32_433, %c0_i32_432 : i32
    %c8_i32_434 = arith.constant 8 : i32
    %736 = arith.muli %735, %c8_i32_434 : i32
    %737 = tpu.assume_multiple %736, 8 : i32
    %738 = arith.index_cast %737 : i32 to index
    %c0_435 = arith.constant 0 : index
    %739 = vector.load %arg19[%738, %c0_435] : memref<64x128xf32, #tpu.memory_space<vmem>>, vector<8x128xf32>
    %c0_436 = arith.constant 0 : index
    %c0_437 = arith.constant 0 : index
    %740 = vector.load %arg22[%c0_436, %c0_437] : memref<8x32xf32, #tpu.memory_space<vmem>>, vector<8x32xf32>
    %cst_438 = arith.constant dense<0.000000e+00> : vector<8x128xf32>
    %741 = tpu.matmul %740, %734, %cst_438 {dimension_numbers = #tpu.dot_dimension_numbers<[1], [0], [0], [1], [0, 0, 1, 1], [], []>} : vector<8x32xf32>, vector<32x128xf32>, vector<8x128xf32> -> vector<8x128xf32>
    %742 = arith.addf %739, %741 : vector<8x128xf32>
    %743 = arith.negf %742 : vector<8x128xf32>
    %744 = math.exp %743 : vector<8x128xf32>
    %cst_439 = arith.constant 1.000000e+00 : f32
    %745 = vector.broadcast %cst_439 : f32 to vector<8x128xf32>
    %746 = arith.addf %745, %744 : vector<8x128xf32>
    %747 = arith.divf %745, %746 : vector<8x128xf32>
    %748 = math.tanh %742 : vector<8x128xf32>
    %749 = vector.extract_strided_slice %747 {offsets = [0, 32], sizes = [8, 32], strides = [1, 1]} : vector<8x128xf32> to vector<8x32xf32>
    %c0_440 = arith.constant 0 : index
    %c0_441 = arith.constant 0 : index
    %750 = vector.load %arg23[%c0_440, %c0_441] : memref<8x32xf32, #tpu.memory_space<vmem>>, vector<8x32xf32>
    %751 = arith.mulf %749, %750 : vector<8x32xf32>
    %752 = vector.extract_strided_slice %747 {offsets = [0, 0], sizes = [8, 32], strides = [1, 1]} : vector<8x128xf32> to vector<8x32xf32>
    %753 = vector.extract_strided_slice %748 {offsets = [0, 64], sizes = [8, 32], strides = [1, 1]} : vector<8x128xf32> to vector<8x32xf32>
    %754 = arith.mulf %752, %753 : vector<8x32xf32>
    %755 = arith.addf %751, %754 : vector<8x32xf32>
    %756 = vector.extract_strided_slice %747 {offsets = [0, 96], sizes = [8, 32], strides = [1, 1]} : vector<8x128xf32> to vector<8x32xf32>
    %757 = math.tanh %755 : vector<8x32xf32>
    %758 = arith.mulf %756, %757 : vector<8x32xf32>
    %c0_442 = arith.constant 0 : index
    %c0_443 = arith.constant 0 : index
    %759 = vector.load %arg22[%c0_442, %c0_443] : memref<8x32xf32, #tpu.memory_space<vmem>>, vector<8x32xf32>
    tpu.vector_store %arg22[%c0_442, %c0_443], %758 {strides = array<i32>} : memref<8x32xf32, #tpu.memory_space<vmem>>, vector<8x32xf32>,
    %c0_444 = arith.constant 0 : index
    %c0_445 = arith.constant 0 : index
    %760 = vector.load %arg23[%c0_444, %c0_445] : memref<8x32xf32, #tpu.memory_space<vmem>>, vector<8x32xf32>
    tpu.vector_store %arg23[%c0_444, %c0_445], %755 {strides = array<i32>} : memref<8x32xf32, #tpu.memory_space<vmem>>, vector<8x32xf32>,
    %761 = arith.index_cast %737 : i32 to index
    %c0_446 = arith.constant 0 : index
    %762 = vector.load %arg21[%761, %c0_446] : memref<64x32xf32, #tpu.memory_space<vmem>>, vector<8x32xf32>
    tpu.vector_store %arg21[%761, %c0_446], %758 {strides = array<i32>} : memref<64x32xf32, #tpu.memory_space<vmem>>, vector<8x32xf32>,
    %c1_i32_447 = arith.constant 1 : i32
    %c7_i32_448 = arith.constant 7 : i32
    %763 = arith.subi %c7_i32_448, %c1_i32_447 : i32
    %c8_i32_449 = arith.constant 8 : i32
    %764 = arith.muli %763, %c8_i32_449 : i32
    %765 = tpu.assume_multiple %764, 8 : i32
    %766 = arith.index_cast %765 : i32 to index
    %c0_450 = arith.constant 0 : index
    %767 = vector.load %arg19[%766, %c0_450] : memref<64x128xf32, #tpu.memory_space<vmem>>, vector<8x128xf32>
    %c0_451 = arith.constant 0 : index
    %c0_452 = arith.constant 0 : index
    %768 = vector.load %arg22[%c0_451, %c0_452] : memref<8x32xf32, #tpu.memory_space<vmem>>, vector<8x32xf32>
    %cst_453 = arith.constant dense<0.000000e+00> : vector<8x128xf32>
    %769 = tpu.matmul %768, %734, %cst_453 {dimension_numbers = #tpu.dot_dimension_numbers<[1], [0], [0], [1], [0, 0, 1, 1], [], []>} : vector<8x32xf32>, vector<32x128xf32>, vector<8x128xf32> -> vector<8x128xf32>
    %770 = arith.addf %767, %769 : vector<8x128xf32>
    %771 = arith.negf %770 : vector<8x128xf32>
    %772 = math.exp %771 : vector<8x128xf32>
    %cst_454 = arith.constant 1.000000e+00 : f32
    %773 = vector.broadcast %cst_454 : f32 to vector<8x128xf32>
    %774 = arith.addf %773, %772 : vector<8x128xf32>
    %775 = arith.divf %773, %774 : vector<8x128xf32>
    %776 = math.tanh %770 : vector<8x128xf32>
    %777 = vector.extract_strided_slice %775 {offsets = [0, 32], sizes = [8, 32], strides = [1, 1]} : vector<8x128xf32> to vector<8x32xf32>
    %c0_455 = arith.constant 0 : index
    %c0_456 = arith.constant 0 : index
    %778 = vector.load %arg23[%c0_455, %c0_456] : memref<8x32xf32, #tpu.memory_space<vmem>>, vector<8x32xf32>
    %779 = arith.mulf %777, %778 : vector<8x32xf32>
    %780 = vector.extract_strided_slice %775 {offsets = [0, 0], sizes = [8, 32], strides = [1, 1]} : vector<8x128xf32> to vector<8x32xf32>
    %781 = vector.extract_strided_slice %776 {offsets = [0, 64], sizes = [8, 32], strides = [1, 1]} : vector<8x128xf32> to vector<8x32xf32>
    %782 = arith.mulf %780, %781 : vector<8x32xf32>
    %783 = arith.addf %779, %782 : vector<8x32xf32>
    %784 = vector.extract_strided_slice %775 {offsets = [0, 96], sizes = [8, 32], strides = [1, 1]} : vector<8x128xf32> to vector<8x32xf32>
    %785 = math.tanh %783 : vector<8x32xf32>
    %786 = arith.mulf %784, %785 : vector<8x32xf32>
    %c0_457 = arith.constant 0 : index
    %c0_458 = arith.constant 0 : index
    %787 = vector.load %arg22[%c0_457, %c0_458] : memref<8x32xf32, #tpu.memory_space<vmem>>, vector<8x32xf32>
    tpu.vector_store %arg22[%c0_457, %c0_458], %786 {strides = array<i32>} : memref<8x32xf32, #tpu.memory_space<vmem>>, vector<8x32xf32>,
    %c0_459 = arith.constant 0 : index
    %c0_460 = arith.constant 0 : index
    %788 = vector.load %arg23[%c0_459, %c0_460] : memref<8x32xf32, #tpu.memory_space<vmem>>, vector<8x32xf32>
    tpu.vector_store %arg23[%c0_459, %c0_460], %783 {strides = array<i32>} : memref<8x32xf32, #tpu.memory_space<vmem>>, vector<8x32xf32>,
    %789 = arith.index_cast %765 : i32 to index
    %c0_461 = arith.constant 0 : index
    %790 = vector.load %arg21[%789, %c0_461] : memref<64x32xf32, #tpu.memory_space<vmem>>, vector<8x32xf32>
    tpu.vector_store %arg21[%789, %c0_461], %786 {strides = array<i32>} : memref<64x32xf32, #tpu.memory_space<vmem>>, vector<8x32xf32>,
    %c2_i32_462 = arith.constant 2 : i32
    %c7_i32_463 = arith.constant 7 : i32
    %791 = arith.subi %c7_i32_463, %c2_i32_462 : i32
    %c8_i32_464 = arith.constant 8 : i32
    %792 = arith.muli %791, %c8_i32_464 : i32
    %793 = tpu.assume_multiple %792, 8 : i32
    %794 = arith.index_cast %793 : i32 to index
    %c0_465 = arith.constant 0 : index
    %795 = vector.load %arg19[%794, %c0_465] : memref<64x128xf32, #tpu.memory_space<vmem>>, vector<8x128xf32>
    %c0_466 = arith.constant 0 : index
    %c0_467 = arith.constant 0 : index
    %796 = vector.load %arg22[%c0_466, %c0_467] : memref<8x32xf32, #tpu.memory_space<vmem>>, vector<8x32xf32>
    %cst_468 = arith.constant dense<0.000000e+00> : vector<8x128xf32>
    %797 = tpu.matmul %796, %734, %cst_468 {dimension_numbers = #tpu.dot_dimension_numbers<[1], [0], [0], [1], [0, 0, 1, 1], [], []>} : vector<8x32xf32>, vector<32x128xf32>, vector<8x128xf32> -> vector<8x128xf32>
    %798 = arith.addf %795, %797 : vector<8x128xf32>
    %799 = arith.negf %798 : vector<8x128xf32>
    %800 = math.exp %799 : vector<8x128xf32>
    %cst_469 = arith.constant 1.000000e+00 : f32
    %801 = vector.broadcast %cst_469 : f32 to vector<8x128xf32>
    %802 = arith.addf %801, %800 : vector<8x128xf32>
    %803 = arith.divf %801, %802 : vector<8x128xf32>
    %804 = math.tanh %798 : vector<8x128xf32>
    %805 = vector.extract_strided_slice %803 {offsets = [0, 32], sizes = [8, 32], strides = [1, 1]} : vector<8x128xf32> to vector<8x32xf32>
    %c0_470 = arith.constant 0 : index
    %c0_471 = arith.constant 0 : index
    %806 = vector.load %arg23[%c0_470, %c0_471] : memref<8x32xf32, #tpu.memory_space<vmem>>, vector<8x32xf32>
    %807 = arith.mulf %805, %806 : vector<8x32xf32>
    %808 = vector.extract_strided_slice %803 {offsets = [0, 0], sizes = [8, 32], strides = [1, 1]} : vector<8x128xf32> to vector<8x32xf32>
    %809 = vector.extract_strided_slice %804 {offsets = [0, 64], sizes = [8, 32], strides = [1, 1]} : vector<8x128xf32> to vector<8x32xf32>
    %810 = arith.mulf %808, %809 : vector<8x32xf32>
    %811 = arith.addf %807, %810 : vector<8x32xf32>
    %812 = vector.extract_strided_slice %803 {offsets = [0, 96], sizes = [8, 32], strides = [1, 1]} : vector<8x128xf32> to vector<8x32xf32>
    %813 = math.tanh %811 : vector<8x32xf32>
    %814 = arith.mulf %812, %813 : vector<8x32xf32>
    %c0_472 = arith.constant 0 : index
    %c0_473 = arith.constant 0 : index
    %815 = vector.load %arg22[%c0_472, %c0_473] : memref<8x32xf32, #tpu.memory_space<vmem>>, vector<8x32xf32>
    tpu.vector_store %arg22[%c0_472, %c0_473], %814 {strides = array<i32>} : memref<8x32xf32, #tpu.memory_space<vmem>>, vector<8x32xf32>,
    %c0_474 = arith.constant 0 : index
    %c0_475 = arith.constant 0 : index
    %816 = vector.load %arg23[%c0_474, %c0_475] : memref<8x32xf32, #tpu.memory_space<vmem>>, vector<8x32xf32>
    tpu.vector_store %arg23[%c0_474, %c0_475], %811 {strides = array<i32>} : memref<8x32xf32, #tpu.memory_space<vmem>>, vector<8x32xf32>,
    %817 = arith.index_cast %793 : i32 to index
    %c0_476 = arith.constant 0 : index
    %818 = vector.load %arg21[%817, %c0_476] : memref<64x32xf32, #tpu.memory_space<vmem>>, vector<8x32xf32>
    tpu.vector_store %arg21[%817, %c0_476], %814 {strides = array<i32>} : memref<64x32xf32, #tpu.memory_space<vmem>>, vector<8x32xf32>,
    %c3_i32_477 = arith.constant 3 : i32
    %c7_i32_478 = arith.constant 7 : i32
    %819 = arith.subi %c7_i32_478, %c3_i32_477 : i32
    %c8_i32_479 = arith.constant 8 : i32
    %820 = arith.muli %819, %c8_i32_479 : i32
    %821 = tpu.assume_multiple %820, 8 : i32
    %822 = arith.index_cast %821 : i32 to index
    %c0_480 = arith.constant 0 : index
    %823 = vector.load %arg19[%822, %c0_480] : memref<64x128xf32, #tpu.memory_space<vmem>>, vector<8x128xf32>
    %c0_481 = arith.constant 0 : index
    %c0_482 = arith.constant 0 : index
    %824 = vector.load %arg22[%c0_481, %c0_482] : memref<8x32xf32, #tpu.memory_space<vmem>>, vector<8x32xf32>
    %cst_483 = arith.constant dense<0.000000e+00> : vector<8x128xf32>
    %825 = tpu.matmul %824, %734, %cst_483 {dimension_numbers = #tpu.dot_dimension_numbers<[1], [0], [0], [1], [0, 0, 1, 1], [], []>} : vector<8x32xf32>, vector<32x128xf32>, vector<8x128xf32> -> vector<8x128xf32>
    %826 = arith.addf %823, %825 : vector<8x128xf32>
    %827 = arith.negf %826 : vector<8x128xf32>
    %828 = math.exp %827 : vector<8x128xf32>
    %cst_484 = arith.constant 1.000000e+00 : f32
    %829 = vector.broadcast %cst_484 : f32 to vector<8x128xf32>
    %830 = arith.addf %829, %828 : vector<8x128xf32>
    %831 = arith.divf %829, %830 : vector<8x128xf32>
    %832 = math.tanh %826 : vector<8x128xf32>
    %833 = vector.extract_strided_slice %831 {offsets = [0, 32], sizes = [8, 32], strides = [1, 1]} : vector<8x128xf32> to vector<8x32xf32>
    %c0_485 = arith.constant 0 : index
    %c0_486 = arith.constant 0 : index
    %834 = vector.load %arg23[%c0_485, %c0_486] : memref<8x32xf32, #tpu.memory_space<vmem>>, vector<8x32xf32>
    %835 = arith.mulf %833, %834 : vector<8x32xf32>
    %836 = vector.extract_strided_slice %831 {offsets = [0, 0], sizes = [8, 32], strides = [1, 1]} : vector<8x128xf32> to vector<8x32xf32>
    %837 = vector.extract_strided_slice %832 {offsets = [0, 64], sizes = [8, 32], strides = [1, 1]} : vector<8x128xf32> to vector<8x32xf32>
    %838 = arith.mulf %836, %837 : vector<8x32xf32>
    %839 = arith.addf %835, %838 : vector<8x32xf32>
    %840 = vector.extract_strided_slice %831 {offsets = [0, 96], sizes = [8, 32], strides = [1, 1]} : vector<8x128xf32> to vector<8x32xf32>
    %841 = math.tanh %839 : vector<8x32xf32>
    %842 = arith.mulf %840, %841 : vector<8x32xf32>
    %c0_487 = arith.constant 0 : index
    %c0_488 = arith.constant 0 : index
    %843 = vector.load %arg22[%c0_487, %c0_488] : memref<8x32xf32, #tpu.memory_space<vmem>>, vector<8x32xf32>
    tpu.vector_store %arg22[%c0_487, %c0_488], %842 {strides = array<i32>} : memref<8x32xf32, #tpu.memory_space<vmem>>, vector<8x32xf32>,
    %c0_489 = arith.constant 0 : index
    %c0_490 = arith.constant 0 : index
    %844 = vector.load %arg23[%c0_489, %c0_490] : memref<8x32xf32, #tpu.memory_space<vmem>>, vector<8x32xf32>
    tpu.vector_store %arg23[%c0_489, %c0_490], %839 {strides = array<i32>} : memref<8x32xf32, #tpu.memory_space<vmem>>, vector<8x32xf32>,
    %845 = arith.index_cast %821 : i32 to index
    %c0_491 = arith.constant 0 : index
    %846 = vector.load %arg21[%845, %c0_491] : memref<64x32xf32, #tpu.memory_space<vmem>>, vector<8x32xf32>
    tpu.vector_store %arg21[%845, %c0_491], %842 {strides = array<i32>} : memref<64x32xf32, #tpu.memory_space<vmem>>, vector<8x32xf32>,
    %c4_i32_492 = arith.constant 4 : i32
    %c7_i32_493 = arith.constant 7 : i32
    %847 = arith.subi %c7_i32_493, %c4_i32_492 : i32
    %c8_i32_494 = arith.constant 8 : i32
    %848 = arith.muli %847, %c8_i32_494 : i32
    %849 = tpu.assume_multiple %848, 8 : i32
    %850 = arith.index_cast %849 : i32 to index
    %c0_495 = arith.constant 0 : index
    %851 = vector.load %arg19[%850, %c0_495] : memref<64x128xf32, #tpu.memory_space<vmem>>, vector<8x128xf32>
    %c0_496 = arith.constant 0 : index
    %c0_497 = arith.constant 0 : index
    %852 = vector.load %arg22[%c0_496, %c0_497] : memref<8x32xf32, #tpu.memory_space<vmem>>, vector<8x32xf32>
    %cst_498 = arith.constant dense<0.000000e+00> : vector<8x128xf32>
    %853 = tpu.matmul %852, %734, %cst_498 {dimension_numbers = #tpu.dot_dimension_numbers<[1], [0], [0], [1], [0, 0, 1, 1], [], []>} : vector<8x32xf32>, vector<32x128xf32>, vector<8x128xf32> -> vector<8x128xf32>
    %854 = arith.addf %851, %853 : vector<8x128xf32>
    %855 = arith.negf %854 : vector<8x128xf32>
    %856 = math.exp %855 : vector<8x128xf32>
    %cst_499 = arith.constant 1.000000e+00 : f32
    %857 = vector.broadcast %cst_499 : f32 to vector<8x128xf32>
    %858 = arith.addf %857, %856 : vector<8x128xf32>
    %859 = arith.divf %857, %858 : vector<8x128xf32>
    %860 = math.tanh %854 : vector<8x128xf32>
    %861 = vector.extract_strided_slice %859 {offsets = [0, 32], sizes = [8, 32], strides = [1, 1]} : vector<8x128xf32> to vector<8x32xf32>
    %c0_500 = arith.constant 0 : index
    %c0_501 = arith.constant 0 : index
    %862 = vector.load %arg23[%c0_500, %c0_501] : memref<8x32xf32, #tpu.memory_space<vmem>>, vector<8x32xf32>
    %863 = arith.mulf %861, %862 : vector<8x32xf32>
    %864 = vector.extract_strided_slice %859 {offsets = [0, 0], sizes = [8, 32], strides = [1, 1]} : vector<8x128xf32> to vector<8x32xf32>
    %865 = vector.extract_strided_slice %860 {offsets = [0, 64], sizes = [8, 32], strides = [1, 1]} : vector<8x128xf32> to vector<8x32xf32>
    %866 = arith.mulf %864, %865 : vector<8x32xf32>
    %867 = arith.addf %863, %866 : vector<8x32xf32>
    %868 = vector.extract_strided_slice %859 {offsets = [0, 96], sizes = [8, 32], strides = [1, 1]} : vector<8x128xf32> to vector<8x32xf32>
    %869 = math.tanh %867 : vector<8x32xf32>
    %870 = arith.mulf %868, %869 : vector<8x32xf32>
    %c0_502 = arith.constant 0 : index
    %c0_503 = arith.constant 0 : index
    %871 = vector.load %arg22[%c0_502, %c0_503] : memref<8x32xf32, #tpu.memory_space<vmem>>, vector<8x32xf32>
    tpu.vector_store %arg22[%c0_502, %c0_503], %870 {strides = array<i32>} : memref<8x32xf32, #tpu.memory_space<vmem>>, vector<8x32xf32>,
    %c0_504 = arith.constant 0 : index
    %c0_505 = arith.constant 0 : index
    %872 = vector.load %arg23[%c0_504, %c0_505] : memref<8x32xf32, #tpu.memory_space<vmem>>, vector<8x32xf32>
    tpu.vector_store %arg23[%c0_504, %c0_505], %867 {strides = array<i32>} : memref<8x32xf32, #tpu.memory_space<vmem>>, vector<8x32xf32>,
    %873 = arith.index_cast %849 : i32 to index
    %c0_506 = arith.constant 0 : index
    %874 = vector.load %arg21[%873, %c0_506] : memref<64x32xf32, #tpu.memory_space<vmem>>, vector<8x32xf32>
    tpu.vector_store %arg21[%873, %c0_506], %870 {strides = array<i32>} : memref<64x32xf32, #tpu.memory_space<vmem>>, vector<8x32xf32>,
    %c5_i32_507 = arith.constant 5 : i32
    %c7_i32_508 = arith.constant 7 : i32
    %875 = arith.subi %c7_i32_508, %c5_i32_507 : i32
    %c8_i32_509 = arith.constant 8 : i32
    %876 = arith.muli %875, %c8_i32_509 : i32
    %877 = tpu.assume_multiple %876, 8 : i32
    %878 = arith.index_cast %877 : i32 to index
    %c0_510 = arith.constant 0 : index
    %879 = vector.load %arg19[%878, %c0_510] : memref<64x128xf32, #tpu.memory_space<vmem>>, vector<8x128xf32>
    %c0_511 = arith.constant 0 : index
    %c0_512 = arith.constant 0 : index
    %880 = vector.load %arg22[%c0_511, %c0_512] : memref<8x32xf32, #tpu.memory_space<vmem>>, vector<8x32xf32>
    %cst_513 = arith.constant dense<0.000000e+00> : vector<8x128xf32>
    %881 = tpu.matmul %880, %734, %cst_513 {dimension_numbers = #tpu.dot_dimension_numbers<[1], [0], [0], [1], [0, 0, 1, 1], [], []>} : vector<8x32xf32>, vector<32x128xf32>, vector<8x128xf32> -> vector<8x128xf32>
    %882 = arith.addf %879, %881 : vector<8x128xf32>
    %883 = arith.negf %882 : vector<8x128xf32>
    %884 = math.exp %883 : vector<8x128xf32>
    %cst_514 = arith.constant 1.000000e+00 : f32
    %885 = vector.broadcast %cst_514 : f32 to vector<8x128xf32>
    %886 = arith.addf %885, %884 : vector<8x128xf32>
    %887 = arith.divf %885, %886 : vector<8x128xf32>
    %888 = math.tanh %882 : vector<8x128xf32>
    %889 = vector.extract_strided_slice %887 {offsets = [0, 32], sizes = [8, 32], strides = [1, 1]} : vector<8x128xf32> to vector<8x32xf32>
    %c0_515 = arith.constant 0 : index
    %c0_516 = arith.constant 0 : index
    %890 = vector.load %arg23[%c0_515, %c0_516] : memref<8x32xf32, #tpu.memory_space<vmem>>, vector<8x32xf32>
    %891 = arith.mulf %889, %890 : vector<8x32xf32>
    %892 = vector.extract_strided_slice %887 {offsets = [0, 0], sizes = [8, 32], strides = [1, 1]} : vector<8x128xf32> to vector<8x32xf32>
    %893 = vector.extract_strided_slice %888 {offsets = [0, 64], sizes = [8, 32], strides = [1, 1]} : vector<8x128xf32> to vector<8x32xf32>
    %894 = arith.mulf %892, %893 : vector<8x32xf32>
    %895 = arith.addf %891, %894 : vector<8x32xf32>
    %896 = vector.extract_strided_slice %887 {offsets = [0, 96], sizes = [8, 32], strides = [1, 1]} : vector<8x128xf32> to vector<8x32xf32>
    %897 = math.tanh %895 : vector<8x32xf32>
    %898 = arith.mulf %896, %897 : vector<8x32xf32>
    %c0_517 = arith.constant 0 : index
    %c0_518 = arith.constant 0 : index
    %899 = vector.load %arg22[%c0_517, %c0_518] : memref<8x32xf32, #tpu.memory_space<vmem>>, vector<8x32xf32>
    tpu.vector_store %arg22[%c0_517, %c0_518], %898 {strides = array<i32>} : memref<8x32xf32, #tpu.memory_space<vmem>>, vector<8x32xf32>,
    %c0_519 = arith.constant 0 : index
    %c0_520 = arith.constant 0 : index
    %900 = vector.load %arg23[%c0_519, %c0_520] : memref<8x32xf32, #tpu.memory_space<vmem>>, vector<8x32xf32>
    tpu.vector_store %arg23[%c0_519, %c0_520], %895 {strides = array<i32>} : memref<8x32xf32, #tpu.memory_space<vmem>>, vector<8x32xf32>,
    %901 = arith.index_cast %877 : i32 to index
    %c0_521 = arith.constant 0 : index
    %902 = vector.load %arg21[%901, %c0_521] : memref<64x32xf32, #tpu.memory_space<vmem>>, vector<8x32xf32>
    tpu.vector_store %arg21[%901, %c0_521], %898 {strides = array<i32>} : memref<64x32xf32, #tpu.memory_space<vmem>>, vector<8x32xf32>,
    %c6_i32_522 = arith.constant 6 : i32
    %c7_i32_523 = arith.constant 7 : i32
    %903 = arith.subi %c7_i32_523, %c6_i32_522 : i32
    %c8_i32_524 = arith.constant 8 : i32
    %904 = arith.muli %903, %c8_i32_524 : i32
    %905 = tpu.assume_multiple %904, 8 : i32
    %906 = arith.index_cast %905 : i32 to index
    %c0_525 = arith.constant 0 : index
    %907 = vector.load %arg19[%906, %c0_525] : memref<64x128xf32, #tpu.memory_space<vmem>>, vector<8x128xf32>
    %c0_526 = arith.constant 0 : index
    %c0_527 = arith.constant 0 : index
    %908 = vector.load %arg22[%c0_526, %c0_527] : memref<8x32xf32, #tpu.memory_space<vmem>>, vector<8x32xf32>
    %cst_528 = arith.constant dense<0.000000e+00> : vector<8x128xf32>
    %909 = tpu.matmul %908, %734, %cst_528 {dimension_numbers = #tpu.dot_dimension_numbers<[1], [0], [0], [1], [0, 0, 1, 1], [], []>} : vector<8x32xf32>, vector<32x128xf32>, vector<8x128xf32> -> vector<8x128xf32>
    %910 = arith.addf %907, %909 : vector<8x128xf32>
    %911 = arith.negf %910 : vector<8x128xf32>
    %912 = math.exp %911 : vector<8x128xf32>
    %cst_529 = arith.constant 1.000000e+00 : f32
    %913 = vector.broadcast %cst_529 : f32 to vector<8x128xf32>
    %914 = arith.addf %913, %912 : vector<8x128xf32>
    %915 = arith.divf %913, %914 : vector<8x128xf32>
    %916 = math.tanh %910 : vector<8x128xf32>
    %917 = vector.extract_strided_slice %915 {offsets = [0, 32], sizes = [8, 32], strides = [1, 1]} : vector<8x128xf32> to vector<8x32xf32>
    %c0_530 = arith.constant 0 : index
    %c0_531 = arith.constant 0 : index
    %918 = vector.load %arg23[%c0_530, %c0_531] : memref<8x32xf32, #tpu.memory_space<vmem>>, vector<8x32xf32>
    %919 = arith.mulf %917, %918 : vector<8x32xf32>
    %920 = vector.extract_strided_slice %915 {offsets = [0, 0], sizes = [8, 32], strides = [1, 1]} : vector<8x128xf32> to vector<8x32xf32>
    %921 = vector.extract_strided_slice %916 {offsets = [0, 64], sizes = [8, 32], strides = [1, 1]} : vector<8x128xf32> to vector<8x32xf32>
    %922 = arith.mulf %920, %921 : vector<8x32xf32>
    %923 = arith.addf %919, %922 : vector<8x32xf32>
    %924 = vector.extract_strided_slice %915 {offsets = [0, 96], sizes = [8, 32], strides = [1, 1]} : vector<8x128xf32> to vector<8x32xf32>
    %925 = math.tanh %923 : vector<8x32xf32>
    %926 = arith.mulf %924, %925 : vector<8x32xf32>
    %c0_532 = arith.constant 0 : index
    %c0_533 = arith.constant 0 : index
    %927 = vector.load %arg22[%c0_532, %c0_533] : memref<8x32xf32, #tpu.memory_space<vmem>>, vector<8x32xf32>
    tpu.vector_store %arg22[%c0_532, %c0_533], %926 {strides = array<i32>} : memref<8x32xf32, #tpu.memory_space<vmem>>, vector<8x32xf32>,
    %c0_534 = arith.constant 0 : index
    %c0_535 = arith.constant 0 : index
    %928 = vector.load %arg23[%c0_534, %c0_535] : memref<8x32xf32, #tpu.memory_space<vmem>>, vector<8x32xf32>
    tpu.vector_store %arg23[%c0_534, %c0_535], %923 {strides = array<i32>} : memref<8x32xf32, #tpu.memory_space<vmem>>, vector<8x32xf32>,
    %929 = arith.index_cast %905 : i32 to index
    %c0_536 = arith.constant 0 : index
    %930 = vector.load %arg21[%929, %c0_536] : memref<64x32xf32, #tpu.memory_space<vmem>>, vector<8x32xf32>
    tpu.vector_store %arg21[%929, %c0_536], %926 {strides = array<i32>} : memref<64x32xf32, #tpu.memory_space<vmem>>, vector<8x32xf32>,
    %c7_i32_537 = arith.constant 7 : i32
    %c7_i32_538 = arith.constant 7 : i32
    %931 = arith.subi %c7_i32_538, %c7_i32_537 : i32
    %c8_i32_539 = arith.constant 8 : i32
    %932 = arith.muli %931, %c8_i32_539 : i32
    %933 = tpu.assume_multiple %932, 8 : i32
    %934 = arith.index_cast %933 : i32 to index
    %c0_540 = arith.constant 0 : index
    %935 = vector.load %arg19[%934, %c0_540] : memref<64x128xf32, #tpu.memory_space<vmem>>, vector<8x128xf32>
    %c0_541 = arith.constant 0 : index
    %c0_542 = arith.constant 0 : index
    %936 = vector.load %arg22[%c0_541, %c0_542] : memref<8x32xf32, #tpu.memory_space<vmem>>, vector<8x32xf32>
    %cst_543 = arith.constant dense<0.000000e+00> : vector<8x128xf32>
    %937 = tpu.matmul %936, %734, %cst_543 {dimension_numbers = #tpu.dot_dimension_numbers<[1], [0], [0], [1], [0, 0, 1, 1], [], []>} : vector<8x32xf32>, vector<32x128xf32>, vector<8x128xf32> -> vector<8x128xf32>
    %938 = arith.addf %935, %937 : vector<8x128xf32>
    %939 = arith.negf %938 : vector<8x128xf32>
    %940 = math.exp %939 : vector<8x128xf32>
    %cst_544 = arith.constant 1.000000e+00 : f32
    %941 = vector.broadcast %cst_544 : f32 to vector<8x128xf32>
    %942 = arith.addf %941, %940 : vector<8x128xf32>
    %943 = arith.divf %941, %942 : vector<8x128xf32>
    %944 = math.tanh %938 : vector<8x128xf32>
    %945 = vector.extract_strided_slice %943 {offsets = [0, 32], sizes = [8, 32], strides = [1, 1]} : vector<8x128xf32> to vector<8x32xf32>
    %c0_545 = arith.constant 0 : index
    %c0_546 = arith.constant 0 : index
    %946 = vector.load %arg23[%c0_545, %c0_546] : memref<8x32xf32, #tpu.memory_space<vmem>>, vector<8x32xf32>
    %947 = arith.mulf %945, %946 : vector<8x32xf32>
    %948 = vector.extract_strided_slice %943 {offsets = [0, 0], sizes = [8, 32], strides = [1, 1]} : vector<8x128xf32> to vector<8x32xf32>
    %949 = vector.extract_strided_slice %944 {offsets = [0, 64], sizes = [8, 32], strides = [1, 1]} : vector<8x128xf32> to vector<8x32xf32>
    %950 = arith.mulf %948, %949 : vector<8x32xf32>
    %951 = arith.addf %947, %950 : vector<8x32xf32>
    %952 = vector.extract_strided_slice %943 {offsets = [0, 96], sizes = [8, 32], strides = [1, 1]} : vector<8x128xf32> to vector<8x32xf32>
    %953 = math.tanh %951 : vector<8x32xf32>
    %954 = arith.mulf %952, %953 : vector<8x32xf32>
    %c0_547 = arith.constant 0 : index
    %c0_548 = arith.constant 0 : index
    %955 = vector.load %arg22[%c0_547, %c0_548] : memref<8x32xf32, #tpu.memory_space<vmem>>, vector<8x32xf32>
    tpu.vector_store %arg22[%c0_547, %c0_548], %954 {strides = array<i32>} : memref<8x32xf32, #tpu.memory_space<vmem>>, vector<8x32xf32>,
    %c0_549 = arith.constant 0 : index
    %c0_550 = arith.constant 0 : index
    %956 = vector.load %arg23[%c0_549, %c0_550] : memref<8x32xf32, #tpu.memory_space<vmem>>, vector<8x32xf32>
    tpu.vector_store %arg23[%c0_549, %c0_550], %951 {strides = array<i32>} : memref<8x32xf32, #tpu.memory_space<vmem>>, vector<8x32xf32>,
    %957 = arith.index_cast %933 : i32 to index
    %c0_551 = arith.constant 0 : index
    %958 = vector.load %arg21[%957, %c0_551] : memref<64x32xf32, #tpu.memory_space<vmem>>, vector<8x32xf32>
    tpu.vector_store %arg21[%957, %c0_551], %954 {strides = array<i32>} : memref<64x32xf32, #tpu.memory_space<vmem>>, vector<8x32xf32>,
    %c8_i32_552 = arith.constant 8 : i32
    %c0_553 = arith.constant 0 : index
    %c0_554 = arith.constant 0 : index
    %959 = vector.load %arg22[%c0_553, %c0_554] : memref<8x32xf32, #tpu.memory_space<vmem>>, vector<8x32xf32>
    %c3 = arith.constant 3 : index
    %c0_555 = arith.constant 0 : index
    %c0_556 = arith.constant 0 : index
    %960 = vector.load %arg16[%c3, %c0_555, %c0_556] : memref<4x8x32xf32, #tpu.memory_space<vmem>>, vector<1x8x32xf32>
    %961 = vector.shape_cast %960 : vector<1x8x32xf32> to vector<8x32xf32>
    %962 = vector.shape_cast %959 : vector<8x32xf32> to vector<1x8x32xf32>
    tpu.vector_store %arg16[%c3, %c0_555, %c0_556], %962 {strides = array<i32>} : memref<4x8x32xf32, #tpu.memory_space<vmem>>, vector<1x8x32xf32>,
    %c0_557 = arith.constant 0 : index
    %c0_558 = arith.constant 0 : index
    %963 = vector.load %arg23[%c0_557, %c0_558] : memref<8x32xf32, #tpu.memory_space<vmem>>, vector<8x32xf32>
    %c3_559 = arith.constant 3 : index
    %c0_560 = arith.constant 0 : index
    %c0_561 = arith.constant 0 : index
    %964 = vector.load %arg17[%c3_559, %c0_560, %c0_561] : memref<4x8x32xf32, #tpu.memory_space<vmem>>, vector<1x8x32xf32>
    %965 = vector.shape_cast %964 : vector<1x8x32xf32> to vector<8x32xf32>
    %966 = vector.shape_cast %963 : vector<8x32xf32> to vector<1x8x32xf32>
    tpu.vector_store %arg17[%c3_559, %c0_560, %c0_561], %966 {strides = array<i32>} : memref<4x8x32xf32, #tpu.memory_space<vmem>>, vector<1x8x32xf32>,
    %c0_562 = arith.constant 0 : index
    %c0_563 = arith.constant 0 : index
    %967 = vector.load %arg13[%c0_562, %c0_563] : memref<1x64xf32, #tpu.memory_space<vmem>>, vector<1x64xf32>
    %c0_564 = arith.constant 0 : index
    %c0_565 = arith.constant 0 : index
    %968 = vector.load %arg20[%c0_564, %c0_565] : memref<64x32xf32, #tpu.memory_space<vmem>>, vector<64x32xf32>
    %969 = vector.extract_strided_slice %967 {offsets = [0, 0], sizes = [1, 32], strides = [1, 1]} : vector<1x64xf32> to vector<1x32xf32>
    %970 = vector.broadcast %969 : vector<1x32xf32> to vector<64x32xf32>
    %971 = arith.mulf %968, %970 : vector<64x32xf32>
    %cst_566 = arith.constant dense<0.000000e+00> : vector<64xf32>
    %972 = vector.multi_reduction <add>, %971, %cst_566 [1] : vector<64x32xf32> to vector<64xf32>
    %c0_567 = arith.constant 0 : index
    %c0_568 = arith.constant 0 : index
    %973 = vector.load %arg21[%c0_567, %c0_568] : memref<64x32xf32, #tpu.memory_space<vmem>>, vector<64x32xf32>
    %974 = vector.extract_strided_slice %967 {offsets = [0, 32], sizes = [1, 32], strides = [1, 1]} : vector<1x64xf32> to vector<1x32xf32>
    %975 = vector.broadcast %974 : vector<1x32xf32> to vector<64x32xf32>
    %976 = arith.mulf %973, %975 : vector<64x32xf32>
    %cst_569 = arith.constant dense<0.000000e+00> : vector<64xf32>
    %977 = vector.multi_reduction <add>, %976, %cst_569 [1] : vector<64x32xf32> to vector<64xf32>
    %978 = arith.addf %972, %977 : vector<64xf32>
    %c0_570 = arith.constant 0 : index
    %c0_571 = arith.constant 0 : index
    %979 = vector.load %arg14[%c0_570, %c0_571] : memref<1x1xf32, #tpu.memory_space<vmem>>, vector<1x1xf32>
    %980 = vector.extract %979[0, 0] : f32 from vector<1x1xf32>
    %981 = vector.broadcast %980 : f32 to vector<64xf32>
    %982 = arith.addf %978, %981 : vector<64xf32>
    %983 = vector.shape_cast %982 : vector<64xf32> to vector<1x64xf32>
    %c0_572 = arith.constant 0 : index
    %c0_573 = arith.constant 0 : index
    %984 = vector.load %arg15[%c0_572, %c0_573] : memref<1x64xf32, #tpu.memory_space<vmem>>, vector<1x64xf32>
    tpu.vector_store %arg15[%c0_572, %c0_573], %983 {strides = array<i32>} : memref<1x64xf32, #tpu.memory_space<vmem>>, vector<1x64xf32>,
    return
  }
}

</mosaic_0001>

<llo_original>
// kernel: model_forward.1
$region0: #{model_forward.1}
  #allocation0 [shape = 'u32[]', space=smem, size = 0x4, offset = 0x4, fixed_abs, tag = 'smem constant byte address 0x4 - core index']
  #allocation1 [shape = 'u32[144,128]{1,0:T(1,128)}', space=vmem, size = 0x12000, scoped, tag = 'internal scratch']
  #allocation2 [shape = 'f32[64,128]{1,0:T(8,128)}', space=vmem, size = 0x8000, scoped, tag = 'scratch operand']
  #allocation3 [shape = 'f32[64,128]{1,0:T(8,128)}', space=vmem, size = 0x8000, scoped, tag = 'scratch operand']
  #allocation4 [shape = 'f32[64,32]{1,0:T(8,128)}', space=vmem, size = 0x8000, scoped, tag = 'scratch operand']
  #allocation5 [shape = 'f32[64,32]{1,0:T(8,128)}', space=vmem, size = 0x8000, scoped, tag = 'scratch operand']
  #allocation6 [shape = 'f32[8,32]{1,0:T(8,128)}', space=vmem, size = 0x1000, scoped, tag = 'scratch operand']
  #allocation7 [shape = 'f32[8,32]{1,0:T(8,128)}', space=vmem, size = 0x1000, scoped, tag = 'scratch operand']
  #allocation8 [shape = 'f32[1,1]{1,0:T(1,128)S(1)}', space=vmem, size = 0x200, scoped, tag = 'scoped memory for model_forward.1']
  %s0 = inlined_call_operand.vmem [shape: f32[64,16], index: 0, kind: input, shape index: {}]
  %s1 = inlined_call_operand.vmem [shape: f32[16,128], index: 1, kind: input, shape index: {}]
  %s2 = inlined_call_operand.vmem [shape: f32[32,128], index: 2, kind: input, shape index: {}]
  %s3 = inlined_call_operand.vmem [shape: f32[1,128], index: 3, kind: input, shape index: {}]
  %s4 = inlined_call_operand.vmem [shape: f32[16,128], index: 4, kind: input, shape index: {}]
  %s5 = inlined_call_operand.vmem [shape: f32[32,128], index: 5, kind: input, shape index: {}]
  %s6 = inlined_call_operand.vmem [shape: f32[1,128], index: 6, kind: input, shape index: {}]
  %s7 = inlined_call_operand.vmem [shape: f32[64,128], index: 7, kind: input, shape index: {}]
  %s8 = inlined_call_operand.vmem [shape: f32[32,128], index: 8, kind: input, shape index: {}]
  %s9 = inlined_call_operand.vmem [shape: f32[1,128], index: 9, kind: input, shape index: {}]
  %s10 = inlined_call_operand.vmem [shape: f32[64,128], index: 10, kind: input, shape index: {}]
  %s11 = inlined_call_operand.vmem [shape: f32[32,128], index: 11, kind: input, shape index: {}]
  %s12 = inlined_call_operand.vmem [shape: f32[1,128], index: 12, kind: input, shape index: {}]
  %s13 = inlined_call_operand.vmem [shape: f32[1,64], index: 13, kind: input, shape index: {}]
  %s14 = inlined_call_operand.<no memory space> [shape: f32[1,1], index: 14, kind: input, shape index: {}]
  %s15 = inlined_call_operand.vmem [shape: f32[1,64], index: 15, kind: output, shape index: {0}]
  %s16 = inlined_call_operand.vmem [shape: f32[4,8,32], index: 16, kind: output, shape index: {1}]
  %s17 = inlined_call_operand.vmem [shape: f32[4,8,32], index: 17, kind: output, shape index: {2}]
  %18 = xla_tuple %s15, %s16, %s17
  %s19 = sld [smem:[#allocation0]]
  $region86: #{model_forward.1} parent=0
    _
  %s21 = ssub.s32 1, %s19
  %s22 = scalar_select 0, %s21, %s19
  %v23 = vstv %s14
  %24 = vst [vmem:[#allocation8] sm:$0x1] %v23
  // Predicated region
  $region2: #{model_forward.1} parent=0 // pred_check
    _
  $region3: #{model_forward.1} parent=0 // pred_check_branch
    %26 = sbr.rel (0) target = $region5
  $region4: #{model_forward.1} parent=0 // pred_region
    _
  $region5: #{model_forward.1} parent=0 // pred_fallthru
    _
  // Predicated region
  $region6: #{model_forward.1} parent=0 // pred_check
    _
  $region7: #{model_forward.1} parent=0 // pred_check_branch
    %28 = sbr.rel (0) target = $region9
  $region8: #{model_forward.1} parent=0 // pred_region
    _
  $region9: #{model_forward.1} parent=0 // pred_fallthru
    _
  // Predicated region
  $region10: #{model_forward.1} parent=0 // pred_check
    _
  $region11: #{model_forward.1} parent=0 // pred_check_branch
    %30 = sbr.rel (0) target = $region13
  $region12: #{model_forward.1} parent=0 // pred_region
    _
  $region13: #{model_forward.1} parent=0 // pred_fallthru
    _
  // Predicated region
  $region14: #{model_forward.1} parent=0 // pred_check
    _
  $region15: #{model_forward.1} parent=0 // pred_check_branch
    %32 = sbr.rel (0) target = $region17
  $region16: #{model_forward.1} parent=0 // pred_region
    _
  $region17: #{model_forward.1} parent=0 // pred_fallthru
    _
  // Predicated region
  $region18: #{model_forward.1} parent=0 // pred_check
    _
  $region19: #{model_forward.1} parent=0 // pred_check_branch
    %34 = sbr.rel (0) target = $region21
  $region20: #{model_forward.1} parent=0 // pred_region
    _
  $region21: #{model_forward.1} parent=0 // pred_fallthru
    _
  // Predicated region
  $region22: #{model_forward.1} parent=0 // pred_check
    _
  $region23: #{model_forward.1} parent=0 // pred_check_branch
    %36 = sbr.rel (0) target = $region25
  $region24: #{model_forward.1} parent=0 // pred_region
    _
  $region25: #{model_forward.1} parent=0 // pred_fallthru
    _
  // Predicated region
  $region26: #{model_forward.1} parent=0 // pred_check
    _
  $region27: #{model_forward.1} parent=0 // pred_check_branch
    %38 = sbr.rel (0) target = $region29
  $region28: #{model_forward.1} parent=0 // pred_region
    _
  $region29: #{model_forward.1} parent=0 // pred_fallthru
    _
  // Predicated region
  $region30: #{model_forward.1} parent=0 // pred_check
    _
  $region31: #{model_forward.1} parent=0 // pred_check_branch
    %40 = sbr.rel (0) target = $region33
  $region32: #{model_forward.1} parent=0 // pred_region
    _
  $region33: #{model_forward.1} parent=0 // pred_fallthru
    _
  // Predicated region
  $region34: #{model_forward.1} parent=0 // pred_check
    _
  $region35: #{model_forward.1} parent=0 // pred_check_branch
    %42 = sbr.rel (0) target = $region37
  $region36: #{model_forward.1} parent=0 // pred_region
    _
  $region37: #{model_forward.1} parent=0 // pred_fallthru
    _
  // Predicated region
  $region38: #{model_forward.1} parent=0 // pred_check
    _
  $region39: #{model_forward.1} parent=0 // pred_check_branch
    %44 = sbr.rel (0) target = $region41
  $region40: #{model_forward.1} parent=0 // pred_region
    _
  $region41: #{model_forward.1} parent=0 // pred_fallthru
    _
  // Predicated region
  $region42: #{model_forward.1} parent=0 // pred_check
    _
  $region43: #{model_forward.1} parent=0 // pred_check_branch
    %46 = sbr.rel (0) target = $region45
  $region44: #{model_forward.1} parent=0 // pred_region
    _
  $region45: #{model_forward.1} parent=0 // pred_fallthru
    _
  // Predicated region
  $region46: #{model_forward.1} parent=0 // pred_check
    _
  $region47: #{model_forward.1} parent=0 // pred_check_branch
    %48 = sbr.rel (0) target = $region49
  $region48: #{model_forward.1} parent=0 // pred_region
    _
  $region49: #{model_forward.1} parent=0 // pred_fallthru
    _
  // Predicated region
  $region50: #{model_forward.1} parent=0 // pred_check
    _
  $region51: #{model_forward.1} parent=0 // pred_check_branch
    %50 = sbr.rel (0) target = $region53
  $region52: #{model_forward.1} parent=0 // pred_region
    _
  $region53: #{model_forward.1} parent=0 // pred_fallthru
    _
  // Predicated region
  $region54: #{model_forward.1} parent=0 // pred_check
    _
  $region55: #{model_forward.1} parent=0 // pred_check_branch
    %52 = sbr.rel (0) target = $region57
  $region56: #{model_forward.1} parent=0 // pred_region
    _
  $region57: #{model_forward.1} parent=0 // pred_fallthru
    _
  // Predicated region
  $region58: #{model_forward.1} parent=0 // pred_check
    _
  $region59: #{model_forward.1} parent=0 // pred_check_branch
    %54 = sbr.rel (0) target = $region61
  $region60: #{model_forward.1} parent=0 // pred_region
    _
  $region61: #{model_forward.1} parent=0 // pred_fallthru
    _
  %v55 = vld [vmem:[%s0] sm:$0xff]
  %v56 = vld [vmem:[%s0 + $0x8] sm:$0xff]
  %v57 = vld [vmem:[%s0 + $0x10] sm:$0xff]
  %v58 = vld [vmem:[%s0 + $0x18] sm:$0xff]
  %v59 = vld [vmem:[%s0 + $0x20] sm:$0xff]
  %v60 = vld [vmem:[%s0 + $0x28] sm:$0xff]
  %v61 = vld [vmem:[%s0 + $0x30] sm:$0xff]
  %v62 = vld [vmem:[%s0 + $0x38] sm:$0xff]
  %v63 = vld [vmem:[%s1] sm:$0xff]
  %v64 = vld [vmem:[%s1 + $0x8] sm:$0xff]
  %v65 = vld [vmem:[%s3] sm:$0x1]
  %v67 = vlaneseq
  %v68 = vshrl.u32 %v67, 7
  %v69 = vsub.s32 0, %v68
  %v70 = vrot.slane %v65, %v69
  %vm72 = vcmask 130048
  %v74 = vsel %vm72, %v55, 0
  %v77 = vsel %vm72, %v56, 0
  %v80 = vsel %vm72, %v57, 0
  %v83 = vsel %vm72, %v58, 0
  %v86 = vsel %vm72, %v59, 0
  %v89 = vsel %vm72, %v60, 0
  %v92 = vsel %vm72, %v61, 0
  %v95 = vsel %vm72, %v62, 0
  %97 = vmatprep.subr.mxu0 0.0
  %98 = vmatpush1.msra.mxu0 0.0
  %99 = vmatprep.subr.mxu0 0.0
  %100 = vmatpush1.msra.mxu0 0.0
  %101 = vmatprep.subr.mxu0 0.0
  %102 = vmatpush1.msra.mxu0 0.0
  %103 = vmatprep.subr.mxu0 0.0
  %104 = vmatpush1.msra.mxu0 0.0
  %105 = vmatprep.subr.mxu0 0.0
  %106 = vmatpush1.msra.mxu0 0.0
  %107 = vmatprep.subr.mxu0 0.0
  %108 = vmatpush1.msra.mxu0 0.0
  %109 = vmatprep.subr.mxu0 0.0
  %110 = vmatpush1.msra.mxu0 0.0
  %111 = vmatprep.subr.mxu0 0.0
  %112 = vmatpush1.msra.mxu0 0.0
  %113 = vmatprep.subr.mxu0 0.0
  %114 = vmatpush1.msra.mxu0 0.0
  %115 = vmatprep.subr.mxu0 0.0
  %116 = vmatpush1.msra.mxu0 0.0
  %117 = vmatprep.subr.mxu0 0.0
  %118 = vmatpush1.msra.mxu0 0.0
  %119 = vmatprep.subr.mxu0 0.0
  %120 = vmatpush1.msra.mxu0 0.0
  %121 = vmatprep.subr.mxu0 0.0
  %122 = vmatpush1.msra.mxu0 0.0
  %123 = vmatprep.subr.mxu0 0.0
  %124 = vmatpush1.msra.mxu0 0.0
  %125 = vmatprep.subr.mxu0 0.0
  %126 = vmatpush1.msra.mxu0 %v64
  %127 = vmatprep.subr.mxu0 0.0
  %128 = vmatpush1.msra.mxu0 %v63
  %129 = vmatprep.subr.mxu0 0.0
  %130 = vmatpush2.msra.mxu0 0.0
  %131 = vmatprep.subr.mxu0 0.0
  %132 = vmatpush2.msra.mxu0 0.0
  %133 = vmatprep.subr.mxu0 0.0
  %134 = vmatpush2.msra.mxu0 0.0
  %135 = vmatprep.subr.mxu0 0.0
  %136 = vmatpush2.msra.mxu0 0.0
  %137 = vmatprep.subr.mxu0 0.0
  %138 = vmatpush2.msra.mxu0 0.0
  %139 = vmatprep.subr.mxu0 0.0
  %140 = vmatpush2.msra.mxu0 0.0
  %141 = vmatprep.subr.mxu0 0.0
  %142 = vmatpush2.msra.mxu0 0.0
  %143 = vmatprep.subr.mxu0 0.0
  %144 = vmatpush2.msra.mxu0 0.0
  %145 = vmatprep.subr.mxu0 0.0
  %146 = vmatpush2.msra.mxu0 0.0
  %147 = vmatprep.subr.mxu0 0.0
  %148 = vmatpush2.msra.mxu0 0.0
  %149 = vmatprep.subr.mxu0 0.0
  %150 = vmatpush2.msra.mxu0 0.0
  %151 = vmatprep.subr.mxu0 0.0
  %152 = vmatpush2.msra.mxu0 0.0
  %153 = vmatprep.subr.mxu0 0.0
  %154 = vmatpush2.msra.mxu0 0.0
  %155 = vmatprep.subr.mxu0 0.0
  %156 = vmatpush2.msra.mxu0 0.0
  %157 = vmatprep.subr.mxu0 0.0
  %158 = vmatpush2.msra.mxu0 0.0
  %159 = vmatprep.subr.mxu0 0.0
  %160 = vmatpush2.msra.mxu0 0.0
  %161 = vmatprep.mubr.f32.mxu0 0.0
  %162 = vmatmul.mubr.f32.gmra.mxu0 %v74
  %v163 = vpop.f32.mrf.mxu0
  %v164 = vadd.f32 %v70, %v163
  %v165 = vpop.f32.mrf.mxu0
  %166 = vmatprep.mubr.f32.mxu0 0.0
  %167 = vmatmul.mubr.f32.gmra.mxu0 %v77
  %v168 = vpop.f32.mrf.mxu0
  %v169 = vadd.f32 %v70, %v168
  %v170 = vpop.f32.mrf.mxu0
  %171 = vmatprep.mubr.f32.mxu0 0.0
  %172 = vmatmul.mubr.f32.gmra.mxu0 %v80
  %v173 = vpop.f32.mrf.mxu0
  %v174 = vadd.f32 %v70, %v173
  %v175 = vpop.f32.mrf.mxu0
  %176 = vmatprep.mubr.f32.mxu0 0.0
  %177 = vmatmul.mubr.f32.gmra.mxu0 %v83
  %v178 = vpop.f32.mrf.mxu0
  %v179 = vadd.f32 %v70, %v178
  %v180 = vpop.f32.mrf.mxu0
  %181 = vmatprep.mubr.f32.mxu0 0.0
  %182 = vmatmul.mubr.f32.gmra.mxu0 %v86
  %v183 = vpop.f32.mrf.mxu0
  %v184 = vadd.f32 %v70, %v183
  %v185 = vpop.f32.mrf.mxu0
  %186 = vmatprep.mubr.f32.mxu0 0.0
  %187 = vmatmul.mubr.f32.gmra.mxu0 %v89
  %v188 = vpop.f32.mrf.mxu0
  %v189 = vadd.f32 %v70, %v188
  %v190 = vpop.f32.mrf.mxu0
  %191 = vmatprep.mubr.f32.mxu0 0.0
  %192 = vmatmul.mubr.f32.gmra.mxu0 %v92
  %v193 = vpop.f32.mrf.mxu0
  %v194 = vadd.f32 %v70, %v193
  %v195 = vpop.f32.mrf.mxu0
  %196 = vmatprep.mubr.f32.mxu0 0.0
  %197 = vmatmul.mubr.f32.gmra.mxu0 %v95
  %v198 = vpop.f32.mrf.mxu0
  %v199 = vadd.f32 %v70, %v198
  %v200 = vpop.f32.mrf.mxu0
  %201 = vdwg.mxu0
  %202 = vst [vmem:[#allocation2] sm:$0xff] %v164
  %203 = vst [vmem:[#allocation2 + $0x8] sm:$0xff] %v169
  %204 = vst [vmem:[#allocation2 + $0x10] sm:$0xff] %v174
  %205 = vst [vmem:[#allocation2 + $0x18] sm:$0xff] %v179
  %206 = vst [vmem:[#allocation2 + $0x20] sm:$0xff] %v184
  %207 = vst [vmem:[#allocation2 + $0x28] sm:$0xff] %v189
  %208 = vst [vmem:[#allocation2 + $0x30] sm:$0xff] %v194
  %209 = vst [vmem:[#allocation2 + $0x38] sm:$0xff] %v199
  %v210 = vld [vmem:[%s4] sm:$0xff]
  %v211 = vld [vmem:[%s4 + $0x8] sm:$0xff]
  %v212 = vld [vmem:[%s6] sm:$0x1]
  %v214 = vlaneseq
  %v215 = vshrl.u32 %v214, 7
  %v216 = vsub.s32 0, %v215
  %v217 = vrot.slane %v212, %v216
  %219 = vmatprep.subr.mxu0 0.0
  %220 = vmatpush1.msra.mxu0 0.0
  %221 = vmatprep.subr.mxu0 0.0
  %222 = vmatpush1.msra.mxu0 0.0
  %223 = vmatprep.subr.mxu0 0.0
  %224 = vmatpush1.msra.mxu0 0.0
  %225 = vmatprep.subr.mxu0 0.0
  %226 = vmatpush1.msra.mxu0 0.0
  %227 = vmatprep.subr.mxu0 0.0
  %228 = vmatpush1.msra.mxu0 0.0
  %229 = vmatprep.subr.mxu0 0.0
  %230 = vmatpush1.msra.mxu0 0.0
  %231 = vmatprep.subr.mxu0 0.0
  %232 = vmatpush1.msra.mxu0 0.0
  %233 = vmatprep.subr.mxu0 0.0
  %234 = vmatpush1.msra.mxu0 0.0
  %235 = vmatprep.subr.mxu0 0.0
  %236 = vmatpush1.msra.mxu0 0.0
  %237 = vmatprep.subr.mxu0 0.0
  %238 = vmatpush1.msra.mxu0 0.0
  %239 = vmatprep.subr.mxu0 0.0
  %240 = vmatpush1.msra.mxu0 0.0
  %241 = vmatprep.subr.mxu0 0.0
  %242 = vmatpush1.msra.mxu0 0.0
  %243 = vmatprep.subr.mxu0 0.0
  %244 = vmatpush1.msra.mxu0 0.0
  %245 = vmatprep.subr.mxu0 0.0
  %246 = vmatpush1.msra.mxu0 0.0
  %247 = vmatprep.subr.mxu0 0.0
  %248 = vmatpush1.msra.mxu0 %v211
  %249 = vmatprep.subr.mxu0 0.0
  %250 = vmatpush1.msra.mxu0 %v210
  %251 = vmatprep.subr.mxu0 0.0
  %252 = vmatpush2.msra.mxu0 0.0
  %253 = vmatprep.subr.mxu0 0.0
  %254 = vmatpush2.msra.mxu0 0.0
  %255 = vmatprep.subr.mxu0 0.0
  %256 = vmatpush2.msra.mxu0 0.0
  %257 = vmatprep.subr.mxu0 0.0
  %258 = vmatpush2.msra.mxu0 0.0
  %259 = vmatprep.subr.mxu0 0.0
  %260 = vmatpush2.msra.mxu0 0.0
  %261 = vmatprep.subr.mxu0 0.0
  %262 = vmatpush2.msra.mxu0 0.0
  %263 = vmatprep.subr.mxu0 0.0
  %264 = vmatpush2.msra.mxu0 0.0
  %265 = vmatprep.subr.mxu0 0.0
  %266 = vmatpush2.msra.mxu0 0.0
  %267 = vmatprep.subr.mxu0 0.0
  %268 = vmatpush2.msra.mxu0 0.0
  %269 = vmatprep.subr.mxu0 0.0
  %270 = vmatpush2.msra.mxu0 0.0
  %271 = vmatprep.subr.mxu0 0.0
  %272 = vmatpush2.msra.mxu0 0.0
  %273 = vmatprep.subr.mxu0 0.0
  %274 = vmatpush2.msra.mxu0 0.0
  %275 = vmatprep.subr.mxu0 0.0
  %276 = vmatpush2.msra.mxu0 0.0
  %277 = vmatprep.subr.mxu0 0.0
  %278 = vmatpush2.msra.mxu0 0.0
  %279 = vmatprep.subr.mxu0 0.0
  %280 = vmatpush2.msra.mxu0 0.0
  %281 = vmatprep.subr.mxu0 0.0
  %282 = vmatpush2.msra.mxu0 0.0
  %283 = vmatprep.mubr.f32.mxu0 0.0
  %284 = vmatmul.mubr.f32.gmra.mxu0 %v74
  %v285 = vpop.f32.mrf.mxu0
  %v286 = vadd.f32 %v217, %v285
  %v287 = vpop.f32.mrf.mxu0
  %288 = vmatprep.mubr.f32.mxu0 0.0
  %289 = vmatmul.mubr.f32.gmra.mxu0 %v77
  %v290 = vpop.f32.mrf.mxu0
  %v291 = vadd.f32 %v217, %v290
  %v292 = vpop.f32.mrf.mxu0
  %293 = vmatprep.mubr.f32.mxu0 0.0
  %294 = vmatmul.mubr.f32.gmra.mxu0 %v80
  %v295 = vpop.f32.mrf.mxu0
  %v296 = vadd.f32 %v217, %v295
  %v297 = vpop.f32.mrf.mxu0
  %298 = vmatprep.mubr.f32.mxu0 0.0
  %299 = vmatmul.mubr.f32.gmra.mxu0 %v83
  %v300 = vpop.f32.mrf.mxu0
  %v301 = vadd.f32 %v217, %v300
  %v302 = vpop.f32.mrf.mxu0
  %303 = vmatprep.mubr.f32.mxu0 0.0
  %304 = vmatmul.mubr.f32.gmra.mxu0 %v86
  %v305 = vpop.f32.mrf.mxu0
  %v306 = vadd.f32 %v217, %v305
  %v307 = vpop.f32.mrf.mxu0
  %308 = vmatprep.mubr.f32.mxu0 0.0
  %309 = vmatmul.mubr.f32.gmra.mxu0 %v89
  %v310 = vpop.f32.mrf.mxu0
  %v311 = vadd.f32 %v217, %v310
  %v312 = vpop.f32.mrf.mxu0
  %313 = vmatprep.mubr.f32.mxu0 0.0
  %314 = vmatmul.mubr.f32.gmra.mxu0 %v92
  %v315 = vpop.f32.mrf.mxu0
  %v316 = vadd.f32 %v217, %v315
  %v317 = vpop.f32.mrf.mxu0
  %318 = vmatprep.mubr.f32.mxu0 0.0
  %319 = vmatmul.mubr.f32.gmra.mxu0 %v95
  %v320 = vpop.f32.mrf.mxu0
  %v321 = vadd.f32 %v217, %v320
  %v322 = vpop.f32.mrf.mxu0
  %323 = vdwg.mxu0
  %324 = vst [vmem:[#allocation3] sm:$0xff] %v286
  %325 = vst [vmem:[#allocation3 + $0x8] sm:$0xff] %v291
  %326 = vst [vmem:[#allocation3 + $0x10] sm:$0xff] %v296
  %327 = vst [vmem:[#allocation3 + $0x18] sm:$0xff] %v301
  %328 = vst [vmem:[#allocation3 + $0x20] sm:$0xff] %v306
  %329 = vst [vmem:[#allocation3 + $0x28] sm:$0xff] %v311
  %330 = vst [vmem:[#allocation3 + $0x30] sm:$0xff] %v316
  %331 = vst [vmem:[#allocation3 + $0x38] sm:$0xff] %v321
  %vm332 = vcmask 261120
  %333 = vst.msk [vmem:[#allocation6] sm:$0xff] %vm332, 0.0
  %334 = vst.msk [vmem:[#allocation7] sm:$0xff] %vm332, 0.0
  %v335 = vld [vmem:[%s2] sm:$0xff]
  %v336 = vld [vmem:[%s2 + $0x8] sm:$0xff]
  %v337 = vld [vmem:[%s2 + $0x10] sm:$0xff]
  %v338 = vld [vmem:[%s2 + $0x18] sm:$0xff]
  %v339 = vld [vmem:[#allocation2] sm:$0xff]
  %v340 = vld [vmem:[#allocation6] sm:$0xff]
  %v342 = vsel %vm332, %v340, 0
  %344 = vmatprep.subr.mxu0 0.0
  %345 = vmatpush1.msra.mxu0 0.0
  %346 = vmatprep.subr.mxu0 0.0
  %347 = vmatpush1.msra.mxu0 0.0
  %348 = vmatprep.subr.mxu0 0.0
  %349 = vmatpush1.msra.mxu0 0.0
  %350 = vmatprep.subr.mxu0 0.0
  %351 = vmatpush1.msra.mxu0 0.0
  %352 = vmatprep.subr.mxu0 0.0
  %353 = vmatpush1.msra.mxu0 0.0
  %354 = vmatprep.subr.mxu0 0.0
  %355 = vmatpush1.msra.mxu0 0.0
  %356 = vmatprep.subr.mxu0 0.0
  %357 = vmatpush1.msra.mxu0 0.0
  %358 = vmatprep.subr.mxu0 0.0
  %359 = vmatpush1.msra.mxu0 0.0
  %360 = vmatprep.subr.mxu0 0.0
  %361 = vmatpush1.msra.mxu0 0.0
  %362 = vmatprep.subr.mxu0 0.0
  %363 = vmatpush1.msra.mxu0 0.0
  %364 = vmatprep.subr.mxu0 0.0
  %365 = vmatpush1.msra.mxu0 0.0
  %366 = vmatprep.subr.mxu0 0.0
  %367 = vmatpush1.msra.mxu0 0.0
  %368 = vmatprep.subr.mxu0 0.0
  %369 = vmatpush1.msra.mxu0 %v338
  %370 = vmatprep.subr.mxu0 0.0
  %371 = vmatpush1.msra.mxu0 %v337
  %372 = vmatprep.subr.mxu0 0.0
  %373 = vmatpush1.msra.mxu0 %v336
  %374 = vmatprep.subr.mxu0 0.0
  %375 = vmatpush1.msra.mxu0 %v335
  %376 = vmatprep.subr.mxu0 0.0
  %377 = vmatpush2.msra.mxu0 0.0
  %378 = vmatprep.subr.mxu0 0.0
  %379 = vmatpush2.msra.mxu0 0.0
  %380 = vmatprep.subr.mxu0 0.0
  %381 = vmatpush2.msra.mxu0 0.0
  %382 = vmatprep.subr.mxu0 0.0
  %383 = vmatpush2.msra.mxu0 0.0
  %384 = vmatprep.subr.mxu0 0.0
  %385 = vmatpush2.msra.mxu0 0.0
  %386 = vmatprep.subr.mxu0 0.0
  %387 = vmatpush2.msra.mxu0 0.0
  %388 = vmatprep.subr.mxu0 0.0
  %389 = vmatpush2.msra.mxu0 0.0
  %390 = vmatprep.subr.mxu0 0.0
  %391 = vmatpush2.msra.mxu0 0.0
  %392 = vmatprep.subr.mxu0 0.0
  %393 = vmatpush2.msra.mxu0 0.0
  %394 = vmatprep.subr.mxu0 0.0
  %395 = vmatpush2.msra.mxu0 0.0
  %396 = vmatprep.subr.mxu0 0.0
  %397 = vmatpush2.msra.mxu0 0.0
  %398 = vmatprep.subr.mxu0 0.0
  %399 = vmatpush2.msra.mxu0 0.0
  %400 = vmatprep.subr.mxu0 0.0
  %401 = vmatpush2.msra.mxu0 0.0
  %402 = vmatprep.subr.mxu0 0.0
  %403 = vmatpush2.msra.mxu0 0.0
  %404 = vmatprep.subr.mxu0 0.0
  %405 = vmatpush2.msra.mxu0 0.0
  %406 = vmatprep.subr.mxu0 0.0
  %407 = vmatpush2.msra.mxu0 0.0
  %408 = vmatprep.mubr.f32.mxu0 0.0
  %409 = vmatmul.mubr.f32.gmra.mxu0 %v342
  %v410 = vpop.f32.mrf.mxu0
  %v411 = vadd.f32 0.0, %v410
  %v412 = vpop.f32.mrf.mxu0
  %413 = vdwg.mxu0
  %v414 = vadd.f32 %v339, %v411
  %v415 = vxor.u32 %v414, 2147483648
  %v416 = vmul.f32 %v415, 1.442695
  %v417 = vpow.pop %v416
  %v418 = vadd.f32 %v417, 1.0
  %v419 = vrcp.pop %v418
  %v420 = vmul.f32 1.0, %v419
  %v421 = vtanh.pop %v414
  %v422 = vld [vmem:[#allocation7] sm:$0xff]
  %424 = vrot.lane.b32.xlu0 %v422, 32
  %v425 = vpop.permute.xlu0 %424
  %v427 = vmul.f32 %v420, %v425
  %429 = vrot.lane.b32.xlu0 %v421, 64
  %v430 = vpop.permute.xlu0 %429
  %v432 = vmul.f32 %v420, %v430
  %434 = vrot.lane.b32.xlu0 %v432, 32
  %v435 = vpop.permute.xlu0 %434
  %v437 = vadd.f32 %v427, %v435
  %v438 = vtanh.pop %v437
  %440 = vrot.lane.b32.xlu0 %v438, 64
  %v441 = vpop.permute.xlu0 %440
  %v443 = vmul.f32 %v420, %v441
  %445 = vrot.lane.b32.xlu0 %v443, 32
  %v446 = vpop.permute.xlu0 %445
  %448 = vst.msk [vmem:[#allocation6] sm:$0xff] %vm332, %v446
  %450 = vrot.lane.b32.xlu0 %v437, 96
  %v451 = vpop.permute.xlu0 %450
  %453 = vst.msk [vmem:[#allocation7] sm:$0xff] %vm332, %v451
  %454 = vst.msk [vmem:[#allocation4] sm:$0xff] %vm332, %v446
  %s455 = scalar_lea.vmem [#allocation2], 8
  %v456 = vld [vmem:[%s455] sm:$0xff]
  %v457 = vld [vmem:[#allocation6] sm:$0xff]
  %v459 = vsel %vm332, %v457, 0
  %461 = vmatprep.subr.mxu0 0.0
  %462 = vmatpush1.msra.mxu0 0.0
  %463 = vmatprep.subr.mxu0 0.0
  %464 = vmatpush1.msra.mxu0 0.0
  %465 = vmatprep.subr.mxu0 0.0
  %466 = vmatpush1.msra.mxu0 0.0
  %467 = vmatprep.subr.mxu0 0.0
  %468 = vmatpush1.msra.mxu0 0.0
  %469 = vmatprep.subr.mxu0 0.0
  %470 = vmatpush1.msra.mxu0 0.0
  %471 = vmatprep.subr.mxu0 0.0
  %472 = vmatpush1.msra.mxu0 0.0
  %473 = vmatprep.subr.mxu0 0.0
  %474 = vmatpush1.msra.mxu0 0.0
  %475 = vmatprep.subr.mxu0 0.0
  %476 = vmatpush1.msra.mxu0 0.0
  %477 = vmatprep.subr.mxu0 0.0
  %478 = vmatpush1.msra.mxu0 0.0
  %479 = vmatprep.subr.mxu0 0.0
  %480 = vmatpush1.msra.mxu0 0.0
  %481 = vmatprep.subr.mxu0 0.0
  %482 = vmatpush1.msra.mxu0 0.0
  %483 = vmatprep.subr.mxu0 0.0
  %484 = vmatpush1.msra.mxu0 0.0
  %485 = vmatprep.subr.mxu0 0.0
  %486 = vmatpush1.msra.mxu0 %v338
  %487 = vmatprep.subr.mxu0 0.0
  %488 = vmatpush1.msra.mxu0 %v337
  %489 = vmatprep.subr.mxu0 0.0
  %490 = vmatpush1.msra.mxu0 %v336
  %491 = vmatprep.subr.mxu0 0.0
  %492 = vmatpush1.msra.mxu0 %v335
  %493 = vmatprep.subr.mxu0 0.0
  %494 = vmatpush2.msra.mxu0 0.0
  %495 = vmatprep.subr.mxu0 0.0
  %496 = vmatpush2.msra.mxu0 0.0
  %497 = vmatprep.subr.mxu0 0.0
  %498 = vmatpush2.msra.mxu0 0.0
  %499 = vmatprep.subr.mxu0 0.0
  %500 = vmatpush2.msra.mxu0 0.0
  %501 = vmatprep.subr.mxu0 0.0
  %502 = vmatpush2.msra.mxu0 0.0
  %503 = vmatprep.subr.mxu0 0.0
  %504 = vmatpush2.msra.mxu0 0.0
  %505 = vmatprep.subr.mxu0 0.0
  %506 = vmatpush2.msra.mxu0 0.0
  %507 = vmatprep.subr.mxu0 0.0
  %508 = vmatpush2.msra.mxu0 0.0
  %509 = vmatprep.subr.mxu0 0.0
  %510 = vmatpush2.msra.mxu0 0.0
  %511 = vmatprep.subr.mxu0 0.0
  %512 = vmatpush2.msra.mxu0 0.0
  %513 = vmatprep.subr.mxu0 0.0
  %514 = vmatpush2.msra.mxu0 0.0
  %515 = vmatprep.subr.mxu0 0.0
  %516 = vmatpush2.msra.mxu0 0.0
  %517 = vmatprep.subr.mxu0 0.0
  %518 = vmatpush2.msra.mxu0 0.0
  %519 = vmatprep.subr.mxu0 0.0
  %520 = vmatpush2.msra.mxu0 0.0
  %521 = vmatprep.subr.mxu0 0.0
  %522 = vmatpush2.msra.mxu0 0.0
  %523 = vmatprep.subr.mxu0 0.0
  %524 = vmatpush2.msra.mxu0 0.0
  %525 = vmatprep.mubr.f32.mxu0 0.0
  %526 = vmatmul.mubr.f32.gmra.mxu0 %v459
  %v527 = vpop.f32.mrf.mxu0
  %v528 = vadd.f32 0.0, %v527
  %v529 = vpop.f32.mrf.mxu0
  %530 = vdwg.mxu0
  %v531 = vadd.f32 %v456, %v528
  %v532 = vxor.u32 %v531, 2147483648
  %v533 = vmul.f32 %v532, 1.442695
  %v534 = vpow.pop %v533
  %v535 = vadd.f32 %v534, 1.0
  %v536 = vrcp.pop %v535
  %v537 = vmul.f32 1.0, %v536
  %v538 = vtanh.pop %v531
  %v539 = vld [vmem:[#allocation7] sm:$0xff]
  %541 = vrot.lane.b32.xlu0 %v539, 32
  %v542 = vpop.permute.xlu0 %541
  %v544 = vmul.f32 %v537, %v542
  %546 = vrot.lane.b32.xlu0 %v538, 64
  %v547 = vpop.permute.xlu0 %546
  %v549 = vmul.f32 %v537, %v547
  %551 = vrot.lane.b32.xlu0 %v549, 32
  %v552 = vpop.permute.xlu0 %551
  %v554 = vadd.f32 %v544, %v552
  %v555 = vtanh.pop %v554
  %557 = vrot.lane.b32.xlu0 %v555, 64
  %v558 = vpop.permute.xlu0 %557
  %v560 = vmul.f32 %v537, %v558
  %562 = vrot.lane.b32.xlu0 %v560, 32
  %v563 = vpop.permute.xlu0 %562
  %565 = vst.msk [vmem:[#allocation6] sm:$0xff] %vm332, %v563
  %567 = vrot.lane.b32.xlu0 %v554, 96
  %v568 = vpop.permute.xlu0 %567
  %570 = vst.msk [vmem:[#allocation7] sm:$0xff] %vm332, %v568
  %s571 = scalar_lea.vmem [#allocation4], 8
  %572 = vst.msk [vmem:[%s571] sm:$0xff] %vm332, %v563
  %s573 = scalar_lea.vmem [#allocation2], 16
  %v574 = vld [vmem:[%s573] sm:$0xff]
  %v575 = vld [vmem:[#allocation6] sm:$0xff]
  %v577 = vsel %vm332, %v575, 0
  %579 = vmatprep.subr.mxu0 0.0
  %580 = vmatpush1.msra.mxu0 0.0
  %581 = vmatprep.subr.mxu0 0.0
  %582 = vmatpush1.msra.mxu0 0.0
  %583 = vmatprep.subr.mxu0 0.0
  %584 = vmatpush1.msra.mxu0 0.0
  %585 = vmatprep.subr.mxu0 0.0
  %586 = vmatpush1.msra.mxu0 0.0
  %587 = vmatprep.subr.mxu0 0.0
  %588 = vmatpush1.msra.mxu0 0.0
  %589 = vmatprep.subr.mxu0 0.0
  %590 = vmatpush1.msra.mxu0 0.0
  %591 = vmatprep.subr.mxu0 0.0
  %592 = vmatpush1.msra.mxu0 0.0
  %593 = vmatprep.subr.mxu0 0.0
  %594 = vmatpush1.msra.mxu0 0.0
  %595 = vmatprep.subr.mxu0 0.0
  %596 = vmatpush1.msra.mxu0 0.0
  %597 = vmatprep.subr.mxu0 0.0
  %598 = vmatpush1.msra.mxu0 0.0
  %599 = vmatprep.subr.mxu0 0.0
  %600 = vmatpush1.msra.mxu0 0.0
  %601 = vmatprep.subr.mxu0 0.0
  %602 = vmatpush1.msra.mxu0 0.0
  %603 = vmatprep.subr.mxu0 0.0
  %604 = vmatpush1.msra.mxu0 %v338
  %605 = vmatprep.subr.mxu0 0.0
  %606 = vmatpush1.msra.mxu0 %v337
  %607 = vmatprep.subr.mxu0 0.0
  %608 = vmatpush1.msra.mxu0 %v336
  %609 = vmatprep.subr.mxu0 0.0
  %610 = vmatpush1.msra.mxu0 %v335
  %611 = vmatprep.subr.mxu0 0.0
  %612 = vmatpush2.msra.mxu0 0.0
  %613 = vmatprep.subr.mxu0 0.0
  %614 = vmatpush2.msra.mxu0 0.0
  %615 = vmatprep.subr.mxu0 0.0
  %616 = vmatpush2.msra.mxu0 0.0
  %617 = vmatprep.subr.mxu0 0.0
  %618 = vmatpush2.msra.mxu0 0.0
  %619 = vmatprep.subr.mxu0 0.0
  %620 = vmatpush2.msra.mxu0 0.0
  %621 = vmatprep.subr.mxu0 0.0
  %622 = vmatpush2.msra.mxu0 0.0
  %623 = vmatprep.subr.mxu0 0.0
  %624 = vmatpush2.msra.mxu0 0.0
  %625 = vmatprep.subr.mxu0 0.0
  %626 = vmatpush2.msra.mxu0 0.0
  %627 = vmatprep.subr.mxu0 0.0
  %628 = vmatpush2.msra.mxu0 0.0
  %629 = vmatprep.subr.mxu0 0.0
  %630 = vmatpush2.msra.mxu0 0.0
  %631 = vmatprep.subr.mxu0 0.0
  %632 = vmatpush2.msra.mxu0 0.0
  %633 = vmatprep.subr.mxu0 0.0
  %634 = vmatpush2.msra.mxu0 0.0
  %635 = vmatprep.subr.mxu0 0.0
  %636 = vmatpush2.msra.mxu0 0.0
  %637 = vmatprep.subr.mxu0 0.0
  %638 = vmatpush2.msra.mxu0 0.0
  %639 = vmatprep.subr.mxu0 0.0
  %640 = vmatpush2.msra.mxu0 0.0
  %641 = vmatprep.subr.mxu0 0.0
  %642 = vmatpush2.msra.mxu0 0.0
  %643 = vmatprep.mubr.f32.mxu0 0.0
  %644 = vmatmul.mubr.f32.gmra.mxu0 %v577
  %v645 = vpop.f32.mrf.mxu0
  %v646 = vadd.f32 0.0, %v645
  %v647 = vpop.f32.mrf.mxu0
  %648 = vdwg.mxu0
  %v649 = vadd.f32 %v574, %v646
  %v650 = vxor.u32 %v649, 2147483648
  %v651 = vmul.f32 %v650, 1.442695
  %v652 = vpow.pop %v651
  %v653 = vadd.f32 %v652, 1.0
  %v654 = vrcp.pop %v653
  %v655 = vmul.f32 1.0, %v654
  %v656 = vtanh.pop %v649
  %v657 = vld [vmem:[#allocation7] sm:$0xff]
  %659 = vrot.lane.b32.xlu0 %v657, 32
  %v660 = vpop.permute.xlu0 %659
  %v662 = vmul.f32 %v655, %v660
  %664 = vrot.lane.b32.xlu0 %v656, 64
  %v665 = vpop.permute.xlu0 %664
  %v667 = vmul.f32 %v655, %v665
  %669 = vrot.lane.b32.xlu0 %v667, 32
  %v670 = vpop.permute.xlu0 %669
  %v672 = vadd.f32 %v662, %v670
  %v673 = vtanh.pop %v672
  %675 = vrot.lane.b32.xlu0 %v673, 64
  %v676 = vpop.permute.xlu0 %675
  %v678 = vmul.f32 %v655, %v676
  %680 = vrot.lane.b32.xlu0 %v678, 32
  %v681 = vpop.permute.xlu0 %680
  %683 = vst.msk [vmem:[#allocation6] sm:$0xff] %vm332, %v681
  %685 = vrot.lane.b32.xlu0 %v672, 96
  %v686 = vpop.permute.xlu0 %685
  %688 = vst.msk [vmem:[#allocation7] sm:$0xff] %vm332, %v686
  %s689 = scalar_lea.vmem [#allocation4], 16
  %690 = vst.msk [vmem:[%s689] sm:$0xff] %vm332, %v681
  %s691 = scalar_lea.vmem [#allocation2], 24
  %v692 = vld [vmem:[%s691] sm:$0xff]
  %v693 = vld [vmem:[#allocation6] sm:$0xff]
  %v695 = vsel %vm332, %v693, 0
  %697 = vmatprep.subr.mxu0 0.0
  %698 = vmatpush1.msra.mxu0 0.0
  %699 = vmatprep.subr.mxu0 0.0
  %700 = vmatpush1.msra.mxu0 0.0
  %701 = vmatprep.subr.mxu0 0.0
  %702 = vmatpush1.msra.mxu0 0.0
  %703 = vmatprep.subr.mxu0 0.0
  %704 = vmatpush1.msra.mxu0 0.0
  %705 = vmatprep.subr.mxu0 0.0
  %706 = vmatpush1.msra.mxu0 0.0
  %707 = vmatprep.subr.mxu0 0.0
  %708 = vmatpush1.msra.mxu0 0.0
  %709 = vmatprep.subr.mxu0 0.0
  %710 = vmatpush1.msra.mxu0 0.0
  %711 = vmatprep.subr.mxu0 0.0
  %712 = vmatpush1.msra.mxu0 0.0
  %713 = vmatprep.subr.mxu0 0.0
  %714 = vmatpush1.msra.mxu0 0.0
  %715 = vmatprep.subr.mxu0 0.0
  %716 = vmatpush1.msra.mxu0 0.0
  %717 = vmatprep.subr.mxu0 0.0
  %718 = vmatpush1.msra.mxu0 0.0
  %719 = vmatprep.subr.mxu0 0.0
  %720 = vmatpush1.msra.mxu0 0.0
  %721 = vmatprep.subr.mxu0 0.0
  %722 = vmatpush1.msra.mxu0 %v338
  %723 = vmatprep.subr.mxu0 0.0
  %724 = vmatpush1.msra.mxu0 %v337
  %725 = vmatprep.subr.mxu0 0.0
  %726 = vmatpush1.msra.mxu0 %v336
  %727 = vmatprep.subr.mxu0 0.0
  %728 = vmatpush1.msra.mxu0 %v335
  %729 = vmatprep.subr.mxu0 0.0
  %730 = vmatpush2.msra.mxu0 0.0
  %731 = vmatprep.subr.mxu0 0.0
  %732 = vmatpush2.msra.mxu0 0.0
  %733 = vmatprep.subr.mxu0 0.0
  %734 = vmatpush2.msra.mxu0 0.0
  %735 = vmatprep.subr.mxu0 0.0
  %736 = vmatpush2.msra.mxu0 0.0
  %737 = vmatprep.subr.mxu0 0.0
  %738 = vmatpush2.msra.mxu0 0.0
  %739 = vmatprep.subr.mxu0 0.0
  %740 = vmatpush2.msra.mxu0 0.0
  %741 = vmatprep.subr.mxu0 0.0
  %742 = vmatpush2.msra.mxu0 0.0
  %743 = vmatprep.subr.mxu0 0.0
  %744 = vmatpush2.msra.mxu0 0.0
  %745 = vmatprep.subr.mxu0 0.0
  %746 = vmatpush2.msra.mxu0 0.0
  %747 = vmatprep.subr.mxu0 0.0
  %748 = vmatpush2.msra.mxu0 0.0
  %749 = vmatprep.subr.mxu0 0.0
  %750 = vmatpush2.msra.mxu0 0.0
  %751 = vmatprep.subr.mxu0 0.0
  %752 = vmatpush2.msra.mxu0 0.0
  %753 = vmatprep.subr.mxu0 0.0
  %754 = vmatpush2.msra.mxu0 0.0
  %755 = vmatprep.subr.mxu0 0.0
  %756 = vmatpush2.msra.mxu0 0.0
  %757 = vmatprep.subr.mxu0 0.0
  %758 = vmatpush2.msra.mxu0 0.0
  %759 = vmatprep.subr.mxu0 0.0
  %760 = vmatpush2.msra.mxu0 0.0
  %761 = vmatprep.mubr.f32.mxu0 0.0
  %762 = vmatmul.mubr.f32.gmra.mxu0 %v695
  %v763 = vpop.f32.mrf.mxu0
  %v764 = vadd.f32 0.0, %v763
  %v765 = vpop.f32.mrf.mxu0
  %766 = vdwg.mxu0
  %v767 = vadd.f32 %v692, %v764
  %v768 = vxor.u32 %v767, 2147483648
  %v769 = vmul.f32 %v768, 1.442695
  %v770 = vpow.pop %v769
  %v771 = vadd.f32 %v770, 1.0
  %v772 = vrcp.pop %v771
  %v773 = vmul.f32 1.0, %v772
  %v774 = vtanh.pop %v767
  %v775 = vld [vmem:[#allocation7] sm:$0xff]
  %777 = vrot.lane.b32.xlu0 %v775, 32
  %v778 = vpop.permute.xlu0 %777
  %v780 = vmul.f32 %v773, %v778
  %782 = vrot.lane.b32.xlu0 %v774, 64
  %v783 = vpop.permute.xlu0 %782
  %v785 = vmul.f32 %v773, %v783
  %787 = vrot.lane.b32.xlu0 %v785, 32
  %v788 = vpop.permute.xlu0 %787
  %v790 = vadd.f32 %v780, %v788
  %v791 = vtanh.pop %v790
  %793 = vrot.lane.b32.xlu0 %v791, 64
  %v794 = vpop.permute.xlu0 %793
  %v796 = vmul.f32 %v773, %v794
  %798 = vrot.lane.b32.xlu0 %v796, 32
  %v799 = vpop.permute.xlu0 %798
  %801 = vst.msk [vmem:[#allocation6] sm:$0xff] %vm332, %v799
  %803 = vrot.lane.b32.xlu0 %v790, 96
  %v804 = vpop.permute.xlu0 %803
  %806 = vst.msk [vmem:[#allocation7] sm:$0xff] %vm332, %v804
  %s807 = scalar_lea.vmem [#allocation4], 24
  %808 = vst.msk [vmem:[%s807] sm:$0xff] %vm332, %v799
  %s809 = scalar_lea.vmem [#allocation2], 32
  %v810 = vld [vmem:[%s809] sm:$0xff]
  %v811 = vld [vmem:[#allocation6] sm:$0xff]
  %v813 = vsel %vm332, %v811, 0
  %815 = vmatprep.subr.mxu0 0.0
  %816 = vmatpush1.msra.mxu0 0.0
  %817 = vmatprep.subr.mxu0 0.0
  %818 = vmatpush1.msra.mxu0 0.0
  %819 = vmatprep.subr.mxu0 0.0
  %820 = vmatpush1.msra.mxu0 0.0
  %821 = vmatprep.subr.mxu0 0.0
  %822 = vmatpush1.msra.mxu0 0.0
  %823 = vmatprep.subr.mxu0 0.0
  %824 = vmatpush1.msra.mxu0 0.0
  %825 = vmatprep.subr.mxu0 0.0
  %826 = vmatpush1.msra.mxu0 0.0
  %827 = vmatprep.subr.mxu0 0.0
  %828 = vmatpush1.msra.mxu0 0.0
  %829 = vmatprep.subr.mxu0 0.0
  %830 = vmatpush1.msra.mxu0 0.0
  %831 = vmatprep.subr.mxu0 0.0
  %832 = vmatpush1.msra.mxu0 0.0
  %833 = vmatprep.subr.mxu0 0.0
  %834 = vmatpush1.msra.mxu0 0.0
  %835 = vmatprep.subr.mxu0 0.0
  %836 = vmatpush1.msra.mxu0 0.0
  %837 = vmatprep.subr.mxu0 0.0
  %838 = vmatpush1.msra.mxu0 0.0
  %839 = vmatprep.subr.mxu0 0.0
  %840 = vmatpush1.msra.mxu0 %v338
  %841 = vmatprep.subr.mxu0 0.0
  %842 = vmatpush1.msra.mxu0 %v337
  %843 = vmatprep.subr.mxu0 0.0
  %844 = vmatpush1.msra.mxu0 %v336
  %845 = vmatprep.subr.mxu0 0.0
  %846 = vmatpush1.msra.mxu0 %v335
  %847 = vmatprep.subr.mxu0 0.0
  %848 = vmatpush2.msra.mxu0 0.0
  %849 = vmatprep.subr.mxu0 0.0
  %850 = vmatpush2.msra.mxu0 0.0
  %851 = vmatprep.subr.mxu0 0.0
  %852 = vmatpush2.msra.mxu0 0.0
  %853 = vmatprep.subr.mxu0 0.0
  %854 = vmatpush2.msra.mxu0 0.0
  %855 = vmatprep.subr.mxu0 0.0
  %856 = vmatpush2.msra.mxu0 0.0
  %857 = vmatprep.subr.mxu0 0.0
  %858 = vmatpush2.msra.mxu0 0.0
  %859 = vmatprep.subr.mxu0 0.0
  %860 = vmatpush2.msra.mxu0 0.0
  %861 = vmatprep.subr.mxu0 0.0
  %862 = vmatpush2.msra.mxu0 0.0
  %863 = vmatprep.subr.mxu0 0.0
  %864 = vmatpush2.msra.mxu0 0.0
  %865 = vmatprep.subr.mxu0 0.0
  %866 = vmatpush2.msra.mxu0 0.0
  %867 = vmatprep.subr.mxu0 0.0
  %868 = vmatpush2.msra.mxu0 0.0
  %869 = vmatprep.subr.mxu0 0.0
  %870 = vmatpush2.msra.mxu0 0.0
  %871 = vmatprep.subr.mxu0 0.0
  %872 = vmatpush2.msra.mxu0 0.0
  %873 = vmatprep.subr.mxu0 0.0
  %874 = vmatpush2.msra.mxu0 0.0
  %875 = vmatprep.subr.mxu0 0.0
  %876 = vmatpush2.msra.mxu0 0.0
  %877 = vmatprep.subr.mxu0 0.0
  %878 = vmatpush2.msra.mxu0 0.0
  %879 = vmatprep.mubr.f32.mxu0 0.0
  %880 = vmatmul.mubr.f32.gmra.mxu0 %v813
  %v881 = vpop.f32.mrf.mxu0
  %v882 = vadd.f32 0.0, %v881
  %v883 = vpop.f32.mrf.mxu0
  %884 = vdwg.mxu0
  %v885 = vadd.f32 %v810, %v882
  %v886 = vxor.u32 %v885, 2147483648
  %v887 = vmul.f32 %v886, 1.442695
  %v888 = vpow.pop %v887
  %v889 = vadd.f32 %v888, 1.0
  %v890 = vrcp.pop %v889
  %v891 = vmul.f32 1.0, %v890
  %v892 = vtanh.pop %v885
  %v893 = vld [vmem:[#allocation7] sm:$0xff]
  %895 = vrot.lane.b32.xlu0 %v893, 32
  %v896 = vpop.permute.xlu0 %895
  %v898 = vmul.f32 %v891, %v896
  %900 = vrot.lane.b32.xlu0 %v892, 64
  %v901 = vpop.permute.xlu0 %900
  %v903 = vmul.f32 %v891, %v901
  %905 = vrot.lane.b32.xlu0 %v903, 32
  %v906 = vpop.permute.xlu0 %905
  %v908 = vadd.f32 %v898, %v906
  %v909 = vtanh.pop %v908
  %911 = vrot.lane.b32.xlu0 %v909, 64
  %v912 = vpop.permute.xlu0 %911
  %v914 = vmul.f32 %v891, %v912
  %916 = vrot.lane.b32.xlu0 %v914, 32
  %v917 = vpop.permute.xlu0 %916
  %919 = vst.msk [vmem:[#allocation6] sm:$0xff] %vm332, %v917
  %921 = vrot.lane.b32.xlu0 %v908, 96
  %v922 = vpop.permute.xlu0 %921
  %924 = vst.msk [vmem:[#allocation7] sm:$0xff] %vm332, %v922
  %s925 = scalar_lea.vmem [#allocation4], 32
  %926 = vst.msk [vmem:[%s925] sm:$0xff] %vm332, %v917
  %s927 = scalar_lea.vmem [#allocation2], 40
  %v928 = vld [vmem:[%s927] sm:$0xff]
  %v929 = vld [vmem:[#allocation6] sm:$0xff]
  %v931 = vsel %vm332, %v929, 0
  %933 = vmatprep.subr.mxu0 0.0
  %934 = vmatpush1.msra.mxu0 0.0
  %935 = vmatprep.subr.mxu0 0.0
  %936 = vmatpush1.msra.mxu0 0.0
  %937 = vmatprep.subr.mxu0 0.0
  %938 = vmatpush1.msra.mxu0 0.0
  %939 = vmatprep.subr.mxu0 0.0
  %940 = vmatpush1.msra.mxu0 0.0
  %941 = vmatprep.subr.mxu0 0.0
  %942 = vmatpush1.msra.mxu0 0.0
  %943 = vmatprep.subr.mxu0 0.0
  %944 = vmatpush1.msra.mxu0 0.0
  %945 = vmatprep.subr.mxu0 0.0
  %946 = vmatpush1.msra.mxu0 0.0
  %947 = vmatprep.subr.mxu0 0.0
  %948 = vmatpush1.msra.mxu0 0.0
  %949 = vmatprep.subr.mxu0 0.0
  %950 = vmatpush1.msra.mxu0 0.0
  %951 = vmatprep.subr.mxu0 0.0
  %952 = vmatpush1.msra.mxu0 0.0
  %953 = vmatprep.subr.mxu0 0.0
  %954 = vmatpush1.msra.mxu0 0.0
  %955 = vmatprep.subr.mxu0 0.0
  %956 = vmatpush1.msra.mxu0 0.0
  %957 = vmatprep.subr.mxu0 0.0
  %958 = vmatpush1.msra.mxu0 %v338
  %959 = vmatprep.subr.mxu0 0.0
  %960 = vmatpush1.msra.mxu0 %v337
  %961 = vmatprep.subr.mxu0 0.0
  %962 = vmatpush1.msra.mxu0 %v336
  %963 = vmatprep.subr.mxu0 0.0
  %964 = vmatpush1.msra.mxu0 %v335
  %965 = vmatprep.subr.mxu0 0.0
  %966 = vmatpush2.msra.mxu0 0.0
  %967 = vmatprep.subr.mxu0 0.0
  %968 = vmatpush2.msra.mxu0 0.0
  %969 = vmatprep.subr.mxu0 0.0
  %970 = vmatpush2.msra.mxu0 0.0
  %971 = vmatprep.subr.mxu0 0.0
  %972 = vmatpush2.msra.mxu0 0.0
  %973 = vmatprep.subr.mxu0 0.0
  %974 = vmatpush2.msra.mxu0 0.0
  %975 = vmatprep.subr.mxu0 0.0
  %976 = vmatpush2.msra.mxu0 0.0
  %977 = vmatprep.subr.mxu0 0.0
  %978 = vmatpush2.msra.mxu0 0.0
  %979 = vmatprep.subr.mxu0 0.0
  %980 = vmatpush2.msra.mxu0 0.0
  %981 = vmatprep.subr.mxu0 0.0
  %982 = vmatpush2.msra.mxu0 0.0
  %983 = vmatprep.subr.mxu0 0.0
  %984 = vmatpush2.msra.mxu0 0.0
  %985 = vmatprep.subr.mxu0 0.0
  %986 = vmatpush2.msra.mxu0 0.0
  %987 = vmatprep.subr.mxu0 0.0
  %988 = vmatpush2.msra.mxu0 0.0
  %989 = vmatprep.subr.mxu0 0.0
  %990 = vmatpush2.msra.mxu0 0.0
  %991 = vmatprep.subr.mxu0 0.0
  %992 = vmatpush2.msra.mxu0 0.0
  %993 = vmatprep.subr.mxu0 0.0
  %994 = vmatpush2.msra.mxu0 0.0
  %995 = vmatprep.subr.mxu0 0.0
  %996 = vmatpush2.msra.mxu0 0.0
  %997 = vmatprep.mubr.f32.mxu0 0.0
  %998 = vmatmul.mubr.f32.gmra.mxu0 %v931
  %v999 = vpop.f32.mrf.mxu0
  %v1000 = vadd.f32 0.0, %v999
  %v1001 = vpop.f32.mrf.mxu0
  %1002 = vdwg.mxu0
  %v1003 = vadd.f32 %v928, %v1000
  %v1004 = vxor.u32 %v1003, 2147483648
  %v1005 = vmul.f32 %v1004, 1.442695
  %v1006 = vpow.pop %v1005
  %v1007 = vadd.f32 %v1006, 1.0
  %v1008 = vrcp.pop %v1007
  %v1009 = vmul.f32 1.0, %v1008
  %v1010 = vtanh.pop %v1003
  %v1011 = vld [vmem:[#allocation7] sm:$0xff]
  %1013 = vrot.lane.b32.xlu0 %v1011, 32
  %v1014 = vpop.permute.xlu0 %1013
  %v1016 = vmul.f32 %v1009, %v1014
  %1018 = vrot.lane.b32.xlu0 %v1010, 64
  %v1019 = vpop.permute.xlu0 %1018
  %v1021 = vmul.f32 %v1009, %v1019
  %1023 = vrot.lane.b32.xlu0 %v1021, 32
  %v1024 = vpop.permute.xlu0 %1023
  %v1026 = vadd.f32 %v1016, %v1024
  %v1027 = vtanh.pop %v1026
  %1029 = vrot.lane.b32.xlu0 %v1027, 64
  %v1030 = vpop.permute.xlu0 %1029
  %v1032 = vmul.f32 %v1009, %v1030
  %1034 = vrot.lane.b32.xlu0 %v1032, 32
  %v1035 = vpop.permute.xlu0 %1034
  %1037 = vst.msk [vmem:[#allocation6] sm:$0xff] %vm332, %v1035
  %1039 = vrot.lane.b32.xlu0 %v1026, 96
  %v1040 = vpop.permute.xlu0 %1039
  %1042 = vst.msk [vmem:[#allocation7] sm:$0xff] %vm332, %v1040
  %s1043 = scalar_lea.vmem [#allocation4], 40
  %1044 = vst.msk [vmem:[%s1043] sm:$0xff] %vm332, %v1035
  %s1045 = scalar_lea.vmem [#allocation2], 48
  %v1046 = vld [vmem:[%s1045] sm:$0xff]
  %v1047 = vld [vmem:[#allocation6] sm:$0xff]
  %v1049 = vsel %vm332, %v1047, 0
  %1051 = vmatprep.subr.mxu0 0.0
  %1052 = vmatpush1.msra.mxu0 0.0
  %1053 = vmatprep.subr.mxu0 0.0
  %1054 = vmatpush1.msra.mxu0 0.0
  %1055 = vmatprep.subr.mxu0 0.0
  %1056 = vmatpush1.msra.mxu0 0.0
  %1057 = vmatprep.subr.mxu0 0.0
  %1058 = vmatpush1.msra.mxu0 0.0
  %1059 = vmatprep.subr.mxu0 0.0
  %1060 = vmatpush1.msra.mxu0 0.0
  %1061 = vmatprep.subr.mxu0 0.0
  %1062 = vmatpush1.msra.mxu0 0.0
  %1063 = vmatprep.subr.mxu0 0.0
  %1064 = vmatpush1.msra.mxu0 0.0
  %1065 = vmatprep.subr.mxu0 0.0
  %1066 = vmatpush1.msra.mxu0 0.0
  %1067 = vmatprep.subr.mxu0 0.0
  %1068 = vmatpush1.msra.mxu0 0.0
  %1069 = vmatprep.subr.mxu0 0.0
  %1070 = vmatpush1.msra.mxu0 0.0
  %1071 = vmatprep.subr.mxu0 0.0
  %1072 = vmatpush1.msra.mxu0 0.0
  %1073 = vmatprep.subr.mxu0 0.0
  %1074 = vmatpush1.msra.mxu0 0.0
  %1075 = vmatprep.subr.mxu0 0.0
  %1076 = vmatpush1.msra.mxu0 %v338
  %1077 = vmatprep.subr.mxu0 0.0
  %1078 = vmatpush1.msra.mxu0 %v337
  %1079 = vmatprep.subr.mxu0 0.0
  %1080 = vmatpush1.msra.mxu0 %v336
  %1081 = vmatprep.subr.mxu0 0.0
  %1082 = vmatpush1.msra.mxu0 %v335
  %1083 = vmatprep.subr.mxu0 0.0
  %1084 = vmatpush2.msra.mxu0 0.0
  %1085 = vmatprep.subr.mxu0 0.0
  %1086 = vmatpush2.msra.mxu0 0.0
  %1087 = vmatprep.subr.mxu0 0.0
  %1088 = vmatpush2.msra.mxu0 0.0
  %1089 = vmatprep.subr.mxu0 0.0
  %1090 = vmatpush2.msra.mxu0 0.0
  %1091 = vmatprep.subr.mxu0 0.0
  %1092 = vmatpush2.msra.mxu0 0.0
  %1093 = vmatprep.subr.mxu0 0.0
  %1094 = vmatpush2.msra.mxu0 0.0
  %1095 = vmatprep.subr.mxu0 0.0
  %1096 = vmatpush2.msra.mxu0 0.0
  %1097 = vmatprep.subr.mxu0 0.0
  %1098 = vmatpush2.msra.mxu0 0.0
  %1099 = vmatprep.subr.mxu0 0.0
  %1100 = vmatpush2.msra.mxu0 0.0
  %1101 = vmatprep.subr.mxu0 0.0
  %1102 = vmatpush2.msra.mxu0 0.0
  %1103 = vmatprep.subr.mxu0 0.0
  %1104 = vmatpush2.msra.mxu0 0.0
  %1105 = vmatprep.subr.mxu0 0.0
  %1106 = vmatpush2.msra.mxu0 0.0
  %1107 = vmatprep.subr.mxu0 0.0
  %1108 = vmatpush2.msra.mxu0 0.0
  %1109 = vmatprep.subr.mxu0 0.0
  %1110 = vmatpush2.msra.mxu0 0.0
  %1111 = vmatprep.subr.mxu0 0.0
  %1112 = vmatpush2.msra.mxu0 0.0
  %1113 = vmatprep.subr.mxu0 0.0
  %1114 = vmatpush2.msra.mxu0 0.0
  %1115 = vmatprep.mubr.f32.mxu0 0.0
  %1116 = vmatmul.mubr.f32.gmra.mxu0 %v1049
  %v1117 = vpop.f32.mrf.mxu0
  %v1118 = vadd.f32 0.0, %v1117
  %v1119 = vpop.f32.mrf.mxu0
  %1120 = vdwg.mxu0
  %v1121 = vadd.f32 %v1046, %v1118
  %v1122 = vxor.u32 %v1121, 2147483648
  %v1123 = vmul.f32 %v1122, 1.442695
  %v1124 = vpow.pop %v1123
  %v1125 = vadd.f32 %v1124, 1.0
  %v1126 = vrcp.pop %v1125
  %v1127 = vmul.f32 1.0, %v1126
  %v1128 = vtanh.pop %v1121
  %v1129 = vld [vmem:[#allocation7] sm:$0xff]
  %1131 = vrot.lane.b32.xlu0 %v1129, 32
  %v1132 = vpop.permute.xlu0 %1131
  %v1134 = vmul.f32 %v1127, %v1132
  %1136 = vrot.lane.b32.xlu0 %v1128, 64
  %v1137 = vpop.permute.xlu0 %1136
  %v1139 = vmul.f32 %v1127, %v1137
  %1141 = vrot.lane.b32.xlu0 %v1139, 32
  %v1142 = vpop.permute.xlu0 %1141
  %v1144 = vadd.f32 %v1134, %v1142
  %v1145 = vtanh.pop %v1144
  %1147 = vrot.lane.b32.xlu0 %v1145, 64
  %v1148 = vpop.permute.xlu0 %1147
  %v1150 = vmul.f32 %v1127, %v1148
  %1152 = vrot.lane.b32.xlu0 %v1150, 32
  %v1153 = vpop.permute.xlu0 %1152
  %1155 = vst.msk [vmem:[#allocation6] sm:$0xff] %vm332, %v1153
  %1157 = vrot.lane.b32.xlu0 %v1144, 96
  %v1158 = vpop.permute.xlu0 %1157
  %1160 = vst.msk [vmem:[#allocation7] sm:$0xff] %vm332, %v1158
  %s1161 = scalar_lea.vmem [#allocation4], 48
  %1162 = vst.msk [vmem:[%s1161] sm:$0xff] %vm332, %v1153
  %s1163 = scalar_lea.vmem [#allocation2], 56
  %v1164 = vld [vmem:[%s1163] sm:$0xff]
  %v1165 = vld [vmem:[#allocation6] sm:$0xff]
  %v1167 = vsel %vm332, %v1165, 0
  %1169 = vmatprep.subr.mxu0 0.0
  %1170 = vmatpush1.msra.mxu0 0.0
  %1171 = vmatprep.subr.mxu0 0.0
  %1172 = vmatpush1.msra.mxu0 0.0
  %1173 = vmatprep.subr.mxu0 0.0
  %1174 = vmatpush1.msra.mxu0 0.0
  %1175 = vmatprep.subr.mxu0 0.0
  %1176 = vmatpush1.msra.mxu0 0.0
  %1177 = vmatprep.subr.mxu0 0.0
  %1178 = vmatpush1.msra.mxu0 0.0
  %1179 = vmatprep.subr.mxu0 0.0
  %1180 = vmatpush1.msra.mxu0 0.0
  %1181 = vmatprep.subr.mxu0 0.0
  %1182 = vmatpush1.msra.mxu0 0.0
  %1183 = vmatprep.subr.mxu0 0.0
  %1184 = vmatpush1.msra.mxu0 0.0
  %1185 = vmatprep.subr.mxu0 0.0
  %1186 = vmatpush1.msra.mxu0 0.0
  %1187 = vmatprep.subr.mxu0 0.0
  %1188 = vmatpush1.msra.mxu0 0.0
  %1189 = vmatprep.subr.mxu0 0.0
  %1190 = vmatpush1.msra.mxu0 0.0
  %1191 = vmatprep.subr.mxu0 0.0
  %1192 = vmatpush1.msra.mxu0 0.0
  %1193 = vmatprep.subr.mxu0 0.0
  %1194 = vmatpush1.msra.mxu0 %v338
  %1195 = vmatprep.subr.mxu0 0.0
  %1196 = vmatpush1.msra.mxu0 %v337
  %1197 = vmatprep.subr.mxu0 0.0
  %1198 = vmatpush1.msra.mxu0 %v336
  %1199 = vmatprep.subr.mxu0 0.0
  %1200 = vmatpush1.msra.mxu0 %v335
  %1201 = vmatprep.subr.mxu0 0.0
  %1202 = vmatpush2.msra.mxu0 0.0
  %1203 = vmatprep.subr.mxu0 0.0
  %1204 = vmatpush2.msra.mxu0 0.0
  %1205 = vmatprep.subr.mxu0 0.0
  %1206 = vmatpush2.msra.mxu0 0.0
  %1207 = vmatprep.subr.mxu0 0.0
  %1208 = vmatpush2.msra.mxu0 0.0
  %1209 = vmatprep.subr.mxu0 0.0
  %1210 = vmatpush2.msra.mxu0 0.0
  %1211 = vmatprep.subr.mxu0 0.0
  %1212 = vmatpush2.msra.mxu0 0.0
  %1213 = vmatprep.subr.mxu0 0.0
  %1214 = vmatpush2.msra.mxu0 0.0
  %1215 = vmatprep.subr.mxu0 0.0
  %1216 = vmatpush2.msra.mxu0 0.0
  %1217 = vmatprep.subr.mxu0 0.0
  %1218 = vmatpush2.msra.mxu0 0.0
  %1219 = vmatprep.subr.mxu0 0.0
  %1220 = vmatpush2.msra.mxu0 0.0
  %1221 = vmatprep.subr.mxu0 0.0
  %1222 = vmatpush2.msra.mxu0 0.0
  %1223 = vmatprep.subr.mxu0 0.0
  %1224 = vmatpush2.msra.mxu0 0.0
  %1225 = vmatprep.subr.mxu0 0.0
  %1226 = vmatpush2.msra.mxu0 0.0
  %1227 = vmatprep.subr.mxu0 0.0
  %1228 = vmatpush2.msra.mxu0 0.0
  %1229 = vmatprep.subr.mxu0 0.0
  %1230 = vmatpush2.msra.mxu0 0.0
  %1231 = vmatprep.subr.mxu0 0.0
  %1232 = vmatpush2.msra.mxu0 0.0
  %1233 = vmatprep.mubr.f32.mxu0 0.0
  %1234 = vmatmul.mubr.f32.gmra.mxu0 %v1167
  %v1235 = vpop.f32.mrf.mxu0
  %v1236 = vadd.f32 0.0, %v1235
  %v1237 = vpop.f32.mrf.mxu0
  %1238 = vdwg.mxu0
  %v1239 = vadd.f32 %v1164, %v1236
  %v1240 = vxor.u32 %v1239, 2147483648
  %v1241 = vmul.f32 %v1240, 1.442695
  %v1242 = vpow.pop %v1241
  %v1243 = vadd.f32 %v1242, 1.0
  %v1244 = vrcp.pop %v1243
  %v1245 = vmul.f32 1.0, %v1244
  %v1246 = vtanh.pop %v1239
  %v1247 = vld [vmem:[#allocation7] sm:$0xff]
  %1249 = vrot.lane.b32.xlu0 %v1247, 32
  %v1250 = vpop.permute.xlu0 %1249
  %v1252 = vmul.f32 %v1245, %v1250
  %1254 = vrot.lane.b32.xlu0 %v1246, 64
  %v1255 = vpop.permute.xlu0 %1254
  %v1257 = vmul.f32 %v1245, %v1255
  %1259 = vrot.lane.b32.xlu0 %v1257, 32
  %v1260 = vpop.permute.xlu0 %1259
  %v1262 = vadd.f32 %v1252, %v1260
  %v1263 = vtanh.pop %v1262
  %1265 = vrot.lane.b32.xlu0 %v1263, 64
  %v1266 = vpop.permute.xlu0 %1265
  %v1268 = vmul.f32 %v1245, %v1266
  %1270 = vrot.lane.b32.xlu0 %v1268, 32
  %v1271 = vpop.permute.xlu0 %1270
  %1273 = vst.msk [vmem:[#allocation6] sm:$0xff] %vm332, %v1271
  %1275 = vrot.lane.b32.xlu0 %v1262, 96
  %v1276 = vpop.permute.xlu0 %1275
  %1278 = vst.msk [vmem:[#allocation7] sm:$0xff] %vm332, %v1276
  %s1279 = scalar_lea.vmem [#allocation4], 56
  %1280 = vst.msk [vmem:[%s1279] sm:$0xff] %vm332, %v1271
  %v1281 = vld [vmem:[#allocation6] sm:$0xff]
  %1282 = vst.msk [vmem:[%s16] sm:$0xff] %vm332, %v1281
  %v1283 = vld [vmem:[#allocation7] sm:$0xff]
  %1284 = vst.msk [vmem:[%s17] sm:$0xff] %vm332, %v1283
  %1285 = vst.msk [vmem:[#allocation6] sm:$0xff] %vm332, 0.0
  %1286 = vst.msk [vmem:[#allocation7] sm:$0xff] %vm332, 0.0
  %v1287 = vld [vmem:[%s5] sm:$0xff]
  %v1288 = vld [vmem:[%s5 + $0x8] sm:$0xff]
  %v1289 = vld [vmem:[%s5 + $0x10] sm:$0xff]
  %v1290 = vld [vmem:[%s5 + $0x18] sm:$0xff]
  %s1291 = scalar_lea.vmem [#allocation3], 56
  %v1292 = vld [vmem:[%s1291] sm:$0xff]
  %v1293 = vld [vmem:[#allocation6] sm:$0xff]
  %v1295 = vsel %vm332, %v1293, 0
  %1297 = vmatprep.subr.mxu0 0.0
  %1298 = vmatpush1.msra.mxu0 0.0
  %1299 = vmatprep.subr.mxu0 0.0
  %1300 = vmatpush1.msra.mxu0 0.0
  %1301 = vmatprep.subr.mxu0 0.0
  %1302 = vmatpush1.msra.mxu0 0.0
  %1303 = vmatprep.subr.mxu0 0.0
  %1304 = vmatpush1.msra.mxu0 0.0
  %1305 = vmatprep.subr.mxu0 0.0
  %1306 = vmatpush1.msra.mxu0 0.0
  %1307 = vmatprep.subr.mxu0 0.0
  %1308 = vmatpush1.msra.mxu0 0.0
  %1309 = vmatprep.subr.mxu0 0.0
  %1310 = vmatpush1.msra.mxu0 0.0
  %1311 = vmatprep.subr.mxu0 0.0
  %1312 = vmatpush1.msra.mxu0 0.0
  %1313 = vmatprep.subr.mxu0 0.0
  %1314 = vmatpush1.msra.mxu0 0.0
  %1315 = vmatprep.subr.mxu0 0.0
  %1316 = vmatpush1.msra.mxu0 0.0
  %1317 = vmatprep.subr.mxu0 0.0
  %1318 = vmatpush1.msra.mxu0 0.0
  %1319 = vmatprep.subr.mxu0 0.0
  %1320 = vmatpush1.msra.mxu0 0.0
  %1321 = vmatprep.subr.mxu0 0.0
  %1322 = vmatpush1.msra.mxu0 %v1290
  %1323 = vmatprep.subr.mxu0 0.0
  %1324 = vmatpush1.msra.mxu0 %v1289
  %1325 = vmatprep.subr.mxu0 0.0
  %1326 = vmatpush1.msra.mxu0 %v1288
  %1327 = vmatprep.subr.mxu0 0.0
  %1328 = vmatpush1.msra.mxu0 %v1287
  %1329 = vmatprep.subr.mxu0 0.0
  %1330 = vmatpush2.msra.mxu0 0.0
  %1331 = vmatprep.subr.mxu0 0.0
  %1332 = vmatpush2.msra.mxu0 0.0
  %1333 = vmatprep.subr.mxu0 0.0
  %1334 = vmatpush2.msra.mxu0 0.0
  %1335 = vmatprep.subr.mxu0 0.0
  %1336 = vmatpush2.msra.mxu0 0.0
  %1337 = vmatprep.subr.mxu0 0.0
  %1338 = vmatpush2.msra.mxu0 0.0
  %1339 = vmatprep.subr.mxu0 0.0
  %1340 = vmatpush2.msra.mxu0 0.0
  %1341 = vmatprep.subr.mxu0 0.0
  %1342 = vmatpush2.msra.mxu0 0.0
  %1343 = vmatprep.subr.mxu0 0.0
  %1344 = vmatpush2.msra.mxu0 0.0
  %1345 = vmatprep.subr.mxu0 0.0
  %1346 = vmatpush2.msra.mxu0 0.0
  %1347 = vmatprep.subr.mxu0 0.0
  %1348 = vmatpush2.msra.mxu0 0.0
  %1349 = vmatprep.subr.mxu0 0.0
  %1350 = vmatpush2.msra.mxu0 0.0
  %1351 = vmatprep.subr.mxu0 0.0
  %1352 = vmatpush2.msra.mxu0 0.0
  %1353 = vmatprep.subr.mxu0 0.0
  %1354 = vmatpush2.msra.mxu0 0.0
  %1355 = vmatprep.subr.mxu0 0.0
  %1356 = vmatpush2.msra.mxu0 0.0
  %1357 = vmatprep.subr.mxu0 0.0
  %1358 = vmatpush2.msra.mxu0 0.0
  %1359 = vmatprep.subr.mxu0 0.0
  %1360 = vmatpush2.msra.mxu0 0.0
  %1361 = vmatprep.mubr.f32.mxu0 0.0
  %1362 = vmatmul.mubr.f32.gmra.mxu0 %v1295
  %v1363 = vpop.f32.mrf.mxu0
  %v1364 = vadd.f32 0.0, %v1363
  %v1365 = vpop.f32.mrf.mxu0
  %1366 = vdwg.mxu0
  %v1367 = vadd.f32 %v1292, %v1364
  %v1368 = vxor.u32 %v1367, 2147483648
  %v1369 = vmul.f32 %v1368, 1.442695
  %v1370 = vpow.pop %v1369
  %v1371 = vadd.f32 %v1370, 1.0
  %v1372 = vrcp.pop %v1371
  %v1373 = vmul.f32 1.0, %v1372
  %v1374 = vtanh.pop %v1367
  %v1375 = vld [vmem:[#allocation7] sm:$0xff]
  %1377 = vrot.lane.b32.xlu0 %v1375, 32
  %v1378 = vpop.permute.xlu0 %1377
  %v1380 = vmul.f32 %v1373, %v1378
  %1382 = vrot.lane.b32.xlu0 %v1374, 64
  %v1383 = vpop.permute.xlu0 %1382
  %v1385 = vmul.f32 %v1373, %v1383
  %1387 = vrot.lane.b32.xlu0 %v1385, 32
  %v1388 = vpop.permute.xlu0 %1387
  %v1390 = vadd.f32 %v1380, %v1388
  %v1391 = vtanh.pop %v1390
  %1393 = vrot.lane.b32.xlu0 %v1391, 64
  %v1394 = vpop.permute.xlu0 %1393
  %v1396 = vmul.f32 %v1373, %v1394
  %1398 = vrot.lane.b32.xlu0 %v1396, 32
  %v1399 = vpop.permute.xlu0 %1398
  %1401 = vst.msk [vmem:[#allocation6] sm:$0xff] %vm332, %v1399
  %1403 = vrot.lane.b32.xlu0 %v1390, 96
  %v1404 = vpop.permute.xlu0 %1403
  %1406 = vst.msk [vmem:[#allocation7] sm:$0xff] %vm332, %v1404
  %s1407 = scalar_lea.vmem [#allocation5], 56
  %1408 = vst.msk [vmem:[%s1407] sm:$0xff] %vm332, %v1399
  %s1409 = scalar_lea.vmem [#allocation3], 48
  %v1410 = vld [vmem:[%s1409] sm:$0xff]
  %v1411 = vld [vmem:[#allocation6] sm:$0xff]
  %v1413 = vsel %vm332, %v1411, 0
  %1415 = vmatprep.subr.mxu0 0.0
  %1416 = vmatpush1.msra.mxu0 0.0
  %1417 = vmatprep.subr.mxu0 0.0
  %1418 = vmatpush1.msra.mxu0 0.0
  %1419 = vmatprep.subr.mxu0 0.0
  %1420 = vmatpush1.msra.mxu0 0.0
  %1421 = vmatprep.subr.mxu0 0.0
  %1422 = vmatpush1.msra.mxu0 0.0
  %1423 = vmatprep.subr.mxu0 0.0
  %1424 = vmatpush1.msra.mxu0 0.0
  %1425 = vmatprep.subr.mxu0 0.0
  %1426 = vmatpush1.msra.mxu0 0.0
  %1427 = vmatprep.subr.mxu0 0.0
  %1428 = vmatpush1.msra.mxu0 0.0
  %1429 = vmatprep.subr.mxu0 0.0
  %1430 = vmatpush1.msra.mxu0 0.0
  %1431 = vmatprep.subr.mxu0 0.0
  %1432 = vmatpush1.msra.mxu0 0.0
  %1433 = vmatprep.subr.mxu0 0.0
  %1434 = vmatpush1.msra.mxu0 0.0
  %1435 = vmatprep.subr.mxu0 0.0
  %1436 = vmatpush1.msra.mxu0 0.0
  %1437 = vmatprep.subr.mxu0 0.0
  %1438 = vmatpush1.msra.mxu0 0.0
  %1439 = vmatprep.subr.mxu0 0.0
  %1440 = vmatpush1.msra.mxu0 %v1290
  %1441 = vmatprep.subr.mxu0 0.0
  %1442 = vmatpush1.msra.mxu0 %v1289
  %1443 = vmatprep.subr.mxu0 0.0
  %1444 = vmatpush1.msra.mxu0 %v1288
  %1445 = vmatprep.subr.mxu0 0.0
  %1446 = vmatpush1.msra.mxu0 %v1287
  %1447 = vmatprep.subr.mxu0 0.0
  %1448 = vmatpush2.msra.mxu0 0.0
  %1449 = vmatprep.subr.mxu0 0.0
  %1450 = vmatpush2.msra.mxu0 0.0
  %1451 = vmatprep.subr.mxu0 0.0
  %1452 = vmatpush2.msra.mxu0 0.0
  %1453 = vmatprep.subr.mxu0 0.0
  %1454 = vmatpush2.msra.mxu0 0.0
  %1455 = vmatprep.subr.mxu0 0.0
  %1456 = vmatpush2.msra.mxu0 0.0
  %1457 = vmatprep.subr.mxu0 0.0
  %1458 = vmatpush2.msra.mxu0 0.0
  %1459 = vmatprep.subr.mxu0 0.0
  %1460 = vmatpush2.msra.mxu0 0.0
  %1461 = vmatprep.subr.mxu0 0.0
  %1462 = vmatpush2.msra.mxu0 0.0
  %1463 = vmatprep.subr.mxu0 0.0
  %1464 = vmatpush2.msra.mxu0 0.0
  %1465 = vmatprep.subr.mxu0 0.0
  %1466 = vmatpush2.msra.mxu0 0.0
  %1467 = vmatprep.subr.mxu0 0.0
  %1468 = vmatpush2.msra.mxu0 0.0
  %1469 = vmatprep.subr.mxu0 0.0
  %1470 = vmatpush2.msra.mxu0 0.0
  %1471 = vmatprep.subr.mxu0 0.0
  %1472 = vmatpush2.msra.mxu0 0.0
  %1473 = vmatprep.subr.mxu0 0.0
  %1474 = vmatpush2.msra.mxu0 0.0
  %1475 = vmatprep.subr.mxu0 0.0
  %1476 = vmatpush2.msra.mxu0 0.0
  %1477 = vmatprep.subr.mxu0 0.0
  %1478 = vmatpush2.msra.mxu0 0.0
  %1479 = vmatprep.mubr.f32.mxu0 0.0
  %1480 = vmatmul.mubr.f32.gmra.mxu0 %v1413
  %v1481 = vpop.f32.mrf.mxu0
  %v1482 = vadd.f32 0.0, %v1481
  %v1483 = vpop.f32.mrf.mxu0
  %1484 = vdwg.mxu0
  %v1485 = vadd.f32 %v1410, %v1482
  %v1486 = vxor.u32 %v1485, 2147483648
  %v1487 = vmul.f32 %v1486, 1.442695
  %v1488 = vpow.pop %v1487
  %v1489 = vadd.f32 %v1488, 1.0
  %v1490 = vrcp.pop %v1489
  %v1491 = vmul.f32 1.0, %v1490
  %v1492 = vtanh.pop %v1485
  %v1493 = vld [vmem:[#allocation7] sm:$0xff]
  %1495 = vrot.lane.b32.xlu0 %v1493, 32
  %v1496 = vpop.permute.xlu0 %1495
  %v1498 = vmul.f32 %v1491, %v1496
  %1500 = vrot.lane.b32.xlu0 %v1492, 64
  %v1501 = vpop.permute.xlu0 %1500
  %v1503 = vmul.f32 %v1491, %v1501
  %1505 = vrot.lane.b32.xlu0 %v1503, 32
  %v1506 = vpop.permute.xlu0 %1505
  %v1508 = vadd.f32 %v1498, %v1506
  %v1509 = vtanh.pop %v1508
  %1511 = vrot.lane.b32.xlu0 %v1509, 64
  %v1512 = vpop.permute.xlu0 %1511
  %v1514 = vmul.f32 %v1491, %v1512
  %1516 = vrot.lane.b32.xlu0 %v1514, 32
  %v1517 = vpop.permute.xlu0 %1516
  %1519 = vst.msk [vmem:[#allocation6] sm:$0xff] %vm332, %v1517
  %1521 = vrot.lane.b32.xlu0 %v1508, 96
  %v1522 = vpop.permute.xlu0 %1521
  %1524 = vst.msk [vmem:[#allocation7] sm:$0xff] %vm332, %v1522
  %s1525 = scalar_lea.vmem [#allocation5], 48
  %1526 = vst.msk [vmem:[%s1525] sm:$0xff] %vm332, %v1517
  %s1527 = scalar_lea.vmem [#allocation3], 40
  %v1528 = vld [vmem:[%s1527] sm:$0xff]
  %v1529 = vld [vmem:[#allocation6] sm:$0xff]
  %v1531 = vsel %vm332, %v1529, 0
  %1533 = vmatprep.subr.mxu0 0.0
  %1534 = vmatpush1.msra.mxu0 0.0
  %1535 = vmatprep.subr.mxu0 0.0
  %1536 = vmatpush1.msra.mxu0 0.0
  %1537 = vmatprep.subr.mxu0 0.0
  %1538 = vmatpush1.msra.mxu0 0.0
  %1539 = vmatprep.subr.mxu0 0.0
  %1540 = vmatpush1.msra.mxu0 0.0
  %1541 = vmatprep.subr.mxu0 0.0
  %1542 = vmatpush1.msra.mxu0 0.0
  %1543 = vmatprep.subr.mxu0 0.0
  %1544 = vmatpush1.msra.mxu0 0.0
  %1545 = vmatprep.subr.mxu0 0.0
  %1546 = vmatpush1.msra.mxu0 0.0
  %1547 = vmatprep.subr.mxu0 0.0
  %1548 = vmatpush1.msra.mxu0 0.0
  %1549 = vmatprep.subr.mxu0 0.0
  %1550 = vmatpush1.msra.mxu0 0.0
  %1551 = vmatprep.subr.mxu0 0.0
  %1552 = vmatpush1.msra.mxu0 0.0
  %1553 = vmatprep.subr.mxu0 0.0
  %1554 = vmatpush1.msra.mxu0 0.0
  %1555 = vmatprep.subr.mxu0 0.0
  %1556 = vmatpush1.msra.mxu0 0.0
  %1557 = vmatprep.subr.mxu0 0.0
  %1558 = vmatpush1.msra.mxu0 %v1290
  %1559 = vmatprep.subr.mxu0 0.0
  %1560 = vmatpush1.msra.mxu0 %v1289
  %1561 = vmatprep.subr.mxu0 0.0
  %1562 = vmatpush1.msra.mxu0 %v1288
  %1563 = vmatprep.subr.mxu0 0.0
  %1564 = vmatpush1.msra.mxu0 %v1287
  %1565 = vmatprep.subr.mxu0 0.0
  %1566 = vmatpush2.msra.mxu0 0.0
  %1567 = vmatprep.subr.mxu0 0.0
  %1568 = vmatpush2.msra.mxu0 0.0
  %1569 = vmatprep.subr.mxu0 0.0
  %1570 = vmatpush2.msra.mxu0 0.0
  %1571 = vmatprep.subr.mxu0 0.0
  %1572 = vmatpush2.msra.mxu0 0.0
  %1573 = vmatprep.subr.mxu0 0.0
  %1574 = vmatpush2.msra.mxu0 0.0
  %1575 = vmatprep.subr.mxu0 0.0
  %1576 = vmatpush2.msra.mxu0 0.0
  %1577 = vmatprep.subr.mxu0 0.0
  %1578 = vmatpush2.msra.mxu0 0.0
  %1579 = vmatprep.subr.mxu0 0.0
  %1580 = vmatpush2.msra.mxu0 0.0
  %1581 = vmatprep.subr.mxu0 0.0
  %1582 = vmatpush2.msra.mxu0 0.0
  %1583 = vmatprep.subr.mxu0 0.0
  %1584 = vmatpush2.msra.mxu0 0.0
  %1585 = vmatprep.subr.mxu0 0.0
  %1586 = vmatpush2.msra.mxu0 0.0
  %1587 = vmatprep.subr.mxu0 0.0
  %1588 = vmatpush2.msra.mxu0 0.0
  %1589 = vmatprep.subr.mxu0 0.0
  %1590 = vmatpush2.msra.mxu0 0.0
  %1591 = vmatprep.subr.mxu0 0.0
  %1592 = vmatpush2.msra.mxu0 0.0
  %1593 = vmatprep.subr.mxu0 0.0
  %1594 = vmatpush2.msra.mxu0 0.0
  %1595 = vmatprep.subr.mxu0 0.0
  %1596 = vmatpush2.msra.mxu0 0.0
  %1597 = vmatprep.mubr.f32.mxu0 0.0
  %1598 = vmatmul.mubr.f32.gmra.mxu0 %v1531
  %v1599 = vpop.f32.mrf.mxu0
  %v1600 = vadd.f32 0.0, %v1599
  %v1601 = vpop.f32.mrf.mxu0
  %1602 = vdwg.mxu0
  %v1603 = vadd.f32 %v1528, %v1600
  %v1604 = vxor.u32 %v1603, 2147483648
  %v1605 = vmul.f32 %v1604, 1.442695
  %v1606 = vpow.pop %v1605
  %v1607 = vadd.f32 %v1606, 1.0
  %v1608 = vrcp.pop %v1607
  %v1609 = vmul.f32 1.0, %v1608
  %v1610 = vtanh.pop %v1603
  %v1611 = vld [vmem:[#allocation7] sm:$0xff]
  %1613 = vrot.lane.b32.xlu0 %v1611, 32
  %v1614 = vpop.permute.xlu0 %1613
  %v1616 = vmul.f32 %v1609, %v1614
  %1618 = vrot.lane.b32.xlu0 %v1610, 64
  %v1619 = vpop.permute.xlu0 %1618
  %v1621 = vmul.f32 %v1609, %v1619
  %1623 = vrot.lane.b32.xlu0 %v1621, 32
  %v1624 = vpop.permute.xlu0 %1623
  %v1626 = vadd.f32 %v1616, %v1624
  %v1627 = vtanh.pop %v1626
  %1629 = vrot.lane.b32.xlu0 %v1627, 64
  %v1630 = vpop.permute.xlu0 %1629
  %v1632 = vmul.f32 %v1609, %v1630
  %1634 = vrot.lane.b32.xlu0 %v1632, 32
  %v1635 = vpop.permute.xlu0 %1634
  %1637 = vst.msk [vmem:[#allocation6] sm:$0xff] %vm332, %v1635
  %1639 = vrot.lane.b32.xlu0 %v1626, 96
  %v1640 = vpop.permute.xlu0 %1639
  %1642 = vst.msk [vmem:[#allocation7] sm:$0xff] %vm332, %v1640
  %s1643 = scalar_lea.vmem [#allocation5], 40
  %1644 = vst.msk [vmem:[%s1643] sm:$0xff] %vm332, %v1635
  %s1645 = scalar_lea.vmem [#allocation3], 32
  %v1646 = vld [vmem:[%s1645] sm:$0xff]
  %v1647 = vld [vmem:[#allocation6] sm:$0xff]
  %v1649 = vsel %vm332, %v1647, 0
  %1651 = vmatprep.subr.mxu0 0.0
  %1652 = vmatpush1.msra.mxu0 0.0
  %1653 = vmatprep.subr.mxu0 0.0
  %1654 = vmatpush1.msra.mxu0 0.0
  %1655 = vmatprep.subr.mxu0 0.0
  %1656 = vmatpush1.msra.mxu0 0.0
  %1657 = vmatprep.subr.mxu0 0.0
  %1658 = vmatpush1.msra.mxu0 0.0
  %1659 = vmatprep.subr.mxu0 0.0
  %1660 = vmatpush1.msra.mxu0 0.0
  %1661 = vmatprep.subr.mxu0 0.0
  %1662 = vmatpush1.msra.mxu0 0.0
  %1663 = vmatprep.subr.mxu0 0.0
  %1664 = vmatpush1.msra.mxu0 0.0
  %1665 = vmatprep.subr.mxu0 0.0
  %1666 = vmatpush1.msra.mxu0 0.0
  %1667 = vmatprep.subr.mxu0 0.0
  %1668 = vmatpush1.msra.mxu0 0.0
  %1669 = vmatprep.subr.mxu0 0.0
  %1670 = vmatpush1.msra.mxu0 0.0
  %1671 = vmatprep.subr.mxu0 0.0
  %1672 = vmatpush1.msra.mxu0 0.0
  %1673 = vmatprep.subr.mxu0 0.0
  %1674 = vmatpush1.msra.mxu0 0.0
  %1675 = vmatprep.subr.mxu0 0.0
  %1676 = vmatpush1.msra.mxu0 %v1290
  %1677 = vmatprep.subr.mxu0 0.0
  %1678 = vmatpush1.msra.mxu0 %v1289
  %1679 = vmatprep.subr.mxu0 0.0
  %1680 = vmatpush1.msra.mxu0 %v1288
  %1681 = vmatprep.subr.mxu0 0.0
  %1682 = vmatpush1.msra.mxu0 %v1287
  %1683 = vmatprep.subr.mxu0 0.0
  %1684 = vmatpush2.msra.mxu0 0.0
  %1685 = vmatprep.subr.mxu0 0.0
  %1686 = vmatpush2.msra.mxu0 0.0
  %1687 = vmatprep.subr.mxu0 0.0
  %1688 = vmatpush2.msra.mxu0 0.0
  %1689 = vmatprep.subr.mxu0 0.0
  %1690 = vmatpush2.msra.mxu0 0.0
  %1691 = vmatprep.subr.mxu0 0.0
  %1692 = vmatpush2.msra.mxu0 0.0
  %1693 = vmatprep.subr.mxu0 0.0
  %1694 = vmatpush2.msra.mxu0 0.0
  %1695 = vmatprep.subr.mxu0 0.0
  %1696 = vmatpush2.msra.mxu0 0.0
  %1697 = vmatprep.subr.mxu0 0.0
  %1698 = vmatpush2.msra.mxu0 0.0
  %1699 = vmatprep.subr.mxu0 0.0
  %1700 = vmatpush2.msra.mxu0 0.0
  %1701 = vmatprep.subr.mxu0 0.0
  %1702 = vmatpush2.msra.mxu0 0.0
  %1703 = vmatprep.subr.mxu0 0.0
  %1704 = vmatpush2.msra.mxu0 0.0
  %1705 = vmatprep.subr.mxu0 0.0
  %1706 = vmatpush2.msra.mxu0 0.0
  %1707 = vmatprep.subr.mxu0 0.0
  %1708 = vmatpush2.msra.mxu0 0.0
  %1709 = vmatprep.subr.mxu0 0.0
  %1710 = vmatpush2.msra.mxu0 0.0
  %1711 = vmatprep.subr.mxu0 0.0
  %1712 = vmatpush2.msra.mxu0 0.0
  %1713 = vmatprep.subr.mxu0 0.0
  %1714 = vmatpush2.msra.mxu0 0.0
  %1715 = vmatprep.mubr.f32.mxu0 0.0
  %1716 = vmatmul.mubr.f32.gmra.mxu0 %v1649
  %v1717 = vpop.f32.mrf.mxu0
  %v1718 = vadd.f32 0.0, %v1717
  %v1719 = vpop.f32.mrf.mxu0
  %1720 = vdwg.mxu0
  %v1721 = vadd.f32 %v1646, %v1718
  %v1722 = vxor.u32 %v1721, 2147483648
  %v1723 = vmul.f32 %v1722, 1.442695
  %v1724 = vpow.pop %v1723
  %v1725 = vadd.f32 %v1724, 1.0
  %v1726 = vrcp.pop %v1725
  %v1727 = vmul.f32 1.0, %v1726
  %v1728 = vtanh.pop %v1721
  %v1729 = vld [vmem:[#allocation7] sm:$0xff]
  %1731 = vrot.lane.b32.xlu0 %v1729, 32
  %v1732 = vpop.permute.xlu0 %1731
  %v1734 = vmul.f32 %v1727, %v1732
  %1736 = vrot.lane.b32.xlu0 %v1728, 64
  %v1737 = vpop.permute.xlu0 %1736
  %v1739 = vmul.f32 %v1727, %v1737
  %1741 = vrot.lane.b32.xlu0 %v1739, 32
  %v1742 = vpop.permute.xlu0 %1741
  %v1744 = vadd.f32 %v1734, %v1742
  %v1745 = vtanh.pop %v1744
  %1747 = vrot.lane.b32.xlu0 %v1745, 64
  %v1748 = vpop.permute.xlu0 %1747
  %v1750 = vmul.f32 %v1727, %v1748
  %1752 = vrot.lane.b32.xlu0 %v1750, 32
  %v1753 = vpop.permute.xlu0 %1752
  %1755 = vst.msk [vmem:[#allocation6] sm:$0xff] %vm332, %v1753
  %1757 = vrot.lane.b32.xlu0 %v1744, 96
  %v1758 = vpop.permute.xlu0 %1757
  %1760 = vst.msk [vmem:[#allocation7] sm:$0xff] %vm332, %v1758
  %s1761 = scalar_lea.vmem [#allocation5], 32
  %1762 = vst.msk [vmem:[%s1761] sm:$0xff] %vm332, %v1753
  %s1763 = scalar_lea.vmem [#allocation3], 24
  %v1764 = vld [vmem:[%s1763] sm:$0xff]
  %v1765 = vld [vmem:[#allocation6] sm:$0xff]
  %v1767 = vsel %vm332, %v1765, 0
  %1769 = vmatprep.subr.mxu0 0.0
  %1770 = vmatpush1.msra.mxu0 0.0
  %1771 = vmatprep.subr.mxu0 0.0
  %1772 = vmatpush1.msra.mxu0 0.0
  %1773 = vmatprep.subr.mxu0 0.0
  %1774 = vmatpush1.msra.mxu0 0.0
  %1775 = vmatprep.subr.mxu0 0.0
  %1776 = vmatpush1.msra.mxu0 0.0
  %1777 = vmatprep.subr.mxu0 0.0
  %1778 = vmatpush1.msra.mxu0 0.0
  %1779 = vmatprep.subr.mxu0 0.0
  %1780 = vmatpush1.msra.mxu0 0.0
  %1781 = vmatprep.subr.mxu0 0.0
  %1782 = vmatpush1.msra.mxu0 0.0
  %1783 = vmatprep.subr.mxu0 0.0
  %1784 = vmatpush1.msra.mxu0 0.0
  %1785 = vmatprep.subr.mxu0 0.0
  %1786 = vmatpush1.msra.mxu0 0.0
  %1787 = vmatprep.subr.mxu0 0.0
  %1788 = vmatpush1.msra.mxu0 0.0
  %1789 = vmatprep.subr.mxu0 0.0
  %1790 = vmatpush1.msra.mxu0 0.0
  %1791 = vmatprep.subr.mxu0 0.0
  %1792 = vmatpush1.msra.mxu0 0.0
  %1793 = vmatprep.subr.mxu0 0.0
  %1794 = vmatpush1.msra.mxu0 %v1290
  %1795 = vmatprep.subr.mxu0 0.0
  %1796 = vmatpush1.msra.mxu0 %v1289
  %1797 = vmatprep.subr.mxu0 0.0
  %1798 = vmatpush1.msra.mxu0 %v1288
  %1799 = vmatprep.subr.mxu0 0.0
  %1800 = vmatpush1.msra.mxu0 %v1287
  %1801 = vmatprep.subr.mxu0 0.0
  %1802 = vmatpush2.msra.mxu0 0.0
  %1803 = vmatprep.subr.mxu0 0.0
  %1804 = vmatpush2.msra.mxu0 0.0
  %1805 = vmatprep.subr.mxu0 0.0
  %1806 = vmatpush2.msra.mxu0 0.0
  %1807 = vmatprep.subr.mxu0 0.0
  %1808 = vmatpush2.msra.mxu0 0.0
  %1809 = vmatprep.subr.mxu0 0.0
  %1810 = vmatpush2.msra.mxu0 0.0
  %1811 = vmatprep.subr.mxu0 0.0
  %1812 = vmatpush2.msra.mxu0 0.0
  %1813 = vmatprep.subr.mxu0 0.0
  %1814 = vmatpush2.msra.mxu0 0.0
  %1815 = vmatprep.subr.mxu0 0.0
  %1816 = vmatpush2.msra.mxu0 0.0
  %1817 = vmatprep.subr.mxu0 0.0
  %1818 = vmatpush2.msra.mxu0 0.0
  %1819 = vmatprep.subr.mxu0 0.0
  %1820 = vmatpush2.msra.mxu0 0.0
  %1821 = vmatprep.subr.mxu0 0.0
  %1822 = vmatpush2.msra.mxu0 0.0
  %1823 = vmatprep.subr.mxu0 0.0
  %1824 = vmatpush2.msra.mxu0 0.0
  %1825 = vmatprep.subr.mxu0 0.0
  %1826 = vmatpush2.msra.mxu0 0.0
  %1827 = vmatprep.subr.mxu0 0.0
  %1828 = vmatpush2.msra.mxu0 0.0
  %1829 = vmatprep.subr.mxu0 0.0
  %1830 = vmatpush2.msra.mxu0 0.0
  %1831 = vmatprep.subr.mxu0 0.0
  %1832 = vmatpush2.msra.mxu0 0.0
  %1833 = vmatprep.mubr.f32.mxu0 0.0
  %1834 = vmatmul.mubr.f32.gmra.mxu0 %v1767
  %v1835 = vpop.f32.mrf.mxu0
  %v1836 = vadd.f32 0.0, %v1835
  %v1837 = vpop.f32.mrf.mxu0
  %1838 = vdwg.mxu0
  %v1839 = vadd.f32 %v1764, %v1836
  %v1840 = vxor.u32 %v1839, 2147483648
  %v1841 = vmul.f32 %v1840, 1.442695
  %v1842 = vpow.pop %v1841
  %v1843 = vadd.f32 %v1842, 1.0
  %v1844 = vrcp.pop %v1843
  %v1845 = vmul.f32 1.0, %v1844
  %v1846 = vtanh.pop %v1839
  %v1847 = vld [vmem:[#allocation7] sm:$0xff]
  %1849 = vrot.lane.b32.xlu0 %v1847, 32
  %v1850 = vpop.permute.xlu0 %1849
  %v1852 = vmul.f32 %v1845, %v1850
  %1854 = vrot.lane.b32.xlu0 %v1846, 64
  %v1855 = vpop.permute.xlu0 %1854
  %v1857 = vmul.f32 %v1845, %v1855
  %1859 = vrot.lane.b32.xlu0 %v1857, 32
  %v1860 = vpop.permute.xlu0 %1859
  %v1862 = vadd.f32 %v1852, %v1860
  %v1863 = vtanh.pop %v1862
  %1865 = vrot.lane.b32.xlu0 %v1863, 64
  %v1866 = vpop.permute.xlu0 %1865
  %v1868 = vmul.f32 %v1845, %v1866
  %1870 = vrot.lane.b32.xlu0 %v1868, 32
  %v1871 = vpop.permute.xlu0 %1870
  %1873 = vst.msk [vmem:[#allocation6] sm:$0xff] %vm332, %v1871
  %1875 = vrot.lane.b32.xlu0 %v1862, 96
  %v1876 = vpop.permute.xlu0 %1875
  %1878 = vst.msk [vmem:[#allocation7] sm:$0xff] %vm332, %v1876
  %s1879 = scalar_lea.vmem [#allocation5], 24
  %1880 = vst.msk [vmem:[%s1879] sm:$0xff] %vm332, %v1871
  %s1881 = scalar_lea.vmem [#allocation3], 16
  %v1882 = vld [vmem:[%s1881] sm:$0xff]
  %v1883 = vld [vmem:[#allocation6] sm:$0xff]
  %v1885 = vsel %vm332, %v1883, 0
  %1887 = vmatprep.subr.mxu0 0.0
  %1888 = vmatpush1.msra.mxu0 0.0
  %1889 = vmatprep.subr.mxu0 0.0
  %1890 = vmatpush1.msra.mxu0 0.0
  %1891 = vmatprep.subr.mxu0 0.0
  %1892 = vmatpush1.msra.mxu0 0.0
  %1893 = vmatprep.subr.mxu0 0.0
  %1894 = vmatpush1.msra.mxu0 0.0
  %1895 = vmatprep.subr.mxu0 0.0
  %1896 = vmatpush1.msra.mxu0 0.0
  %1897 = vmatprep.subr.mxu0 0.0
  %1898 = vmatpush1.msra.mxu0 0.0
  %1899 = vmatprep.subr.mxu0 0.0
  %1900 = vmatpush1.msra.mxu0 0.0
  %1901 = vmatprep.subr.mxu0 0.0
  %1902 = vmatpush1.msra.mxu0 0.0
  %1903 = vmatprep.subr.mxu0 0.0
  %1904 = vmatpush1.msra.mxu0 0.0
  %1905 = vmatprep.subr.mxu0 0.0
  %1906 = vmatpush1.msra.mxu0 0.0
  %1907 = vmatprep.subr.mxu0 0.0
  %1908 = vmatpush1.msra.mxu0 0.0
  %1909 = vmatprep.subr.mxu0 0.0
  %1910 = vmatpush1.msra.mxu0 0.0
  %1911 = vmatprep.subr.mxu0 0.0
  %1912 = vmatpush1.msra.mxu0 %v1290
  %1913 = vmatprep.subr.mxu0 0.0
  %1914 = vmatpush1.msra.mxu0 %v1289
  %1915 = vmatprep.subr.mxu0 0.0
  %1916 = vmatpush1.msra.mxu0 %v1288
  %1917 = vmatprep.subr.mxu0 0.0
  %1918 = vmatpush1.msra.mxu0 %v1287
  %1919 = vmatprep.subr.mxu0 0.0
  %1920 = vmatpush2.msra.mxu0 0.0
  %1921 = vmatprep.subr.mxu0 0.0
  %1922 = vmatpush2.msra.mxu0 0.0
  %1923 = vmatprep.subr.mxu0 0.0
  %1924 = vmatpush2.msra.mxu0 0.0
  %1925 = vmatprep.subr.mxu0 0.0
  %1926 = vmatpush2.msra.mxu0 0.0
  %1927 = vmatprep.subr.mxu0 0.0
  %1928 = vmatpush2.msra.mxu0 0.0
  %1929 = vmatprep.subr.mxu0 0.0
  %1930 = vmatpush2.msra.mxu0 0.0
  %1931 = vmatprep.subr.mxu0 0.0
  %1932 = vmatpush2.msra.mxu0 0.0
  %1933 = vmatprep.subr.mxu0 0.0
  %1934 = vmatpush2.msra.mxu0 0.0
  %1935 = vmatprep.subr.mxu0 0.0
  %1936 = vmatpush2.msra.mxu0 0.0
  %1937 = vmatprep.subr.mxu0 0.0
  %1938 = vmatpush2.msra.mxu0 0.0
  %1939 = vmatprep.subr.mxu0 0.0
  %1940 = vmatpush2.msra.mxu0 0.0
  %1941 = vmatprep.subr.mxu0 0.0
  %1942 = vmatpush2.msra.mxu0 0.0
  %1943 = vmatprep.subr.mxu0 0.0
  %1944 = vmatpush2.msra.mxu0 0.0
  %1945 = vmatprep.subr.mxu0 0.0
  %1946 = vmatpush2.msra.mxu0 0.0
  %1947 = vmatprep.subr.mxu0 0.0
  %1948 = vmatpush2.msra.mxu0 0.0
  %1949 = vmatprep.subr.mxu0 0.0
  %1950 = vmatpush2.msra.mxu0 0.0
  %1951 = vmatprep.mubr.f32.mxu0 0.0
  %1952 = vmatmul.mubr.f32.gmra.mxu0 %v1885
  %v1953 = vpop.f32.mrf.mxu0
  %v1954 = vadd.f32 0.0, %v1953
  %v1955 = vpop.f32.mrf.mxu0
  %1956 = vdwg.mxu0
  %v1957 = vadd.f32 %v1882, %v1954
  %v1958 = vxor.u32 %v1957, 2147483648
  %v1959 = vmul.f32 %v1958, 1.442695
  %v1960 = vpow.pop %v1959
  %v1961 = vadd.f32 %v1960, 1.0
  %v1962 = vrcp.pop %v1961
  %v1963 = vmul.f32 1.0, %v1962
  %v1964 = vtanh.pop %v1957
  %v1965 = vld [vmem:[#allocation7] sm:$0xff]
  %1967 = vrot.lane.b32.xlu0 %v1965, 32
  %v1968 = vpop.permute.xlu0 %1967
  %v1970 = vmul.f32 %v1963, %v1968
  %1972 = vrot.lane.b32.xlu0 %v1964, 64
  %v1973 = vpop.permute.xlu0 %1972
  %v1975 = vmul.f32 %v1963, %v1973
  %1977 = vrot.lane.b32.xlu0 %v1975, 32
  %v1978 = vpop.permute.xlu0 %1977
  %v1980 = vadd.f32 %v1970, %v1978
  %v1981 = vtanh.pop %v1980
  %1983 = vrot.lane.b32.xlu0 %v1981, 64
  %v1984 = vpop.permute.xlu0 %1983
  %v1986 = vmul.f32 %v1963, %v1984
  %1988 = vrot.lane.b32.xlu0 %v1986, 32
  %v1989 = vpop.permute.xlu0 %1988
  %1991 = vst.msk [vmem:[#allocation6] sm:$0xff] %vm332, %v1989
  %1993 = vrot.lane.b32.xlu0 %v1980, 96
  %v1994 = vpop.permute.xlu0 %1993
  %1996 = vst.msk [vmem:[#allocation7] sm:$0xff] %vm332, %v1994
  %s1997 = scalar_lea.vmem [#allocation5], 16
  %1998 = vst.msk [vmem:[%s1997] sm:$0xff] %vm332, %v1989
  %s1999 = scalar_lea.vmem [#allocation3], 8
  %v2000 = vld [vmem:[%s1999] sm:$0xff]
  %v2001 = vld [vmem:[#allocation6] sm:$0xff]
  %v2003 = vsel %vm332, %v2001, 0
  %2005 = vmatprep.subr.mxu0 0.0
  %2006 = vmatpush1.msra.mxu0 0.0
  %2007 = vmatprep.subr.mxu0 0.0
  %2008 = vmatpush1.msra.mxu0 0.0
  %2009 = vmatprep.subr.mxu0 0.0
  %2010 = vmatpush1.msra.mxu0 0.0
  %2011 = vmatprep.subr.mxu0 0.0
  %2012 = vmatpush1.msra.mxu0 0.0
  %2013 = vmatprep.subr.mxu0 0.0
  %2014 = vmatpush1.msra.mxu0 0.0
  %2015 = vmatprep.subr.mxu0 0.0
  %2016 = vmatpush1.msra.mxu0 0.0
  %2017 = vmatprep.subr.mxu0 0.0
  %2018 = vmatpush1.msra.mxu0 0.0
  %2019 = vmatprep.subr.mxu0 0.0
  %2020 = vmatpush1.msra.mxu0 0.0
  %2021 = vmatprep.subr.mxu0 0.0
  %2022 = vmatpush1.msra.mxu0 0.0
  %2023 = vmatprep.subr.mxu0 0.0
  %2024 = vmatpush1.msra.mxu0 0.0
  %2025 = vmatprep.subr.mxu0 0.0
  %2026 = vmatpush1.msra.mxu0 0.0
  %2027 = vmatprep.subr.mxu0 0.0
  %2028 = vmatpush1.msra.mxu0 0.0
  %2029 = vmatprep.subr.mxu0 0.0
  %2030 = vmatpush1.msra.mxu0 %v1290
  %2031 = vmatprep.subr.mxu0 0.0
  %2032 = vmatpush1.msra.mxu0 %v1289
  %2033 = vmatprep.subr.mxu0 0.0
  %2034 = vmatpush1.msra.mxu0 %v1288
  %2035 = vmatprep.subr.mxu0 0.0
  %2036 = vmatpush1.msra.mxu0 %v1287
  %2037 = vmatprep.subr.mxu0 0.0
  %2038 = vmatpush2.msra.mxu0 0.0
  %2039 = vmatprep.subr.mxu0 0.0
  %2040 = vmatpush2.msra.mxu0 0.0
  %2041 = vmatprep.subr.mxu0 0.0
  %2042 = vmatpush2.msra.mxu0 0.0
  %2043 = vmatprep.subr.mxu0 0.0
  %2044 = vmatpush2.msra.mxu0 0.0
  %2045 = vmatprep.subr.mxu0 0.0
  %2046 = vmatpush2.msra.mxu0 0.0
  %2047 = vmatprep.subr.mxu0 0.0
  %2048 = vmatpush2.msra.mxu0 0.0
  %2049 = vmatprep.subr.mxu0 0.0
  %2050 = vmatpush2.msra.mxu0 0.0
  %2051 = vmatprep.subr.mxu0 0.0
  %2052 = vmatpush2.msra.mxu0 0.0
  %2053 = vmatprep.subr.mxu0 0.0
  %2054 = vmatpush2.msra.mxu0 0.0
  %2055 = vmatprep.subr.mxu0 0.0
  %2056 = vmatpush2.msra.mxu0 0.0
  %2057 = vmatprep.subr.mxu0 0.0
  %2058 = vmatpush2.msra.mxu0 0.0
  %2059 = vmatprep.subr.mxu0 0.0
  %2060 = vmatpush2.msra.mxu0 0.0
  %2061 = vmatprep.subr.mxu0 0.0
  %2062 = vmatpush2.msra.mxu0 0.0
  %2063 = vmatprep.subr.mxu0 0.0
  %2064 = vmatpush2.msra.mxu0 0.0
  %2065 = vmatprep.subr.mxu0 0.0
  %2066 = vmatpush2.msra.mxu0 0.0
  %2067 = vmatprep.subr.mxu0 0.0
  %2068 = vmatpush2.msra.mxu0 0.0
  %2069 = vmatprep.mubr.f32.mxu0 0.0
  %2070 = vmatmul.mubr.f32.gmra.mxu0 %v2003
  %v2071 = vpop.f32.mrf.mxu0
  %v2072 = vadd.f32 0.0, %v2071
  %v2073 = vpop.f32.mrf.mxu0
  %2074 = vdwg.mxu0
  %v2075 = vadd.f32 %v2000, %v2072
  %v2076 = vxor.u32 %v2075, 2147483648
  %v2077 = vmul.f32 %v2076, 1.442695
  %v2078 = vpow.pop %v2077
  %v2079 = vadd.f32 %v2078, 1.0
  %v2080 = vrcp.pop %v2079
  %v2081 = vmul.f32 1.0, %v2080
  %v2082 = vtanh.pop %v2075
  %v2083 = vld [vmem:[#allocation7] sm:$0xff]
  %2085 = vrot.lane.b32.xlu0 %v2083, 32
  %v2086 = vpop.permute.xlu0 %2085
  %v2088 = vmul.f32 %v2081, %v2086
  %2090 = vrot.lane.b32.xlu0 %v2082, 64
  %v2091 = vpop.permute.xlu0 %2090
  %v2093 = vmul.f32 %v2081, %v2091
  %2095 = vrot.lane.b32.xlu0 %v2093, 32
  %v2096 = vpop.permute.xlu0 %2095
  %v2098 = vadd.f32 %v2088, %v2096
  %v2099 = vtanh.pop %v2098
  %2101 = vrot.lane.b32.xlu0 %v2099, 64
  %v2102 = vpop.permute.xlu0 %2101
  %v2104 = vmul.f32 %v2081, %v2102
  %2106 = vrot.lane.b32.xlu0 %v2104, 32
  %v2107 = vpop.permute.xlu0 %2106
  %2109 = vst.msk [vmem:[#allocation6] sm:$0xff] %vm332, %v2107
  %2111 = vrot.lane.b32.xlu0 %v2098, 96
  %v2112 = vpop.permute.xlu0 %2111
  %2114 = vst.msk [vmem:[#allocation7] sm:$0xff] %vm332, %v2112
  %s2115 = scalar_lea.vmem [#allocation5], 8
  %2116 = vst.msk [vmem:[%s2115] sm:$0xff] %vm332, %v2107
  %v2117 = vld [vmem:[#allocation3] sm:$0xff]
  %v2118 = vld [vmem:[#allocation6] sm:$0xff]
  %v2120 = vsel %vm332, %v2118, 0
  %2122 = vmatprep.subr.mxu0 0.0
  %2123 = vmatpush1.msra.mxu0 0.0
  %2124 = vmatprep.subr.mxu0 0.0
  %2125 = vmatpush1.msra.mxu0 0.0
  %2126 = vmatprep.subr.mxu0 0.0
  %2127 = vmatpush1.msra.mxu0 0.0
  %2128 = vmatprep.subr.mxu0 0.0
  %2129 = vmatpush1.msra.mxu0 0.0
  %2130 = vmatprep.subr.mxu0 0.0
  %2131 = vmatpush1.msra.mxu0 0.0
  %2132 = vmatprep.subr.mxu0 0.0
  %2133 = vmatpush1.msra.mxu0 0.0
  %2134 = vmatprep.subr.mxu0 0.0
  %2135 = vmatpush1.msra.mxu0 0.0
  %2136 = vmatprep.subr.mxu0 0.0
  %2137 = vmatpush1.msra.mxu0 0.0
  %2138 = vmatprep.subr.mxu0 0.0
  %2139 = vmatpush1.msra.mxu0 0.0
  %2140 = vmatprep.subr.mxu0 0.0
  %2141 = vmatpush1.msra.mxu0 0.0
  %2142 = vmatprep.subr.mxu0 0.0
  %2143 = vmatpush1.msra.mxu0 0.0
  %2144 = vmatprep.subr.mxu0 0.0
  %2145 = vmatpush1.msra.mxu0 0.0
  %2146 = vmatprep.subr.mxu0 0.0
  %2147 = vmatpush1.msra.mxu0 %v1290
  %2148 = vmatprep.subr.mxu0 0.0
  %2149 = vmatpush1.msra.mxu0 %v1289
  %2150 = vmatprep.subr.mxu0 0.0
  %2151 = vmatpush1.msra.mxu0 %v1288
  %2152 = vmatprep.subr.mxu0 0.0
  %2153 = vmatpush1.msra.mxu0 %v1287
  %2154 = vmatprep.subr.mxu0 0.0
  %2155 = vmatpush2.msra.mxu0 0.0
  %2156 = vmatprep.subr.mxu0 0.0
  %2157 = vmatpush2.msra.mxu0 0.0
  %2158 = vmatprep.subr.mxu0 0.0
  %2159 = vmatpush2.msra.mxu0 0.0
  %2160 = vmatprep.subr.mxu0 0.0
  %2161 = vmatpush2.msra.mxu0 0.0
  %2162 = vmatprep.subr.mxu0 0.0
  %2163 = vmatpush2.msra.mxu0 0.0
  %2164 = vmatprep.subr.mxu0 0.0
  %2165 = vmatpush2.msra.mxu0 0.0
  %2166 = vmatprep.subr.mxu0 0.0
  %2167 = vmatpush2.msra.mxu0 0.0
  %2168 = vmatprep.subr.mxu0 0.0
  %2169 = vmatpush2.msra.mxu0 0.0
  %2170 = vmatprep.subr.mxu0 0.0
  %2171 = vmatpush2.msra.mxu0 0.0
  %2172 = vmatprep.subr.mxu0 0.0
  %2173 = vmatpush2.msra.mxu0 0.0
  %2174 = vmatprep.subr.mxu0 0.0
  %2175 = vmatpush2.msra.mxu0 0.0
  %2176 = vmatprep.subr.mxu0 0.0
  %2177 = vmatpush2.msra.mxu0 0.0
  %2178 = vmatprep.subr.mxu0 0.0
  %2179 = vmatpush2.msra.mxu0 0.0
  %2180 = vmatprep.subr.mxu0 0.0
  %2181 = vmatpush2.msra.mxu0 0.0
  %2182 = vmatprep.subr.mxu0 0.0
  %2183 = vmatpush2.msra.mxu0 0.0
  %2184 = vmatprep.subr.mxu0 0.0
  %2185 = vmatpush2.msra.mxu0 0.0
  %2186 = vmatprep.mubr.f32.mxu0 0.0
  %2187 = vmatmul.mubr.f32.gmra.mxu0 %v2120
  %v2188 = vpop.f32.mrf.mxu0
  %v2189 = vadd.f32 0.0, %v2188
  %v2190 = vpop.f32.mrf.mxu0
  %2191 = vdwg.mxu0
  %v2192 = vadd.f32 %v2117, %v2189
  %v2193 = vxor.u32 %v2192, 2147483648
  %v2194 = vmul.f32 %v2193, 1.442695
  %v2195 = vpow.pop %v2194
  %v2196 = vadd.f32 %v2195, 1.0
  %v2197 = vrcp.pop %v2196
  %v2198 = vmul.f32 1.0, %v2197
  %v2199 = vtanh.pop %v2192
  %v2200 = vld [vmem:[#allocation7] sm:$0xff]
  %2202 = vrot.lane.b32.xlu0 %v2200, 32
  %v2203 = vpop.permute.xlu0 %2202
  %v2205 = vmul.f32 %v2198, %v2203
  %2207 = vrot.lane.b32.xlu0 %v2199, 64
  %v2208 = vpop.permute.xlu0 %2207
  %v2210 = vmul.f32 %v2198, %v2208
  %2212 = vrot.lane.b32.xlu0 %v2210, 32
  %v2213 = vpop.permute.xlu0 %2212
  %v2215 = vadd.f32 %v2205, %v2213
  %v2216 = vtanh.pop %v2215
  %2218 = vrot.lane.b32.xlu0 %v2216, 64
  %v2219 = vpop.permute.xlu0 %2218
  %v2221 = vmul.f32 %v2198, %v2219
  %2223 = vrot.lane.b32.xlu0 %v2221, 32
  %v2224 = vpop.permute.xlu0 %2223
  %2226 = vst.msk [vmem:[#allocation6] sm:$0xff] %vm332, %v2224
  %2228 = vrot.lane.b32.xlu0 %v2215, 96
  %v2229 = vpop.permute.xlu0 %2228
  %2231 = vst.msk [vmem:[#allocation7] sm:$0xff] %vm332, %v2229
  %2232 = vst.msk [vmem:[#allocation5] sm:$0xff] %vm332, %v2224
  %v2233 = vld [vmem:[#allocation6] sm:$0xff]
  %s2234 = scalar_lea.vmem %s16, 8
  %2235 = vst.msk [vmem:[%s2234] sm:$0xff] %vm332, %v2233
  %v2236 = vld [vmem:[#allocation7] sm:$0xff]
  %s2237 = scalar_lea.vmem %s17, 8
  %2238 = vst.msk [vmem:[%s2237] sm:$0xff] %vm332, %v2236
  %v2239 = vld [vmem:[#allocation4] sm:$0xff]
  %v2240 = vld [vmem:[#allocation4 + $0x8] sm:$0xff]
  %v2241 = vld [vmem:[#allocation4 + $0x10] sm:$0xff]
  %v2242 = vld [vmem:[#allocation4 + $0x18] sm:$0xff]
  %v2243 = vld [vmem:[#allocation4 + $0x20] sm:$0xff]
  %v2244 = vld [vmem:[#allocation4 + $0x28] sm:$0xff]
  %v2245 = vld [vmem:[#allocation4 + $0x30] sm:$0xff]
  %v2246 = vld [vmem:[#allocation4 + $0x38] sm:$0xff]
  %v2247 = vld [vmem:[#allocation5] sm:$0xff]
  %v2248 = vld [vmem:[#allocation5 + $0x8] sm:$0xff]
  %v2249 = vld [vmem:[#allocation5 + $0x10] sm:$0xff]
  %v2250 = vld [vmem:[#allocation5 + $0x18] sm:$0xff]
  %v2251 = vld [vmem:[#allocation5 + $0x20] sm:$0xff]
  %v2252 = vld [vmem:[#allocation5 + $0x28] sm:$0xff]
  %v2253 = vld [vmem:[#allocation5 + $0x30] sm:$0xff]
  %v2254 = vld [vmem:[#allocation5 + $0x38] sm:$0xff]
  %v2255 = vld [vmem:[%s7] sm:$0xff]
  %v2256 = vld [vmem:[%s7 + $0x8] sm:$0xff]
  %v2257 = vld [vmem:[%s7 + $0x10] sm:$0xff]
  %v2258 = vld [vmem:[%s7 + $0x18] sm:$0xff]
  %v2259 = vld [vmem:[%s7 + $0x20] sm:$0xff]
  %v2260 = vld [vmem:[%s7 + $0x28] sm:$0xff]
  %v2261 = vld [vmem:[%s7 + $0x30] sm:$0xff]
  %v2262 = vld [vmem:[%s7 + $0x38] sm:$0xff]
  %v2263 = vld [vmem:[%s10] sm:$0xff]
  %v2264 = vld [vmem:[%s10 + $0x8] sm:$0xff]
  %v2265 = vld [vmem:[%s10 + $0x10] sm:$0xff]
  %v2266 = vld [vmem:[%s10 + $0x18] sm:$0xff]
  %v2267 = vld [vmem:[%s10 + $0x20] sm:$0xff]
  %v2268 = vld [vmem:[%s10 + $0x28] sm:$0xff]
  %v2269 = vld [vmem:[%s10 + $0x30] sm:$0xff]
  %v2270 = vld [vmem:[%s10 + $0x38] sm:$0xff]
  %v2272 = vsel %vm332, %v2247, 0
  %v2275 = vsel %vm332, %v2248, 0
  %v2278 = vsel %vm332, %v2249, 0
  %v2281 = vsel %vm332, %v2250, 0
  %v2284 = vsel %vm332, %v2251, 0
  %v2287 = vsel %vm332, %v2252, 0
  %v2290 = vsel %vm332, %v2253, 0
  %v2293 = vsel %vm332, %v2254, 0
  %2295 = vmatprep.subr.mxu0 0.0
  %2296 = vmatpush1.msra.mxu0 0.0
  %2297 = vmatprep.subr.mxu0 0.0
  %2298 = vmatpush1.msra.mxu0 0.0
  %2299 = vmatprep.subr.mxu0 0.0
  %2300 = vmatpush1.msra.mxu0 0.0
  %2301 = vmatprep.subr.mxu0 0.0
  %2302 = vmatpush1.msra.mxu0 0.0
  %2303 = vmatprep.subr.mxu0 0.0
  %2304 = vmatpush1.msra.mxu0 0.0
  %2305 = vmatprep.subr.mxu0 0.0
  %2306 = vmatpush1.msra.mxu0 0.0
  %2307 = vmatprep.subr.mxu0 0.0
  %2308 = vmatpush1.msra.mxu0 0.0
  %2309 = vmatprep.subr.mxu0 0.0
  %2310 = vmatpush1.msra.mxu0 0.0
  %2311 = vmatprep.subr.mxu0 0.0
  %2312 = vmatpush1.msra.mxu0 0.0
  %2313 = vmatprep.subr.mxu0 0.0
  %2314 = vmatpush1.msra.mxu0 0.0
  %2315 = vmatprep.subr.mxu0 0.0
  %2316 = vmatpush1.msra.mxu0 0.0
  %2317 = vmatprep.subr.mxu0 0.0
  %2318 = vmatpush1.msra.mxu0 0.0
  %2319 = vmatprep.subr.mxu0 0.0
  %2320 = vmatpush1.msra.mxu0 %v2262
  %2321 = vmatprep.subr.mxu0 0.0
  %2322 = vmatpush1.msra.mxu0 %v2261
  %2323 = vmatprep.subr.mxu0 0.0
  %2324 = vmatpush1.msra.mxu0 %v2260
  %2325 = vmatprep.subr.mxu0 0.0
  %2326 = vmatpush1.msra.mxu0 %v2259
  %2327 = vmatprep.subr.mxu0 0.0
  %2328 = vmatpush2.msra.mxu0 0.0
  %2329 = vmatprep.subr.mxu0 0.0
  %2330 = vmatpush2.msra.mxu0 0.0
  %2331 = vmatprep.subr.mxu0 0.0
  %2332 = vmatpush2.msra.mxu0 0.0
  %2333 = vmatprep.subr.mxu0 0.0
  %2334 = vmatpush2.msra.mxu0 0.0
  %2335 = vmatprep.subr.mxu0 0.0
  %2336 = vmatpush2.msra.mxu0 0.0
  %2337 = vmatprep.subr.mxu0 0.0
  %2338 = vmatpush2.msra.mxu0 0.0
  %2339 = vmatprep.subr.mxu0 0.0
  %2340 = vmatpush2.msra.mxu0 0.0
  %2341 = vmatprep.subr.mxu0 0.0
  %2342 = vmatpush2.msra.mxu0 0.0
  %2343 = vmatprep.subr.mxu0 0.0
  %2344 = vmatpush2.msra.mxu0 0.0
  %2345 = vmatprep.subr.mxu0 0.0
  %2346 = vmatpush2.msra.mxu0 0.0
  %2347 = vmatprep.subr.mxu0 0.0
  %2348 = vmatpush2.msra.mxu0 0.0
  %2349 = vmatprep.subr.mxu0 0.0
  %2350 = vmatpush2.msra.mxu0 0.0
  %2351 = vmatprep.subr.mxu0 0.0
  %2352 = vmatpush2.msra.mxu0 0.0
  %2353 = vmatprep.subr.mxu0 0.0
  %2354 = vmatpush2.msra.mxu0 0.0
  %2355 = vmatprep.subr.mxu0 0.0
  %2356 = vmatpush2.msra.mxu0 0.0
  %2357 = vmatprep.subr.mxu0 0.0
  %2358 = vmatpush2.msra.mxu0 0.0
  %2359 = vmatprep.mubr.f32.mxu0 0.0
  %2360 = vmatmul.mubr.f32.gmra.mxu0 %v2272
  %v2361 = vpop.f32.mrf.mxu0
  %v2362 = vadd.f32 0.0, %v2361
  %v2363 = vpop.f32.mrf.mxu0
  %2364 = vmatprep.mubr.f32.mxu0 0.0
  %2365 = vmatmul.mubr.f32.gmra.mxu0 %v2275
  %v2366 = vpop.f32.mrf.mxu0
  %v2367 = vadd.f32 0.0, %v2366
  %v2368 = vpop.f32.mrf.mxu0
  %2369 = vmatprep.mubr.f32.mxu0 0.0
  %2370 = vmatmul.mubr.f32.gmra.mxu0 %v2278
  %v2371 = vpop.f32.mrf.mxu0
  %v2372 = vadd.f32 0.0, %v2371
  %v2373 = vpop.f32.mrf.mxu0
  %2374 = vmatprep.mubr.f32.mxu0 0.0
  %2375 = vmatmul.mubr.f32.gmra.mxu0 %v2281
  %v2376 = vpop.f32.mrf.mxu0
  %v2377 = vadd.f32 0.0, %v2376
  %v2378 = vpop.f32.mrf.mxu0
  %2379 = vmatprep.mubr.f32.mxu0 0.0
  %2380 = vmatmul.mubr.f32.gmra.mxu0 %v2284
  %v2381 = vpop.f32.mrf.mxu0
  %v2382 = vadd.f32 0.0, %v2381
  %v2383 = vpop.f32.mrf.mxu0
  %2384 = vmatprep.mubr.f32.mxu0 0.0
  %2385 = vmatmul.mubr.f32.gmra.mxu0 %v2287
  %v2386 = vpop.f32.mrf.mxu0
  %v2387 = vadd.f32 0.0, %v2386
  %v2388 = vpop.f32.mrf.mxu0
  %2389 = vmatprep.mubr.f32.mxu0 0.0
  %2390 = vmatmul.mubr.f32.gmra.mxu0 %v2290
  %v2391 = vpop.f32.mrf.mxu0
  %v2392 = vadd.f32 0.0, %v2391
  %v2393 = vpop.f32.mrf.mxu0
  %2394 = vmatprep.mubr.f32.mxu0 0.0
  %2395 = vmatmul.mubr.f32.gmra.mxu0 %v2293
  %v2396 = vpop.f32.mrf.mxu0
  %v2397 = vadd.f32 0.0, %v2396
  %v2398 = vpop.f32.mrf.mxu0
  %2399 = vdwg.mxu0
  %v2401 = vsel %vm332, %v2239, 0
  %v2404 = vsel %vm332, %v2240, 0
  %v2407 = vsel %vm332, %v2241, 0
  %v2410 = vsel %vm332, %v2242, 0
  %v2413 = vsel %vm332, %v2243, 0
  %v2416 = vsel %vm332, %v2244, 0
  %v2419 = vsel %vm332, %v2245, 0
  %v2422 = vsel %vm332, %v2246, 0
  %2424 = vmatprep.subr.mxu0 0.0
  %2425 = vmatpush1.msra.mxu0 0.0
  %2426 = vmatprep.subr.mxu0 0.0
  %2427 = vmatpush1.msra.mxu0 0.0
  %2428 = vmatprep.subr.mxu0 0.0
  %2429 = vmatpush1.msra.mxu0 0.0
  %2430 = vmatprep.subr.mxu0 0.0
  %2431 = vmatpush1.msra.mxu0 0.0
  %2432 = vmatprep.subr.mxu0 0.0
  %2433 = vmatpush1.msra.mxu0 0.0
  %2434 = vmatprep.subr.mxu0 0.0
  %2435 = vmatpush1.msra.mxu0 0.0
  %2436 = vmatprep.subr.mxu0 0.0
  %2437 = vmatpush1.msra.mxu0 0.0
  %2438 = vmatprep.subr.mxu0 0.0
  %2439 = vmatpush1.msra.mxu0 0.0
  %2440 = vmatprep.subr.mxu0 0.0
  %2441 = vmatpush1.msra.mxu0 0.0
  %2442 = vmatprep.subr.mxu0 0.0
  %2443 = vmatpush1.msra.mxu0 0.0
  %2444 = vmatprep.subr.mxu0 0.0
  %2445 = vmatpush1.msra.mxu0 0.0
  %2446 = vmatprep.subr.mxu0 0.0
  %2447 = vmatpush1.msra.mxu0 0.0
  %2448 = vmatprep.subr.mxu0 0.0
  %2449 = vmatpush1.msra.mxu0 %v2258
  %2450 = vmatprep.subr.mxu0 0.0
  %2451 = vmatpush1.msra.mxu0 %v2257
  %2452 = vmatprep.subr.mxu0 0.0
  %2453 = vmatpush1.msra.mxu0 %v2256
  %2454 = vmatprep.subr.mxu0 0.0
  %2455 = vmatpush1.msra.mxu0 %v2255
  %2456 = vmatprep.subr.mxu0 0.0
  %2457 = vmatpush2.msra.mxu0 0.0
  %2458 = vmatprep.subr.mxu0 0.0
  %2459 = vmatpush2.msra.mxu0 0.0
  %2460 = vmatprep.subr.mxu0 0.0
  %2461 = vmatpush2.msra.mxu0 0.0
  %2462 = vmatprep.subr.mxu0 0.0
  %2463 = vmatpush2.msra.mxu0 0.0
  %2464 = vmatprep.subr.mxu0 0.0
  %2465 = vmatpush2.msra.mxu0 0.0
  %2466 = vmatprep.subr.mxu0 0.0
  %2467 = vmatpush2.msra.mxu0 0.0
  %2468 = vmatprep.subr.mxu0 0.0
  %2469 = vmatpush2.msra.mxu0 0.0
  %2470 = vmatprep.subr.mxu0 0.0
  %2471 = vmatpush2.msra.mxu0 0.0
  %2472 = vmatprep.subr.mxu0 0.0
  %2473 = vmatpush2.msra.mxu0 0.0
  %2474 = vmatprep.subr.mxu0 0.0
  %2475 = vmatpush2.msra.mxu0 0.0
  %2476 = vmatprep.subr.mxu0 0.0
  %2477 = vmatpush2.msra.mxu0 0.0
  %2478 = vmatprep.subr.mxu0 0.0
  %2479 = vmatpush2.msra.mxu0 0.0
  %2480 = vmatprep.subr.mxu0 0.0
  %2481 = vmatpush2.msra.mxu0 0.0
  %2482 = vmatprep.subr.mxu0 0.0
  %2483 = vmatpush2.msra.mxu0 0.0
  %2484 = vmatprep.subr.mxu0 0.0
  %2485 = vmatpush2.msra.mxu0 0.0
  %2486 = vmatprep.subr.mxu0 0.0
  %2487 = vmatpush2.msra.mxu0 0.0
  %2488 = vmatprep.mubr.f32.mxu0 0.0
  %2489 = vmatmul.mubr.f32.gmra.mxu0 %v2401
  %v2490 = vpop.f32.mrf.mxu0
  %v2491 = vadd.f32 %v2362, %v2490
  %v2492 = vpop.f32.mrf.mxu0
  %2493 = vmatprep.mubr.f32.mxu0 0.0
  %2494 = vmatmul.mubr.f32.gmra.mxu0 %v2404
  %v2495 = vpop.f32.mrf.mxu0
  %v2496 = vadd.f32 %v2367, %v2495
  %v2497 = vpop.f32.mrf.mxu0
  %2498 = vmatprep.mubr.f32.mxu0 0.0
  %2499 = vmatmul.mubr.f32.gmra.mxu0 %v2407
  %v2500 = vpop.f32.mrf.mxu0
  %v2501 = vadd.f32 %v2372, %v2500
  %v2502 = vpop.f32.mrf.mxu0
  %2503 = vmatprep.mubr.f32.mxu0 0.0
  %2504 = vmatmul.mubr.f32.gmra.mxu0 %v2410
  %v2505 = vpop.f32.mrf.mxu0
  %v2506 = vadd.f32 %v2377, %v2505
  %v2507 = vpop.f32.mrf.mxu0
  %2508 = vmatprep.mubr.f32.mxu0 0.0
  %2509 = vmatmul.mubr.f32.gmra.mxu0 %v2413
  %v2510 = vpop.f32.mrf.mxu0
  %v2511 = vadd.f32 %v2382, %v2510
  %v2512 = vpop.f32.mrf.mxu0
  %2513 = vmatprep.mubr.f32.mxu0 0.0
  %2514 = vmatmul.mubr.f32.gmra.mxu0 %v2416
  %v2515 = vpop.f32.mrf.mxu0
  %v2516 = vadd.f32 %v2387, %v2515
  %v2517 = vpop.f32.mrf.mxu0
  %2518 = vmatprep.mubr.f32.mxu0 0.0
  %2519 = vmatmul.mubr.f32.gmra.mxu0 %v2419
  %v2520 = vpop.f32.mrf.mxu0
  %v2521 = vadd.f32 %v2392, %v2520
  %v2522 = vpop.f32.mrf.mxu0
  %2523 = vmatprep.mubr.f32.mxu0 0.0
  %2524 = vmatmul.mubr.f32.gmra.mxu0 %v2422
  %v2525 = vpop.f32.mrf.mxu0
  %v2526 = vadd.f32 %v2397, %v2525
  %v2527 = vpop.f32.mrf.mxu0
  %2528 = vdwg.mxu0
  %v2529 = vld [vmem:[%s9] sm:$0x1]
  %v2531 = vlaneseq
  %v2532 = vshrl.u32 %v2531, 7
  %v2533 = vsub.s32 0, %v2532
  %v2534 = vrot.slane %v2529, %v2533
  %v2536 = vadd.f32 %v2491, %v2534
  %v2537 = vadd.f32 %v2496, %v2534
  %v2538 = vadd.f32 %v2501, %v2534
  %v2539 = vadd.f32 %v2506, %v2534
  %v2540 = vadd.f32 %v2511, %v2534
  %v2541 = vadd.f32 %v2516, %v2534
  %v2542 = vadd.f32 %v2521, %v2534
  %v2543 = vadd.f32 %v2526, %v2534
  %2544 = vst [vmem:[#allocation2] sm:$0xff] %v2536
  %2545 = vst [vmem:[#allocation2 + $0x8] sm:$0xff] %v2537
  %2546 = vst [vmem:[#allocation2 + $0x10] sm:$0xff] %v2538
  %2547 = vst [vmem:[#allocation2 + $0x18] sm:$0xff] %v2539
  %2548 = vst [vmem:[#allocation2 + $0x20] sm:$0xff] %v2540
  %2549 = vst [vmem:[#allocation2 + $0x28] sm:$0xff] %v2541
  %2550 = vst [vmem:[#allocation2 + $0x30] sm:$0xff] %v2542
  %2551 = vst [vmem:[#allocation2 + $0x38] sm:$0xff] %v2543
  %2552 = vmatprep.subr.mxu0 0.0
  %2553 = vmatpush1.msra.mxu0 0.0
  %2554 = vmatprep.subr.mxu0 0.0
  %2555 = vmatpush1.msra.mxu0 0.0
  %2556 = vmatprep.subr.mxu0 0.0
  %2557 = vmatpush1.msra.mxu0 0.0
  %2558 = vmatprep.subr.mxu0 0.0
  %2559 = vmatpush1.msra.mxu0 0.0
  %2560 = vmatprep.subr.mxu0 0.0
  %2561 = vmatpush1.msra.mxu0 0.0
  %2562 = vmatprep.subr.mxu0 0.0
  %2563 = vmatpush1.msra.mxu0 0.0
  %2564 = vmatprep.subr.mxu0 0.0
  %2565 = vmatpush1.msra.mxu0 0.0
  %2566 = vmatprep.subr.mxu0 0.0
  %2567 = vmatpush1.msra.mxu0 0.0
  %2568 = vmatprep.subr.mxu0 0.0
  %2569 = vmatpush1.msra.mxu0 0.0
  %2570 = vmatprep.subr.mxu0 0.0
  %2571 = vmatpush1.msra.mxu0 0.0
  %2572 = vmatprep.subr.mxu0 0.0
  %2573 = vmatpush1.msra.mxu0 0.0
  %2574 = vmatprep.subr.mxu0 0.0
  %2575 = vmatpush1.msra.mxu0 0.0
  %2576 = vmatprep.subr.mxu0 0.0
  %2577 = vmatpush1.msra.mxu0 %v2270
  %2578 = vmatprep.subr.mxu0 0.0
  %2579 = vmatpush1.msra.mxu0 %v2269
  %2580 = vmatprep.subr.mxu0 0.0
  %2581 = vmatpush1.msra.mxu0 %v2268
  %2582 = vmatprep.subr.mxu0 0.0
  %2583 = vmatpush1.msra.mxu0 %v2267
  %2584 = vmatprep.subr.mxu0 0.0
  %2585 = vmatpush2.msra.mxu0 0.0
  %2586 = vmatprep.subr.mxu0 0.0
  %2587 = vmatpush2.msra.mxu0 0.0
  %2588 = vmatprep.subr.mxu0 0.0
  %2589 = vmatpush2.msra.mxu0 0.0
  %2590 = vmatprep.subr.mxu0 0.0
  %2591 = vmatpush2.msra.mxu0 0.0
  %2592 = vmatprep.subr.mxu0 0.0
  %2593 = vmatpush2.msra.mxu0 0.0
  %2594 = vmatprep.subr.mxu0 0.0
  %2595 = vmatpush2.msra.mxu0 0.0
  %2596 = vmatprep.subr.mxu0 0.0
  %2597 = vmatpush2.msra.mxu0 0.0
  %2598 = vmatprep.subr.mxu0 0.0
  %2599 = vmatpush2.msra.mxu0 0.0
  %2600 = vmatprep.subr.mxu0 0.0
  %2601 = vmatpush2.msra.mxu0 0.0
  %2602 = vmatprep.subr.mxu0 0.0
  %2603 = vmatpush2.msra.mxu0 0.0
  %2604 = vmatprep.subr.mxu0 0.0
  %2605 = vmatpush2.msra.mxu0 0.0
  %2606 = vmatprep.subr.mxu0 0.0
  %2607 = vmatpush2.msra.mxu0 0.0
  %2608 = vmatprep.subr.mxu0 0.0
  %2609 = vmatpush2.msra.mxu0 0.0
  %2610 = vmatprep.subr.mxu0 0.0
  %2611 = vmatpush2.msra.mxu0 0.0
  %2612 = vmatprep.subr.mxu0 0.0
  %2613 = vmatpush2.msra.mxu0 0.0
  %2614 = vmatprep.subr.mxu0 0.0
  %2615 = vmatpush2.msra.mxu0 0.0
  %2616 = vmatprep.mubr.f32.mxu0 0.0
  %2617 = vmatmul.mubr.f32.gmra.mxu0 %v2272
  %v2618 = vpop.f32.mrf.mxu0
  %v2619 = vadd.f32 0.0, %v2618
  %v2620 = vpop.f32.mrf.mxu0
  %2621 = vmatprep.mubr.f32.mxu0 0.0
  %2622 = vmatmul.mubr.f32.gmra.mxu0 %v2275
  %v2623 = vpop.f32.mrf.mxu0
  %v2624 = vadd.f32 0.0, %v2623
  %v2625 = vpop.f32.mrf.mxu0
  %2626 = vmatprep.mubr.f32.mxu0 0.0
  %2627 = vmatmul.mubr.f32.gmra.mxu0 %v2278
  %v2628 = vpop.f32.mrf.mxu0
  %v2629 = vadd.f32 0.0, %v2628
  %v2630 = vpop.f32.mrf.mxu0
  %2631 = vmatprep.mubr.f32.mxu0 0.0
  %2632 = vmatmul.mubr.f32.gmra.mxu0 %v2281
  %v2633 = vpop.f32.mrf.mxu0
  %v2634 = vadd.f32 0.0, %v2633
  %v2635 = vpop.f32.mrf.mxu0
  %2636 = vmatprep.mubr.f32.mxu0 0.0
  %2637 = vmatmul.mubr.f32.gmra.mxu0 %v2284
  %v2638 = vpop.f32.mrf.mxu0
  %v2639 = vadd.f32 0.0, %v2638
  %v2640 = vpop.f32.mrf.mxu0
  %2641 = vmatprep.mubr.f32.mxu0 0.0
  %2642 = vmatmul.mubr.f32.gmra.mxu0 %v2287
  %v2643 = vpop.f32.mrf.mxu0
  %v2644 = vadd.f32 0.0, %v2643
  %v2645 = vpop.f32.mrf.mxu0
  %2646 = vmatprep.mubr.f32.mxu0 0.0
  %2647 = vmatmul.mubr.f32.gmra.mxu0 %v2290
  %v2648 = vpop.f32.mrf.mxu0
  %v2649 = vadd.f32 0.0, %v2648
  %v2650 = vpop.f32.mrf.mxu0
  %2651 = vmatprep.mubr.f32.mxu0 0.0
  %2652 = vmatmul.mubr.f32.gmra.mxu0 %v2293
  %v2653 = vpop.f32.mrf.mxu0
  %v2654 = vadd.f32 0.0, %v2653
  %v2655 = vpop.f32.mrf.mxu0
  %2656 = vdwg.mxu0
  %2657 = vmatprep.subr.mxu0 0.0
  %2658 = vmatpush1.msra.mxu0 0.0
  %2659 = vmatprep.subr.mxu0 0.0
  %2660 = vmatpush1.msra.mxu0 0.0
  %2661 = vmatprep.subr.mxu0 0.0
  %2662 = vmatpush1.msra.mxu0 0.0
  %2663 = vmatprep.subr.mxu0 0.0
  %2664 = vmatpush1.msra.mxu0 0.0
  %2665 = vmatprep.subr.mxu0 0.0
  %2666 = vmatpush1.msra.mxu0 0.0
  %2667 = vmatprep.subr.mxu0 0.0
  %2668 = vmatpush1.msra.mxu0 0.0
  %2669 = vmatprep.subr.mxu0 0.0
  %2670 = vmatpush1.msra.mxu0 0.0
  %2671 = vmatprep.subr.mxu0 0.0
  %2672 = vmatpush1.msra.mxu0 0.0
  %2673 = vmatprep.subr.mxu0 0.0
  %2674 = vmatpush1.msra.mxu0 0.0
  %2675 = vmatprep.subr.mxu0 0.0
  %2676 = vmatpush1.msra.mxu0 0.0
  %2677 = vmatprep.subr.mxu0 0.0
  %2678 = vmatpush1.msra.mxu0 0.0
  %2679 = vmatprep.subr.mxu0 0.0
  %2680 = vmatpush1.msra.mxu0 0.0
  %2681 = vmatprep.subr.mxu0 0.0
  %2682 = vmatpush1.msra.mxu0 %v2266
  %2683 = vmatprep.subr.mxu0 0.0
  %2684 = vmatpush1.msra.mxu0 %v2265
  %2685 = vmatprep.subr.mxu0 0.0
  %2686 = vmatpush1.msra.mxu0 %v2264
  %2687 = vmatprep.subr.mxu0 0.0
  %2688 = vmatpush1.msra.mxu0 %v2263
  %2689 = vmatprep.subr.mxu0 0.0
  %2690 = vmatpush2.msra.mxu0 0.0
  %2691 = vmatprep.subr.mxu0 0.0
  %2692 = vmatpush2.msra.mxu0 0.0
  %2693 = vmatprep.subr.mxu0 0.0
  %2694 = vmatpush2.msra.mxu0 0.0
  %2695 = vmatprep.subr.mxu0 0.0
  %2696 = vmatpush2.msra.mxu0 0.0
  %2697 = vmatprep.subr.mxu0 0.0
  %2698 = vmatpush2.msra.mxu0 0.0
  %2699 = vmatprep.subr.mxu0 0.0
  %2700 = vmatpush2.msra.mxu0 0.0
  %2701 = vmatprep.subr.mxu0 0.0
  %2702 = vmatpush2.msra.mxu0 0.0
  %2703 = vmatprep.subr.mxu0 0.0
  %2704 = vmatpush2.msra.mxu0 0.0
  %2705 = vmatprep.subr.mxu0 0.0
  %2706 = vmatpush2.msra.mxu0 0.0
  %2707 = vmatprep.subr.mxu0 0.0
  %2708 = vmatpush2.msra.mxu0 0.0
  %2709 = vmatprep.subr.mxu0 0.0
  %2710 = vmatpush2.msra.mxu0 0.0
  %2711 = vmatprep.subr.mxu0 0.0
  %2712 = vmatpush2.msra.mxu0 0.0
  %2713 = vmatprep.subr.mxu0 0.0
  %2714 = vmatpush2.msra.mxu0 0.0
  %2715 = vmatprep.subr.mxu0 0.0
  %2716 = vmatpush2.msra.mxu0 0.0
  %2717 = vmatprep.subr.mxu0 0.0
  %2718 = vmatpush2.msra.mxu0 0.0
  %2719 = vmatprep.subr.mxu0 0.0
  %2720 = vmatpush2.msra.mxu0 0.0
  %2721 = vmatprep.mubr.f32.mxu0 0.0
  %2722 = vmatmul.mubr.f32.gmra.mxu0 %v2401
  %v2723 = vpop.f32.mrf.mxu0
  %v2724 = vadd.f32 %v2619, %v2723
  %v2725 = vpop.f32.mrf.mxu0
  %2726 = vmatprep.mubr.f32.mxu0 0.0
  %2727 = vmatmul.mubr.f32.gmra.mxu0 %v2404
  %v2728 = vpop.f32.mrf.mxu0
  %v2729 = vadd.f32 %v2624, %v2728
  %v2730 = vpop.f32.mrf.mxu0
  %2731 = vmatprep.mubr.f32.mxu0 0.0
  %2732 = vmatmul.mubr.f32.gmra.mxu0 %v2407
  %v2733 = vpop.f32.mrf.mxu0
  %v2734 = vadd.f32 %v2629, %v2733
  %v2735 = vpop.f32.mrf.mxu0
  %2736 = vmatprep.mubr.f32.mxu0 0.0
  %2737 = vmatmul.mubr.f32.gmra.mxu0 %v2410
  %v2738 = vpop.f32.mrf.mxu0
  %v2739 = vadd.f32 %v2634, %v2738
  %v2740 = vpop.f32.mrf.mxu0
  %2741 = vmatprep.mubr.f32.mxu0 0.0
  %2742 = vmatmul.mubr.f32.gmra.mxu0 %v2413
  %v2743 = vpop.f32.mrf.mxu0
  %v2744 = vadd.f32 %v2639, %v2743
  %v2745 = vpop.f32.mrf.mxu0
  %2746 = vmatprep.mubr.f32.mxu0 0.0
  %2747 = vmatmul.mubr.f32.gmra.mxu0 %v2416
  %v2748 = vpop.f32.mrf.mxu0
  %v2749 = vadd.f32 %v2644, %v2748
  %v2750 = vpop.f32.mrf.mxu0
  %2751 = vmatprep.mubr.f32.mxu0 0.0
  %2752 = vmatmul.mubr.f32.gmra.mxu0 %v2419
  %v2753 = vpop.f32.mrf.mxu0
  %v2754 = vadd.f32 %v2649, %v2753
  %v2755 = vpop.f32.mrf.mxu0
  %2756 = vmatprep.mubr.f32.mxu0 0.0
  %2757 = vmatmul.mubr.f32.gmra.mxu0 %v2422
  %v2758 = vpop.f32.mrf.mxu0
  %v2759 = vadd.f32 %v2654, %v2758
  %v2760 = vpop.f32.mrf.mxu0
  %2761 = vdwg.mxu0
  %v2762 = vld [vmem:[%s12] sm:$0x1]
  %v2764 = vlaneseq
  %v2765 = vshrl.u32 %v2764, 7
  %v2766 = vsub.s32 0, %v2765
  %v2767 = vrot.slane %v2762, %v2766
  %v2769 = vadd.f32 %v2724, %v2767
  %v2770 = vadd.f32 %v2729, %v2767
  %v2771 = vadd.f32 %v2734, %v2767
  %v2772 = vadd.f32 %v2739, %v2767
  %v2773 = vadd.f32 %v2744, %v2767
  %v2774 = vadd.f32 %v2749, %v2767
  %v2775 = vadd.f32 %v2754, %v2767
  %v2776 = vadd.f32 %v2759, %v2767
  %2777 = vst [vmem:[#allocation3] sm:$0xff] %v2769
  %2778 = vst [vmem:[#allocation3 + $0x8] sm:$0xff] %v2770
  %2779 = vst [vmem:[#allocation3 + $0x10] sm:$0xff] %v2771
  %2780 = vst [vmem:[#allocation3 + $0x18] sm:$0xff] %v2772
  %2781 = vst [vmem:[#allocation3 + $0x20] sm:$0xff] %v2773
  %2782 = vst [vmem:[#allocation3 + $0x28] sm:$0xff] %v2774
  %2783 = vst [vmem:[#allocation3 + $0x30] sm:$0xff] %v2775
  %2784 = vst [vmem:[#allocation3 + $0x38] sm:$0xff] %v2776
  %2785 = vst.msk [vmem:[#allocation6] sm:$0xff] %vm332, 0.0
  %2786 = vst.msk [vmem:[#allocation7] sm:$0xff] %vm332, 0.0
  %v2787 = vld [vmem:[%s8] sm:$0xff]
  %v2788 = vld [vmem:[%s8 + $0x8] sm:$0xff]
  %v2789 = vld [vmem:[%s8 + $0x10] sm:$0xff]
  %v2790 = vld [vmem:[%s8 + $0x18] sm:$0xff]
  %v2791 = vld [vmem:[#allocation2] sm:$0xff]
  %v2792 = vld [vmem:[#allocation6] sm:$0xff]
  %v2794 = vsel %vm332, %v2792, 0
  %2796 = vmatprep.subr.mxu0 0.0
  %2797 = vmatpush1.msra.mxu0 0.0
  %2798 = vmatprep.subr.mxu0 0.0
  %2799 = vmatpush1.msra.mxu0 0.0
  %2800 = vmatprep.subr.mxu0 0.0
  %2801 = vmatpush1.msra.mxu0 0.0
  %2802 = vmatprep.subr.mxu0 0.0
  %2803 = vmatpush1.msra.mxu0 0.0
  %2804 = vmatprep.subr.mxu0 0.0
  %2805 = vmatpush1.msra.mxu0 0.0
  %2806 = vmatprep.subr.mxu0 0.0
  %2807 = vmatpush1.msra.mxu0 0.0
  %2808 = vmatprep.subr.mxu0 0.0
  %2809 = vmatpush1.msra.mxu0 0.0
  %2810 = vmatprep.subr.mxu0 0.0
  %2811 = vmatpush1.msra.mxu0 0.0
  %2812 = vmatprep.subr.mxu0 0.0
  %2813 = vmatpush1.msra.mxu0 0.0
  %2814 = vmatprep.subr.mxu0 0.0
  %2815 = vmatpush1.msra.mxu0 0.0
  %2816 = vmatprep.subr.mxu0 0.0
  %2817 = vmatpush1.msra.mxu0 0.0
  %2818 = vmatprep.subr.mxu0 0.0
  %2819 = vmatpush1.msra.mxu0 0.0
  %2820 = vmatprep.subr.mxu0 0.0
  %2821 = vmatpush1.msra.mxu0 %v2790
  %2822 = vmatprep.subr.mxu0 0.0
  %2823 = vmatpush1.msra.mxu0 %v2789
  %2824 = vmatprep.subr.mxu0 0.0
  %2825 = vmatpush1.msra.mxu0 %v2788
  %2826 = vmatprep.subr.mxu0 0.0
  %2827 = vmatpush1.msra.mxu0 %v2787
  %2828 = vmatprep.subr.mxu0 0.0
  %2829 = vmatpush2.msra.mxu0 0.0
  %2830 = vmatprep.subr.mxu0 0.0
  %2831 = vmatpush2.msra.mxu0 0.0
  %2832 = vmatprep.subr.mxu0 0.0
  %2833 = vmatpush2.msra.mxu0 0.0
  %2834 = vmatprep.subr.mxu0 0.0
  %2835 = vmatpush2.msra.mxu0 0.0
  %2836 = vmatprep.subr.mxu0 0.0
  %2837 = vmatpush2.msra.mxu0 0.0
  %2838 = vmatprep.subr.mxu0 0.0
  %2839 = vmatpush2.msra.mxu0 0.0
  %2840 = vmatprep.subr.mxu0 0.0
  %2841 = vmatpush2.msra.mxu0 0.0
  %2842 = vmatprep.subr.mxu0 0.0
  %2843 = vmatpush2.msra.mxu0 0.0
  %2844 = vmatprep.subr.mxu0 0.0
  %2845 = vmatpush2.msra.mxu0 0.0
  %2846 = vmatprep.subr.mxu0 0.0
  %2847 = vmatpush2.msra.mxu0 0.0
  %2848 = vmatprep.subr.mxu0 0.0
  %2849 = vmatpush2.msra.mxu0 0.0
  %2850 = vmatprep.subr.mxu0 0.0
  %2851 = vmatpush2.msra.mxu0 0.0
  %2852 = vmatprep.subr.mxu0 0.0
  %2853 = vmatpush2.msra.mxu0 0.0
  %2854 = vmatprep.subr.mxu0 0.0
  %2855 = vmatpush2.msra.mxu0 0.0
  %2856 = vmatprep.subr.mxu0 0.0
  %2857 = vmatpush2.msra.mxu0 0.0
  %2858 = vmatprep.subr.mxu0 0.0
  %2859 = vmatpush2.msra.mxu0 0.0
  %2860 = vmatprep.mubr.f32.mxu0 0.0
  %2861 = vmatmul.mubr.f32.gmra.mxu0 %v2794
  %v2862 = vpop.f32.mrf.mxu0
  %v2863 = vadd.f32 0.0, %v2862
  %v2864 = vpop.f32.mrf.mxu0
  %2865 = vdwg.mxu0
  %v2866 = vadd.f32 %v2791, %v2863
  %v2867 = vxor.u32 %v2866, 2147483648
  %v2868 = vmul.f32 %v2867, 1.442695
  %v2869 = vpow.pop %v2868
  %v2870 = vadd.f32 %v2869, 1.0
  %v2871 = vrcp.pop %v2870
  %v2872 = vmul.f32 1.0, %v2871
  %v2873 = vtanh.pop %v2866
  %v2874 = vld [vmem:[#allocation7] sm:$0xff]
  %2876 = vrot.lane.b32.xlu0 %v2874, 32
  %v2877 = vpop.permute.xlu0 %2876
  %v2879 = vmul.f32 %v2872, %v2877
  %2881 = vrot.lane.b32.xlu0 %v2873, 64
  %v2882 = vpop.permute.xlu0 %2881
  %v2884 = vmul.f32 %v2872, %v2882
  %2886 = vrot.lane.b32.xlu0 %v2884, 32
  %v2887 = vpop.permute.xlu0 %2886
  %v2889 = vadd.f32 %v2879, %v2887
  %v2890 = vtanh.pop %v2889
  %2892 = vrot.lane.b32.xlu0 %v2890, 64
  %v2893 = vpop.permute.xlu0 %2892
  %v2895 = vmul.f32 %v2872, %v2893
  %2897 = vrot.lane.b32.xlu0 %v2895, 32
  %v2898 = vpop.permute.xlu0 %2897
  %2900 = vst.msk [vmem:[#allocation6] sm:$0xff] %vm332, %v2898
  %2902 = vrot.lane.b32.xlu0 %v2889, 96
  %v2903 = vpop.permute.xlu0 %2902
  %2905 = vst.msk [vmem:[#allocation7] sm:$0xff] %vm332, %v2903
  %2906 = vst.msk [vmem:[#allocation4] sm:$0xff] %vm332, %v2898
  %v2907 = vld [vmem:[%s455] sm:$0xff]
  %v2908 = vld [vmem:[#allocation6] sm:$0xff]
  %v2910 = vsel %vm332, %v2908, 0
  %2912 = vmatprep.subr.mxu0 0.0
  %2913 = vmatpush1.msra.mxu0 0.0
  %2914 = vmatprep.subr.mxu0 0.0
  %2915 = vmatpush1.msra.mxu0 0.0
  %2916 = vmatprep.subr.mxu0 0.0
  %2917 = vmatpush1.msra.mxu0 0.0
  %2918 = vmatprep.subr.mxu0 0.0
  %2919 = vmatpush1.msra.mxu0 0.0
  %2920 = vmatprep.subr.mxu0 0.0
  %2921 = vmatpush1.msra.mxu0 0.0
  %2922 = vmatprep.subr.mxu0 0.0
  %2923 = vmatpush1.msra.mxu0 0.0
  %2924 = vmatprep.subr.mxu0 0.0
  %2925 = vmatpush1.msra.mxu0 0.0
  %2926 = vmatprep.subr.mxu0 0.0
  %2927 = vmatpush1.msra.mxu0 0.0
  %2928 = vmatprep.subr.mxu0 0.0
  %2929 = vmatpush1.msra.mxu0 0.0
  %2930 = vmatprep.subr.mxu0 0.0
  %2931 = vmatpush1.msra.mxu0 0.0
  %2932 = vmatprep.subr.mxu0 0.0
  %2933 = vmatpush1.msra.mxu0 0.0
  %2934 = vmatprep.subr.mxu0 0.0
  %2935 = vmatpush1.msra.mxu0 0.0
  %2936 = vmatprep.subr.mxu0 0.0
  %2937 = vmatpush1.msra.mxu0 %v2790
  %2938 = vmatprep.subr.mxu0 0.0
  %2939 = vmatpush1.msra.mxu0 %v2789
  %2940 = vmatprep.subr.mxu0 0.0
  %2941 = vmatpush1.msra.mxu0 %v2788
  %2942 = vmatprep.subr.mxu0 0.0
  %2943 = vmatpush1.msra.mxu0 %v2787
  %2944 = vmatprep.subr.mxu0 0.0
  %2945 = vmatpush2.msra.mxu0 0.0
  %2946 = vmatprep.subr.mxu0 0.0
  %2947 = vmatpush2.msra.mxu0 0.0
  %2948 = vmatprep.subr.mxu0 0.0
  %2949 = vmatpush2.msra.mxu0 0.0
  %2950 = vmatprep.subr.mxu0 0.0
  %2951 = vmatpush2.msra.mxu0 0.0
  %2952 = vmatprep.subr.mxu0 0.0
  %2953 = vmatpush2.msra.mxu0 0.0
  %2954 = vmatprep.subr.mxu0 0.0
  %2955 = vmatpush2.msra.mxu0 0.0
  %2956 = vmatprep.subr.mxu0 0.0
  %2957 = vmatpush2.msra.mxu0 0.0
  %2958 = vmatprep.subr.mxu0 0.0
  %2959 = vmatpush2.msra.mxu0 0.0
  %2960 = vmatprep.subr.mxu0 0.0
  %2961 = vmatpush2.msra.mxu0 0.0
  %2962 = vmatprep.subr.mxu0 0.0
  %2963 = vmatpush2.msra.mxu0 0.0
  %2964 = vmatprep.subr.mxu0 0.0
  %2965 = vmatpush2.msra.mxu0 0.0
  %2966 = vmatprep.subr.mxu0 0.0
  %2967 = vmatpush2.msra.mxu0 0.0
  %2968 = vmatprep.subr.mxu0 0.0
  %2969 = vmatpush2.msra.mxu0 0.0
  %2970 = vmatprep.subr.mxu0 0.0
  %2971 = vmatpush2.msra.mxu0 0.0
  %2972 = vmatprep.subr.mxu0 0.0
  %2973 = vmatpush2.msra.mxu0 0.0
  %2974 = vmatprep.subr.mxu0 0.0
  %2975 = vmatpush2.msra.mxu0 0.0
  %2976 = vmatprep.mubr.f32.mxu0 0.0
  %2977 = vmatmul.mubr.f32.gmra.mxu0 %v2910
  %v2978 = vpop.f32.mrf.mxu0
  %v2979 = vadd.f32 0.0, %v2978
  %v2980 = vpop.f32.mrf.mxu0
  %2981 = vdwg.mxu0
  %v2982 = vadd.f32 %v2907, %v2979
  %v2983 = vxor.u32 %v2982, 2147483648
  %v2984 = vmul.f32 %v2983, 1.442695
  %v2985 = vpow.pop %v2984
  %v2986 = vadd.f32 %v2985, 1.0
  %v2987 = vrcp.pop %v2986
  %v2988 = vmul.f32 1.0, %v2987
  %v2989 = vtanh.pop %v2982
  %v2990 = vld [vmem:[#allocation7] sm:$0xff]
  %2992 = vrot.lane.b32.xlu0 %v2990, 32
  %v2993 = vpop.permute.xlu0 %2992
  %v2995 = vmul.f32 %v2988, %v2993
  %2997 = vrot.lane.b32.xlu0 %v2989, 64
  %v2998 = vpop.permute.xlu0 %2997
  %v3000 = vmul.f32 %v2988, %v2998
  %3002 = vrot.lane.b32.xlu0 %v3000, 32
  %v3003 = vpop.permute.xlu0 %3002
  %v3005 = vadd.f32 %v2995, %v3003
  %v3006 = vtanh.pop %v3005
  %3008 = vrot.lane.b32.xlu0 %v3006, 64
  %v3009 = vpop.permute.xlu0 %3008
  %v3011 = vmul.f32 %v2988, %v3009
  %3013 = vrot.lane.b32.xlu0 %v3011, 32
  %v3014 = vpop.permute.xlu0 %3013
  %3016 = vst.msk [vmem:[#allocation6] sm:$0xff] %vm332, %v3014
  %3018 = vrot.lane.b32.xlu0 %v3005, 96
  %v3019 = vpop.permute.xlu0 %3018
  %3021 = vst.msk [vmem:[#allocation7] sm:$0xff] %vm332, %v3019
  %3022 = vst.msk [vmem:[%s571] sm:$0xff] %vm332, %v3014
  %v3023 = vld [vmem:[%s573] sm:$0xff]
  %v3024 = vld [vmem:[#allocation6] sm:$0xff]
  %v3026 = vsel %vm332, %v3024, 0
  %3028 = vmatprep.subr.mxu0 0.0
  %3029 = vmatpush1.msra.mxu0 0.0
  %3030 = vmatprep.subr.mxu0 0.0
  %3031 = vmatpush1.msra.mxu0 0.0
  %3032 = vmatprep.subr.mxu0 0.0
  %3033 = vmatpush1.msra.mxu0 0.0
  %3034 = vmatprep.subr.mxu0 0.0
  %3035 = vmatpush1.msra.mxu0 0.0
  %3036 = vmatprep.subr.mxu0 0.0
  %3037 = vmatpush1.msra.mxu0 0.0
  %3038 = vmatprep.subr.mxu0 0.0
  %3039 = vmatpush1.msra.mxu0 0.0
  %3040 = vmatprep.subr.mxu0 0.0
  %3041 = vmatpush1.msra.mxu0 0.0
  %3042 = vmatprep.subr.mxu0 0.0
  %3043 = vmatpush1.msra.mxu0 0.0
  %3044 = vmatprep.subr.mxu0 0.0
  %3045 = vmatpush1.msra.mxu0 0.0
  %3046 = vmatprep.subr.mxu0 0.0
  %3047 = vmatpush1.msra.mxu0 0.0
  %3048 = vmatprep.subr.mxu0 0.0
  %3049 = vmatpush1.msra.mxu0 0.0
  %3050 = vmatprep.subr.mxu0 0.0
  %3051 = vmatpush1.msra.mxu0 0.0
  %3052 = vmatprep.subr.mxu0 0.0
  %3053 = vmatpush1.msra.mxu0 %v2790
  %3054 = vmatprep.subr.mxu0 0.0
  %3055 = vmatpush1.msra.mxu0 %v2789
  %3056 = vmatprep.subr.mxu0 0.0
  %3057 = vmatpush1.msra.mxu0 %v2788
  %3058 = vmatprep.subr.mxu0 0.0
  %3059 = vmatpush1.msra.mxu0 %v2787
  %3060 = vmatprep.subr.mxu0 0.0
  %3061 = vmatpush2.msra.mxu0 0.0
  %3062 = vmatprep.subr.mxu0 0.0
  %3063 = vmatpush2.msra.mxu0 0.0
  %3064 = vmatprep.subr.mxu0 0.0
  %3065 = vmatpush2.msra.mxu0 0.0
  %3066 = vmatprep.subr.mxu0 0.0
  %3067 = vmatpush2.msra.mxu0 0.0
  %3068 = vmatprep.subr.mxu0 0.0
  %3069 = vmatpush2.msra.mxu0 0.0
  %3070 = vmatprep.subr.mxu0 0.0
  %3071 = vmatpush2.msra.mxu0 0.0
  %3072 = vmatprep.subr.mxu0 0.0
  %3073 = vmatpush2.msra.mxu0 0.0
  %3074 = vmatprep.subr.mxu0 0.0
  %3075 = vmatpush2.msra.mxu0 0.0
  %3076 = vmatprep.subr.mxu0 0.0
  %3077 = vmatpush2.msra.mxu0 0.0
  %3078 = vmatprep.subr.mxu0 0.0
  %3079 = vmatpush2.msra.mxu0 0.0
  %3080 = vmatprep.subr.mxu0 0.0
  %3081 = vmatpush2.msra.mxu0 0.0
  %3082 = vmatprep.subr.mxu0 0.0
  %3083 = vmatpush2.msra.mxu0 0.0
  %3084 = vmatprep.subr.mxu0 0.0
  %3085 = vmatpush2.msra.mxu0 0.0
  %3086 = vmatprep.subr.mxu0 0.0
  %3087 = vmatpush2.msra.mxu0 0.0
  %3088 = vmatprep.subr.mxu0 0.0
  %3089 = vmatpush2.msra.mxu0 0.0
  %3090 = vmatprep.subr.mxu0 0.0
  %3091 = vmatpush2.msra.mxu0 0.0
  %3092 = vmatprep.mubr.f32.mxu0 0.0
  %3093 = vmatmul.mubr.f32.gmra.mxu0 %v3026
  %v3094 = vpop.f32.mrf.mxu0
  %v3095 = vadd.f32 0.0, %v3094
  %v3096 = vpop.f32.mrf.mxu0
  %3097 = vdwg.mxu0
  %v3098 = vadd.f32 %v3023, %v3095
  %v3099 = vxor.u32 %v3098, 2147483648
  %v3100 = vmul.f32 %v3099, 1.442695
  %v3101 = vpow.pop %v3100
  %v3102 = vadd.f32 %v3101, 1.0
  %v3103 = vrcp.pop %v3102
  %v3104 = vmul.f32 1.0, %v3103
  %v3105 = vtanh.pop %v3098
  %v3106 = vld [vmem:[#allocation7] sm:$0xff]
  %3108 = vrot.lane.b32.xlu0 %v3106, 32
  %v3109 = vpop.permute.xlu0 %3108
  %v3111 = vmul.f32 %v3104, %v3109
  %3113 = vrot.lane.b32.xlu0 %v3105, 64
  %v3114 = vpop.permute.xlu0 %3113
  %v3116 = vmul.f32 %v3104, %v3114
  %3118 = vrot.lane.b32.xlu0 %v3116, 32
  %v3119 = vpop.permute.xlu0 %3118
  %v3121 = vadd.f32 %v3111, %v3119
  %v3122 = vtanh.pop %v3121
  %3124 = vrot.lane.b32.xlu0 %v3122, 64
  %v3125 = vpop.permute.xlu0 %3124
  %v3127 = vmul.f32 %v3104, %v3125
  %3129 = vrot.lane.b32.xlu0 %v3127, 32
  %v3130 = vpop.permute.xlu0 %3129
  %3132 = vst.msk [vmem:[#allocation6] sm:$0xff] %vm332, %v3130
  %3134 = vrot.lane.b32.xlu0 %v3121, 96
  %v3135 = vpop.permute.xlu0 %3134
  %3137 = vst.msk [vmem:[#allocation7] sm:$0xff] %vm332, %v3135
  %3138 = vst.msk [vmem:[%s689] sm:$0xff] %vm332, %v3130
  %v3139 = vld [vmem:[%s691] sm:$0xff]
  %v3140 = vld [vmem:[#allocation6] sm:$0xff]
  %v3142 = vsel %vm332, %v3140, 0
  %3144 = vmatprep.subr.mxu0 0.0
  %3145 = vmatpush1.msra.mxu0 0.0
  %3146 = vmatprep.subr.mxu0 0.0
  %3147 = vmatpush1.msra.mxu0 0.0
  %3148 = vmatprep.subr.mxu0 0.0
  %3149 = vmatpush1.msra.mxu0 0.0
  %3150 = vmatprep.subr.mxu0 0.0
  %3151 = vmatpush1.msra.mxu0 0.0
  %3152 = vmatprep.subr.mxu0 0.0
  %3153 = vmatpush1.msra.mxu0 0.0
  %3154 = vmatprep.subr.mxu0 0.0
  %3155 = vmatpush1.msra.mxu0 0.0
  %3156 = vmatprep.subr.mxu0 0.0
  %3157 = vmatpush1.msra.mxu0 0.0
  %3158 = vmatprep.subr.mxu0 0.0
  %3159 = vmatpush1.msra.mxu0 0.0
  %3160 = vmatprep.subr.mxu0 0.0
  %3161 = vmatpush1.msra.mxu0 0.0
  %3162 = vmatprep.subr.mxu0 0.0
  %3163 = vmatpush1.msra.mxu0 0.0
  %3164 = vmatprep.subr.mxu0 0.0
  %3165 = vmatpush1.msra.mxu0 0.0
  %3166 = vmatprep.subr.mxu0 0.0
  %3167 = vmatpush1.msra.mxu0 0.0
  %3168 = vmatprep.subr.mxu0 0.0
  %3169 = vmatpush1.msra.mxu0 %v2790
  %3170 = vmatprep.subr.mxu0 0.0
  %3171 = vmatpush1.msra.mxu0 %v2789
  %3172 = vmatprep.subr.mxu0 0.0
  %3173 = vmatpush1.msra.mxu0 %v2788
  %3174 = vmatprep.subr.mxu0 0.0
  %3175 = vmatpush1.msra.mxu0 %v2787
  %3176 = vmatprep.subr.mxu0 0.0
  %3177 = vmatpush2.msra.mxu0 0.0
  %3178 = vmatprep.subr.mxu0 0.0
  %3179 = vmatpush2.msra.mxu0 0.0
  %3180 = vmatprep.subr.mxu0 0.0
  %3181 = vmatpush2.msra.mxu0 0.0
  %3182 = vmatprep.subr.mxu0 0.0
  %3183 = vmatpush2.msra.mxu0 0.0
  %3184 = vmatprep.subr.mxu0 0.0
  %3185 = vmatpush2.msra.mxu0 0.0
  %3186 = vmatprep.subr.mxu0 0.0
  %3187 = vmatpush2.msra.mxu0 0.0
  %3188 = vmatprep.subr.mxu0 0.0
  %3189 = vmatpush2.msra.mxu0 0.0
  %3190 = vmatprep.subr.mxu0 0.0
  %3191 = vmatpush2.msra.mxu0 0.0
  %3192 = vmatprep.subr.mxu0 0.0
  %3193 = vmatpush2.msra.mxu0 0.0
  %3194 = vmatprep.subr.mxu0 0.0
  %3195 = vmatpush2.msra.mxu0 0.0
  %3196 = vmatprep.subr.mxu0 0.0
  %3197 = vmatpush2.msra.mxu0 0.0
  %3198 = vmatprep.subr.mxu0 0.0
  %3199 = vmatpush2.msra.mxu0 0.0
  %3200 = vmatprep.subr.mxu0 0.0
  %3201 = vmatpush2.msra.mxu0 0.0
  %3202 = vmatprep.subr.mxu0 0.0
  %3203 = vmatpush2.msra.mxu0 0.0
  %3204 = vmatprep.subr.mxu0 0.0
  %3205 = vmatpush2.msra.mxu0 0.0
  %3206 = vmatprep.subr.mxu0 0.0
  %3207 = vmatpush2.msra.mxu0 0.0
  %3208 = vmatprep.mubr.f32.mxu0 0.0
  %3209 = vmatmul.mubr.f32.gmra.mxu0 %v3142
  %v3210 = vpop.f32.mrf.mxu0
  %v3211 = vadd.f32 0.0, %v3210
  %v3212 = vpop.f32.mrf.mxu0
  %3213 = vdwg.mxu0
  %v3214 = vadd.f32 %v3139, %v3211
  %v3215 = vxor.u32 %v3214, 2147483648
  %v3216 = vmul.f32 %v3215, 1.442695
  %v3217 = vpow.pop %v3216
  %v3218 = vadd.f32 %v3217, 1.0
  %v3219 = vrcp.pop %v3218
  %v3220 = vmul.f32 1.0, %v3219
  %v3221 = vtanh.pop %v3214
  %v3222 = vld [vmem:[#allocation7] sm:$0xff]
  %3224 = vrot.lane.b32.xlu0 %v3222, 32
  %v3225 = vpop.permute.xlu0 %3224
  %v3227 = vmul.f32 %v3220, %v3225
  %3229 = vrot.lane.b32.xlu0 %v3221, 64
  %v3230 = vpop.permute.xlu0 %3229
  %v3232 = vmul.f32 %v3220, %v3230
  %3234 = vrot.lane.b32.xlu0 %v3232, 32
  %v3235 = vpop.permute.xlu0 %3234
  %v3237 = vadd.f32 %v3227, %v3235
  %v3238 = vtanh.pop %v3237
  %3240 = vrot.lane.b32.xlu0 %v3238, 64
  %v3241 = vpop.permute.xlu0 %3240
  %v3243 = vmul.f32 %v3220, %v3241
  %3245 = vrot.lane.b32.xlu0 %v3243, 32
  %v3246 = vpop.permute.xlu0 %3245
  %3248 = vst.msk [vmem:[#allocation6] sm:$0xff] %vm332, %v3246
  %3250 = vrot.lane.b32.xlu0 %v3237, 96
  %v3251 = vpop.permute.xlu0 %3250
  %3253 = vst.msk [vmem:[#allocation7] sm:$0xff] %vm332, %v3251
  %3254 = vst.msk [vmem:[%s807] sm:$0xff] %vm332, %v3246
  %v3255 = vld [vmem:[%s809] sm:$0xff]
  %v3256 = vld [vmem:[#allocation6] sm:$0xff]
  %v3258 = vsel %vm332, %v3256, 0
  %3260 = vmatprep.subr.mxu0 0.0
  %3261 = vmatpush1.msra.mxu0 0.0
  %3262 = vmatprep.subr.mxu0 0.0
  %3263 = vmatpush1.msra.mxu0 0.0
  %3264 = vmatprep.subr.mxu0 0.0
  %3265 = vmatpush1.msra.mxu0 0.0
  %3266 = vmatprep.subr.mxu0 0.0
  %3267 = vmatpush1.msra.mxu0 0.0
  %3268 = vmatprep.subr.mxu0 0.0
  %3269 = vmatpush1.msra.mxu0 0.0
  %3270 = vmatprep.subr.mxu0 0.0
  %3271 = vmatpush1.msra.mxu0 0.0
  %3272 = vmatprep.subr.mxu0 0.0
  %3273 = vmatpush1.msra.mxu0 0.0
  %3274 = vmatprep.subr.mxu0 0.0
  %3275 = vmatpush1.msra.mxu0 0.0
  %3276 = vmatprep.subr.mxu0 0.0
  %3277 = vmatpush1.msra.mxu0 0.0
  %3278 = vmatprep.subr.mxu0 0.0
  %3279 = vmatpush1.msra.mxu0 0.0
  %3280 = vmatprep.subr.mxu0 0.0
  %3281 = vmatpush1.msra.mxu0 0.0
  %3282 = vmatprep.subr.mxu0 0.0
  %3283 = vmatpush1.msra.mxu0 0.0
  %3284 = vmatprep.subr.mxu0 0.0
  %3285 = vmatpush1.msra.mxu0 %v2790
  %3286 = vmatprep.subr.mxu0 0.0
  %3287 = vmatpush1.msra.mxu0 %v2789
  %3288 = vmatprep.subr.mxu0 0.0
  %3289 = vmatpush1.msra.mxu0 %v2788
  %3290 = vmatprep.subr.mxu0 0.0
  %3291 = vmatpush1.msra.mxu0 %v2787
  %3292 = vmatprep.subr.mxu0 0.0
  %3293 = vmatpush2.msra.mxu0 0.0
  %3294 = vmatprep.subr.mxu0 0.0
  %3295 = vmatpush2.msra.mxu0 0.0
  %3296 = vmatprep.subr.mxu0 0.0
  %3297 = vmatpush2.msra.mxu0 0.0
  %3298 = vmatprep.subr.mxu0 0.0
  %3299 = vmatpush2.msra.mxu0 0.0
  %3300 = vmatprep.subr.mxu0 0.0
  %3301 = vmatpush2.msra.mxu0 0.0
  %3302 = vmatprep.subr.mxu0 0.0
  %3303 = vmatpush2.msra.mxu0 0.0
  %3304 = vmatprep.subr.mxu0 0.0
  %3305 = vmatpush2.msra.mxu0 0.0
  %3306 = vmatprep.subr.mxu0 0.0
  %3307 = vmatpush2.msra.mxu0 0.0
  %3308 = vmatprep.subr.mxu0 0.0
  %3309 = vmatpush2.msra.mxu0 0.0
  %3310 = vmatprep.subr.mxu0 0.0
  %3311 = vmatpush2.msra.mxu0 0.0
  %3312 = vmatprep.subr.mxu0 0.0
  %3313 = vmatpush2.msra.mxu0 0.0
  %3314 = vmatprep.subr.mxu0 0.0
  %3315 = vmatpush2.msra.mxu0 0.0
  %3316 = vmatprep.subr.mxu0 0.0
  %3317 = vmatpush2.msra.mxu0 0.0
  %3318 = vmatprep.subr.mxu0 0.0
  %3319 = vmatpush2.msra.mxu0 0.0
  %3320 = vmatprep.subr.mxu0 0.0
  %3321 = vmatpush2.msra.mxu0 0.0
  %3322 = vmatprep.subr.mxu0 0.0
  %3323 = vmatpush2.msra.mxu0 0.0
  %3324 = vmatprep.mubr.f32.mxu0 0.0
  %3325 = vmatmul.mubr.f32.gmra.mxu0 %v3258
  %v3326 = vpop.f32.mrf.mxu0
  %v3327 = vadd.f32 0.0, %v3326
  %v3328 = vpop.f32.mrf.mxu0
  %3329 = vdwg.mxu0
  %v3330 = vadd.f32 %v3255, %v3327
  %v3331 = vxor.u32 %v3330, 2147483648
  %v3332 = vmul.f32 %v3331, 1.442695
  %v3333 = vpow.pop %v3332
  %v3334 = vadd.f32 %v3333, 1.0
  %v3335 = vrcp.pop %v3334
  %v3336 = vmul.f32 1.0, %v3335
  %v3337 = vtanh.pop %v3330
  %v3338 = vld [vmem:[#allocation7] sm:$0xff]
  %3340 = vrot.lane.b32.xlu0 %v3338, 32
  %v3341 = vpop.permute.xlu0 %3340
  %v3343 = vmul.f32 %v3336, %v3341
  %3345 = vrot.lane.b32.xlu0 %v3337, 64
  %v3346 = vpop.permute.xlu0 %3345
  %v3348 = vmul.f32 %v3336, %v3346
  %3350 = vrot.lane.b32.xlu0 %v3348, 32
  %v3351 = vpop.permute.xlu0 %3350
  %v3353 = vadd.f32 %v3343, %v3351
  %v3354 = vtanh.pop %v3353
  %3356 = vrot.lane.b32.xlu0 %v3354, 64
  %v3357 = vpop.permute.xlu0 %3356
  %v3359 = vmul.f32 %v3336, %v3357
  %3361 = vrot.lane.b32.xlu0 %v3359, 32
  %v3362 = vpop.permute.xlu0 %3361
  %3364 = vst.msk [vmem:[#allocation6] sm:$0xff] %vm332, %v3362
  %3366 = vrot.lane.b32.xlu0 %v3353, 96
  %v3367 = vpop.permute.xlu0 %3366
  %3369 = vst.msk [vmem:[#allocation7] sm:$0xff] %vm332, %v3367
  %3370 = vst.msk [vmem:[%s925] sm:$0xff] %vm332, %v3362
  %v3371 = vld [vmem:[%s927] sm:$0xff]
  %v3372 = vld [vmem:[#allocation6] sm:$0xff]
  %v3374 = vsel %vm332, %v3372, 0
  %3376 = vmatprep.subr.mxu0 0.0
  %3377 = vmatpush1.msra.mxu0 0.0
  %3378 = vmatprep.subr.mxu0 0.0
  %3379 = vmatpush1.msra.mxu0 0.0
  %3380 = vmatprep.subr.mxu0 0.0
  %3381 = vmatpush1.msra.mxu0 0.0
  %3382 = vmatprep.subr.mxu0 0.0
  %3383 = vmatpush1.msra.mxu0 0.0
  %3384 = vmatprep.subr.mxu0 0.0
  %3385 = vmatpush1.msra.mxu0 0.0
  %3386 = vmatprep.subr.mxu0 0.0
  %3387 = vmatpush1.msra.mxu0 0.0
  %3388 = vmatprep.subr.mxu0 0.0
  %3389 = vmatpush1.msra.mxu0 0.0
  %3390 = vmatprep.subr.mxu0 0.0
  %3391 = vmatpush1.msra.mxu0 0.0
  %3392 = vmatprep.subr.mxu0 0.0
  %3393 = vmatpush1.msra.mxu0 0.0
  %3394 = vmatprep.subr.mxu0 0.0
  %3395 = vmatpush1.msra.mxu0 0.0
  %3396 = vmatprep.subr.mxu0 0.0
  %3397 = vmatpush1.msra.mxu0 0.0
  %3398 = vmatprep.subr.mxu0 0.0
  %3399 = vmatpush1.msra.mxu0 0.0
  %3400 = vmatprep.subr.mxu0 0.0
  %3401 = vmatpush1.msra.mxu0 %v2790
  %3402 = vmatprep.subr.mxu0 0.0
  %3403 = vmatpush1.msra.mxu0 %v2789
  %3404 = vmatprep.subr.mxu0 0.0
  %3405 = vmatpush1.msra.mxu0 %v2788
  %3406 = vmatprep.subr.mxu0 0.0
  %3407 = vmatpush1.msra.mxu0 %v2787
  %3408 = vmatprep.subr.mxu0 0.0
  %3409 = vmatpush2.msra.mxu0 0.0
  %3410 = vmatprep.subr.mxu0 0.0
  %3411 = vmatpush2.msra.mxu0 0.0
  %3412 = vmatprep.subr.mxu0 0.0
  %3413 = vmatpush2.msra.mxu0 0.0
  %3414 = vmatprep.subr.mxu0 0.0
  %3415 = vmatpush2.msra.mxu0 0.0
  %3416 = vmatprep.subr.mxu0 0.0
  %3417 = vmatpush2.msra.mxu0 0.0
  %3418 = vmatprep.subr.mxu0 0.0
  %3419 = vmatpush2.msra.mxu0 0.0
  %3420 = vmatprep.subr.mxu0 0.0
  %3421 = vmatpush2.msra.mxu0 0.0
  %3422 = vmatprep.subr.mxu0 0.0
  %3423 = vmatpush2.msra.mxu0 0.0
  %3424 = vmatprep.subr.mxu0 0.0
  %3425 = vmatpush2.msra.mxu0 0.0
  %3426 = vmatprep.subr.mxu0 0.0
  %3427 = vmatpush2.msra.mxu0 0.0
  %3428 = vmatprep.subr.mxu0 0.0
  %3429 = vmatpush2.msra.mxu0 0.0
  %3430 = vmatprep.subr.mxu0 0.0
  %3431 = vmatpush2.msra.mxu0 0.0
  %3432 = vmatprep.subr.mxu0 0.0
  %3433 = vmatpush2.msra.mxu0 0.0
  %3434 = vmatprep.subr.mxu0 0.0
  %3435 = vmatpush2.msra.mxu0 0.0
  %3436 = vmatprep.subr.mxu0 0.0
  %3437 = vmatpush2.msra.mxu0 0.0
  %3438 = vmatprep.subr.mxu0 0.0
  %3439 = vmatpush2.msra.mxu0 0.0
  %3440 = vmatprep.mubr.f32.mxu0 0.0
  %3441 = vmatmul.mubr.f32.gmra.mxu0 %v3374
  %v3442 = vpop.f32.mrf.mxu0
  %v3443 = vadd.f32 0.0, %v3442
  %v3444 = vpop.f32.mrf.mxu0
  %3445 = vdwg.mxu0
  %v3446 = vadd.f32 %v3371, %v3443
  %v3447 = vxor.u32 %v3446, 2147483648
  %v3448 = vmul.f32 %v3447, 1.442695
  %v3449 = vpow.pop %v3448
  %v3450 = vadd.f32 %v3449, 1.0
  %v3451 = vrcp.pop %v3450
  %v3452 = vmul.f32 1.0, %v3451
  %v3453 = vtanh.pop %v3446
  %v3454 = vld [vmem:[#allocation7] sm:$0xff]
  %3456 = vrot.lane.b32.xlu0 %v3454, 32
  %v3457 = vpop.permute.xlu0 %3456
  %v3459 = vmul.f32 %v3452, %v3457
  %3461 = vrot.lane.b32.xlu0 %v3453, 64
  %v3462 = vpop.permute.xlu0 %3461
  %v3464 = vmul.f32 %v3452, %v3462
  %3466 = vrot.lane.b32.xlu0 %v3464, 32
  %v3467 = vpop.permute.xlu0 %3466
  %v3469 = vadd.f32 %v3459, %v3467
  %v3470 = vtanh.pop %v3469
  %3472 = vrot.lane.b32.xlu0 %v3470, 64
  %v3473 = vpop.permute.xlu0 %3472
  %v3475 = vmul.f32 %v3452, %v3473
  %3477 = vrot.lane.b32.xlu0 %v3475, 32
  %v3478 = vpop.permute.xlu0 %3477
  %3480 = vst.msk [vmem:[#allocation6] sm:$0xff] %vm332, %v3478
  %3482 = vrot.lane.b32.xlu0 %v3469, 96
  %v3483 = vpop.permute.xlu0 %3482
  %3485 = vst.msk [vmem:[#allocation7] sm:$0xff] %vm332, %v3483
  %3486 = vst.msk [vmem:[%s1043] sm:$0xff] %vm332, %v3478
  %v3487 = vld [vmem:[%s1045] sm:$0xff]
  %v3488 = vld [vmem:[#allocation6] sm:$0xff]
  %v3490 = vsel %vm332, %v3488, 0
  %3492 = vmatprep.subr.mxu0 0.0
  %3493 = vmatpush1.msra.mxu0 0.0
  %3494 = vmatprep.subr.mxu0 0.0
  %3495 = vmatpush1.msra.mxu0 0.0
  %3496 = vmatprep.subr.mxu0 0.0
  %3497 = vmatpush1.msra.mxu0 0.0
  %3498 = vmatprep.subr.mxu0 0.0
  %3499 = vmatpush1.msra.mxu0 0.0
  %3500 = vmatprep.subr.mxu0 0.0
  %3501 = vmatpush1.msra.mxu0 0.0
  %3502 = vmatprep.subr.mxu0 0.0
  %3503 = vmatpush1.msra.mxu0 0.0
  %3504 = vmatprep.subr.mxu0 0.0
  %3505 = vmatpush1.msra.mxu0 0.0
  %3506 = vmatprep.subr.mxu0 0.0
  %3507 = vmatpush1.msra.mxu0 0.0
  %3508 = vmatprep.subr.mxu0 0.0
  %3509 = vmatpush1.msra.mxu0 0.0
  %3510 = vmatprep.subr.mxu0 0.0
  %3511 = vmatpush1.msra.mxu0 0.0
  %3512 = vmatprep.subr.mxu0 0.0
  %3513 = vmatpush1.msra.mxu0 0.0
  %3514 = vmatprep.subr.mxu0 0.0
  %3515 = vmatpush1.msra.mxu0 0.0
  %3516 = vmatprep.subr.mxu0 0.0
  %3517 = vmatpush1.msra.mxu0 %v2790
  %3518 = vmatprep.subr.mxu0 0.0
  %3519 = vmatpush1.msra.mxu0 %v2789
  %3520 = vmatprep.subr.mxu0 0.0
  %3521 = vmatpush1.msra.mxu0 %v2788
  %3522 = vmatprep.subr.mxu0 0.0
  %3523 = vmatpush1.msra.mxu0 %v2787
  %3524 = vmatprep.subr.mxu0 0.0
  %3525 = vmatpush2.msra.mxu0 0.0
  %3526 = vmatprep.subr.mxu0 0.0
  %3527 = vmatpush2.msra.mxu0 0.0
  %3528 = vmatprep.subr.mxu0 0.0
  %3529 = vmatpush2.msra.mxu0 0.0
  %3530 = vmatprep.subr.mxu0 0.0
  %3531 = vmatpush2.msra.mxu0 0.0
  %3532 = vmatprep.subr.mxu0 0.0
  %3533 = vmatpush2.msra.mxu0 0.0
  %3534 = vmatprep.subr.mxu0 0.0
  %3535 = vmatpush2.msra.mxu0 0.0
  %3536 = vmatprep.subr.mxu0 0.0
  %3537 = vmatpush2.msra.mxu0 0.0
  %3538 = vmatprep.subr.mxu0 0.0
  %3539 = vmatpush2.msra.mxu0 0.0
  %3540 = vmatprep.subr.mxu0 0.0
  %3541 = vmatpush2.msra.mxu0 0.0
  %3542 = vmatprep.subr.mxu0 0.0
  %3543 = vmatpush2.msra.mxu0 0.0
  %3544 = vmatprep.subr.mxu0 0.0
  %3545 = vmatpush2.msra.mxu0 0.0
  %3546 = vmatprep.subr.mxu0 0.0
  %3547 = vmatpush2.msra.mxu0 0.0
  %3548 = vmatprep.subr.mxu0 0.0
  %3549 = vmatpush2.msra.mxu0 0.0
  %3550 = vmatprep.subr.mxu0 0.0
  %3551 = vmatpush2.msra.mxu0 0.0
  %3552 = vmatprep.subr.mxu0 0.0
  %3553 = vmatpush2.msra.mxu0 0.0
  %3554 = vmatprep.subr.mxu0 0.0
  %3555 = vmatpush2.msra.mxu0 0.0
  %3556 = vmatprep.mubr.f32.mxu0 0.0
  %3557 = vmatmul.mubr.f32.gmra.mxu0 %v3490
  %v3558 = vpop.f32.mrf.mxu0
  %v3559 = vadd.f32 0.0, %v3558
  %v3560 = vpop.f32.mrf.mxu0
  %3561 = vdwg.mxu0
  %v3562 = vadd.f32 %v3487, %v3559
  %v3563 = vxor.u32 %v3562, 2147483648
  %v3564 = vmul.f32 %v3563, 1.442695
  %v3565 = vpow.pop %v3564
  %v3566 = vadd.f32 %v3565, 1.0
  %v3567 = vrcp.pop %v3566
  %v3568 = vmul.f32 1.0, %v3567
  %v3569 = vtanh.pop %v3562
  %v3570 = vld [vmem:[#allocation7] sm:$0xff]
  %3572 = vrot.lane.b32.xlu0 %v3570, 32
  %v3573 = vpop.permute.xlu0 %3572
  %v3575 = vmul.f32 %v3568, %v3573
  %3577 = vrot.lane.b32.xlu0 %v3569, 64
  %v3578 = vpop.permute.xlu0 %3577
  %v3580 = vmul.f32 %v3568, %v3578
  %3582 = vrot.lane.b32.xlu0 %v3580, 32
  %v3583 = vpop.permute.xlu0 %3582
  %v3585 = vadd.f32 %v3575, %v3583
  %v3586 = vtanh.pop %v3585
  %3588 = vrot.lane.b32.xlu0 %v3586, 64
  %v3589 = vpop.permute.xlu0 %3588
  %v3591 = vmul.f32 %v3568, %v3589
  %3593 = vrot.lane.b32.xlu0 %v3591, 32
  %v3594 = vpop.permute.xlu0 %3593
  %3596 = vst.msk [vmem:[#allocation6] sm:$0xff] %vm332, %v3594
  %3598 = vrot.lane.b32.xlu0 %v3585, 96
  %v3599 = vpop.permute.xlu0 %3598
  %3601 = vst.msk [vmem:[#allocation7] sm:$0xff] %vm332, %v3599
  %3602 = vst.msk [vmem:[%s1161] sm:$0xff] %vm332, %v3594
  %v3603 = vld [vmem:[%s1163] sm:$0xff]
  %v3604 = vld [vmem:[#allocation6] sm:$0xff]
  %v3606 = vsel %vm332, %v3604, 0
  %3608 = vmatprep.subr.mxu0 0.0
  %3609 = vmatpush1.msra.mxu0 0.0
  %3610 = vmatprep.subr.mxu0 0.0
  %3611 = vmatpush1.msra.mxu0 0.0
  %3612 = vmatprep.subr.mxu0 0.0
  %3613 = vmatpush1.msra.mxu0 0.0
  %3614 = vmatprep.subr.mxu0 0.0
  %3615 = vmatpush1.msra.mxu0 0.0
  %3616 = vmatprep.subr.mxu0 0.0
  %3617 = vmatpush1.msra.mxu0 0.0
  %3618 = vmatprep.subr.mxu0 0.0
  %3619 = vmatpush1.msra.mxu0 0.0
  %3620 = vmatprep.subr.mxu0 0.0
  %3621 = vmatpush1.msra.mxu0 0.0
  %3622 = vmatprep.subr.mxu0 0.0
  %3623 = vmatpush1.msra.mxu0 0.0
  %3624 = vmatprep.subr.mxu0 0.0
  %3625 = vmatpush1.msra.mxu0 0.0
  %3626 = vmatprep.subr.mxu0 0.0
  %3627 = vmatpush1.msra.mxu0 0.0
  %3628 = vmatprep.subr.mxu0 0.0
  %3629 = vmatpush1.msra.mxu0 0.0
  %3630 = vmatprep.subr.mxu0 0.0
  %3631 = vmatpush1.msra.mxu0 0.0
  %3632 = vmatprep.subr.mxu0 0.0
  %3633 = vmatpush1.msra.mxu0 %v2790
  %3634 = vmatprep.subr.mxu0 0.0
  %3635 = vmatpush1.msra.mxu0 %v2789
  %3636 = vmatprep.subr.mxu0 0.0
  %3637 = vmatpush1.msra.mxu0 %v2788
  %3638 = vmatprep.subr.mxu0 0.0
  %3639 = vmatpush1.msra.mxu0 %v2787
  %3640 = vmatprep.subr.mxu0 0.0
  %3641 = vmatpush2.msra.mxu0 0.0
  %3642 = vmatprep.subr.mxu0 0.0
  %3643 = vmatpush2.msra.mxu0 0.0
  %3644 = vmatprep.subr.mxu0 0.0
  %3645 = vmatpush2.msra.mxu0 0.0
  %3646 = vmatprep.subr.mxu0 0.0
  %3647 = vmatpush2.msra.mxu0 0.0
  %3648 = vmatprep.subr.mxu0 0.0
  %3649 = vmatpush2.msra.mxu0 0.0
  %3650 = vmatprep.subr.mxu0 0.0
  %3651 = vmatpush2.msra.mxu0 0.0
  %3652 = vmatprep.subr.mxu0 0.0
  %3653 = vmatpush2.msra.mxu0 0.0
  %3654 = vmatprep.subr.mxu0 0.0
  %3655 = vmatpush2.msra.mxu0 0.0
  %3656 = vmatprep.subr.mxu0 0.0
  %3657 = vmatpush2.msra.mxu0 0.0
  %3658 = vmatprep.subr.mxu0 0.0
  %3659 = vmatpush2.msra.mxu0 0.0
  %3660 = vmatprep.subr.mxu0 0.0
  %3661 = vmatpush2.msra.mxu0 0.0
  %3662 = vmatprep.subr.mxu0 0.0
  %3663 = vmatpush2.msra.mxu0 0.0
  %3664 = vmatprep.subr.mxu0 0.0
  %3665 = vmatpush2.msra.mxu0 0.0
  %3666 = vmatprep.subr.mxu0 0.0
  %3667 = vmatpush2.msra.mxu0 0.0
  %3668 = vmatprep.subr.mxu0 0.0
  %3669 = vmatpush2.msra.mxu0 0.0
  %3670 = vmatprep.subr.mxu0 0.0
  %3671 = vmatpush2.msra.mxu0 0.0
  %3672 = vmatprep.mubr.f32.mxu0 0.0
  %3673 = vmatmul.mubr.f32.gmra.mxu0 %v3606
  %v3674 = vpop.f32.mrf.mxu0
  %v3675 = vadd.f32 0.0, %v3674
  %v3676 = vpop.f32.mrf.mxu0
  %3677 = vdwg.mxu0
  %v3678 = vadd.f32 %v3603, %v3675
  %v3679 = vxor.u32 %v3678, 2147483648
  %v3680 = vmul.f32 %v3679, 1.442695
  %v3681 = vpow.pop %v3680
  %v3682 = vadd.f32 %v3681, 1.0
  %v3683 = vrcp.pop %v3682
  %v3684 = vmul.f32 1.0, %v3683
  %v3685 = vtanh.pop %v3678
  %v3686 = vld [vmem:[#allocation7] sm:$0xff]
  %3688 = vrot.lane.b32.xlu0 %v3686, 32
  %v3689 = vpop.permute.xlu0 %3688
  %v3691 = vmul.f32 %v3684, %v3689
  %3693 = vrot.lane.b32.xlu0 %v3685, 64
  %v3694 = vpop.permute.xlu0 %3693
  %v3696 = vmul.f32 %v3684, %v3694
  %3698 = vrot.lane.b32.xlu0 %v3696, 32
  %v3699 = vpop.permute.xlu0 %3698
  %v3701 = vadd.f32 %v3691, %v3699
  %v3702 = vtanh.pop %v3701
  %3704 = vrot.lane.b32.xlu0 %v3702, 64
  %v3705 = vpop.permute.xlu0 %3704
  %v3707 = vmul.f32 %v3684, %v3705
  %3709 = vrot.lane.b32.xlu0 %v3707, 32
  %v3710 = vpop.permute.xlu0 %3709
  %3712 = vst.msk [vmem:[#allocation6] sm:$0xff] %vm332, %v3710
  %3714 = vrot.lane.b32.xlu0 %v3701, 96
  %v3715 = vpop.permute.xlu0 %3714
  %3717 = vst.msk [vmem:[#allocation7] sm:$0xff] %vm332, %v3715
  %3718 = vst.msk [vmem:[%s1279] sm:$0xff] %vm332, %v3710
  %v3719 = vld [vmem:[#allocation6] sm:$0xff]
  %s3720 = scalar_lea.vmem %s16, 16
  %3721 = vst.msk [vmem:[%s3720] sm:$0xff] %vm332, %v3719
  %v3722 = vld [vmem:[#allocation7] sm:$0xff]
  %s3723 = scalar_lea.vmem %s17, 16
  %3724 = vst.msk [vmem:[%s3723] sm:$0xff] %vm332, %v3722
  %3725 = vst.msk [vmem:[#allocation6] sm:$0xff] %vm332, 0.0
  %3726 = vst.msk [vmem:[#allocation7] sm:$0xff] %vm332, 0.0
  %v3727 = vld [vmem:[%s11] sm:$0xff]
  %v3728 = vld [vmem:[%s11 + $0x8] sm:$0xff]
  %v3729 = vld [vmem:[%s11 + $0x10] sm:$0xff]
  %v3730 = vld [vmem:[%s11 + $0x18] sm:$0xff]
  %v3731 = vld [vmem:[%s1291] sm:$0xff]
  %v3732 = vld [vmem:[#allocation6] sm:$0xff]
  %v3734 = vsel %vm332, %v3732, 0
  %3736 = vmatprep.subr.mxu0 0.0
  %3737 = vmatpush1.msra.mxu0 0.0
  %3738 = vmatprep.subr.mxu0 0.0
  %3739 = vmatpush1.msra.mxu0 0.0
  %3740 = vmatprep.subr.mxu0 0.0
  %3741 = vmatpush1.msra.mxu0 0.0
  %3742 = vmatprep.subr.mxu0 0.0
  %3743 = vmatpush1.msra.mxu0 0.0
  %3744 = vmatprep.subr.mxu0 0.0
  %3745 = vmatpush1.msra.mxu0 0.0
  %3746 = vmatprep.subr.mxu0 0.0
  %3747 = vmatpush1.msra.mxu0 0.0
  %3748 = vmatprep.subr.mxu0 0.0
  %3749 = vmatpush1.msra.mxu0 0.0
  %3750 = vmatprep.subr.mxu0 0.0
  %3751 = vmatpush1.msra.mxu0 0.0
  %3752 = vmatprep.subr.mxu0 0.0
  %3753 = vmatpush1.msra.mxu0 0.0
  %3754 = vmatprep.subr.mxu0 0.0
  %3755 = vmatpush1.msra.mxu0 0.0
  %3756 = vmatprep.subr.mxu0 0.0
  %3757 = vmatpush1.msra.mxu0 0.0
  %3758 = vmatprep.subr.mxu0 0.0
  %3759 = vmatpush1.msra.mxu0 0.0
  %3760 = vmatprep.subr.mxu0 0.0
  %3761 = vmatpush1.msra.mxu0 %v3730
  %3762 = vmatprep.subr.mxu0 0.0
  %3763 = vmatpush1.msra.mxu0 %v3729
  %3764 = vmatprep.subr.mxu0 0.0
  %3765 = vmatpush1.msra.mxu0 %v3728
  %3766 = vmatprep.subr.mxu0 0.0
  %3767 = vmatpush1.msra.mxu0 %v3727
  %3768 = vmatprep.subr.mxu0 0.0
  %3769 = vmatpush2.msra.mxu0 0.0
  %3770 = vmatprep.subr.mxu0 0.0
  %3771 = vmatpush2.msra.mxu0 0.0
  %3772 = vmatprep.subr.mxu0 0.0
  %3773 = vmatpush2.msra.mxu0 0.0
  %3774 = vmatprep.subr.mxu0 0.0
  %3775 = vmatpush2.msra.mxu0 0.0
  %3776 = vmatprep.subr.mxu0 0.0
  %3777 = vmatpush2.msra.mxu0 0.0
  %3778 = vmatprep.subr.mxu0 0.0
  %3779 = vmatpush2.msra.mxu0 0.0
  %3780 = vmatprep.subr.mxu0 0.0
  %3781 = vmatpush2.msra.mxu0 0.0
  %3782 = vmatprep.subr.mxu0 0.0
  %3783 = vmatpush2.msra.mxu0 0.0
  %3784 = vmatprep.subr.mxu0 0.0
  %3785 = vmatpush2.msra.mxu0 0.0
  %3786 = vmatprep.subr.mxu0 0.0
  %3787 = vmatpush2.msra.mxu0 0.0
  %3788 = vmatprep.subr.mxu0 0.0
  %3789 = vmatpush2.msra.mxu0 0.0
  %3790 = vmatprep.subr.mxu0 0.0
  %3791 = vmatpush2.msra.mxu0 0.0
  %3792 = vmatprep.subr.mxu0 0.0
  %3793 = vmatpush2.msra.mxu0 0.0
  %3794 = vmatprep.subr.mxu0 0.0
  %3795 = vmatpush2.msra.mxu0 0.0
  %3796 = vmatprep.subr.mxu0 0.0
  %3797 = vmatpush2.msra.mxu0 0.0
  %3798 = vmatprep.subr.mxu0 0.0
  %3799 = vmatpush2.msra.mxu0 0.0
  %3800 = vmatprep.mubr.f32.mxu0 0.0
  %3801 = vmatmul.mubr.f32.gmra.mxu0 %v3734
  %v3802 = vpop.f32.mrf.mxu0
  %v3803 = vadd.f32 0.0, %v3802
  %v3804 = vpop.f32.mrf.mxu0
  %3805 = vdwg.mxu0
  %v3806 = vadd.f32 %v3731, %v3803
  %v3807 = vxor.u32 %v3806, 2147483648
  %v3808 = vmul.f32 %v3807, 1.442695
  %v3809 = vpow.pop %v3808
  %v3810 = vadd.f32 %v3809, 1.0
  %v3811 = vrcp.pop %v3810
  %v3812 = vmul.f32 1.0, %v3811
  %v3813 = vtanh.pop %v3806
  %v3814 = vld [vmem:[#allocation7] sm:$0xff]
  %3816 = vrot.lane.b32.xlu0 %v3814, 32
  %v3817 = vpop.permute.xlu0 %3816
  %v3819 = vmul.f32 %v3812, %v3817
  %3821 = vrot.lane.b32.xlu0 %v3813, 64
  %v3822 = vpop.permute.xlu0 %3821
  %v3824 = vmul.f32 %v3812, %v3822
  %3826 = vrot.lane.b32.xlu0 %v3824, 32
  %v3827 = vpop.permute.xlu0 %3826
  %v3829 = vadd.f32 %v3819, %v3827
  %v3830 = vtanh.pop %v3829
  %3832 = vrot.lane.b32.xlu0 %v3830, 64
  %v3833 = vpop.permute.xlu0 %3832
  %v3835 = vmul.f32 %v3812, %v3833
  %3837 = vrot.lane.b32.xlu0 %v3835, 32
  %v3838 = vpop.permute.xlu0 %3837
  %3840 = vst.msk [vmem:[#allocation6] sm:$0xff] %vm332, %v3838
  %3842 = vrot.lane.b32.xlu0 %v3829, 96
  %v3843 = vpop.permute.xlu0 %3842
  %3845 = vst.msk [vmem:[#allocation7] sm:$0xff] %vm332, %v3843
  %3846 = vst.msk [vmem:[%s1407] sm:$0xff] %vm332, %v3838
  %v3847 = vld [vmem:[%s1409] sm:$0xff]
  %v3848 = vld [vmem:[#allocation6] sm:$0xff]
  %v3850 = vsel %vm332, %v3848, 0
  %3852 = vmatprep.subr.mxu0 0.0
  %3853 = vmatpush1.msra.mxu0 0.0
  %3854 = vmatprep.subr.mxu0 0.0
  %3855 = vmatpush1.msra.mxu0 0.0
  %3856 = vmatprep.subr.mxu0 0.0
  %3857 = vmatpush1.msra.mxu0 0.0
  %3858 = vmatprep.subr.mxu0 0.0
  %3859 = vmatpush1.msra.mxu0 0.0
  %3860 = vmatprep.subr.mxu0 0.0
  %3861 = vmatpush1.msra.mxu0 0.0
  %3862 = vmatprep.subr.mxu0 0.0
  %3863 = vmatpush1.msra.mxu0 0.0
  %3864 = vmatprep.subr.mxu0 0.0
  %3865 = vmatpush1.msra.mxu0 0.0
  %3866 = vmatprep.subr.mxu0 0.0
  %3867 = vmatpush1.msra.mxu0 0.0
  %3868 = vmatprep.subr.mxu0 0.0
  %3869 = vmatpush1.msra.mxu0 0.0
  %3870 = vmatprep.subr.mxu0 0.0
  %3871 = vmatpush1.msra.mxu0 0.0
  %3872 = vmatprep.subr.mxu0 0.0
  %3873 = vmatpush1.msra.mxu0 0.0
  %3874 = vmatprep.subr.mxu0 0.0
  %3875 = vmatpush1.msra.mxu0 0.0
  %3876 = vmatprep.subr.mxu0 0.0
  %3877 = vmatpush1.msra.mxu0 %v3730
  %3878 = vmatprep.subr.mxu0 0.0
  %3879 = vmatpush1.msra.mxu0 %v3729
  %3880 = vmatprep.subr.mxu0 0.0
  %3881 = vmatpush1.msra.mxu0 %v3728
  %3882 = vmatprep.subr.mxu0 0.0
  %3883 = vmatpush1.msra.mxu0 %v3727
  %3884 = vmatprep.subr.mxu0 0.0
  %3885 = vmatpush2.msra.mxu0 0.0
  %3886 = vmatprep.subr.mxu0 0.0
  %3887 = vmatpush2.msra.mxu0 0.0
  %3888 = vmatprep.subr.mxu0 0.0
  %3889 = vmatpush2.msra.mxu0 0.0
  %3890 = vmatprep.subr.mxu0 0.0
  %3891 = vmatpush2.msra.mxu0 0.0
  %3892 = vmatprep.subr.mxu0 0.0
  %3893 = vmatpush2.msra.mxu0 0.0
  %3894 = vmatprep.subr.mxu0 0.0
  %3895 = vmatpush2.msra.mxu0 0.0
  %3896 = vmatprep.subr.mxu0 0.0
  %3897 = vmatpush2.msra.mxu0 0.0
  %3898 = vmatprep.subr.mxu0 0.0
  %3899 = vmatpush2.msra.mxu0 0.0
  %3900 = vmatprep.subr.mxu0 0.0
  %3901 = vmatpush2.msra.mxu0 0.0
  %3902 = vmatprep.subr.mxu0 0.0
  %3903 = vmatpush2.msra.mxu0 0.0
  %3904 = vmatprep.subr.mxu0 0.0
  %3905 = vmatpush2.msra.mxu0 0.0
  %3906 = vmatprep.subr.mxu0 0.0
  %3907 = vmatpush2.msra.mxu0 0.0
  %3908 = vmatprep.subr.mxu0 0.0
  %3909 = vmatpush2.msra.mxu0 0.0
  %3910 = vmatprep.subr.mxu0 0.0
  %3911 = vmatpush2.msra.mxu0 0.0
  %3912 = vmatprep.subr.mxu0 0.0
  %3913 = vmatpush2.msra.mxu0 0.0
  %3914 = vmatprep.subr.mxu0 0.0
  %3915 = vmatpush2.msra.mxu0 0.0
  %3916 = vmatprep.mubr.f32.mxu0 0.0
  %3917 = vmatmul.mubr.f32.gmra.mxu0 %v3850
  %v3918 = vpop.f32.mrf.mxu0
  %v3919 = vadd.f32 0.0, %v3918
  %v3920 = vpop.f32.mrf.mxu0
  %3921 = vdwg.mxu0
  %v3922 = vadd.f32 %v3847, %v3919
  %v3923 = vxor.u32 %v3922, 2147483648
  %v3924 = vmul.f32 %v3923, 1.442695
  %v3925 = vpow.pop %v3924
  %v3926 = vadd.f32 %v3925, 1.0
  %v3927 = vrcp.pop %v3926
  %v3928 = vmul.f32 1.0, %v3927
  %v3929 = vtanh.pop %v3922
  %v3930 = vld [vmem:[#allocation7] sm:$0xff]
  %3932 = vrot.lane.b32.xlu0 %v3930, 32
  %v3933 = vpop.permute.xlu0 %3932
  %v3935 = vmul.f32 %v3928, %v3933
  %3937 = vrot.lane.b32.xlu0 %v3929, 64
  %v3938 = vpop.permute.xlu0 %3937
  %v3940 = vmul.f32 %v3928, %v3938
  %3942 = vrot.lane.b32.xlu0 %v3940, 32
  %v3943 = vpop.permute.xlu0 %3942
  %v3945 = vadd.f32 %v3935, %v3943
  %v3946 = vtanh.pop %v3945
  %3948 = vrot.lane.b32.xlu0 %v3946, 64
  %v3949 = vpop.permute.xlu0 %3948
  %v3951 = vmul.f32 %v3928, %v3949
  %3953 = vrot.lane.b32.xlu0 %v3951, 32
  %v3954 = vpop.permute.xlu0 %3953
  %3956 = vst.msk [vmem:[#allocation6] sm:$0xff] %vm332, %v3954
  %3958 = vrot.lane.b32.xlu0 %v3945, 96
  %v3959 = vpop.permute.xlu0 %3958
  %3961 = vst.msk [vmem:[#allocation7] sm:$0xff] %vm332, %v3959
  %3962 = vst.msk [vmem:[%s1525] sm:$0xff] %vm332, %v3954
  %v3963 = vld [vmem:[%s1527] sm:$0xff]
  %v3964 = vld [vmem:[#allocation6] sm:$0xff]
  %v3966 = vsel %vm332, %v3964, 0
  %3968 = vmatprep.subr.mxu0 0.0
  %3969 = vmatpush1.msra.mxu0 0.0
  %3970 = vmatprep.subr.mxu0 0.0
  %3971 = vmatpush1.msra.mxu0 0.0
  %3972 = vmatprep.subr.mxu0 0.0
  %3973 = vmatpush1.msra.mxu0 0.0
  %3974 = vmatprep.subr.mxu0 0.0
  %3975 = vmatpush1.msra.mxu0 0.0
  %3976 = vmatprep.subr.mxu0 0.0
  %3977 = vmatpush1.msra.mxu0 0.0
  %3978 = vmatprep.subr.mxu0 0.0
  %3979 = vmatpush1.msra.mxu0 0.0
  %3980 = vmatprep.subr.mxu0 0.0
  %3981 = vmatpush1.msra.mxu0 0.0
  %3982 = vmatprep.subr.mxu0 0.0
  %3983 = vmatpush1.msra.mxu0 0.0
  %3984 = vmatprep.subr.mxu0 0.0
  %3985 = vmatpush1.msra.mxu0 0.0
  %3986 = vmatprep.subr.mxu0 0.0
  %3987 = vmatpush1.msra.mxu0 0.0
  %3988 = vmatprep.subr.mxu0 0.0
  %3989 = vmatpush1.msra.mxu0 0.0
  %3990 = vmatprep.subr.mxu0 0.0
  %3991 = vmatpush1.msra.mxu0 0.0
  %3992 = vmatprep.subr.mxu0 0.0
  %3993 = vmatpush1.msra.mxu0 %v3730
  %3994 = vmatprep.subr.mxu0 0.0
  %3995 = vmatpush1.msra.mxu0 %v3729
  %3996 = vmatprep.subr.mxu0 0.0
  %3997 = vmatpush1.msra.mxu0 %v3728
  %3998 = vmatprep.subr.mxu0 0.0
  %3999 = vmatpush1.msra.mxu0 %v3727
  %4000 = vmatprep.subr.mxu0 0.0
  %4001 = vmatpush2.msra.mxu0 0.0
  %4002 = vmatprep.subr.mxu0 0.0
  %4003 = vmatpush2.msra.mxu0 0.0
  %4004 = vmatprep.subr.mxu0 0.0
  %4005 = vmatpush2.msra.mxu0 0.0
  %4006 = vmatprep.subr.mxu0 0.0
  %4007 = vmatpush2.msra.mxu0 0.0
  %4008 = vmatprep.subr.mxu0 0.0
  %4009 = vmatpush2.msra.mxu0 0.0
  %4010 = vmatprep.subr.mxu0 0.0
  %4011 = vmatpush2.msra.mxu0 0.0
  %4012 = vmatprep.subr.mxu0 0.0
  %4013 = vmatpush2.msra.mxu0 0.0
  %4014 = vmatprep.subr.mxu0 0.0
  %4015 = vmatpush2.msra.mxu0 0.0
  %4016 = vmatprep.subr.mxu0 0.0
  %4017 = vmatpush2.msra.mxu0 0.0
  %4018 = vmatprep.subr.mxu0 0.0
  %4019 = vmatpush2.msra.mxu0 0.0
  %4020 = vmatprep.subr.mxu0 0.0
  %4021 = vmatpush2.msra.mxu0 0.0
  %4022 = vmatprep.subr.mxu0 0.0
  %4023 = vmatpush2.msra.mxu0 0.0
  %4024 = vmatprep.subr.mxu0 0.0
  %4025 = vmatpush2.msra.mxu0 0.0
  %4026 = vmatprep.subr.mxu0 0.0
  %4027 = vmatpush2.msra.mxu0 0.0
  %4028 = vmatprep.subr.mxu0 0.0
  %4029 = vmatpush2.msra.mxu0 0.0
  %4030 = vmatprep.subr.mxu0 0.0
  %4031 = vmatpush2.msra.mxu0 0.0
  %4032 = vmatprep.mubr.f32.mxu0 0.0
  %4033 = vmatmul.mubr.f32.gmra.mxu0 %v3966
  %v4034 = vpop.f32.mrf.mxu0
  %v4035 = vadd.f32 0.0, %v4034
  %v4036 = vpop.f32.mrf.mxu0
  %4037 = vdwg.mxu0
  %v4038 = vadd.f32 %v3963, %v4035
  %v4039 = vxor.u32 %v4038, 2147483648
  %v4040 = vmul.f32 %v4039, 1.442695
  %v4041 = vpow.pop %v4040
  %v4042 = vadd.f32 %v4041, 1.0
  %v4043 = vrcp.pop %v4042
  %v4044 = vmul.f32 1.0, %v4043
  %v4045 = vtanh.pop %v4038
  %v4046 = vld [vmem:[#allocation7] sm:$0xff]
  %4048 = vrot.lane.b32.xlu0 %v4046, 32
  %v4049 = vpop.permute.xlu0 %4048
  %v4051 = vmul.f32 %v4044, %v4049
  %4053 = vrot.lane.b32.xlu0 %v4045, 64
  %v4054 = vpop.permute.xlu0 %4053
  %v4056 = vmul.f32 %v4044, %v4054
  %4058 = vrot.lane.b32.xlu0 %v4056, 32
  %v4059 = vpop.permute.xlu0 %4058
  %v4061 = vadd.f32 %v4051, %v4059
  %v4062 = vtanh.pop %v4061
  %4064 = vrot.lane.b32.xlu0 %v4062, 64
  %v4065 = vpop.permute.xlu0 %4064
  %v4067 = vmul.f32 %v4044, %v4065
  %4069 = vrot.lane.b32.xlu0 %v4067, 32
  %v4070 = vpop.permute.xlu0 %4069
  %4072 = vst.msk [vmem:[#allocation6] sm:$0xff] %vm332, %v4070
  %4074 = vrot.lane.b32.xlu0 %v4061, 96
  %v4075 = vpop.permute.xlu0 %4074
  %4077 = vst.msk [vmem:[#allocation7] sm:$0xff] %vm332, %v4075
  %4078 = vst.msk [vmem:[%s1643] sm:$0xff] %vm332, %v4070
  %v4079 = vld [vmem:[%s1645] sm:$0xff]
  %v4080 = vld [vmem:[#allocation6] sm:$0xff]
  %v4082 = vsel %vm332, %v4080, 0
  %4084 = vmatprep.subr.mxu0 0.0
  %4085 = vmatpush1.msra.mxu0 0.0
  %4086 = vmatprep.subr.mxu0 0.0
  %4087 = vmatpush1.msra.mxu0 0.0
  %4088 = vmatprep.subr.mxu0 0.0
  %4089 = vmatpush1.msra.mxu0 0.0
  %4090 = vmatprep.subr.mxu0 0.0
  %4091 = vmatpush1.msra.mxu0 0.0
  %4092 = vmatprep.subr.mxu0 0.0
  %4093 = vmatpush1.msra.mxu0 0.0
  %4094 = vmatprep.subr.mxu0 0.0
  %4095 = vmatpush1.msra.mxu0 0.0
  %4096 = vmatprep.subr.mxu0 0.0
  %4097 = vmatpush1.msra.mxu0 0.0
  %4098 = vmatprep.subr.mxu0 0.0
  %4099 = vmatpush1.msra.mxu0 0.0
  %4100 = vmatprep.subr.mxu0 0.0
  %4101 = vmatpush1.msra.mxu0 0.0
  %4102 = vmatprep.subr.mxu0 0.0
  %4103 = vmatpush1.msra.mxu0 0.0
  %4104 = vmatprep.subr.mxu0 0.0
  %4105 = vmatpush1.msra.mxu0 0.0
  %4106 = vmatprep.subr.mxu0 0.0
  %4107 = vmatpush1.msra.mxu0 0.0
  %4108 = vmatprep.subr.mxu0 0.0
  %4109 = vmatpush1.msra.mxu0 %v3730
  %4110 = vmatprep.subr.mxu0 0.0
  %4111 = vmatpush1.msra.mxu0 %v3729
  %4112 = vmatprep.subr.mxu0 0.0
  %4113 = vmatpush1.msra.mxu0 %v3728
  %4114 = vmatprep.subr.mxu0 0.0
  %4115 = vmatpush1.msra.mxu0 %v3727
  %4116 = vmatprep.subr.mxu0 0.0
  %4117 = vmatpush2.msra.mxu0 0.0
  %4118 = vmatprep.subr.mxu0 0.0
  %4119 = vmatpush2.msra.mxu0 0.0
  %4120 = vmatprep.subr.mxu0 0.0
  %4121 = vmatpush2.msra.mxu0 0.0
  %4122 = vmatprep.subr.mxu0 0.0
  %4123 = vmatpush2.msra.mxu0 0.0
  %4124 = vmatprep.subr.mxu0 0.0
  %4125 = vmatpush2.msra.mxu0 0.0
  %4126 = vmatprep.subr.mxu0 0.0
  %4127 = vmatpush2.msra.mxu0 0.0
  %4128 = vmatprep.subr.mxu0 0.0
  %4129 = vmatpush2.msra.mxu0 0.0
  %4130 = vmatprep.subr.mxu0 0.0
  %4131 = vmatpush2.msra.mxu0 0.0
  %4132 = vmatprep.subr.mxu0 0.0
  %4133 = vmatpush2.msra.mxu0 0.0
  %4134 = vmatprep.subr.mxu0 0.0
  %4135 = vmatpush2.msra.mxu0 0.0
  %4136 = vmatprep.subr.mxu0 0.0
  %4137 = vmatpush2.msra.mxu0 0.0
  %4138 = vmatprep.subr.mxu0 0.0
  %4139 = vmatpush2.msra.mxu0 0.0
  %4140 = vmatprep.subr.mxu0 0.0
  %4141 = vmatpush2.msra.mxu0 0.0
  %4142 = vmatprep.subr.mxu0 0.0
  %4143 = vmatpush2.msra.mxu0 0.0
  %4144 = vmatprep.subr.mxu0 0.0
  %4145 = vmatpush2.msra.mxu0 0.0
  %4146 = vmatprep.subr.mxu0 0.0
  %4147 = vmatpush2.msra.mxu0 0.0
  %4148 = vmatprep.mubr.f32.mxu0 0.0
  %4149 = vmatmul.mubr.f32.gmra.mxu0 %v4082
  %v4150 = vpop.f32.mrf.mxu0
  %v4151 = vadd.f32 0.0, %v4150
  %v4152 = vpop.f32.mrf.mxu0
  %4153 = vdwg.mxu0
  %v4154 = vadd.f32 %v4079, %v4151
  %v4155 = vxor.u32 %v4154, 2147483648
  %v4156 = vmul.f32 %v4155, 1.442695
  %v4157 = vpow.pop %v4156
  %v4158 = vadd.f32 %v4157, 1.0
  %v4159 = vrcp.pop %v4158
  %v4160 = vmul.f32 1.0, %v4159
  %v4161 = vtanh.pop %v4154
  %v4162 = vld [vmem:[#allocation7] sm:$0xff]
  %4164 = vrot.lane.b32.xlu0 %v4162, 32
  %v4165 = vpop.permute.xlu0 %4164
  %v4167 = vmul.f32 %v4160, %v4165
  %4169 = vrot.lane.b32.xlu0 %v4161, 64
  %v4170 = vpop.permute.xlu0 %4169
  %v4172 = vmul.f32 %v4160, %v4170
  %4174 = vrot.lane.b32.xlu0 %v4172, 32
  %v4175 = vpop.permute.xlu0 %4174
  %v4177 = vadd.f32 %v4167, %v4175
  %v4178 = vtanh.pop %v4177
  %4180 = vrot.lane.b32.xlu0 %v4178, 64
  %v4181 = vpop.permute.xlu0 %4180
  %v4183 = vmul.f32 %v4160, %v4181
  %4185 = vrot.lane.b32.xlu0 %v4183, 32
  %v4186 = vpop.permute.xlu0 %4185
  %4188 = vst.msk [vmem:[#allocation6] sm:$0xff] %vm332, %v4186
  %4190 = vrot.lane.b32.xlu0 %v4177, 96
  %v4191 = vpop.permute.xlu0 %4190
  %4193 = vst.msk [vmem:[#allocation7] sm:$0xff] %vm332, %v4191
  %4194 = vst.msk [vmem:[%s1761] sm:$0xff] %vm332, %v4186
  %v4195 = vld [vmem:[%s1763] sm:$0xff]
  %v4196 = vld [vmem:[#allocation6] sm:$0xff]
  %v4198 = vsel %vm332, %v4196, 0
  %4200 = vmatprep.subr.mxu0 0.0
  %4201 = vmatpush1.msra.mxu0 0.0
  %4202 = vmatprep.subr.mxu0 0.0
  %4203 = vmatpush1.msra.mxu0 0.0
  %4204 = vmatprep.subr.mxu0 0.0
  %4205 = vmatpush1.msra.mxu0 0.0
  %4206 = vmatprep.subr.mxu0 0.0
  %4207 = vmatpush1.msra.mxu0 0.0
  %4208 = vmatprep.subr.mxu0 0.0
  %4209 = vmatpush1.msra.mxu0 0.0
  %4210 = vmatprep.subr.mxu0 0.0
  %4211 = vmatpush1.msra.mxu0 0.0
  %4212 = vmatprep.subr.mxu0 0.0
  %4213 = vmatpush1.msra.mxu0 0.0
  %4214 = vmatprep.subr.mxu0 0.0
  %4215 = vmatpush1.msra.mxu0 0.0
  %4216 = vmatprep.subr.mxu0 0.0
  %4217 = vmatpush1.msra.mxu0 0.0
  %4218 = vmatprep.subr.mxu0 0.0
  %4219 = vmatpush1.msra.mxu0 0.0
  %4220 = vmatprep.subr.mxu0 0.0
  %4221 = vmatpush1.msra.mxu0 0.0
  %4222 = vmatprep.subr.mxu0 0.0
  %4223 = vmatpush1.msra.mxu0 0.0
  %4224 = vmatprep.subr.mxu0 0.0
  %4225 = vmatpush1.msra.mxu0 %v3730
  %4226 = vmatprep.subr.mxu0 0.0
  %4227 = vmatpush1.msra.mxu0 %v3729
  %4228 = vmatprep.subr.mxu0 0.0
  %4229 = vmatpush1.msra.mxu0 %v3728
  %4230 = vmatprep.subr.mxu0 0.0
  %4231 = vmatpush1.msra.mxu0 %v3727
  %4232 = vmatprep.subr.mxu0 0.0
  %4233 = vmatpush2.msra.mxu0 0.0
  %4234 = vmatprep.subr.mxu0 0.0
  %4235 = vmatpush2.msra.mxu0 0.0
  %4236 = vmatprep.subr.mxu0 0.0
  %4237 = vmatpush2.msra.mxu0 0.0
  %4238 = vmatprep.subr.mxu0 0.0
  %4239 = vmatpush2.msra.mxu0 0.0
  %4240 = vmatprep.subr.mxu0 0.0
  %4241 = vmatpush2.msra.mxu0 0.0
  %4242 = vmatprep.subr.mxu0 0.0
  %4243 = vmatpush2.msra.mxu0 0.0
  %4244 = vmatprep.subr.mxu0 0.0
  %4245 = vmatpush2.msra.mxu0 0.0
  %4246 = vmatprep.subr.mxu0 0.0
  %4247 = vmatpush2.msra.mxu0 0.0
  %4248 = vmatprep.subr.mxu0 0.0
  %4249 = vmatpush2.msra.mxu0 0.0
  %4250 = vmatprep.subr.mxu0 0.0
  %4251 = vmatpush2.msra.mxu0 0.0
  %4252 = vmatprep.subr.mxu0 0.0
  %4253 = vmatpush2.msra.mxu0 0.0
  %4254 = vmatprep.subr.mxu0 0.0
  %4255 = vmatpush2.msra.mxu0 0.0
  %4256 = vmatprep.subr.mxu0 0.0
  %4257 = vmatpush2.msra.mxu0 0.0
  %4258 = vmatprep.subr.mxu0 0.0
  %4259 = vmatpush2.msra.mxu0 0.0
  %4260 = vmatprep.subr.mxu0 0.0
  %4261 = vmatpush2.msra.mxu0 0.0
  %4262 = vmatprep.subr.mxu0 0.0
  %4263 = vmatpush2.msra.mxu0 0.0
  %4264 = vmatprep.mubr.f32.mxu0 0.0
  %4265 = vmatmul.mubr.f32.gmra.mxu0 %v4198
  %v4266 = vpop.f32.mrf.mxu0
  %v4267 = vadd.f32 0.0, %v4266
  %v4268 = vpop.f32.mrf.mxu0
  %4269 = vdwg.mxu0
  %v4270 = vadd.f32 %v4195, %v4267
  %v4271 = vxor.u32 %v4270, 2147483648
  %v4272 = vmul.f32 %v4271, 1.442695
  %v4273 = vpow.pop %v4272
  %v4274 = vadd.f32 %v4273, 1.0
  %v4275 = vrcp.pop %v4274
  %v4276 = vmul.f32 1.0, %v4275
  %v4277 = vtanh.pop %v4270
  %v4278 = vld [vmem:[#allocation7] sm:$0xff]
  %4280 = vrot.lane.b32.xlu0 %v4278, 32
  %v4281 = vpop.permute.xlu0 %4280
  %v4283 = vmul.f32 %v4276, %v4281
  %4285 = vrot.lane.b32.xlu0 %v4277, 64
  %v4286 = vpop.permute.xlu0 %4285
  %v4288 = vmul.f32 %v4276, %v4286
  %4290 = vrot.lane.b32.xlu0 %v4288, 32
  %v4291 = vpop.permute.xlu0 %4290
  %v4293 = vadd.f32 %v4283, %v4291
  %v4294 = vtanh.pop %v4293
  %4296 = vrot.lane.b32.xlu0 %v4294, 64
  %v4297 = vpop.permute.xlu0 %4296
  %v4299 = vmul.f32 %v4276, %v4297
  %4301 = vrot.lane.b32.xlu0 %v4299, 32
  %v4302 = vpop.permute.xlu0 %4301
  %4304 = vst.msk [vmem:[#allocation6] sm:$0xff] %vm332, %v4302
  %4306 = vrot.lane.b32.xlu0 %v4293, 96
  %v4307 = vpop.permute.xlu0 %4306
  %4309 = vst.msk [vmem:[#allocation7] sm:$0xff] %vm332, %v4307
  %4310 = vst.msk [vmem:[%s1879] sm:$0xff] %vm332, %v4302
  %v4311 = vld [vmem:[%s1881] sm:$0xff]
  %v4312 = vld [vmem:[#allocation6] sm:$0xff]
  %v4314 = vsel %vm332, %v4312, 0
  %4316 = vmatprep.subr.mxu0 0.0
  %4317 = vmatpush1.msra.mxu0 0.0
  %4318 = vmatprep.subr.mxu0 0.0
  %4319 = vmatpush1.msra.mxu0 0.0
  %4320 = vmatprep.subr.mxu0 0.0
  %4321 = vmatpush1.msra.mxu0 0.0
  %4322 = vmatprep.subr.mxu0 0.0
  %4323 = vmatpush1.msra.mxu0 0.0
  %4324 = vmatprep.subr.mxu0 0.0
  %4325 = vmatpush1.msra.mxu0 0.0
  %4326 = vmatprep.subr.mxu0 0.0
  %4327 = vmatpush1.msra.mxu0 0.0
  %4328 = vmatprep.subr.mxu0 0.0
  %4329 = vmatpush1.msra.mxu0 0.0
  %4330 = vmatprep.subr.mxu0 0.0
  %4331 = vmatpush1.msra.mxu0 0.0
  %4332 = vmatprep.subr.mxu0 0.0
  %4333 = vmatpush1.msra.mxu0 0.0
  %4334 = vmatprep.subr.mxu0 0.0
  %4335 = vmatpush1.msra.mxu0 0.0
  %4336 = vmatprep.subr.mxu0 0.0
  %4337 = vmatpush1.msra.mxu0 0.0
  %4338 = vmatprep.subr.mxu0 0.0
  %4339 = vmatpush1.msra.mxu0 0.0
  %4340 = vmatprep.subr.mxu0 0.0
  %4341 = vmatpush1.msra.mxu0 %v3730
  %4342 = vmatprep.subr.mxu0 0.0
  %4343 = vmatpush1.msra.mxu0 %v3729
  %4344 = vmatprep.subr.mxu0 0.0
  %4345 = vmatpush1.msra.mxu0 %v3728
  %4346 = vmatprep.subr.mxu0 0.0
  %4347 = vmatpush1.msra.mxu0 %v3727
  %4348 = vmatprep.subr.mxu0 0.0
  %4349 = vmatpush2.msra.mxu0 0.0
  %4350 = vmatprep.subr.mxu0 0.0
  %4351 = vmatpush2.msra.mxu0 0.0
  %4352 = vmatprep.subr.mxu0 0.0
  %4353 = vmatpush2.msra.mxu0 0.0
  %4354 = vmatprep.subr.mxu0 0.0
  %4355 = vmatpush2.msra.mxu0 0.0
  %4356 = vmatprep.subr.mxu0 0.0
  %4357 = vmatpush2.msra.mxu0 0.0
  %4358 = vmatprep.subr.mxu0 0.0
  %4359 = vmatpush2.msra.mxu0 0.0
  %4360 = vmatprep.subr.mxu0 0.0
  %4361 = vmatpush2.msra.mxu0 0.0
  %4362 = vmatprep.subr.mxu0 0.0
  %4363 = vmatpush2.msra.mxu0 0.0
  %4364 = vmatprep.subr.mxu0 0.0
  %4365 = vmatpush2.msra.mxu0 0.0
  %4366 = vmatprep.subr.mxu0 0.0
  %4367 = vmatpush2.msra.mxu0 0.0
  %4368 = vmatprep.subr.mxu0 0.0
  %4369 = vmatpush2.msra.mxu0 0.0
  %4370 = vmatprep.subr.mxu0 0.0
  %4371 = vmatpush2.msra.mxu0 0.0
  %4372 = vmatprep.subr.mxu0 0.0
  %4373 = vmatpush2.msra.mxu0 0.0
  %4374 = vmatprep.subr.mxu0 0.0
  %4375 = vmatpush2.msra.mxu0 0.0
  %4376 = vmatprep.subr.mxu0 0.0
  %4377 = vmatpush2.msra.mxu0 0.0
  %4378 = vmatprep.subr.mxu0 0.0
  %4379 = vmatpush2.msra.mxu0 0.0
  %4380 = vmatprep.mubr.f32.mxu0 0.0
  %4381 = vmatmul.mubr.f32.gmra.mxu0 %v4314
  %v4382 = vpop.f32.mrf.mxu0
  %v4383 = vadd.f32 0.0, %v4382
  %v4384 = vpop.f32.mrf.mxu0
  %4385 = vdwg.mxu0
  %v4386 = vadd.f32 %v4311, %v4383
  %v4387 = vxor.u32 %v4386, 2147483648
  %v4388 = vmul.f32 %v4387, 1.442695
  %v4389 = vpow.pop %v4388
  %v4390 = vadd.f32 %v4389, 1.0
  %v4391 = vrcp.pop %v4390
  %v4392 = vmul.f32 1.0, %v4391
  %v4393 = vtanh.pop %v4386
  %v4394 = vld [vmem:[#allocation7] sm:$0xff]
  %4396 = vrot.lane.b32.xlu0 %v4394, 32
  %v4397 = vpop.permute.xlu0 %4396
  %v4399 = vmul.f32 %v4392, %v4397
  %4401 = vrot.lane.b32.xlu0 %v4393, 64
  %v4402 = vpop.permute.xlu0 %4401
  %v4404 = vmul.f32 %v4392, %v4402
  %4406 = vrot.lane.b32.xlu0 %v4404, 32
  %v4407 = vpop.permute.xlu0 %4406
  %v4409 = vadd.f32 %v4399, %v4407
  %v4410 = vtanh.pop %v4409
  %4412 = vrot.lane.b32.xlu0 %v4410, 64
  %v4413 = vpop.permute.xlu0 %4412
  %v4415 = vmul.f32 %v4392, %v4413
  %4417 = vrot.lane.b32.xlu0 %v4415, 32
  %v4418 = vpop.permute.xlu0 %4417
  %4420 = vst.msk [vmem:[#allocation6] sm:$0xff] %vm332, %v4418
  %4422 = vrot.lane.b32.xlu0 %v4409, 96
  %v4423 = vpop.permute.xlu0 %4422
  %4425 = vst.msk [vmem:[#allocation7] sm:$0xff] %vm332, %v4423
  %4426 = vst.msk [vmem:[%s1997] sm:$0xff] %vm332, %v4418
  %v4427 = vld [vmem:[%s1999] sm:$0xff]
  %v4428 = vld [vmem:[#allocation6] sm:$0xff]
  %v4430 = vsel %vm332, %v4428, 0
  %4432 = vmatprep.subr.mxu0 0.0
  %4433 = vmatpush1.msra.mxu0 0.0
  %4434 = vmatprep.subr.mxu0 0.0
  %4435 = vmatpush1.msra.mxu0 0.0
  %4436 = vmatprep.subr.mxu0 0.0
  %4437 = vmatpush1.msra.mxu0 0.0
  %4438 = vmatprep.subr.mxu0 0.0
  %4439 = vmatpush1.msra.mxu0 0.0
  %4440 = vmatprep.subr.mxu0 0.0
  %4441 = vmatpush1.msra.mxu0 0.0
  %4442 = vmatprep.subr.mxu0 0.0
  %4443 = vmatpush1.msra.mxu0 0.0
  %4444 = vmatprep.subr.mxu0 0.0
  %4445 = vmatpush1.msra.mxu0 0.0
  %4446 = vmatprep.subr.mxu0 0.0
  %4447 = vmatpush1.msra.mxu0 0.0
  %4448 = vmatprep.subr.mxu0 0.0
  %4449 = vmatpush1.msra.mxu0 0.0
  %4450 = vmatprep.subr.mxu0 0.0
  %4451 = vmatpush1.msra.mxu0 0.0
  %4452 = vmatprep.subr.mxu0 0.0
  %4453 = vmatpush1.msra.mxu0 0.0
  %4454 = vmatprep.subr.mxu0 0.0
  %4455 = vmatpush1.msra.mxu0 0.0
  %4456 = vmatprep.subr.mxu0 0.0
  %4457 = vmatpush1.msra.mxu0 %v3730
  %4458 = vmatprep.subr.mxu0 0.0
  %4459 = vmatpush1.msra.mxu0 %v3729
  %4460 = vmatprep.subr.mxu0 0.0
  %4461 = vmatpush1.msra.mxu0 %v3728
  %4462 = vmatprep.subr.mxu0 0.0
  %4463 = vmatpush1.msra.mxu0 %v3727
  %4464 = vmatprep.subr.mxu0 0.0
  %4465 = vmatpush2.msra.mxu0 0.0
  %4466 = vmatprep.subr.mxu0 0.0
  %4467 = vmatpush2.msra.mxu0 0.0
  %4468 = vmatprep.subr.mxu0 0.0
  %4469 = vmatpush2.msra.mxu0 0.0
  %4470 = vmatprep.subr.mxu0 0.0
  %4471 = vmatpush2.msra.mxu0 0.0
  %4472 = vmatprep.subr.mxu0 0.0
  %4473 = vmatpush2.msra.mxu0 0.0
  %4474 = vmatprep.subr.mxu0 0.0
  %4475 = vmatpush2.msra.mxu0 0.0
  %4476 = vmatprep.subr.mxu0 0.0
  %4477 = vmatpush2.msra.mxu0 0.0
  %4478 = vmatprep.subr.mxu0 0.0
  %4479 = vmatpush2.msra.mxu0 0.0
  %4480 = vmatprep.subr.mxu0 0.0
  %4481 = vmatpush2.msra.mxu0 0.0
  %4482 = vmatprep.subr.mxu0 0.0
  %4483 = vmatpush2.msra.mxu0 0.0
  %4484 = vmatprep.subr.mxu0 0.0
  %4485 = vmatpush2.msra.mxu0 0.0
  %4486 = vmatprep.subr.mxu0 0.0
  %4487 = vmatpush2.msra.mxu0 0.0
  %4488 = vmatprep.subr.mxu0 0.0
  %4489 = vmatpush2.msra.mxu0 0.0
  %4490 = vmatprep.subr.mxu0 0.0
  %4491 = vmatpush2.msra.mxu0 0.0
  %4492 = vmatprep.subr.mxu0 0.0
  %4493 = vmatpush2.msra.mxu0 0.0
  %4494 = vmatprep.subr.mxu0 0.0
  %4495 = vmatpush2.msra.mxu0 0.0
  %4496 = vmatprep.mubr.f32.mxu0 0.0
  %4497 = vmatmul.mubr.f32.gmra.mxu0 %v4430
  %v4498 = vpop.f32.mrf.mxu0
  %v4499 = vadd.f32 0.0, %v4498
  %v4500 = vpop.f32.mrf.mxu0
  %4501 = vdwg.mxu0
  %v4502 = vadd.f32 %v4427, %v4499
  %v4503 = vxor.u32 %v4502, 2147483648
  %v4504 = vmul.f32 %v4503, 1.442695
  %v4505 = vpow.pop %v4504
  %v4506 = vadd.f32 %v4505, 1.0
  %v4507 = vrcp.pop %v4506
  %v4508 = vmul.f32 1.0, %v4507
  %v4509 = vtanh.pop %v4502
  %v4510 = vld [vmem:[#allocation7] sm:$0xff]
  %4512 = vrot.lane.b32.xlu0 %v4510, 32
  %v4513 = vpop.permute.xlu0 %4512
  %v4515 = vmul.f32 %v4508, %v4513
  %4517 = vrot.lane.b32.xlu0 %v4509, 64
  %v4518 = vpop.permute.xlu0 %4517
  %v4520 = vmul.f32 %v4508, %v4518
  %4522 = vrot.lane.b32.xlu0 %v4520, 32
  %v4523 = vpop.permute.xlu0 %4522
  %v4525 = vadd.f32 %v4515, %v4523
  %v4526 = vtanh.pop %v4525
  %4528 = vrot.lane.b32.xlu0 %v4526, 64
  %v4529 = vpop.permute.xlu0 %4528
  %v4531 = vmul.f32 %v4508, %v4529
  %4533 = vrot.lane.b32.xlu0 %v4531, 32
  %v4534 = vpop.permute.xlu0 %4533
  %4536 = vst.msk [vmem:[#allocation6] sm:$0xff] %vm332, %v4534
  %4538 = vrot.lane.b32.xlu0 %v4525, 96
  %v4539 = vpop.permute.xlu0 %4538
  %4541 = vst.msk [vmem:[#allocation7] sm:$0xff] %vm332, %v4539
  %4542 = vst.msk [vmem:[%s2115] sm:$0xff] %vm332, %v4534
  %v4543 = vld [vmem:[#allocation3] sm:$0xff]
  %v4544 = vld [vmem:[#allocation6] sm:$0xff]
  %v4546 = vsel %vm332, %v4544, 0
  %4548 = vmatprep.subr.mxu0 0.0
  %4549 = vmatpush1.msra.mxu0 0.0
  %4550 = vmatprep.subr.mxu0 0.0
  %4551 = vmatpush1.msra.mxu0 0.0
  %4552 = vmatprep.subr.mxu0 0.0
  %4553 = vmatpush1.msra.mxu0 0.0
  %4554 = vmatprep.subr.mxu0 0.0
  %4555 = vmatpush1.msra.mxu0 0.0
  %4556 = vmatprep.subr.mxu0 0.0
  %4557 = vmatpush1.msra.mxu0 0.0
  %4558 = vmatprep.subr.mxu0 0.0
  %4559 = vmatpush1.msra.mxu0 0.0
  %4560 = vmatprep.subr.mxu0 0.0
  %4561 = vmatpush1.msra.mxu0 0.0
  %4562 = vmatprep.subr.mxu0 0.0
  %4563 = vmatpush1.msra.mxu0 0.0
  %4564 = vmatprep.subr.mxu0 0.0
  %4565 = vmatpush1.msra.mxu0 0.0
  %4566 = vmatprep.subr.mxu0 0.0
  %4567 = vmatpush1.msra.mxu0 0.0
  %4568 = vmatprep.subr.mxu0 0.0
  %4569 = vmatpush1.msra.mxu0 0.0
  %4570 = vmatprep.subr.mxu0 0.0
  %4571 = vmatpush1.msra.mxu0 0.0
  %4572 = vmatprep.subr.mxu0 0.0
  %4573 = vmatpush1.msra.mxu0 %v3730
  %4574 = vmatprep.subr.mxu0 0.0
  %4575 = vmatpush1.msra.mxu0 %v3729
  %4576 = vmatprep.subr.mxu0 0.0
  %4577 = vmatpush1.msra.mxu0 %v3728
  %4578 = vmatprep.subr.mxu0 0.0
  %4579 = vmatpush1.msra.mxu0 %v3727
  %4580 = vmatprep.subr.mxu0 0.0
  %4581 = vmatpush2.msra.mxu0 0.0
  %4582 = vmatprep.subr.mxu0 0.0
  %4583 = vmatpush2.msra.mxu0 0.0
  %4584 = vmatprep.subr.mxu0 0.0
  %4585 = vmatpush2.msra.mxu0 0.0
  %4586 = vmatprep.subr.mxu0 0.0
  %4587 = vmatpush2.msra.mxu0 0.0
  %4588 = vmatprep.subr.mxu0 0.0
  %4589 = vmatpush2.msra.mxu0 0.0
  %4590 = vmatprep.subr.mxu0 0.0
  %4591 = vmatpush2.msra.mxu0 0.0
  %4592 = vmatprep.subr.mxu0 0.0
  %4593 = vmatpush2.msra.mxu0 0.0
  %4594 = vmatprep.subr.mxu0 0.0
  %4595 = vmatpush2.msra.mxu0 0.0
  %4596 = vmatprep.subr.mxu0 0.0
  %4597 = vmatpush2.msra.mxu0 0.0
  %4598 = vmatprep.subr.mxu0 0.0
  %4599 = vmatpush2.msra.mxu0 0.0
  %4600 = vmatprep.subr.mxu0 0.0
  %4601 = vmatpush2.msra.mxu0 0.0
  %4602 = vmatprep.subr.mxu0 0.0
  %4603 = vmatpush2.msra.mxu0 0.0
  %4604 = vmatprep.subr.mxu0 0.0
  %4605 = vmatpush2.msra.mxu0 0.0
  %4606 = vmatprep.subr.mxu0 0.0
  %4607 = vmatpush2.msra.mxu0 0.0
  %4608 = vmatprep.subr.mxu0 0.0
  %4609 = vmatpush2.msra.mxu0 0.0
  %4610 = vmatprep.subr.mxu0 0.0
  %4611 = vmatpush2.msra.mxu0 0.0
  %4612 = vmatprep.mubr.f32.mxu0 0.0
  %4613 = vmatmul.mubr.f32.gmra.mxu0 %v4546
  %v4614 = vpop.f32.mrf.mxu0
  %v4615 = vadd.f32 0.0, %v4614
  %v4616 = vpop.f32.mrf.mxu0
  %4617 = vdwg.mxu0
  %v4618 = vadd.f32 %v4543, %v4615
  %v4619 = vxor.u32 %v4618, 2147483648
  %v4620 = vmul.f32 %v4619, 1.442695
  %v4621 = vpow.pop %v4620
  %v4622 = vadd.f32 %v4621, 1.0
  %v4623 = vrcp.pop %v4622
  %v4624 = vmul.f32 1.0, %v4623
  %v4625 = vtanh.pop %v4618
  %v4626 = vld [vmem:[#allocation7] sm:$0xff]
  %4628 = vrot.lane.b32.xlu0 %v4626, 32
  %v4629 = vpop.permute.xlu0 %4628
  %v4631 = vmul.f32 %v4624, %v4629
  %4633 = vrot.lane.b32.xlu0 %v4625, 64
  %v4634 = vpop.permute.xlu0 %4633
  %v4636 = vmul.f32 %v4624, %v4634
  %4638 = vrot.lane.b32.xlu0 %v4636, 32
  %v4639 = vpop.permute.xlu0 %4638
  %v4641 = vadd.f32 %v4631, %v4639
  %v4642 = vtanh.pop %v4641
  %4644 = vrot.lane.b32.xlu0 %v4642, 64
  %v4645 = vpop.permute.xlu0 %4644
  %v4647 = vmul.f32 %v4624, %v4645
  %4649 = vrot.lane.b32.xlu0 %v4647, 32
  %v4650 = vpop.permute.xlu0 %4649
  %4652 = vst.msk [vmem:[#allocation6] sm:$0xff] %vm332, %v4650
  %4654 = vrot.lane.b32.xlu0 %v4641, 96
  %v4655 = vpop.permute.xlu0 %4654
  %4657 = vst.msk [vmem:[#allocation7] sm:$0xff] %vm332, %v4655
  %4658 = vst.msk [vmem:[#allocation5] sm:$0xff] %vm332, %v4650
  %v4659 = vld [vmem:[#allocation6] sm:$0xff]
  %s4660 = scalar_lea.vmem %s16, 24
  %4661 = vst.msk [vmem:[%s4660] sm:$0xff] %vm332, %v4659
  %v4662 = vld [vmem:[#allocation7] sm:$0xff]
  %s4663 = scalar_lea.vmem %s17, 24
  %4664 = vst.msk [vmem:[%s4663] sm:$0xff] %vm332, %v4662
  %v4665 = vld [vmem:[%s13] sm:$0x1]
  %v4666 = vld [vmem:[#allocation4] sm:$0xff]
  %v4667 = vld [vmem:[#allocation4 + $0x8] sm:$0xff]
  %v4668 = vld [vmem:[#allocation4 + $0x10] sm:$0xff]
  %v4669 = vld [vmem:[#allocation4 + $0x18] sm:$0xff]
  %v4670 = vld [vmem:[#allocation4 + $0x20] sm:$0xff]
  %v4671 = vld [vmem:[#allocation4 + $0x28] sm:$0xff]
  %v4672 = vld [vmem:[#allocation4 + $0x30] sm:$0xff]
  %v4673 = vld [vmem:[#allocation4 + $0x38] sm:$0xff]
  %v4675 = vlaneseq
  %v4676 = vshrl.u32 %v4675, 7
  %v4677 = vsub.s32 0, %v4676
  %v4678 = vrot.slane %v4665, %v4677
  %v4680 = vmul.f32 %v4666, %v4678
  %v4681 = vmul.f32 %v4667, %v4678
  %v4682 = vmul.f32 %v4668, %v4678
  %v4683 = vmul.f32 %v4669, %v4678
  %v4684 = vmul.f32 %v4670, %v4678
  %v4685 = vmul.f32 %v4671, %v4678
  %v4686 = vmul.f32 %v4672, %v4678
  %v4687 = vmul.f32 %v4673, %v4678
  %v4688 = vsel %vm332, %v4680, 0.0
  %4689 = vadd.xlane.f32.xlu0 %v4688
  %v4690 = vpop.xlane.xlu0 %4689
  %v4691 = vsel %vm332, %v4681, 0.0
  %4692 = vadd.xlane.f32.xlu0 %v4691
  %v4693 = vpop.xlane.xlu0 %4692
  %v4694 = vsel %vm332, %v4682, 0.0
  %4695 = vadd.xlane.f32.xlu0 %v4694
  %v4696 = vpop.xlane.xlu0 %4695
  %v4697 = vsel %vm332, %v4683, 0.0
  %4698 = vadd.xlane.f32.xlu0 %v4697
  %v4699 = vpop.xlane.xlu0 %4698
  %v4700 = vsel %vm332, %v4684, 0.0
  %4701 = vadd.xlane.f32.xlu0 %v4700
  %v4702 = vpop.xlane.xlu0 %4701
  %v4703 = vsel %vm332, %v4685, 0.0
  %4704 = vadd.xlane.f32.xlu0 %v4703
  %v4705 = vpop.xlane.xlu0 %4704
  %v4706 = vsel %vm332, %v4686, 0.0
  %4707 = vadd.xlane.f32.xlu0 %v4706
  %v4708 = vpop.xlane.xlu0 %4707
  %v4709 = vsel %vm332, %v4687, 0.0
  %4710 = vadd.xlane.f32.xlu0 %v4709
  %v4711 = vpop.xlane.xlu0 %4710
  %v4712 = vld [vmem:[#allocation5] sm:$0xff]
  %v4713 = vld [vmem:[#allocation5 + $0x8] sm:$0xff]
  %v4714 = vld [vmem:[#allocation5 + $0x10] sm:$0xff]
  %v4715 = vld [vmem:[#allocation5 + $0x18] sm:$0xff]
  %v4716 = vld [vmem:[#allocation5 + $0x20] sm:$0xff]
  %v4717 = vld [vmem:[#allocation5 + $0x28] sm:$0xff]
  %v4718 = vld [vmem:[#allocation5 + $0x30] sm:$0xff]
  %v4719 = vld [vmem:[#allocation5 + $0x38] sm:$0xff]
  %4720 = vrot.lane.b32.xlu0 %v4678, 96
  %v4721 = vpop.permute.xlu0 %4720
  %v4723 = vmul.f32 %v4712, %v4721
  %v4724 = vmul.f32 %v4713, %v4721
  %v4725 = vmul.f32 %v4714, %v4721
  %v4726 = vmul.f32 %v4715, %v4721
  %v4727 = vmul.f32 %v4716, %v4721
  %v4728 = vmul.f32 %v4717, %v4721
  %v4729 = vmul.f32 %v4718, %v4721
  %v4730 = vmul.f32 %v4719, %v4721
  %v4731 = vsel %vm332, %v4723, 0.0
  %4732 = vadd.xlane.f32.xlu0 %v4731
  %v4733 = vpop.xlane.xlu0 %4732
  %v4734 = vsel %vm332, %v4724, 0.0
  %4735 = vadd.xlane.f32.xlu0 %v4734
  %v4736 = vpop.xlane.xlu0 %4735
  %v4737 = vsel %vm332, %v4725, 0.0
  %4738 = vadd.xlane.f32.xlu0 %v4737
  %v4739 = vpop.xlane.xlu0 %4738
  %v4740 = vsel %vm332, %v4726, 0.0
  %4741 = vadd.xlane.f32.xlu0 %v4740
  %v4742 = vpop.xlane.xlu0 %4741
  %v4743 = vsel %vm332, %v4727, 0.0
  %4744 = vadd.xlane.f32.xlu0 %v4743
  %v4745 = vpop.xlane.xlu0 %4744
  %v4746 = vsel %vm332, %v4728, 0.0
  %4747 = vadd.xlane.f32.xlu0 %v4746
  %v4748 = vpop.xlane.xlu0 %4747
  %v4749 = vsel %vm332, %v4729, 0.0
  %4750 = vadd.xlane.f32.xlu0 %v4749
  %v4751 = vpop.xlane.xlu0 %4750
  %v4752 = vsel %vm332, %v4730, 0.0
  %4753 = vadd.xlane.f32.xlu0 %v4752
  %v4754 = vpop.xlane.xlu0 %4753
  %v4755 = vadd.f32 %v4690, %v4733
  %v4756 = vadd.f32 %v4693, %v4736
  %v4757 = vadd.f32 %v4696, %v4739
  %v4758 = vadd.f32 %v4699, %v4742
  %v4759 = vadd.f32 %v4702, %v4745
  %v4760 = vadd.f32 %v4705, %v4748
  %v4761 = vadd.f32 %v4708, %v4751
  %v4762 = vadd.f32 %v4711, %v4754
  %v4763 = vld [vmem:[#allocation8] sm:$0x1]
  %s4764 = vtos %v4763
  %v4765 = vstv %s4764
  %v4766 = vadd.f32 %v4755, %v4765
  %v4767 = vadd.f32 %v4756, %v4765
  %v4768 = vadd.f32 %v4757, %v4765
  %v4769 = vadd.f32 %v4758, %v4765
  %v4770 = vadd.f32 %v4759, %v4765
  %v4771 = vadd.f32 %v4760, %v4765
  %v4772 = vadd.f32 %v4761, %v4765
  %v4773 = vadd.f32 %v4762, %v4765
  %v4782 = vlaneseq
  %v4783 = vand.u32 %v4782, 127
  %v4784 = vlaneseq
  %v4785 = vshrl.u32 %v4784, 7
  %v4786 = vsub.s32 %v4783, %v4785
  %v4787 = vrot.slane %v4766, %v4786
  %v4788 = vadd.s32 %v4783, 4294967288
  %v4789 = vlaneseq
  %v4790 = vshrl.u32 %v4789, 7
  %v4791 = vsub.s32 %v4788, %v4790
  %v4792 = vrot.slane %v4767, %v4791
  %vm4793 = vcmask 130112
  %v4794 = vsel %vm4793, %v4792, %v4787
  %v4795 = vadd.s32 %v4783, 4294967280
  %v4796 = vlaneseq
  %v4797 = vshrl.u32 %v4796, 7
  %v4798 = vsub.s32 %v4795, %v4797
  %v4799 = vrot.slane %v4768, %v4798
  %vm4800 = vcmask 195712
  %v4801 = vsel %vm4800, %v4799, %v4794
  %v4802 = vadd.s32 %v4783, 4294967272
  %v4803 = vlaneseq
  %v4804 = vshrl.u32 %v4803, 7
  %v4805 = vsub.s32 %v4802, %v4804
  %v4806 = vrot.slane %v4769, %v4805
  %vm4807 = vcmask 261312
  %v4808 = vsel %vm4807, %v4806, %v4801
  %v4809 = vadd.s32 %v4783, 4294967264
  %v4810 = vlaneseq
  %v4811 = vshrl.u32 %v4810, 7
  %v4812 = vsub.s32 %v4809, %v4811
  %v4813 = vrot.slane %v4770, %v4812
  %vm4814 = vcmask 326912
  %v4815 = vsel %vm4814, %v4813, %v4808
  %v4816 = vadd.s32 %v4783, 4294967256
  %v4817 = vlaneseq
  %v4818 = vshrl.u32 %v4817, 7
  %v4819 = vsub.s32 %v4816, %v4818
  %v4820 = vrot.slane %v4771, %v4819
  %vm4821 = vcmask 392512
  %v4822 = vsel %vm4821, %v4820, %v4815
  %v4823 = vadd.s32 %v4783, 4294967248
  %v4824 = vlaneseq
  %v4825 = vshrl.u32 %v4824, 7
  %v4826 = vsub.s32 %v4823, %v4825
  %v4827 = vrot.slane %v4772, %v4826
  %vm4828 = vcmask 458112
  %v4829 = vsel %vm4828, %v4827, %v4822
  %v4830 = vadd.s32 %v4783, 4294967240
  %v4831 = vlaneseq
  %v4832 = vshrl.u32 %v4831, 7
  %v4833 = vsub.s32 %v4830, %v4832
  %v4834 = vrot.slane %v4773, %v4833
  %vm4835 = vcmask 523712
  %v4836 = vsel %vm4835, %v4834, %v4829
  %vm4838 = vcmask 516096
  %4839 = vst.msk [vmem:[%s15] sm:$0x1] %vm4838, %v4836
  // Predicated region
  $region62: #{model_forward.1} parent=0 // pred_check
    _
  $region63: #{model_forward.1} parent=0 // pred_check_branch
    %4841 = sbr.rel (0) target = $region65
  $region64: #{model_forward.1} parent=0 // pred_region
    _
  $region65: #{model_forward.1} parent=0 // pred_fallthru
    _
  // Predicated region
  $region66: #{model_forward.1} parent=0 // pred_check
    _
  $region67: #{model_forward.1} parent=0 // pred_check_branch
    %4843 = sbr.rel (0) target = $region69
  $region68: #{model_forward.1} parent=0 // pred_region
    _
  $region69: #{model_forward.1} parent=0 // pred_fallthru
    _
  // Predicated region
  $region70: #{model_forward.1} parent=0 // pred_check
    _
  $region71: #{model_forward.1} parent=0 // pred_check_branch
    %4845 = sbr.rel (0) target = $region73
  $region72: #{model_forward.1} parent=0 // pred_region
    _
  $region73: #{model_forward.1} parent=0 // pred_fallthru
    _
  // Predicated region
  $region74: #{model_forward.1} parent=0 // pred_check
    _
  $region75: #{model_forward.1} parent=0 // pred_check_branch
    %4847 = sbr.rel (0) target = $region77
  $region76: #{model_forward.1} parent=0 // pred_region
    _
  $region77: #{model_forward.1} parent=0 // pred_fallthru
    _
  // Predicated region
  $region78: #{model_forward.1} parent=0 // pred_check
    _
  $region79: #{model_forward.1} parent=0 // pred_check_branch
    %4849 = sbr.rel (0) target = $region81
  $region80: #{model_forward.1} parent=0 // pred_region
    _
  $region81: #{model_forward.1} parent=0 // pred_fallthru
    _
  // Predicated region
  $region82: #{model_forward.1} parent=0 // pred_check
    _
  $region83: #{model_forward.1} parent=0 // pred_check_branch
    %4851 = sbr.rel (0) target = $region85
  $region84: #{model_forward.1} parent=0 // pred_region
    _
  $region85: #{model_forward.1} parent=0 // pred_fallthru
    _

</llo_original>
